<compile_context>
chip_gen: v6e
topology: v6e:2x2x1
jax: 0.10.0
libtpu: 0.0.40
codegen_flags: <defaults>
</compile_context>

<pallas_src>
import jax
import jax.numpy as jnp
import numpy as np
from jax.experimental import pallas as pl
from jax.experimental.pallas import tpu as pltpu

N_VERT = 35709                  # fixed by the module's reshape(35709, 3)
N_FLAT = N_VERT * 3             # 107127
K_ID, K_EX, K_TEX = 16, 8, 16   # small synthetic coefficient dims
N_FACES = 4096                  # small synthetic triangle count

NPAD = 107520                   # multiple of 128 covering N_FLAT
TILE_N = 26880                  # 210 * 128 ; grid = NPAD // TILE_N = 4 (even for v7x)

K_SHAPE = K_ID + K_EX + 1       # 25 rows: idBase ++ exBase ++ meanshape
K_TEXF = K_TEX + 1              # 17 rows: texBase ++ meantex

assert NPAD % 128 == 0 and NPAD >= N_FLAT
assert NPAD % TILE_N == 0 and TILE_N % 128 == 0


def _bfm_kernel(sc_ref, tc_ref, sb_ref, tb_ref, out_ref):
    # out row 0: faceshape  = sum_k shapeBasis[k,:] * shape_coeff[k]  (mean folded, coeff=1)
    # out row 1: float_tex  = sum_k texBasis[k,:]   * tex_coeff[k]    (mean and /255 folded)
    out_ref[0:1, :] = jnp.sum(sb_ref[...] * sc_ref[...], axis=0, keepdims=True)
    out_ref[1:2, :] = jnp.sum(tb_ref[...] * tc_ref[...], axis=0, keepdims=True)


def prepare_bfm_buffers(idBase, exBase, meanshape, texBase, meantex, tri):
    """One-time (module-__init__-equivalent) prep.
      idBase (K_ID, N_FLAT), exBase (K_EX, N_FLAT), texBase (K_TEX, N_FLAT),
      meanshape (N_FLAT,), meantex (N_FLAT,)  -- all float32; tri (N_FACES, 3) int32.
    Pads the flattened vertex axis to NPAD, concatenates the means as extra
    basis rows, and precomputes faces = (tri - 1)[None].
    Returns (shapeBasis (K_SHAPE, NPAD), texBasis (K_TEXF, NPAD), faces (1, N_FACES, 3))."""
    pad = NPAD - N_FLAT
    shape_basis = jnp.concatenate(
        [idBase, exBase, meanshape.reshape(1, N_FLAT)], axis=0)
    tex_basis = jnp.concatenate(
        [texBase, meantex.reshape(1, N_FLAT)], axis=0)
    shape_basis = jnp.pad(shape_basis, ((0, 0), (0, pad)))
    tex_basis = jnp.pad(tex_basis, ((0, 0), (0, pad)))
    faces = (tri - 1)[None, :, :]          # hoisted out of the forward pass
    return shape_basis, tex_basis, faces


def compute_bfm_forward(id_coeff, ex_coeff, tex_coeff, shape_basis, tex_basis, faces):
    """Forward pass matching the PyTorch module.
       id_coeff (K_ID,), ex_coeff (K_EX,), tex_coeff (K_TEX,) float32
       shape_basis (K_SHAPE, NPAD), tex_basis (K_TEXF, NPAD) float32
       faces (1, N_FACES, 3) int32 (precomputed tri - 1)
       Returns (shape, float_texture, faces):
         (1, 35709, 3) f32, (1, 35709, 3) f32, (1, N_FACES, 3) i32"""
    one = jnp.ones((1,), jnp.float32)
    shape_coeff = jnp.concatenate([id_coeff, ex_coeff, one]).reshape(K_SHAPE, 1)
    tex_coeff_full = (jnp.concatenate([tex_coeff, one]) * (1.0 / 255.0)).reshape(K_TEXF, 1)

    grid = (NPAD // TILE_N,)
    coeff_spec = lambda k: pl.BlockSpec((k, 1), lambda j: (0, 0))
    base_spec = lambda k: pl.BlockSpec((k, TILE_N), lambda j: (0, j))
    out_spec = pl.BlockSpec((2, TILE_N), lambda j: (0, j))

    # Advisory cost hint: reads (25+17)*NPAD f32 + writes 2*NPAD f32 ≈ 18.9 MB,
    # ~2 flops per read element, no transcendentals.
    cost = pl.CostEstimate(
        flops=2 * (K_SHAPE + K_TEXF) * NPAD,
        transcendentals=0,
        bytes_accessed=(K_SHAPE + K_TEXF + 2) * NPAD * 4,
    )

    merged = pl.pallas_call(
        _bfm_kernel,
        out_shape=jax.ShapeDtypeStruct((2, NPAD), jnp.float32),
        grid=grid,
        in_specs=[coeff_spec(K_SHAPE), coeff_spec(K_TEXF),
                  base_spec(K_SHAPE), base_spec(K_TEXF)],
        out_specs=out_spec,
        compiler_params=pltpu.CompilerParams(
            dimension_semantics=("parallel",)),
        cost_estimate=cost,
    )(shape_coeff, tex_coeff_full, shape_basis, tex_basis)

    # Epilogue reshape to the module's (1, 35709, 3) contract (plain XLA).
    shape = merged[0, :N_FLAT].reshape(N_VERT, 3)[None, :, :]          # unsqueeze(0)
    float_texture = merged[1, :N_FLAT].reshape(N_VERT, 3)[None, :, :]
    return shape, float_texture, faces


if __name__ == "__main__":
    key = jax.random.PRNGKey(0)
    ks = jax.random.split(key, 9)

    # Deterministic synthetic BFM "parameters" (module __init__ buffers).
    idBase_raw = jax.random.normal(ks[0], (K_ID, N_FLAT), jnp.float32) * 0.1
    exBase_raw = jax.random.normal(ks[1], (K_EX, N_FLAT), jnp.float32) * 0.1
    texBase_raw = jax.random.normal(ks[2], (K_TEX, N_FLAT), jnp.float32) * 0.1
    meanshape_raw = jax.random.normal(ks[3], (N_FLAT,), jnp.float32)
    meantex_raw = jax.random.uniform(ks[4], (N_FLAT,), jnp.float32, 0.0, 255.0)
    tri = jax.random.randint(ks[5], (N_FACES, 3), 1, N_VERT + 1, jnp.int32)

    # Forward inputs.
    id_coeff = jax.random.normal(ks[6], (K_ID,), jnp.float32)
    ex_coeff = jax.random.normal(ks[7], (K_EX,), jnp.float32)
    tex_coeff = jax.random.normal(ks[8], (K_TEX,), jnp.float32)

    # One-time prep (module init equivalent): pad + concat bases, precompute faces.
    shape_basis, tex_basis, faces_pre = prepare_bfm_buffers(
        idBase_raw, exBase_raw, meanshape_raw, texBase_raw, meantex_raw, tri)
    jax.block_until_ready((shape_basis, tex_basis, faces_pre))

    shape, float_texture, faces = compute_bfm_forward(
        id_coeff, ex_coeff, tex_coeff, shape_basis, tex_basis, faces_pre)
    jax.block_until_ready((shape, float_texture, faces))

    # Pure-JAX reference (mirrors the PyTorch forward exactly).
    faceshape_ref = (idBase_raw * id_coeff[:, None]).sum(0) \
        + (exBase_raw * ex_coeff[:, None]).sum(0) + meanshape_raw
    facetex_ref = (texBase_raw * tex_coeff[:, None]).sum(0) + meantex_raw
    shape_ref = faceshape_ref.reshape(N_VERT, 3)[None]
    tex_ref = (facetex_ref.reshape(N_VERT, 3) / 255.0)[None]
    faces_ref = (tri - 1)[None]

    assert shape.shape == (1, N_VERT, 3) and float_texture.shape == (1, N_VERT, 3)
    assert faces.shape == (1, N_FACES, 3) and faces.dtype == jnp.int32
    np.testing.assert_allclose(np.asarray(shape), np.asarray(shape_ref),
                               rtol=1e-5, atol=1e-4)
    np.testing.assert_allclose(np.asarray(float_texture), np.asarray(tex_ref),
                               rtol=1e-5, atol=1e-5)
    np.testing.assert_array_equal(np.asarray(faces), np.asarray(faces_ref))

    print("KERNEL_OK")
</pallas_src>

<mosaic_0001>
module attributes {stable_mosaic.version = 11 : i64} {
  func.func @_bfm_kernel(%arg0: i32, %arg1: memref<25x1xf32, #tpu.memory_space<vmem>>, %arg2: memref<17x1xf32, #tpu.memory_space<vmem>>, %arg3: memref<25x26880xf32, #tpu.memory_space<vmem>>, %arg4: memref<17x26880xf32, #tpu.memory_space<vmem>>, %arg5: memref<2x26880xf32, #tpu.memory_space<vmem>>) attributes {dimension_semantics = [#tpu.dimension_semantics<parallel>], iteration_bounds = array<i64: 4>, scalar_prefetch = 0 : i64, scratch_operands = 0 : i64, tpu.core_type = #tpu.core_type<tc>, window_params = [{pipeline_mode = #tpu.pipeline_mode<synchronous>, transform_indices = @transform_0, window_bounds = array<i64: 25, 1>}, {pipeline_mode = #tpu.pipeline_mode<synchronous>, transform_indices = @transform_1, window_bounds = array<i64: 17, 1>}, {transform_indices = @transform_2, window_bounds = array<i64: 25, 26880>}, {transform_indices = @transform_3, window_bounds = array<i64: 17, 26880>}, {transform_indices = @transform_4, window_bounds = array<i64: 2, 26880>}]} {
    %c0 = arith.constant 0 : index
    %c0_0 = arith.constant 0 : index
    %0 = vector.load %arg3[%c0, %c0_0] : memref<25x26880xf32, #tpu.memory_space<vmem>>, vector<25x26880xf32>
    %c0_1 = arith.constant 0 : index
    %c0_2 = arith.constant 0 : index
    %1 = vector.load %arg1[%c0_1, %c0_2] : memref<25x1xf32, #tpu.memory_space<vmem>>, vector<25x1xf32>
    %2 = vector.broadcast %1 : vector<25x1xf32> to vector<25x26880xf32>
    %3 = arith.mulf %0, %2 : vector<25x26880xf32>
    %cst = arith.constant dense<0.000000e+00> : vector<26880xf32>
    %4 = vector.multi_reduction <add>, %3, %cst [0] : vector<25x26880xf32> to vector<26880xf32>
    %5 = vector.shape_cast %4 : vector<26880xf32> to vector<1x26880xf32>
    %c0_3 = arith.constant 0 : index
    %c0_4 = arith.constant 0 : index
    %6 = vector.load %arg5[%c0_3, %c0_4] : memref<2x26880xf32, #tpu.memory_space<vmem>>, vector<1x26880xf32>
    tpu.vector_store %arg5[%c0_3, %c0_4], %5 {strides = array<i32>} : memref<2x26880xf32, #tpu.memory_space<vmem>>, vector<1x26880xf32>,
    %c0_5 = arith.constant 0 : index
    %c0_6 = arith.constant 0 : index
    %7 = vector.load %arg4[%c0_5, %c0_6] : memref<17x26880xf32, #tpu.memory_space<vmem>>, vector<17x26880xf32>
    %c0_7 = arith.constant 0 : index
    %c0_8 = arith.constant 0 : index
    %8 = vector.load %arg2[%c0_7, %c0_8] : memref<17x1xf32, #tpu.memory_space<vmem>>, vector<17x1xf32>
    %9 = vector.broadcast %8 : vector<17x1xf32> to vector<17x26880xf32>
    %10 = arith.mulf %7, %9 : vector<17x26880xf32>
    %cst_9 = arith.constant dense<0.000000e+00> : vector<26880xf32>
    %11 = vector.multi_reduction <add>, %10, %cst_9 [0] : vector<17x26880xf32> to vector<26880xf32>
    %12 = vector.shape_cast %11 : vector<26880xf32> to vector<1x26880xf32>
    %c1 = arith.constant 1 : index
    %c0_10 = arith.constant 0 : index
    %13 = vector.load %arg5[%c1, %c0_10] : memref<2x26880xf32, #tpu.memory_space<vmem>>, vector<1x26880xf32>
    tpu.vector_store %arg5[%c1, %c0_10], %12 {strides = array<i32>} : memref<2x26880xf32, #tpu.memory_space<vmem>>, vector<1x26880xf32>,
    return
  }
  func.func @transform_0(%arg0: i32) -> (i32, i32) {
    %c0_i32 = arith.constant 0 : i32
    %c0_i32_0 = arith.constant 0 : i32
    %c0_i32_1 = arith.constant 0 : i32
    return %c0_i32, %c0_i32_0 : i32, i32
  }
  func.func @transform_1(%arg0: i32) -> (i32, i32) {
    %c0_i32 = arith.constant 0 : i32
    %c0_i32_0 = arith.constant 0 : i32
    %c0_i32_1 = arith.constant 0 : i32
    return %c0_i32, %c0_i32_0 : i32, i32
  }
  func.func @transform_2(%arg0: i32) -> (i32, i32) {
    %c0_i32 = arith.constant 0 : i32
    %c0_i32_0 = arith.constant 0 : i32
    return %c0_i32, %arg0 : i32, i32
  }
  func.func @transform_3(%arg0: i32) -> (i32, i32) {
    %c0_i32 = arith.constant 0 : i32
    %c0_i32_0 = arith.constant 0 : i32
    return %c0_i32, %arg0 : i32, i32
  }
  func.func @transform_4(%arg0: i32) -> (i32, i32) {
    %c0_i32 = arith.constant 0 : i32
    %c0_i32_0 = arith.constant 0 : i32
    return %c0_i32, %arg0 : i32, i32
  }
}

</mosaic_0001>

<llo_original>
// kernel: tpu_custom_call.1
$region0: #{tpu_custom_call.1}
  #allocation0 [shape = 'u32[]', space=smem, size = 0x4, offset = 0x4, fixed_abs, tag = 'smem constant byte address 0x4 - core index']
  #allocation1 [shape = 'u32[144,128]{1,0:T(1,128)}', space=vmem, size = 0x12000, scoped, tag = 'internal scratch']
  %s0 = inlined_call_operand.vmem [shape: f32[25,1], index: 0, kind: input, shape index: {}]
  %s1 = inlined_call_operand.vmem [shape: f32[17,1], index: 1, kind: input, shape index: {}]
  %s2 = inlined_call_operand.hbm [shape: f32[25,107520], index: 2, kind: input, shape index: {}]
  %s3 = inlined_call_operand.hbm [shape: f32[17,107520], index: 3, kind: input, shape index: {}]
  %s4 = inlined_call_operand.hbm [shape: f32[2,107520], index: 4, kind: output, shape index: {}]
  %s5 = sld [smem:[#allocation0]]
  $region57: #{tpu_custom_call.1} parent=0
    _
  %s7 = ssub.s32 1, %s5
  %s8 = scalar_select 0, %s7, %s5
  $region1: #{tpu_custom_call.1} parent=0
    #allocation2 [shape = 'u8[6881280]{0}', space=vmem, size = 0x690000, scoped, tag = 'input window, operand 2']
    #allocation3 [shape = 's32[2]{0}', space=sflag, size = 0x8, scoped, tag = 'scoped memory for tpu_custom_call.1']
    #allocation4 [shape = 's32[2]{0}', space=sflag, size = 0x8, scoped, tag = 'scoped memory for tpu_custom_call.1']
    #allocation5 [shape = 'u8[5160960]{0}', space=vmem, size = 0x4ec000, scoped, tag = 'input window, operand 3']
    #allocation6 [shape = 's32[2]{0}', space=sflag, size = 0x8, scoped, tag = 'scoped memory for tpu_custom_call.1']
    #allocation7 [shape = 'u8[430080]{0}', space=vmem, size = 0x69000, scoped, tag = 'output window, operand 0']
    %9 = vsyncpa [#allocation3], 0
    %s10 = scalar_lea.sflag [#allocation3], 1
    %11 = vsyncpa %s10, 0
    %12 = vsyncpa [#allocation6], 0
    %s13 = scalar_lea.sflag [#allocation6], 1
    %14 = vsyncpa %s13, 0
    %15 = vsyncpa [#allocation4], 0
    %s16 = scalar_lea.sflag [#allocation4], 1
    %17 = vsyncpa %s16, 0
    loop: start=0, step=1, limit=6
    $region2: #{tpu_custom_call.1} parent=1 // loop_pre_header
      _
    $region3: #{tpu_custom_call.1} parent=1 // loop_header
      %s19 = sphi 0, %s23
      %p20 = scmp.ge.s32.totalorder %s19, 6
      %s27 = sphi 0, %s27
      %s29 = sphi 0, %s27
      %s30 = sphi 0, %s29
      %s44 = sphi 0, %s30
      %s48 = sphi 0, %s48
      %s50 = sphi 0, %s48
      %s51 = sphi 0, %s50
      %s65 = sphi 0, %s51
      %s71 = sphi 0, %s73
      %s74 = sphi 0, %s71
      %s75 = sphi 0, %s74
      %s91 = sphi 0, %s75
      %s97 = sphi 0, %s99
      %s100 = sphi 0, %s97
      %s101 = sphi 0, %s100
      %s117 = sphi 0, %s101
      %s123 = sphi 0, %s125
      %s126 = sphi 0, %s123
      %s127 = sphi 0, %s126
      %s143 = sphi 0, %s127
    $region4: #{tpu_custom_call.1} parent=1 // loop_header_branch
      %22 = sbr.rel (%p20) target = $region8
    $region5: #{tpu_custom_call.1} parent=1 // loop_body
      %s24 = ssub.s32 %s19, 1
      %s25 = ssub.s32 %s19, 2
      %s26 = sadd.s32 %s19, 1
      %s28 = sadd.s32 %s27, 1
      %p31 = scmp.eq.s32.totalorder %s19, 3
      %p32 = scmp.ne.s32.totalorder %s27, %s29
      %p33 = scmp.eq.s32.totalorder %s19, 0
      %p34 = por %p32, %p33
      %p35 = scmp.ne.s32.totalorder %s27, %s29
      %p36 = scmp.eq.s32.totalorder %s24, 3
      %p37 = por %p35, %p36
      %p38 = scmp.ne.s32.totalorder %s29, %s30
      %p39 = scmp.eq.s32.totalorder %s24, 0
      %p40 = por %p38, %p39
      %p41 = scmp.ne.s32.totalorder %s29, %s30
      %p42 = scmp.eq.s32.totalorder %s25, 3
      %p43 = por %p41, %p42
      %p45 = scmp.ne.s32.totalorder %s30, %s44
      %p46 = scmp.eq.s32.totalorder %s25, 0
      %p47 = por %p45, %p46
      %s49 = sadd.s32 %s48, 1
      %p52 = scmp.eq.s32.totalorder %s19, 3
      %p53 = scmp.ne.s32.totalorder %s48, %s50
      %p54 = scmp.eq.s32.totalorder %s19, 0
      %p55 = por %p53, %p54
      %p56 = scmp.ne.s32.totalorder %s48, %s50
      %p57 = scmp.eq.s32.totalorder %s24, 3
      %p58 = por %p56, %p57
      %p59 = scmp.ne.s32.totalorder %s50, %s51
      %p60 = scmp.eq.s32.totalorder %s24, 0
      %p61 = por %p59, %p60
      %p62 = scmp.ne.s32.totalorder %s50, %s51
      %p63 = scmp.eq.s32.totalorder %s25, 3
      %p64 = por %p62, %p63
      %p66 = scmp.ne.s32.totalorder %s51, %s65
      %p67 = scmp.eq.s32.totalorder %s25, 0
      %p68 = por %p66, %p67
      %s69 = ssub.s32 %s19, %s26
      %p70 = scmp.eq.s32.totalorder %s69, 0
      %s72 = sadd.s32 %s71, 1
      %s73 = scalar_select %p70, %s71, %s72
      %p76 = pneg %p70
      %p77 = scmp.eq.s32.totalorder %s19, 3
      %p78 = por %p76, %p77
      %p79 = scmp.ne.s32.totalorder %s71, %s74
      %p80 = scmp.eq.s32.totalorder %s19, 0
      %p81 = por %p79, %p80
      %p82 = scmp.ne.s32.totalorder %s71, %s74
      %p83 = scmp.eq.s32.totalorder %s24, 3
      %p84 = por %p82, %p83
      %p85 = scmp.ne.s32.totalorder %s74, %s75
      %p86 = scmp.eq.s32.totalorder %s24, 0
      %p87 = por %p85, %p86
      %p88 = scmp.ne.s32.totalorder %s74, %s75
      %p89 = scmp.eq.s32.totalorder %s25, 3
      %p90 = por %p88, %p89
      %p92 = scmp.ne.s32.totalorder %s75, %s91
      %p93 = scmp.eq.s32.totalorder %s25, 0
      %p94 = por %p92, %p93
      %s95 = ssub.s32 %s19, %s26
      %p96 = scmp.eq.s32.totalorder %s95, 0
      %s98 = sadd.s32 %s97, 1
      %s99 = scalar_select %p96, %s97, %s98
      %p102 = pneg %p96
      %p103 = scmp.eq.s32.totalorder %s19, 3
      %p104 = por %p102, %p103
      %p105 = scmp.ne.s32.totalorder %s97, %s100
      %p106 = scmp.eq.s32.totalorder %s19, 0
      %p107 = por %p105, %p106
      %p108 = scmp.ne.s32.totalorder %s97, %s100
      %p109 = scmp.eq.s32.totalorder %s24, 3
      %p110 = por %p108, %p109
      %p111 = scmp.ne.s32.totalorder %s100, %s101
      %p112 = scmp.eq.s32.totalorder %s24, 0
      %p113 = por %p111, %p112
      %p114 = scmp.ne.s32.totalorder %s100, %s101
      %p115 = scmp.eq.s32.totalorder %s25, 3
      %p116 = por %p114, %p115
      %p118 = scmp.ne.s32.totalorder %s101, %s117
      %p119 = scmp.eq.s32.totalorder %s25, 0
      %p120 = por %p118, %p119
      %s121 = ssub.s32 %s19, %s26
      %p122 = scmp.eq.s32.totalorder %s121, 0
      %s124 = sadd.s32 %s123, 1
      %s125 = scalar_select %p122, %s123, %s124
      %p128 = pneg %p122
      %p129 = scmp.eq.s32.totalorder %s19, 3
      %p130 = por %p128, %p129
      %p131 = scmp.ne.s32.totalorder %s123, %s126
      %p132 = scmp.eq.s32.totalorder %s19, 0
      %p133 = por %p131, %p132
      %p134 = scmp.ne.s32.totalorder %s123, %s126
      %p135 = scmp.eq.s32.totalorder %s24, 3
      %p136 = por %p134, %p135
      %p137 = scmp.ne.s32.totalorder %s126, %s127
      %p138 = scmp.eq.s32.totalorder %s24, 0
      %p139 = por %p137, %p138
      %p140 = scmp.ne.s32.totalorder %s126, %s127
      %p141 = scmp.eq.s32.totalorder %s25, 3
      %p142 = por %p140, %p141
      %p144 = scmp.ne.s32.totalorder %s127, %s143
      %p145 = scmp.eq.s32.totalorder %s25, 0
      %p146 = por %p144, %p145
      %p147 = scmp.le.s32.totalorder 1, %s19
      %p148 = scmp.lt.s32.totalorder %s19, 5
      %p149 = pnand %p147, %p148
      %p150 = pneg %p149
      // Predicated region
      $region9: #{tpu_custom_call.1} parent=5 // pred_check
        _
      $region10: #{tpu_custom_call.1} parent=5 // pred_check_branch
        %152 = sbr.rel (%p149) target = $region12
      $region11: #{tpu_custom_call.1} parent=5 // pred_region
        %s153 = ssub.s32 %s19, 1
        // Predicated region
        $region13: #{tpu_custom_call.1} parent=11 // pred_check
          %p154 = pneg %p40
        $region14: #{tpu_custom_call.1} parent=11 // pred_check_branch
          %156 = sbr.rel (%p154) target = $region16
        $region15: #{tpu_custom_call.1} parent=11 // pred_region
          _
        $region16: #{tpu_custom_call.1} parent=11 // pred_fallthru
          _
        // Predicated region
        $region17: #{tpu_custom_call.1} parent=11 // pred_check
          %p157 = pneg %p61
        $region18: #{tpu_custom_call.1} parent=11 // pred_check_branch
          %159 = sbr.rel (%p157) target = $region20
        $region19: #{tpu_custom_call.1} parent=11 // pred_region
          _
        $region20: #{tpu_custom_call.1} parent=11 // pred_fallthru
          _
      $region12: #{tpu_custom_call.1} parent=5 // pred_fallthru
        _
      %p160 = scmp.lt.s32.totalorder %s19, 4
      // Predicated region
      $region21: #{tpu_custom_call.1} parent=5 // pred_check
        %p161 = pneg %p160
      $region22: #{tpu_custom_call.1} parent=5 // pred_check_branch
        %163 = sbr.rel (%p161) target = $region24
      $region23: #{tpu_custom_call.1} parent=5 // pred_region
        // Predicated region
        $region25: #{tpu_custom_call.1} parent=23 // pred_check
          %p164 = pneg %p81
        $region26: #{tpu_custom_call.1} parent=23 // pred_check_branch
          %166 = sbr.rel (%p164) target = $region28
        $region27: #{tpu_custom_call.1} parent=23 // pred_region
          %s167 = sand.u32 %s71, 1
          %s168 = scalar_lea.sflag [#allocation3], %s167
          %s169 = sand.u32 %s71, 1
          %s170 = smul.addr %s169, 6720
          %s171 = scalar_lea.vmem [#allocation2], %s170
          %s172 = smul.u32 210, %s19
          %s174 = ssub.s32 107520, 107520
          %175 = vsyncadd %s168, %s174
          %s176 = smul.addr %s172, 128
          %s177 = scalar_lea.hbm %s2, %s176
          %s178 = sshll.u32 %s171, 4
          %s179 = int_to_ptr.vmem [resolvable:$true] %s178
          %184 = dma.hbm_to_vmem [thread:$0]  %s177, 107520, %s179, %s168, 107520, 26880, 1680
        $region28: #{tpu_custom_call.1} parent=23 // pred_fallthru
          _
        // Predicated region
        $region29: #{tpu_custom_call.1} parent=23 // pred_check
          %p185 = pneg %p107
        $region30: #{tpu_custom_call.1} parent=23 // pred_check_branch
          %187 = sbr.rel (%p185) target = $region32
        $region31: #{tpu_custom_call.1} parent=23 // pred_region
          %s188 = sand.u32 %s97, 1
          %s189 = scalar_lea.sflag [#allocation6], %s188
          %s190 = sand.u32 %s97, 1
          %s191 = smul.addr %s190, 5040
          %s192 = scalar_lea.vmem [#allocation5], %s191
          %s193 = smul.u32 210, %s19
          %s195 = ssub.s32 80640, 80640
          %196 = vsyncadd %s189, %s195
          %s197 = smul.addr %s193, 128
          %s198 = scalar_lea.hbm %s3, %s197
          %s199 = sshll.u32 %s192, 4
          %s200 = int_to_ptr.vmem [resolvable:$true] %s199
          %205 = dma.hbm_to_vmem [thread:$0]  %s198, 80640, %s200, %s189, 107520, 26880, 1680
        $region32: #{tpu_custom_call.1} parent=23 // pred_fallthru
          _
      $region24: #{tpu_custom_call.1} parent=5 // pred_fallthru
        _
      %p206 = scmp.le.s32.totalorder 1, %s19
      %p207 = scmp.lt.s32.totalorder %s19, 5
      %p208 = pnand %p206, %p207
      %p209 = pneg %p208
      // Predicated region
      $region33: #{tpu_custom_call.1} parent=5 // pred_check
        _
      $region34: #{tpu_custom_call.1} parent=5 // pred_check_branch
        %211 = sbr.rel (%p208) target = $region36
      $region35: #{tpu_custom_call.1} parent=5 // pred_region
        %s212 = ssub.s32 %s19, 1
        %s213 = sand.u32 %s74, 1
        %s214 = scalar_lea.sflag [#allocation3], %s213
        %s215 = sand.u32 %s74, 1
        %s216 = smul.addr %s215, 6720
        %s217 = scalar_lea.vmem [#allocation2], %s216
        // Predicated region
        $region37: #{tpu_custom_call.1} parent=35 // pred_check
          %p218 = pneg %p87
        $region38: #{tpu_custom_call.1} parent=35 // pred_check_branch
          %220 = sbr.rel (%p218) target = $region40
        $region39: #{tpu_custom_call.1} parent=35 // pred_region
          %221 = dma.done %s214, 107520
        $region40: #{tpu_custom_call.1} parent=35 // pred_fallthru
          _
        %s222 = sand.u32 %s100, 1
        %s223 = scalar_lea.sflag [#allocation6], %s222
        %s224 = sand.u32 %s100, 1
        %s225 = smul.addr %s224, 5040
        %s226 = scalar_lea.vmem [#allocation5], %s225
        // Predicated region
        $region41: #{tpu_custom_call.1} parent=35 // pred_check
          %p227 = pneg %p113
        $region42: #{tpu_custom_call.1} parent=35 // pred_check_branch
          %229 = sbr.rel (%p227) target = $region44
        $region43: #{tpu_custom_call.1} parent=35 // pred_region
          %230 = dma.done %s223, 80640
        $region44: #{tpu_custom_call.1} parent=35 // pred_fallthru
          _
        %p231 = pneg %p40
        %p232 = pneg %p37
        %p233 = pneg %p61
        %p234 = pneg %p58
        %s235 = sand.u32 %s74, 1
        %s236 = scalar_lea.sflag [#allocation3], %s235
        %s237 = sand.u32 %s74, 1
        %s238 = smul.addr %s237, 6720
        %s239 = scalar_lea.vmem [#allocation2], %s238
        %p240 = pneg %p87
        %p241 = pneg %p84
        %s242 = sand.u32 %s100, 1
        %s243 = scalar_lea.sflag [#allocation6], %s242
        %s244 = sand.u32 %s100, 1
        %s245 = smul.addr %s244, 5040
        %s246 = scalar_lea.vmem [#allocation5], %s245
        %p247 = pneg %p113
        %p248 = pneg %p110
        %p249 = pneg %p139
        %p250 = pneg %p136
        %s251 = sand.u32 %s126, 1
        %s252 = scalar_lea.sflag [#allocation4], %s251
        %s253 = sand.u32 %s126, 1
        %s254 = smul.addr %s253, 420
        %s255 = scalar_lea.vmem [#allocation7], %s254
        %s256 = smul.u32 210, %s24
        %s257 = smul.u32 210, %s24
        %s258 = smul.u32 210, %s24
        %v259 = vld [vmem:[%s217] sm:$0xff]
        %v260 = vld [vmem:[%s217 + $0x8] sm:$0xff]
        %v261 = vld [vmem:[%s217 + $0x10] sm:$0xff]
        %v262 = vld [vmem:[%s217 + $0x18] sm:$0xff]
        %v263 = vld [vmem:[%s217 + $0x20] sm:$0xff]
        %v264 = vld [vmem:[%s217 + $0x28] sm:$0xff]
        %v265 = vld [vmem:[%s217 + $0x30] sm:$0xff]
        %v266 = vld [vmem:[%s217 + $0x38] sm:$0xff]
        %v267 = vld [vmem:[%s217 + $0x40] sm:$0xff]
        %v268 = vld [vmem:[%s217 + $0x48] sm:$0xff]
        %v269 = vld [vmem:[%s217 + $0x50] sm:$0xff]
        %v270 = vld [vmem:[%s217 + $0x58] sm:$0xff]
        %v271 = vld [vmem:[%s217 + $0x60] sm:$0xff]
        %v272 = vld [vmem:[%s217 + $0x68] sm:$0xff]
        %v273 = vld [vmem:[%s217 + $0x70] sm:$0xff]
        %v274 = vld [vmem:[%s217 + $0x78] sm:$0xff]
        %v275 = vld [vmem:[%s217 + $0x80] sm:$0xff]
        %v276 = vld [vmem:[%s217 + $0x88] sm:$0xff]
        %v277 = vld [vmem:[%s217 + $0x90] sm:$0xff]
        %v278 = vld [vmem:[%s217 + $0x98] sm:$0xff]
        %v279 = vld [vmem:[%s217 + $0xa0] sm:$0xff]
        %v280 = vld [vmem:[%s217 + $0xa8] sm:$0xff]
        %v281 = vld [vmem:[%s217 + $0xb0] sm:$0xff]
        %v282 = vld [vmem:[%s217 + $0xb8] sm:$0xff]
        %v283 = vld [vmem:[%s217 + $0xc0] sm:$0xff]
        %v284 = vld [vmem:[%s217 + $0xc8] sm:$0xff]
        %v285 = vld [vmem:[%s217 + $0xd0] sm:$0xff]
        %v286 = vld [vmem:[%s217 + $0xd8] sm:$0xff]
        %v287 = vld [vmem:[%s217 + $0xe0] sm:$0xff]
        %v288 = vld [vmem:[%s217 + $0xe8] sm:$0xff]
        %v289 = vld [vmem:[%s217 + $0xf0] sm:$0xff]
        %v290 = vld [vmem:[%s217 + $0xf8] sm:$0xff]
        %v291 = vld [vmem:[%s217 + $0x100] sm:$0xff]
        %v292 = vld [vmem:[%s217 + $0x108] sm:$0xff]
        %v293 = vld [vmem:[%s217 + $0x110] sm:$0xff]
        %v294 = vld [vmem:[%s217 + $0x118] sm:$0xff]
        %v295 = vld [vmem:[%s217 + $0x120] sm:$0xff]
        %v296 = vld [vmem:[%s217 + $0x128] sm:$0xff]
        %v297 = vld [vmem:[%s217 + $0x130] sm:$0xff]
        %v298 = vld [vmem:[%s217 + $0x138] sm:$0xff]
        %v299 = vld [vmem:[%s217 + $0x140] sm:$0xff]
        %v300 = vld [vmem:[%s217 + $0x148] sm:$0xff]
        %v301 = vld [vmem:[%s217 + $0x150] sm:$0xff]
        %v302 = vld [vmem:[%s217 + $0x158] sm:$0xff]
        %v303 = vld [vmem:[%s217 + $0x160] sm:$0xff]
        %v304 = vld [vmem:[%s217 + $0x168] sm:$0xff]
        %v305 = vld [vmem:[%s217 + $0x170] sm:$0xff]
        %v306 = vld [vmem:[%s217 + $0x178] sm:$0xff]
        %v307 = vld [vmem:[%s217 + $0x180] sm:$0xff]
        %v308 = vld [vmem:[%s217 + $0x188] sm:$0xff]
        %v309 = vld [vmem:[%s217 + $0x190] sm:$0xff]
        %v310 = vld [vmem:[%s217 + $0x198] sm:$0xff]
        %v311 = vld [vmem:[%s217 + $0x1a0] sm:$0xff]
        %v312 = vld [vmem:[%s217 + $0x1a8] sm:$0xff]
        %v313 = vld [vmem:[%s217 + $0x1b0] sm:$0xff]
        %v314 = vld [vmem:[%s217 + $0x1b8] sm:$0xff]
        %v315 = vld [vmem:[%s217 + $0x1c0] sm:$0xff]
        %v316 = vld [vmem:[%s217 + $0x1c8] sm:$0xff]
        %v317 = vld [vmem:[%s217 + $0x1d0] sm:$0xff]
        %v318 = vld [vmem:[%s217 + $0x1d8] sm:$0xff]
        %v319 = vld [vmem:[%s217 + $0x1e0] sm:$0xff]
        %v320 = vld [vmem:[%s217 + $0x1e8] sm:$0xff]
        %v321 = vld [vmem:[%s217 + $0x1f0] sm:$0xff]
        %v322 = vld [vmem:[%s217 + $0x1f8] sm:$0xff]
        %v323 = vld [vmem:[%s217 + $0x200] sm:$0xff]
        %v324 = vld [vmem:[%s217 + $0x208] sm:$0xff]
        %v325 = vld [vmem:[%s217 + $0x210] sm:$0xff]
        %v326 = vld [vmem:[%s217 + $0x218] sm:$0xff]
        %v327 = vld [vmem:[%s217 + $0x220] sm:$0xff]
        %v328 = vld [vmem:[%s217 + $0x228] sm:$0xff]
        %v329 = vld [vmem:[%s217 + $0x230] sm:$0xff]
        %v330 = vld [vmem:[%s217 + $0x238] sm:$0xff]
        %v331 = vld [vmem:[%s217 + $0x240] sm:$0xff]
        %v332 = vld [vmem:[%s217 + $0x248] sm:$0xff]
        %v333 = vld [vmem:[%s217 + $0x250] sm:$0xff]
        %v334 = vld [vmem:[%s217 + $0x258] sm:$0xff]
        %v335 = vld [vmem:[%s217 + $0x260] sm:$0xff]
        %v336 = vld [vmem:[%s217 + $0x268] sm:$0xff]
        %v337 = vld [vmem:[%s217 + $0x270] sm:$0xff]
        %v338 = vld [vmem:[%s217 + $0x278] sm:$0xff]
        %v339 = vld [vmem:[%s217 + $0x280] sm:$0xff]
        %v340 = vld [vmem:[%s217 + $0x288] sm:$0xff]
        %v341 = vld [vmem:[%s217 + $0x290] sm:$0xff]
        %v342 = vld [vmem:[%s217 + $0x298] sm:$0xff]
        %v343 = vld [vmem:[%s217 + $0x2a0] sm:$0xff]
        %v344 = vld [vmem:[%s217 + $0x2a8] sm:$0xff]
        %v345 = vld [vmem:[%s217 + $0x2b0] sm:$0xff]
        %v346 = vld [vmem:[%s217 + $0x2b8] sm:$0xff]
        %v347 = vld [vmem:[%s217 + $0x2c0] sm:$0xff]
        %v348 = vld [vmem:[%s217 + $0x2c8] sm:$0xff]
        %v349 = vld [vmem:[%s217 + $0x2d0] sm:$0xff]
        %v350 = vld [vmem:[%s217 + $0x2d8] sm:$0xff]
        %v351 = vld [vmem:[%s217 + $0x2e0] sm:$0xff]
        %v352 = vld [vmem:[%s217 + $0x2e8] sm:$0xff]
        %v353 = vld [vmem:[%s217 + $0x2f0] sm:$0xff]
        %v354 = vld [vmem:[%s217 + $0x2f8] sm:$0xff]
        %v355 = vld [vmem:[%s217 + $0x300] sm:$0xff]
        %v356 = vld [vmem:[%s217 + $0x308] sm:$0xff]
        %v357 = vld [vmem:[%s217 + $0x310] sm:$0xff]
        %v358 = vld [vmem:[%s217 + $0x318] sm:$0xff]
        %v359 = vld [vmem:[%s217 + $0x320] sm:$0xff]
        %v360 = vld [vmem:[%s217 + $0x328] sm:$0xff]
        %v361 = vld [vmem:[%s217 + $0x330] sm:$0xff]
        %v362 = vld [vmem:[%s217 + $0x338] sm:$0xff]
        %v363 = vld [vmem:[%s217 + $0x340] sm:$0xff]
        %v364 = vld [vmem:[%s217 + $0x348] sm:$0xff]
        %v365 = vld [vmem:[%s217 + $0x350] sm:$0xff]
        %v366 = vld [vmem:[%s217 + $0x358] sm:$0xff]
        %v367 = vld [vmem:[%s217 + $0x360] sm:$0xff]
        %v368 = vld [vmem:[%s217 + $0x368] sm:$0xff]
        %v369 = vld [vmem:[%s217 + $0x370] sm:$0xff]
        %v370 = vld [vmem:[%s217 + $0x378] sm:$0xff]
        %v371 = vld [vmem:[%s217 + $0x380] sm:$0xff]
        %v372 = vld [vmem:[%s217 + $0x388] sm:$0xff]
        %v373 = vld [vmem:[%s217 + $0x390] sm:$0xff]
        %v374 = vld [vmem:[%s217 + $0x398] sm:$0xff]
        %v375 = vld [vmem:[%s217 + $0x3a0] sm:$0xff]
        %v376 = vld [vmem:[%s217 + $0x3a8] sm:$0xff]
        %v377 = vld [vmem:[%s217 + $0x3b0] sm:$0xff]
        %v378 = vld [vmem:[%s217 + $0x3b8] sm:$0xff]
        %v379 = vld [vmem:[%s217 + $0x3c0] sm:$0xff]
        %v380 = vld [vmem:[%s217 + $0x3c8] sm:$0xff]
        %v381 = vld [vmem:[%s217 + $0x3d0] sm:$0xff]
        %v382 = vld [vmem:[%s217 + $0x3d8] sm:$0xff]
        %v383 = vld [vmem:[%s217 + $0x3e0] sm:$0xff]
        %v384 = vld [vmem:[%s217 + $0x3e8] sm:$0xff]
        %v385 = vld [vmem:[%s217 + $0x3f0] sm:$0xff]
        %v386 = vld [vmem:[%s217 + $0x3f8] sm:$0xff]
        %v387 = vld [vmem:[%s217 + $0x400] sm:$0xff]
        %v388 = vld [vmem:[%s217 + $0x408] sm:$0xff]
        %v389 = vld [vmem:[%s217 + $0x410] sm:$0xff]
        %v390 = vld [vmem:[%s217 + $0x418] sm:$0xff]
        %v391 = vld [vmem:[%s217 + $0x420] sm:$0xff]
        %v392 = vld [vmem:[%s217 + $0x428] sm:$0xff]
        %v393 = vld [vmem:[%s217 + $0x430] sm:$0xff]
        %v394 = vld [vmem:[%s217 + $0x438] sm:$0xff]
        %v395 = vld [vmem:[%s217 + $0x440] sm:$0xff]
        %v396 = vld [vmem:[%s217 + $0x448] sm:$0xff]
        %v397 = vld [vmem:[%s217 + $0x450] sm:$0xff]
        %v398 = vld [vmem:[%s217 + $0x458] sm:$0xff]
        %v399 = vld [vmem:[%s217 + $0x460] sm:$0xff]
        %v400 = vld [vmem:[%s217 + $0x468] sm:$0xff]
        %v401 = vld [vmem:[%s217 + $0x470] sm:$0xff]
        %v402 = vld [vmem:[%s217 + $0x478] sm:$0xff]
        %v403 = vld [vmem:[%s217 + $0x480] sm:$0xff]
        %v404 = vld [vmem:[%s217 + $0x488] sm:$0xff]
        %v405 = vld [vmem:[%s217 + $0x490] sm:$0xff]
        %v406 = vld [vmem:[%s217 + $0x498] sm:$0xff]
        %v407 = vld [vmem:[%s217 + $0x4a0] sm:$0xff]
        %v408 = vld [vmem:[%s217 + $0x4a8] sm:$0xff]
        %v409 = vld [vmem:[%s217 + $0x4b0] sm:$0xff]
        %v410 = vld [vmem:[%s217 + $0x4b8] sm:$0xff]
        %v411 = vld [vmem:[%s217 + $0x4c0] sm:$0xff]
        %v412 = vld [vmem:[%s217 + $0x4c8] sm:$0xff]
        %v413 = vld [vmem:[%s217 + $0x4d0] sm:$0xff]
        %v414 = vld [vmem:[%s217 + $0x4d8] sm:$0xff]
        %v415 = vld [vmem:[%s217 + $0x4e0] sm:$0xff]
        %v416 = vld [vmem:[%s217 + $0x4e8] sm:$0xff]
        %v417 = vld [vmem:[%s217 + $0x4f0] sm:$0xff]
        %v418 = vld [vmem:[%s217 + $0x4f8] sm:$0xff]
        %v419 = vld [vmem:[%s217 + $0x500] sm:$0xff]
        %v420 = vld [vmem:[%s217 + $0x508] sm:$0xff]
        %v421 = vld [vmem:[%s217 + $0x510] sm:$0xff]
        %v422 = vld [vmem:[%s217 + $0x518] sm:$0xff]
        %v423 = vld [vmem:[%s217 + $0x520] sm:$0xff]
        %v424 = vld [vmem:[%s217 + $0x528] sm:$0xff]
        %v425 = vld [vmem:[%s217 + $0x530] sm:$0xff]
        %v426 = vld [vmem:[%s217 + $0x538] sm:$0xff]
        %v427 = vld [vmem:[%s217 + $0x540] sm:$0xff]
        %v428 = vld [vmem:[%s217 + $0x548] sm:$0xff]
        %v429 = vld [vmem:[%s217 + $0x550] sm:$0xff]
        %v430 = vld [vmem:[%s217 + $0x558] sm:$0xff]
        %v431 = vld [vmem:[%s217 + $0x560] sm:$0xff]
        %v432 = vld [vmem:[%s217 + $0x568] sm:$0xff]
        %v433 = vld [vmem:[%s217 + $0x570] sm:$0xff]
        %v434 = vld [vmem:[%s217 + $0x578] sm:$0xff]
        %v435 = vld [vmem:[%s217 + $0x580] sm:$0xff]
        %v436 = vld [vmem:[%s217 + $0x588] sm:$0xff]
        %v437 = vld [vmem:[%s217 + $0x590] sm:$0xff]
        %v438 = vld [vmem:[%s217 + $0x598] sm:$0xff]
        %v439 = vld [vmem:[%s217 + $0x5a0] sm:$0xff]
        %v440 = vld [vmem:[%s217 + $0x5a8] sm:$0xff]
        %v441 = vld [vmem:[%s217 + $0x5b0] sm:$0xff]
        %v442 = vld [vmem:[%s217 + $0x5b8] sm:$0xff]
        %v443 = vld [vmem:[%s217 + $0x5c0] sm:$0xff]
        %v444 = vld [vmem:[%s217 + $0x5c8] sm:$0xff]
        %v445 = vld [vmem:[%s217 + $0x5d0] sm:$0xff]
        %v446 = vld [vmem:[%s217 + $0x5d8] sm:$0xff]
        %v447 = vld [vmem:[%s217 + $0x5e0] sm:$0xff]
        %v448 = vld [vmem:[%s217 + $0x5e8] sm:$0xff]
        %v449 = vld [vmem:[%s217 + $0x5f0] sm:$0xff]
        %v450 = vld [vmem:[%s217 + $0x5f8] sm:$0xff]
        %v451 = vld [vmem:[%s217 + $0x600] sm:$0xff]
        %v452 = vld [vmem:[%s217 + $0x608] sm:$0xff]
        %v453 = vld [vmem:[%s217 + $0x610] sm:$0xff]
        %v454 = vld [vmem:[%s217 + $0x618] sm:$0xff]
        %v455 = vld [vmem:[%s217 + $0x620] sm:$0xff]
        %v456 = vld [vmem:[%s217 + $0x628] sm:$0xff]
        %v457 = vld [vmem:[%s217 + $0x630] sm:$0xff]
        %v458 = vld [vmem:[%s217 + $0x638] sm:$0xff]
        %v459 = vld [vmem:[%s217 + $0x640] sm:$0xff]
        %v460 = vld [vmem:[%s217 + $0x648] sm:$0xff]
        %v461 = vld [vmem:[%s217 + $0x650] sm:$0xff]
        %v462 = vld [vmem:[%s217 + $0x658] sm:$0xff]
        %v463 = vld [vmem:[%s217 + $0x660] sm:$0xff]
        %v464 = vld [vmem:[%s217 + $0x668] sm:$0xff]
        %v465 = vld [vmem:[%s217 + $0x670] sm:$0xff]
        %v466 = vld [vmem:[%s217 + $0x678] sm:$0xff]
        %v467 = vld [vmem:[%s217 + $0x680] sm:$0xff]
        %v468 = vld [vmem:[%s217 + $0x688] sm:$0xff]
        %v469 = vld [vmem:[%s217 + $0x690] sm:$0xff]
        %v470 = vld [vmem:[%s217 + $0x698] sm:$0xff]
        %v471 = vld [vmem:[%s217 + $0x6a0] sm:$0xff]
        %v472 = vld [vmem:[%s217 + $0x6a8] sm:$0xff]
        %v473 = vld [vmem:[%s217 + $0x6b0] sm:$0xff]
        %v474 = vld [vmem:[%s217 + $0x6b8] sm:$0xff]
        %v475 = vld [vmem:[%s217 + $0x6c0] sm:$0xff]
        %v476 = vld [vmem:[%s217 + $0x6c8] sm:$0xff]
        %v477 = vld [vmem:[%s217 + $0x6d0] sm:$0xff]
        %v478 = vld [vmem:[%s217 + $0x6d8] sm:$0xff]
        %v479 = vld [vmem:[%s217 + $0x6e0] sm:$0xff]
        %v480 = vld [vmem:[%s217 + $0x6e8] sm:$0xff]
        %v481 = vld [vmem:[%s217 + $0x6f0] sm:$0xff]
        %v482 = vld [vmem:[%s217 + $0x6f8] sm:$0xff]
        %v483 = vld [vmem:[%s217 + $0x700] sm:$0xff]
        %v484 = vld [vmem:[%s217 + $0x708] sm:$0xff]
        %v485 = vld [vmem:[%s217 + $0x710] sm:$0xff]
        %v486 = vld [vmem:[%s217 + $0x718] sm:$0xff]
        %v487 = vld [vmem:[%s217 + $0x720] sm:$0xff]
        %v488 = vld [vmem:[%s217 + $0x728] sm:$0xff]
        %v489 = vld [vmem:[%s217 + $0x730] sm:$0xff]
        %v490 = vld [vmem:[%s217 + $0x738] sm:$0xff]
        %v491 = vld [vmem:[%s217 + $0x740] sm:$0xff]
        %v492 = vld [vmem:[%s217 + $0x748] sm:$0xff]
        %v493 = vld [vmem:[%s217 + $0x750] sm:$0xff]
        %v494 = vld [vmem:[%s217 + $0x758] sm:$0xff]
        %v495 = vld [vmem:[%s217 + $0x760] sm:$0xff]
        %v496 = vld [vmem:[%s217 + $0x768] sm:$0xff]
        %v497 = vld [vmem:[%s217 + $0x770] sm:$0xff]
        %v498 = vld [vmem:[%s217 + $0x778] sm:$0xff]
        %v499 = vld [vmem:[%s217 + $0x780] sm:$0xff]
        %v500 = vld [vmem:[%s217 + $0x788] sm:$0xff]
        %v501 = vld [vmem:[%s217 + $0x790] sm:$0xff]
        %v502 = vld [vmem:[%s217 + $0x798] sm:$0xff]
        %v503 = vld [vmem:[%s217 + $0x7a0] sm:$0xff]
        %v504 = vld [vmem:[%s217 + $0x7a8] sm:$0xff]
        %v505 = vld [vmem:[%s217 + $0x7b0] sm:$0xff]
        %v506 = vld [vmem:[%s217 + $0x7b8] sm:$0xff]
        %v507 = vld [vmem:[%s217 + $0x7c0] sm:$0xff]
        %v508 = vld [vmem:[%s217 + $0x7c8] sm:$0xff]
        %v509 = vld [vmem:[%s217 + $0x7d0] sm:$0xff]
        %v510 = vld [vmem:[%s217 + $0x7d8] sm:$0xff]
        %v511 = vld [vmem:[%s217 + $0x7e0] sm:$0xff]
        %v512 = vld [vmem:[%s217 + $0x7e8] sm:$0xff]
        %v513 = vld [vmem:[%s217 + $0x7f0] sm:$0xff]
        %v514 = vld [vmem:[%s217 + $0x7f8] sm:$0xff]
        %v515 = vld [vmem:[%s217 + $0x800] sm:$0xff]
        %v516 = vld [vmem:[%s217 + $0x808] sm:$0xff]
        %v517 = vld [vmem:[%s217 + $0x810] sm:$0xff]
        %v518 = vld [vmem:[%s217 + $0x818] sm:$0xff]
        %v519 = vld [vmem:[%s217 + $0x820] sm:$0xff]
        %v520 = vld [vmem:[%s217 + $0x828] sm:$0xff]
        %v521 = vld [vmem:[%s217 + $0x830] sm:$0xff]
        %v522 = vld [vmem:[%s217 + $0x838] sm:$0xff]
        %v523 = vld [vmem:[%s217 + $0x840] sm:$0xff]
        %v524 = vld [vmem:[%s217 + $0x848] sm:$0xff]
        %v525 = vld [vmem:[%s217 + $0x850] sm:$0xff]
        %v526 = vld [vmem:[%s217 + $0x858] sm:$0xff]
        %v527 = vld [vmem:[%s217 + $0x860] sm:$0xff]
        %v528 = vld [vmem:[%s217 + $0x868] sm:$0xff]
        %v529 = vld [vmem:[%s217 + $0x870] sm:$0xff]
        %v530 = vld [vmem:[%s217 + $0x878] sm:$0xff]
        %v531 = vld [vmem:[%s217 + $0x880] sm:$0xff]
        %v532 = vld [vmem:[%s217 + $0x888] sm:$0xff]
        %v533 = vld [vmem:[%s217 + $0x890] sm:$0xff]
        %v534 = vld [vmem:[%s217 + $0x898] sm:$0xff]
        %v535 = vld [vmem:[%s217 + $0x8a0] sm:$0xff]
        %v536 = vld [vmem:[%s217 + $0x8a8] sm:$0xff]
        %v537 = vld [vmem:[%s217 + $0x8b0] sm:$0xff]
        %v538 = vld [vmem:[%s217 + $0x8b8] sm:$0xff]
        %v539 = vld [vmem:[%s217 + $0x8c0] sm:$0xff]
        %v540 = vld [vmem:[%s217 + $0x8c8] sm:$0xff]
        %v541 = vld [vmem:[%s217 + $0x8d0] sm:$0xff]
        %v542 = vld [vmem:[%s217 + $0x8d8] sm:$0xff]
        %v543 = vld [vmem:[%s217 + $0x8e0] sm:$0xff]
        %v544 = vld [vmem:[%s217 + $0x8e8] sm:$0xff]
        %v545 = vld [vmem:[%s217 + $0x8f0] sm:$0xff]
        %v546 = vld [vmem:[%s217 + $0x8f8] sm:$0xff]
        %v547 = vld [vmem:[%s217 + $0x900] sm:$0xff]
        %v548 = vld [vmem:[%s217 + $0x908] sm:$0xff]
        %v549 = vld [vmem:[%s217 + $0x910] sm:$0xff]
        %v550 = vld [vmem:[%s217 + $0x918] sm:$0xff]
        %v551 = vld [vmem:[%s217 + $0x920] sm:$0xff]
        %v552 = vld [vmem:[%s217 + $0x928] sm:$0xff]
        %v553 = vld [vmem:[%s217 + $0x930] sm:$0xff]
        %v554 = vld [vmem:[%s217 + $0x938] sm:$0xff]
        %v555 = vld [vmem:[%s217 + $0x940] sm:$0xff]
        %v556 = vld [vmem:[%s217 + $0x948] sm:$0xff]
        %v557 = vld [vmem:[%s217 + $0x950] sm:$0xff]
        %v558 = vld [vmem:[%s217 + $0x958] sm:$0xff]
        %v559 = vld [vmem:[%s217 + $0x960] sm:$0xff]
        %v560 = vld [vmem:[%s217 + $0x968] sm:$0xff]
        %v561 = vld [vmem:[%s217 + $0x970] sm:$0xff]
        %v562 = vld [vmem:[%s217 + $0x978] sm:$0xff]
        %v563 = vld [vmem:[%s217 + $0x980] sm:$0xff]
        %v564 = vld [vmem:[%s217 + $0x988] sm:$0xff]
        %v565 = vld [vmem:[%s217 + $0x990] sm:$0xff]
        %v566 = vld [vmem:[%s217 + $0x998] sm:$0xff]
        %v567 = vld [vmem:[%s217 + $0x9a0] sm:$0xff]
        %v568 = vld [vmem:[%s217 + $0x9a8] sm:$0xff]
        %v569 = vld [vmem:[%s217 + $0x9b0] sm:$0xff]
        %v570 = vld [vmem:[%s217 + $0x9b8] sm:$0xff]
        %v571 = vld [vmem:[%s217 + $0x9c0] sm:$0xff]
        %v572 = vld [vmem:[%s217 + $0x9c8] sm:$0xff]
        %v573 = vld [vmem:[%s217 + $0x9d0] sm:$0xff]
        %v574 = vld [vmem:[%s217 + $0x9d8] sm:$0xff]
        %v575 = vld [vmem:[%s217 + $0x9e0] sm:$0xff]
        %v576 = vld [vmem:[%s217 + $0x9e8] sm:$0xff]
        %v577 = vld [vmem:[%s217 + $0x9f0] sm:$0xff]
        %v578 = vld [vmem:[%s217 + $0x9f8] sm:$0xff]
        %v579 = vld [vmem:[%s217 + $0xa00] sm:$0xff]
        %v580 = vld [vmem:[%s217 + $0xa08] sm:$0xff]
        %v581 = vld [vmem:[%s217 + $0xa10] sm:$0xff]
        %v582 = vld [vmem:[%s217 + $0xa18] sm:$0xff]
        %v583 = vld [vmem:[%s217 + $0xa20] sm:$0xff]
        %v584 = vld [vmem:[%s217 + $0xa28] sm:$0xff]
        %v585 = vld [vmem:[%s217 + $0xa30] sm:$0xff]
        %v586 = vld [vmem:[%s217 + $0xa38] sm:$0xff]
        %v587 = vld [vmem:[%s217 + $0xa40] sm:$0xff]
        %v588 = vld [vmem:[%s217 + $0xa48] sm:$0xff]
        %v589 = vld [vmem:[%s217 + $0xa50] sm:$0xff]
        %v590 = vld [vmem:[%s217 + $0xa58] sm:$0xff]
        %v591 = vld [vmem:[%s217 + $0xa60] sm:$0xff]
        %v592 = vld [vmem:[%s217 + $0xa68] sm:$0xff]
        %v593 = vld [vmem:[%s217 + $0xa70] sm:$0xff]
        %v594 = vld [vmem:[%s217 + $0xa78] sm:$0xff]
        %v595 = vld [vmem:[%s217 + $0xa80] sm:$0xff]
        %v596 = vld [vmem:[%s217 + $0xa88] sm:$0xff]
        %v597 = vld [vmem:[%s217 + $0xa90] sm:$0xff]
        %v598 = vld [vmem:[%s217 + $0xa98] sm:$0xff]
        %v599 = vld [vmem:[%s217 + $0xaa0] sm:$0xff]
        %v600 = vld [vmem:[%s217 + $0xaa8] sm:$0xff]
        %v601 = vld [vmem:[%s217 + $0xab0] sm:$0xff]
        %v602 = vld [vmem:[%s217 + $0xab8] sm:$0xff]
        %v603 = vld [vmem:[%s217 + $0xac0] sm:$0xff]
        %v604 = vld [vmem:[%s217 + $0xac8] sm:$0xff]
        %v605 = vld [vmem:[%s217 + $0xad0] sm:$0xff]
        %v606 = vld [vmem:[%s217 + $0xad8] sm:$0xff]
        %v607 = vld [vmem:[%s217 + $0xae0] sm:$0xff]
        %v608 = vld [vmem:[%s217 + $0xae8] sm:$0xff]
        %v609 = vld [vmem:[%s217 + $0xaf0] sm:$0xff]
        %v610 = vld [vmem:[%s217 + $0xaf8] sm:$0xff]
        %v611 = vld [vmem:[%s217 + $0xb00] sm:$0xff]
        %v612 = vld [vmem:[%s217 + $0xb08] sm:$0xff]
        %v613 = vld [vmem:[%s217 + $0xb10] sm:$0xff]
        %v614 = vld [vmem:[%s217 + $0xb18] sm:$0xff]
        %v615 = vld [vmem:[%s217 + $0xb20] sm:$0xff]
        %v616 = vld [vmem:[%s217 + $0xb28] sm:$0xff]
        %v617 = vld [vmem:[%s217 + $0xb30] sm:$0xff]
        %v618 = vld [vmem:[%s217 + $0xb38] sm:$0xff]
        %v619 = vld [vmem:[%s217 + $0xb40] sm:$0xff]
        %v620 = vld [vmem:[%s217 + $0xb48] sm:$0xff]
        %v621 = vld [vmem:[%s217 + $0xb50] sm:$0xff]
        %v622 = vld [vmem:[%s217 + $0xb58] sm:$0xff]
        %v623 = vld [vmem:[%s217 + $0xb60] sm:$0xff]
        %v624 = vld [vmem:[%s217 + $0xb68] sm:$0xff]
        %v625 = vld [vmem:[%s217 + $0xb70] sm:$0xff]
        %v626 = vld [vmem:[%s217 + $0xb78] sm:$0xff]
        %v627 = vld [vmem:[%s217 + $0xb80] sm:$0xff]
        %v628 = vld [vmem:[%s217 + $0xb88] sm:$0xff]
        %v629 = vld [vmem:[%s217 + $0xb90] sm:$0xff]
        %v630 = vld [vmem:[%s217 + $0xb98] sm:$0xff]
        %v631 = vld [vmem:[%s217 + $0xba0] sm:$0xff]
        %v632 = vld [vmem:[%s217 + $0xba8] sm:$0xff]
        %v633 = vld [vmem:[%s217 + $0xbb0] sm:$0xff]
        %v634 = vld [vmem:[%s217 + $0xbb8] sm:$0xff]
        %v635 = vld [vmem:[%s217 + $0xbc0] sm:$0xff]
        %v636 = vld [vmem:[%s217 + $0xbc8] sm:$0xff]
        %v637 = vld [vmem:[%s217 + $0xbd0] sm:$0xff]
        %v638 = vld [vmem:[%s217 + $0xbd8] sm:$0xff]
        %v639 = vld [vmem:[%s217 + $0xbe0] sm:$0xff]
        %v640 = vld [vmem:[%s217 + $0xbe8] sm:$0xff]
        %v641 = vld [vmem:[%s217 + $0xbf0] sm:$0xff]
        %v642 = vld [vmem:[%s217 + $0xbf8] sm:$0xff]
        %v643 = vld [vmem:[%s217 + $0xc00] sm:$0xff]
        %v644 = vld [vmem:[%s217 + $0xc08] sm:$0xff]
        %v645 = vld [vmem:[%s217 + $0xc10] sm:$0xff]
        %v646 = vld [vmem:[%s217 + $0xc18] sm:$0xff]
        %v647 = vld [vmem:[%s217 + $0xc20] sm:$0xff]
        %v648 = vld [vmem:[%s217 + $0xc28] sm:$0xff]
        %v649 = vld [vmem:[%s217 + $0xc30] sm:$0xff]
        %v650 = vld [vmem:[%s217 + $0xc38] sm:$0xff]
        %v651 = vld [vmem:[%s217 + $0xc40] sm:$0xff]
        %v652 = vld [vmem:[%s217 + $0xc48] sm:$0xff]
        %v653 = vld [vmem:[%s217 + $0xc50] sm:$0xff]
        %v654 = vld [vmem:[%s217 + $0xc58] sm:$0xff]
        %v655 = vld [vmem:[%s217 + $0xc60] sm:$0xff]
        %v656 = vld [vmem:[%s217 + $0xc68] sm:$0xff]
        %v657 = vld [vmem:[%s217 + $0xc70] sm:$0xff]
        %v658 = vld [vmem:[%s217 + $0xc78] sm:$0xff]
        %v659 = vld [vmem:[%s217 + $0xc80] sm:$0xff]
        %v660 = vld [vmem:[%s217 + $0xc88] sm:$0xff]
        %v661 = vld [vmem:[%s217 + $0xc90] sm:$0xff]
        %v662 = vld [vmem:[%s217 + $0xc98] sm:$0xff]
        %v663 = vld [vmem:[%s217 + $0xca0] sm:$0xff]
        %v664 = vld [vmem:[%s217 + $0xca8] sm:$0xff]
        %v665 = vld [vmem:[%s217 + $0xcb0] sm:$0xff]
        %v666 = vld [vmem:[%s217 + $0xcb8] sm:$0xff]
        %v667 = vld [vmem:[%s217 + $0xcc0] sm:$0xff]
        %v668 = vld [vmem:[%s217 + $0xcc8] sm:$0xff]
        %v669 = vld [vmem:[%s217 + $0xcd0] sm:$0xff]
        %v670 = vld [vmem:[%s217 + $0xcd8] sm:$0xff]
        %v671 = vld [vmem:[%s217 + $0xce0] sm:$0xff]
        %v672 = vld [vmem:[%s217 + $0xce8] sm:$0xff]
        %v673 = vld [vmem:[%s217 + $0xcf0] sm:$0xff]
        %v674 = vld [vmem:[%s217 + $0xcf8] sm:$0xff]
        %v675 = vld [vmem:[%s217 + $0xd00] sm:$0xff]
        %v676 = vld [vmem:[%s217 + $0xd08] sm:$0xff]
        %v677 = vld [vmem:[%s217 + $0xd10] sm:$0xff]
        %v678 = vld [vmem:[%s217 + $0xd18] sm:$0xff]
        %v679 = vld [vmem:[%s217 + $0xd20] sm:$0xff]
        %v680 = vld [vmem:[%s217 + $0xd28] sm:$0xff]
        %v681 = vld [vmem:[%s217 + $0xd30] sm:$0xff]
        %v682 = vld [vmem:[%s217 + $0xd38] sm:$0xff]
        %v683 = vld [vmem:[%s217 + $0xd40] sm:$0xff]
        %v684 = vld [vmem:[%s217 + $0xd48] sm:$0xff]
        %v685 = vld [vmem:[%s217 + $0xd50] sm:$0xff]
        %v686 = vld [vmem:[%s217 + $0xd58] sm:$0xff]
        %v687 = vld [vmem:[%s217 + $0xd60] sm:$0xff]
        %v688 = vld [vmem:[%s217 + $0xd68] sm:$0xff]
        %v689 = vld [vmem:[%s217 + $0xd70] sm:$0xff]
        %v690 = vld [vmem:[%s217 + $0xd78] sm:$0xff]
        %v691 = vld [vmem:[%s217 + $0xd80] sm:$0xff]
        %v692 = vld [vmem:[%s217 + $0xd88] sm:$0xff]
        %v693 = vld [vmem:[%s217 + $0xd90] sm:$0xff]
        %v694 = vld [vmem:[%s217 + $0xd98] sm:$0xff]
        %v695 = vld [vmem:[%s217 + $0xda0] sm:$0xff]
        %v696 = vld [vmem:[%s217 + $0xda8] sm:$0xff]
        %v697 = vld [vmem:[%s217 + $0xdb0] sm:$0xff]
        %v698 = vld [vmem:[%s217 + $0xdb8] sm:$0xff]
        %v699 = vld [vmem:[%s217 + $0xdc0] sm:$0xff]
        %v700 = vld [vmem:[%s217 + $0xdc8] sm:$0xff]
        %v701 = vld [vmem:[%s217 + $0xdd0] sm:$0xff]
        %v702 = vld [vmem:[%s217 + $0xdd8] sm:$0xff]
        %v703 = vld [vmem:[%s217 + $0xde0] sm:$0xff]
        %v704 = vld [vmem:[%s217 + $0xde8] sm:$0xff]
        %v705 = vld [vmem:[%s217 + $0xdf0] sm:$0xff]
        %v706 = vld [vmem:[%s217 + $0xdf8] sm:$0xff]
        %v707 = vld [vmem:[%s217 + $0xe00] sm:$0xff]
        %v708 = vld [vmem:[%s217 + $0xe08] sm:$0xff]
        %v709 = vld [vmem:[%s217 + $0xe10] sm:$0xff]
        %v710 = vld [vmem:[%s217 + $0xe18] sm:$0xff]
        %v711 = vld [vmem:[%s217 + $0xe20] sm:$0xff]
        %v712 = vld [vmem:[%s217 + $0xe28] sm:$0xff]
        %v713 = vld [vmem:[%s217 + $0xe30] sm:$0xff]
        %v714 = vld [vmem:[%s217 + $0xe38] sm:$0xff]
        %v715 = vld [vmem:[%s217 + $0xe40] sm:$0xff]
        %v716 = vld [vmem:[%s217 + $0xe48] sm:$0xff]
        %v717 = vld [vmem:[%s217 + $0xe50] sm:$0xff]
        %v718 = vld [vmem:[%s217 + $0xe58] sm:$0xff]
        %v719 = vld [vmem:[%s217 + $0xe60] sm:$0xff]
        %v720 = vld [vmem:[%s217 + $0xe68] sm:$0xff]
        %v721 = vld [vmem:[%s217 + $0xe70] sm:$0xff]
        %v722 = vld [vmem:[%s217 + $0xe78] sm:$0xff]
        %v723 = vld [vmem:[%s217 + $0xe80] sm:$0xff]
        %v724 = vld [vmem:[%s217 + $0xe88] sm:$0xff]
        %v725 = vld [vmem:[%s217 + $0xe90] sm:$0xff]
        %v726 = vld [vmem:[%s217 + $0xe98] sm:$0xff]
        %v727 = vld [vmem:[%s217 + $0xea0] sm:$0xff]
        %v728 = vld [vmem:[%s217 + $0xea8] sm:$0xff]
        %v729 = vld [vmem:[%s217 + $0xeb0] sm:$0xff]
        %v730 = vld [vmem:[%s217 + $0xeb8] sm:$0xff]
        %v731 = vld [vmem:[%s217 + $0xec0] sm:$0xff]
        %v732 = vld [vmem:[%s217 + $0xec8] sm:$0xff]
        %v733 = vld [vmem:[%s217 + $0xed0] sm:$0xff]
        %v734 = vld [vmem:[%s217 + $0xed8] sm:$0xff]
        %v735 = vld [vmem:[%s217 + $0xee0] sm:$0xff]
        %v736 = vld [vmem:[%s217 + $0xee8] sm:$0xff]
        %v737 = vld [vmem:[%s217 + $0xef0] sm:$0xff]
        %v738 = vld [vmem:[%s217 + $0xef8] sm:$0xff]
        %v739 = vld [vmem:[%s217 + $0xf00] sm:$0xff]
        %v740 = vld [vmem:[%s217 + $0xf08] sm:$0xff]
        %v741 = vld [vmem:[%s217 + $0xf10] sm:$0xff]
        %v742 = vld [vmem:[%s217 + $0xf18] sm:$0xff]
        %v743 = vld [vmem:[%s217 + $0xf20] sm:$0xff]
        %v744 = vld [vmem:[%s217 + $0xf28] sm:$0xff]
        %v745 = vld [vmem:[%s217 + $0xf30] sm:$0xff]
        %v746 = vld [vmem:[%s217 + $0xf38] sm:$0xff]
        %v747 = vld [vmem:[%s217 + $0xf40] sm:$0xff]
        %v748 = vld [vmem:[%s217 + $0xf48] sm:$0xff]
        %v749 = vld [vmem:[%s217 + $0xf50] sm:$0xff]
        %v750 = vld [vmem:[%s217 + $0xf58] sm:$0xff]
        %v751 = vld [vmem:[%s217 + $0xf60] sm:$0xff]
        %v752 = vld [vmem:[%s217 + $0xf68] sm:$0xff]
        %v753 = vld [vmem:[%s217 + $0xf70] sm:$0xff]
        %v754 = vld [vmem:[%s217 + $0xf78] sm:$0xff]
        %v755 = vld [vmem:[%s217 + $0xf80] sm:$0xff]
        %v756 = vld [vmem:[%s217 + $0xf88] sm:$0xff]
        %v757 = vld [vmem:[%s217 + $0xf90] sm:$0xff]
        %v758 = vld [vmem:[%s217 + $0xf98] sm:$0xff]
        %v759 = vld [vmem:[%s217 + $0xfa0] sm:$0xff]
        %v760 = vld [vmem:[%s217 + $0xfa8] sm:$0xff]
        %v761 = vld [vmem:[%s217 + $0xfb0] sm:$0xff]
        %v762 = vld [vmem:[%s217 + $0xfb8] sm:$0xff]
        %v763 = vld [vmem:[%s217 + $0xfc0] sm:$0xff]
        %v764 = vld [vmem:[%s217 + $0xfc8] sm:$0xff]
        %v765 = vld [vmem:[%s217 + $0xfd0] sm:$0xff]
        %v766 = vld [vmem:[%s217 + $0xfd8] sm:$0xff]
        %v767 = vld [vmem:[%s217 + $0xfe0] sm:$0xff]
        %v768 = vld [vmem:[%s217 + $0xfe8] sm:$0xff]
        %v769 = vld [vmem:[%s217 + $0xff0] sm:$0xff]
        %v770 = vld [vmem:[%s217 + $0xff8] sm:$0xff]
        %v771 = vld [vmem:[%s217 + $0x1000] sm:$0xff]
        %v772 = vld [vmem:[%s217 + $0x1008] sm:$0xff]
        %v773 = vld [vmem:[%s217 + $0x1010] sm:$0xff]
        %v774 = vld [vmem:[%s217 + $0x1018] sm:$0xff]
        %v775 = vld [vmem:[%s217 + $0x1020] sm:$0xff]
        %v776 = vld [vmem:[%s217 + $0x1028] sm:$0xff]
        %v777 = vld [vmem:[%s217 + $0x1030] sm:$0xff]
        %v778 = vld [vmem:[%s217 + $0x1038] sm:$0xff]
        %v779 = vld [vmem:[%s217 + $0x1040] sm:$0xff]
        %v780 = vld [vmem:[%s217 + $0x1048] sm:$0xff]
        %v781 = vld [vmem:[%s217 + $0x1050] sm:$0xff]
        %v782 = vld [vmem:[%s217 + $0x1058] sm:$0xff]
        %v783 = vld [vmem:[%s217 + $0x1060] sm:$0xff]
        %v784 = vld [vmem:[%s217 + $0x1068] sm:$0xff]
        %v785 = vld [vmem:[%s217 + $0x1070] sm:$0xff]
        %v786 = vld [vmem:[%s217 + $0x1078] sm:$0xff]
        %v787 = vld [vmem:[%s217 + $0x1080] sm:$0xff]
        %v788 = vld [vmem:[%s217 + $0x1088] sm:$0xff]
        %v789 = vld [vmem:[%s217 + $0x1090] sm:$0xff]
        %v790 = vld [vmem:[%s217 + $0x1098] sm:$0xff]
        %v791 = vld [vmem:[%s217 + $0x10a0] sm:$0xff]
        %v792 = vld [vmem:[%s217 + $0x10a8] sm:$0xff]
        %v793 = vld [vmem:[%s217 + $0x10b0] sm:$0xff]
        %v794 = vld [vmem:[%s217 + $0x10b8] sm:$0xff]
        %v795 = vld [vmem:[%s217 + $0x10c0] sm:$0xff]
        %v796 = vld [vmem:[%s217 + $0x10c8] sm:$0xff]
        %v797 = vld [vmem:[%s217 + $0x10d0] sm:$0xff]
        %v798 = vld [vmem:[%s217 + $0x10d8] sm:$0xff]
        %v799 = vld [vmem:[%s217 + $0x10e0] sm:$0xff]
        %v800 = vld [vmem:[%s217 + $0x10e8] sm:$0xff]
        %v801 = vld [vmem:[%s217 + $0x10f0] sm:$0xff]
        %v802 = vld [vmem:[%s217 + $0x10f8] sm:$0xff]
        %v803 = vld [vmem:[%s217 + $0x1100] sm:$0xff]
        %v804 = vld [vmem:[%s217 + $0x1108] sm:$0xff]
        %v805 = vld [vmem:[%s217 + $0x1110] sm:$0xff]
        %v806 = vld [vmem:[%s217 + $0x1118] sm:$0xff]
        %v807 = vld [vmem:[%s217 + $0x1120] sm:$0xff]
        %v808 = vld [vmem:[%s217 + $0x1128] sm:$0xff]
        %v809 = vld [vmem:[%s217 + $0x1130] sm:$0xff]
        %v810 = vld [vmem:[%s217 + $0x1138] sm:$0xff]
        %v811 = vld [vmem:[%s217 + $0x1140] sm:$0xff]
        %v812 = vld [vmem:[%s217 + $0x1148] sm:$0xff]
        %v813 = vld [vmem:[%s217 + $0x1150] sm:$0xff]
        %v814 = vld [vmem:[%s217 + $0x1158] sm:$0xff]
        %v815 = vld [vmem:[%s217 + $0x1160] sm:$0xff]
        %v816 = vld [vmem:[%s217 + $0x1168] sm:$0xff]
        %v817 = vld [vmem:[%s217 + $0x1170] sm:$0xff]
        %v818 = vld [vmem:[%s217 + $0x1178] sm:$0xff]
        %v819 = vld [vmem:[%s217 + $0x1180] sm:$0xff]
        %v820 = vld [vmem:[%s217 + $0x1188] sm:$0xff]
        %v821 = vld [vmem:[%s217 + $0x1190] sm:$0xff]
        %v822 = vld [vmem:[%s217 + $0x1198] sm:$0xff]
        %v823 = vld [vmem:[%s217 + $0x11a0] sm:$0xff]
        %v824 = vld [vmem:[%s217 + $0x11a8] sm:$0xff]
        %v825 = vld [vmem:[%s217 + $0x11b0] sm:$0xff]
        %v826 = vld [vmem:[%s217 + $0x11b8] sm:$0xff]
        %v827 = vld [vmem:[%s217 + $0x11c0] sm:$0xff]
        %v828 = vld [vmem:[%s217 + $0x11c8] sm:$0xff]
        %v829 = vld [vmem:[%s217 + $0x11d0] sm:$0xff]
        %v830 = vld [vmem:[%s217 + $0x11d8] sm:$0xff]
        %v831 = vld [vmem:[%s217 + $0x11e0] sm:$0xff]
        %v832 = vld [vmem:[%s217 + $0x11e8] sm:$0xff]
        %v833 = vld [vmem:[%s217 + $0x11f0] sm:$0xff]
        %v834 = vld [vmem:[%s217 + $0x11f8] sm:$0xff]
        %v835 = vld [vmem:[%s217 + $0x1200] sm:$0xff]
        %v836 = vld [vmem:[%s217 + $0x1208] sm:$0xff]
        %v837 = vld [vmem:[%s217 + $0x1210] sm:$0xff]
        %v838 = vld [vmem:[%s217 + $0x1218] sm:$0xff]
        %v839 = vld [vmem:[%s217 + $0x1220] sm:$0xff]
        %v840 = vld [vmem:[%s217 + $0x1228] sm:$0xff]
        %v841 = vld [vmem:[%s217 + $0x1230] sm:$0xff]
        %v842 = vld [vmem:[%s217 + $0x1238] sm:$0xff]
        %v843 = vld [vmem:[%s217 + $0x1240] sm:$0xff]
        %v844 = vld [vmem:[%s217 + $0x1248] sm:$0xff]
        %v845 = vld [vmem:[%s217 + $0x1250] sm:$0xff]
        %v846 = vld [vmem:[%s217 + $0x1258] sm:$0xff]
        %v847 = vld [vmem:[%s217 + $0x1260] sm:$0xff]
        %v848 = vld [vmem:[%s217 + $0x1268] sm:$0xff]
        %v849 = vld [vmem:[%s217 + $0x1270] sm:$0xff]
        %v850 = vld [vmem:[%s217 + $0x1278] sm:$0xff]
        %v851 = vld [vmem:[%s217 + $0x1280] sm:$0xff]
        %v852 = vld [vmem:[%s217 + $0x1288] sm:$0xff]
        %v853 = vld [vmem:[%s217 + $0x1290] sm:$0xff]
        %v854 = vld [vmem:[%s217 + $0x1298] sm:$0xff]
        %v855 = vld [vmem:[%s217 + $0x12a0] sm:$0xff]
        %v856 = vld [vmem:[%s217 + $0x12a8] sm:$0xff]
        %v857 = vld [vmem:[%s217 + $0x12b0] sm:$0xff]
        %v858 = vld [vmem:[%s217 + $0x12b8] sm:$0xff]
        %v859 = vld [vmem:[%s217 + $0x12c0] sm:$0xff]
        %v860 = vld [vmem:[%s217 + $0x12c8] sm:$0xff]
        %v861 = vld [vmem:[%s217 + $0x12d0] sm:$0xff]
        %v862 = vld [vmem:[%s217 + $0x12d8] sm:$0xff]
        %v863 = vld [vmem:[%s217 + $0x12e0] sm:$0xff]
        %v864 = vld [vmem:[%s217 + $0x12e8] sm:$0xff]
        %v865 = vld [vmem:[%s217 + $0x12f0] sm:$0xff]
        %v866 = vld [vmem:[%s217 + $0x12f8] sm:$0xff]
        %v867 = vld [vmem:[%s217 + $0x1300] sm:$0xff]
        %v868 = vld [vmem:[%s217 + $0x1308] sm:$0xff]
        %v869 = vld [vmem:[%s217 + $0x1310] sm:$0xff]
        %v870 = vld [vmem:[%s217 + $0x1318] sm:$0xff]
        %v871 = vld [vmem:[%s217 + $0x1320] sm:$0xff]
        %v872 = vld [vmem:[%s217 + $0x1328] sm:$0xff]
        %v873 = vld [vmem:[%s217 + $0x1330] sm:$0xff]
        %v874 = vld [vmem:[%s217 + $0x1338] sm:$0xff]
        %v875 = vld [vmem:[%s217 + $0x1340] sm:$0xff]
        %v876 = vld [vmem:[%s217 + $0x1348] sm:$0xff]
        %v877 = vld [vmem:[%s217 + $0x1350] sm:$0xff]
        %v878 = vld [vmem:[%s217 + $0x1358] sm:$0xff]
        %v879 = vld [vmem:[%s217 + $0x1360] sm:$0xff]
        %v880 = vld [vmem:[%s217 + $0x1368] sm:$0xff]
        %v881 = vld [vmem:[%s217 + $0x1370] sm:$0xff]
        %v882 = vld [vmem:[%s217 + $0x1378] sm:$0xff]
        %v883 = vld [vmem:[%s217 + $0x1380] sm:$0xff]
        %v884 = vld [vmem:[%s217 + $0x1388] sm:$0xff]
        %v885 = vld [vmem:[%s217 + $0x1390] sm:$0xff]
        %v886 = vld [vmem:[%s217 + $0x1398] sm:$0xff]
        %v887 = vld [vmem:[%s217 + $0x13a0] sm:$0xff]
        %v888 = vld [vmem:[%s217 + $0x13a8] sm:$0xff]
        %v889 = vld [vmem:[%s217 + $0x13b0] sm:$0x1]
        %v890 = vld [vmem:[%s217 + $0x13b8] sm:$0x1]
        %v891 = vld [vmem:[%s217 + $0x13c0] sm:$0x1]
        %v892 = vld [vmem:[%s217 + $0x13c8] sm:$0x1]
        %v893 = vld [vmem:[%s217 + $0x13d0] sm:$0x1]
        %v894 = vld [vmem:[%s217 + $0x13d8] sm:$0x1]
        %v895 = vld [vmem:[%s217 + $0x13e0] sm:$0x1]
        %v896 = vld [vmem:[%s217 + $0x13e8] sm:$0x1]
        %v897 = vld [vmem:[%s217 + $0x13f0] sm:$0x1]
        %v898 = vld [vmem:[%s217 + $0x13f8] sm:$0x1]
        %v899 = vld [vmem:[%s217 + $0x1400] sm:$0x1]
        %v900 = vld [vmem:[%s217 + $0x1408] sm:$0x1]
        %v901 = vld [vmem:[%s217 + $0x1410] sm:$0x1]
        %v902 = vld [vmem:[%s217 + $0x1418] sm:$0x1]
        %v903 = vld [vmem:[%s217 + $0x1420] sm:$0x1]
        %v904 = vld [vmem:[%s217 + $0x1428] sm:$0x1]
        %v905 = vld [vmem:[%s217 + $0x1430] sm:$0x1]
        %v906 = vld [vmem:[%s217 + $0x1438] sm:$0x1]
        %v907 = vld [vmem:[%s217 + $0x1440] sm:$0x1]
        %v908 = vld [vmem:[%s217 + $0x1448] sm:$0x1]
        %v909 = vld [vmem:[%s217 + $0x1450] sm:$0x1]
        %v910 = vld [vmem:[%s217 + $0x1458] sm:$0x1]
        %v911 = vld [vmem:[%s217 + $0x1460] sm:$0x1]
        %v912 = vld [vmem:[%s217 + $0x1468] sm:$0x1]
        %v913 = vld [vmem:[%s217 + $0x1470] sm:$0x1]
        %v914 = vld [vmem:[%s217 + $0x1478] sm:$0x1]
        %v915 = vld [vmem:[%s217 + $0x1480] sm:$0x1]
        %v916 = vld [vmem:[%s217 + $0x1488] sm:$0x1]
        %v917 = vld [vmem:[%s217 + $0x1490] sm:$0x1]
        %v918 = vld [vmem:[%s217 + $0x1498] sm:$0x1]
        %v919 = vld [vmem:[%s217 + $0x14a0] sm:$0x1]
        %v920 = vld [vmem:[%s217 + $0x14a8] sm:$0x1]
        %v921 = vld [vmem:[%s217 + $0x14b0] sm:$0x1]
        %v922 = vld [vmem:[%s217 + $0x14b8] sm:$0x1]
        %v923 = vld [vmem:[%s217 + $0x14c0] sm:$0x1]
        %v924 = vld [vmem:[%s217 + $0x14c8] sm:$0x1]
        %v925 = vld [vmem:[%s217 + $0x14d0] sm:$0x1]
        %v926 = vld [vmem:[%s217 + $0x14d8] sm:$0x1]
        %v927 = vld [vmem:[%s217 + $0x14e0] sm:$0x1]
        %v928 = vld [vmem:[%s217 + $0x14e8] sm:$0x1]
        %v929 = vld [vmem:[%s217 + $0x14f0] sm:$0x1]
        %v930 = vld [vmem:[%s217 + $0x14f8] sm:$0x1]
        %v931 = vld [vmem:[%s217 + $0x1500] sm:$0x1]
        %v932 = vld [vmem:[%s217 + $0x1508] sm:$0x1]
        %v933 = vld [vmem:[%s217 + $0x1510] sm:$0x1]
        %v934 = vld [vmem:[%s217 + $0x1518] sm:$0x1]
        %v935 = vld [vmem:[%s217 + $0x1520] sm:$0x1]
        %v936 = vld [vmem:[%s217 + $0x1528] sm:$0x1]
        %v937 = vld [vmem:[%s217 + $0x1530] sm:$0x1]
        %v938 = vld [vmem:[%s217 + $0x1538] sm:$0x1]
        %v939 = vld [vmem:[%s217 + $0x1540] sm:$0x1]
        %v940 = vld [vmem:[%s217 + $0x1548] sm:$0x1]
        %v941 = vld [vmem:[%s217 + $0x1550] sm:$0x1]
        %v942 = vld [vmem:[%s217 + $0x1558] sm:$0x1]
        %v943 = vld [vmem:[%s217 + $0x1560] sm:$0x1]
        %v944 = vld [vmem:[%s217 + $0x1568] sm:$0x1]
        %v945 = vld [vmem:[%s217 + $0x1570] sm:$0x1]
        %v946 = vld [vmem:[%s217 + $0x1578] sm:$0x1]
        %v947 = vld [vmem:[%s217 + $0x1580] sm:$0x1]
        %v948 = vld [vmem:[%s217 + $0x1588] sm:$0x1]
        %v949 = vld [vmem:[%s217 + $0x1590] sm:$0x1]
        %v950 = vld [vmem:[%s217 + $0x1598] sm:$0x1]
        %v951 = vld [vmem:[%s217 + $0x15a0] sm:$0x1]
        %v952 = vld [vmem:[%s217 + $0x15a8] sm:$0x1]
        %v953 = vld [vmem:[%s217 + $0x15b0] sm:$0x1]
        %v954 = vld [vmem:[%s217 + $0x15b8] sm:$0x1]
        %v955 = vld [vmem:[%s217 + $0x15c0] sm:$0x1]
        %v956 = vld [vmem:[%s217 + $0x15c8] sm:$0x1]
        %v957 = vld [vmem:[%s217 + $0x15d0] sm:$0x1]
        %v958 = vld [vmem:[%s217 + $0x15d8] sm:$0x1]
        %v959 = vld [vmem:[%s217 + $0x15e0] sm:$0x1]
        %v960 = vld [vmem:[%s217 + $0x15e8] sm:$0x1]
        %v961 = vld [vmem:[%s217 + $0x15f0] sm:$0x1]
        %v962 = vld [vmem:[%s217 + $0x15f8] sm:$0x1]
        %v963 = vld [vmem:[%s217 + $0x1600] sm:$0x1]
        %v964 = vld [vmem:[%s217 + $0x1608] sm:$0x1]
        %v965 = vld [vmem:[%s217 + $0x1610] sm:$0x1]
        %v966 = vld [vmem:[%s217 + $0x1618] sm:$0x1]
        %v967 = vld [vmem:[%s217 + $0x1620] sm:$0x1]
        %v968 = vld [vmem:[%s217 + $0x1628] sm:$0x1]
        %v969 = vld [vmem:[%s217 + $0x1630] sm:$0x1]
        %v970 = vld [vmem:[%s217 + $0x1638] sm:$0x1]
        %v971 = vld [vmem:[%s217 + $0x1640] sm:$0x1]
        %v972 = vld [vmem:[%s217 + $0x1648] sm:$0x1]
        %v973 = vld [vmem:[%s217 + $0x1650] sm:$0x1]
        %v974 = vld [vmem:[%s217 + $0x1658] sm:$0x1]
        %v975 = vld [vmem:[%s217 + $0x1660] sm:$0x1]
        %v976 = vld [vmem:[%s217 + $0x1668] sm:$0x1]
        %v977 = vld [vmem:[%s217 + $0x1670] sm:$0x1]
        %v978 = vld [vmem:[%s217 + $0x1678] sm:$0x1]
        %v979 = vld [vmem:[%s217 + $0x1680] sm:$0x1]
        %v980 = vld [vmem:[%s217 + $0x1688] sm:$0x1]
        %v981 = vld [vmem:[%s217 + $0x1690] sm:$0x1]
        %v982 = vld [vmem:[%s217 + $0x1698] sm:$0x1]
        %v983 = vld [vmem:[%s217 + $0x16a0] sm:$0x1]
        %v984 = vld [vmem:[%s217 + $0x16a8] sm:$0x1]
        %v985 = vld [vmem:[%s217 + $0x16b0] sm:$0x1]
        %v986 = vld [vmem:[%s217 + $0x16b8] sm:$0x1]
        %v987 = vld [vmem:[%s217 + $0x16c0] sm:$0x1]
        %v988 = vld [vmem:[%s217 + $0x16c8] sm:$0x1]
        %v989 = vld [vmem:[%s217 + $0x16d0] sm:$0x1]
        %v990 = vld [vmem:[%s217 + $0x16d8] sm:$0x1]
        %v991 = vld [vmem:[%s217 + $0x16e0] sm:$0x1]
        %v992 = vld [vmem:[%s217 + $0x16e8] sm:$0x1]
        %v993 = vld [vmem:[%s217 + $0x16f0] sm:$0x1]
        %v994 = vld [vmem:[%s217 + $0x16f8] sm:$0x1]
        %v995 = vld [vmem:[%s217 + $0x1700] sm:$0x1]
        %v996 = vld [vmem:[%s217 + $0x1708] sm:$0x1]
        %v997 = vld [vmem:[%s217 + $0x1710] sm:$0x1]
        %v998 = vld [vmem:[%s217 + $0x1718] sm:$0x1]
        %v999 = vld [vmem:[%s217 + $0x1720] sm:$0x1]
        %v1000 = vld [vmem:[%s217 + $0x1728] sm:$0x1]
        %v1001 = vld [vmem:[%s217 + $0x1730] sm:$0x1]
        %v1002 = vld [vmem:[%s217 + $0x1738] sm:$0x1]
        %v1003 = vld [vmem:[%s217 + $0x1740] sm:$0x1]
        %v1004 = vld [vmem:[%s217 + $0x1748] sm:$0x1]
        %v1005 = vld [vmem:[%s217 + $0x1750] sm:$0x1]
        %v1006 = vld [vmem:[%s217 + $0x1758] sm:$0x1]
        %v1007 = vld [vmem:[%s217 + $0x1760] sm:$0x1]
        %v1008 = vld [vmem:[%s217 + $0x1768] sm:$0x1]
        %v1009 = vld [vmem:[%s217 + $0x1770] sm:$0x1]
        %v1010 = vld [vmem:[%s217 + $0x1778] sm:$0x1]
        %v1011 = vld [vmem:[%s217 + $0x1780] sm:$0x1]
        %v1012 = vld [vmem:[%s217 + $0x1788] sm:$0x1]
        %v1013 = vld [vmem:[%s217 + $0x1790] sm:$0x1]
        %v1014 = vld [vmem:[%s217 + $0x1798] sm:$0x1]
        %v1015 = vld [vmem:[%s217 + $0x17a0] sm:$0x1]
        %v1016 = vld [vmem:[%s217 + $0x17a8] sm:$0x1]
        %v1017 = vld [vmem:[%s217 + $0x17b0] sm:$0x1]
        %v1018 = vld [vmem:[%s217 + $0x17b8] sm:$0x1]
        %v1019 = vld [vmem:[%s217 + $0x17c0] sm:$0x1]
        %v1020 = vld [vmem:[%s217 + $0x17c8] sm:$0x1]
        %v1021 = vld [vmem:[%s217 + $0x17d0] sm:$0x1]
        %v1022 = vld [vmem:[%s217 + $0x17d8] sm:$0x1]
        %v1023 = vld [vmem:[%s217 + $0x17e0] sm:$0x1]
        %v1024 = vld [vmem:[%s217 + $0x17e8] sm:$0x1]
        %v1025 = vld [vmem:[%s217 + $0x17f0] sm:$0x1]
        %v1026 = vld [vmem:[%s217 + $0x17f8] sm:$0x1]
        %v1027 = vld [vmem:[%s217 + $0x1800] sm:$0x1]
        %v1028 = vld [vmem:[%s217 + $0x1808] sm:$0x1]
        %v1029 = vld [vmem:[%s217 + $0x1810] sm:$0x1]
        %v1030 = vld [vmem:[%s217 + $0x1818] sm:$0x1]
        %v1031 = vld [vmem:[%s217 + $0x1820] sm:$0x1]
        %v1032 = vld [vmem:[%s217 + $0x1828] sm:$0x1]
        %v1033 = vld [vmem:[%s217 + $0x1830] sm:$0x1]
        %v1034 = vld [vmem:[%s217 + $0x1838] sm:$0x1]
        %v1035 = vld [vmem:[%s217 + $0x1840] sm:$0x1]
        %v1036 = vld [vmem:[%s217 + $0x1848] sm:$0x1]
        %v1037 = vld [vmem:[%s217 + $0x1850] sm:$0x1]
        %v1038 = vld [vmem:[%s217 + $0x1858] sm:$0x1]
        %v1039 = vld [vmem:[%s217 + $0x1860] sm:$0x1]
        %v1040 = vld [vmem:[%s217 + $0x1868] sm:$0x1]
        %v1041 = vld [vmem:[%s217 + $0x1870] sm:$0x1]
        %v1042 = vld [vmem:[%s217 + $0x1878] sm:$0x1]
        %v1043 = vld [vmem:[%s217 + $0x1880] sm:$0x1]
        %v1044 = vld [vmem:[%s217 + $0x1888] sm:$0x1]
        %v1045 = vld [vmem:[%s217 + $0x1890] sm:$0x1]
        %v1046 = vld [vmem:[%s217 + $0x1898] sm:$0x1]
        %v1047 = vld [vmem:[%s217 + $0x18a0] sm:$0x1]
        %v1048 = vld [vmem:[%s217 + $0x18a8] sm:$0x1]
        %v1049 = vld [vmem:[%s217 + $0x18b0] sm:$0x1]
        %v1050 = vld [vmem:[%s217 + $0x18b8] sm:$0x1]
        %v1051 = vld [vmem:[%s217 + $0x18c0] sm:$0x1]
        %v1052 = vld [vmem:[%s217 + $0x18c8] sm:$0x1]
        %v1053 = vld [vmem:[%s217 + $0x18d0] sm:$0x1]
        %v1054 = vld [vmem:[%s217 + $0x18d8] sm:$0x1]
        %v1055 = vld [vmem:[%s217 + $0x18e0] sm:$0x1]
        %v1056 = vld [vmem:[%s217 + $0x18e8] sm:$0x1]
        %v1057 = vld [vmem:[%s217 + $0x18f0] sm:$0x1]
        %v1058 = vld [vmem:[%s217 + $0x18f8] sm:$0x1]
        %v1059 = vld [vmem:[%s217 + $0x1900] sm:$0x1]
        %v1060 = vld [vmem:[%s217 + $0x1908] sm:$0x1]
        %v1061 = vld [vmem:[%s217 + $0x1910] sm:$0x1]
        %v1062 = vld [vmem:[%s217 + $0x1918] sm:$0x1]
        %v1063 = vld [vmem:[%s217 + $0x1920] sm:$0x1]
        %v1064 = vld [vmem:[%s217 + $0x1928] sm:$0x1]
        %v1065 = vld [vmem:[%s217 + $0x1930] sm:$0x1]
        %v1066 = vld [vmem:[%s217 + $0x1938] sm:$0x1]
        %v1067 = vld [vmem:[%s217 + $0x1940] sm:$0x1]
        %v1068 = vld [vmem:[%s217 + $0x1948] sm:$0x1]
        %v1069 = vld [vmem:[%s217 + $0x1950] sm:$0x1]
        %v1070 = vld [vmem:[%s217 + $0x1958] sm:$0x1]
        %v1071 = vld [vmem:[%s217 + $0x1960] sm:$0x1]
        %v1072 = vld [vmem:[%s217 + $0x1968] sm:$0x1]
        %v1073 = vld [vmem:[%s217 + $0x1970] sm:$0x1]
        %v1074 = vld [vmem:[%s217 + $0x1978] sm:$0x1]
        %v1075 = vld [vmem:[%s217 + $0x1980] sm:$0x1]
        %v1076 = vld [vmem:[%s217 + $0x1988] sm:$0x1]
        %v1077 = vld [vmem:[%s217 + $0x1990] sm:$0x1]
        %v1078 = vld [vmem:[%s217 + $0x1998] sm:$0x1]
        %v1079 = vld [vmem:[%s217 + $0x19a0] sm:$0x1]
        %v1080 = vld [vmem:[%s217 + $0x19a8] sm:$0x1]
        %v1081 = vld [vmem:[%s217 + $0x19b0] sm:$0x1]
        %v1082 = vld [vmem:[%s217 + $0x19b8] sm:$0x1]
        %v1083 = vld [vmem:[%s217 + $0x19c0] sm:$0x1]
        %v1084 = vld [vmem:[%s217 + $0x19c8] sm:$0x1]
        %v1085 = vld [vmem:[%s217 + $0x19d0] sm:$0x1]
        %v1086 = vld [vmem:[%s217 + $0x19d8] sm:$0x1]
        %v1087 = vld [vmem:[%s217 + $0x19e0] sm:$0x1]
        %v1088 = vld [vmem:[%s217 + $0x19e8] sm:$0x1]
        %v1089 = vld [vmem:[%s217 + $0x19f0] sm:$0x1]
        %v1090 = vld [vmem:[%s217 + $0x19f8] sm:$0x1]
        %v1091 = vld [vmem:[%s217 + $0x1a00] sm:$0x1]
        %v1092 = vld [vmem:[%s217 + $0x1a08] sm:$0x1]
        %v1093 = vld [vmem:[%s217 + $0x1a10] sm:$0x1]
        %v1094 = vld [vmem:[%s217 + $0x1a18] sm:$0x1]
        %v1095 = vld [vmem:[%s217 + $0x1a20] sm:$0x1]
        %v1096 = vld [vmem:[%s217 + $0x1a28] sm:$0x1]
        %v1097 = vld [vmem:[%s217 + $0x1a30] sm:$0x1]
        %v1098 = vld [vmem:[%s217 + $0x1a38] sm:$0x1]
        %v1099 = vld [vmem:[%s0] sm:$0xff]
        %v1100 = vld [vmem:[%s0 + $0x8] sm:$0xff]
        %v1101 = vld [vmem:[%s0 + $0x10] sm:$0xff]
        %v1102 = vld [vmem:[%s0 + $0x18] sm:$0x1]
        %1104 = vset.pattern.permute.xlu0 0
        %1105 = vperm.xlu0 %1104, %v1099
        %v1106 = vpop.permute.xlu0 %1105
        %1109 = vset.pattern.permute.xlu0 0
        %1110 = vperm.xlu0 %1109, %v1100
        %v1111 = vpop.permute.xlu0 %1110
        %1114 = vset.pattern.permute.xlu0 0
        %1115 = vperm.xlu0 %1114, %v1101
        %v1116 = vpop.permute.xlu0 %1115
        %1119 = vset.pattern.permute.xlu0 0
        %1120 = vperm.xlu0 %1119, %v1102
        %v1121 = vpop.permute.xlu0 %1120
        %v1123 = vmul.f32 %v259, %v1106
        %v1124 = vmul.f32 %v260, %v1106
        %v1125 = vmul.f32 %v261, %v1106
        %v1126 = vmul.f32 %v262, %v1106
        %v1127 = vmul.f32 %v263, %v1106
        %v1128 = vmul.f32 %v264, %v1106
        %v1129 = vmul.f32 %v265, %v1106
        %v1130 = vmul.f32 %v266, %v1106
        %v1131 = vmul.f32 %v267, %v1106
        %v1132 = vmul.f32 %v268, %v1106
        %v1133 = vmul.f32 %v269, %v1106
        %v1134 = vmul.f32 %v270, %v1106
        %v1135 = vmul.f32 %v271, %v1106
        %v1136 = vmul.f32 %v272, %v1106
        %v1137 = vmul.f32 %v273, %v1106
        %v1138 = vmul.f32 %v274, %v1106
        %v1139 = vmul.f32 %v275, %v1106
        %v1140 = vmul.f32 %v276, %v1106
        %v1141 = vmul.f32 %v277, %v1106
        %v1142 = vmul.f32 %v278, %v1106
        %v1143 = vmul.f32 %v279, %v1106
        %v1144 = vmul.f32 %v280, %v1106
        %v1145 = vmul.f32 %v281, %v1106
        %v1146 = vmul.f32 %v282, %v1106
        %v1147 = vmul.f32 %v283, %v1106
        %v1148 = vmul.f32 %v284, %v1106
        %v1149 = vmul.f32 %v285, %v1106
        %v1150 = vmul.f32 %v286, %v1106
        %v1151 = vmul.f32 %v287, %v1106
        %v1152 = vmul.f32 %v288, %v1106
        %v1153 = vmul.f32 %v289, %v1106
        %v1154 = vmul.f32 %v290, %v1106
        %v1155 = vmul.f32 %v291, %v1106
        %v1156 = vmul.f32 %v292, %v1106
        %v1157 = vmul.f32 %v293, %v1106
        %v1158 = vmul.f32 %v294, %v1106
        %v1159 = vmul.f32 %v295, %v1106
        %v1160 = vmul.f32 %v296, %v1106
        %v1161 = vmul.f32 %v297, %v1106
        %v1162 = vmul.f32 %v298, %v1106
        %v1163 = vmul.f32 %v299, %v1106
        %v1164 = vmul.f32 %v300, %v1106
        %v1165 = vmul.f32 %v301, %v1106
        %v1166 = vmul.f32 %v302, %v1106
        %v1167 = vmul.f32 %v303, %v1106
        %v1168 = vmul.f32 %v304, %v1106
        %v1169 = vmul.f32 %v305, %v1106
        %v1170 = vmul.f32 %v306, %v1106
        %v1171 = vmul.f32 %v307, %v1106
        %v1172 = vmul.f32 %v308, %v1106
        %v1173 = vmul.f32 %v309, %v1106
        %v1174 = vmul.f32 %v310, %v1106
        %v1175 = vmul.f32 %v311, %v1106
        %v1176 = vmul.f32 %v312, %v1106
        %v1177 = vmul.f32 %v313, %v1106
        %v1178 = vmul.f32 %v314, %v1106
        %v1179 = vmul.f32 %v315, %v1106
        %v1180 = vmul.f32 %v316, %v1106
        %v1181 = vmul.f32 %v317, %v1106
        %v1182 = vmul.f32 %v318, %v1106
        %v1183 = vmul.f32 %v319, %v1106
        %v1184 = vmul.f32 %v320, %v1106
        %v1185 = vmul.f32 %v321, %v1106
        %v1186 = vmul.f32 %v322, %v1106
        %v1187 = vmul.f32 %v323, %v1106
        %v1188 = vmul.f32 %v324, %v1106
        %v1189 = vmul.f32 %v325, %v1106
        %v1190 = vmul.f32 %v326, %v1106
        %v1191 = vmul.f32 %v327, %v1106
        %v1192 = vmul.f32 %v328, %v1106
        %v1193 = vmul.f32 %v329, %v1106
        %v1194 = vmul.f32 %v330, %v1106
        %v1195 = vmul.f32 %v331, %v1106
        %v1196 = vmul.f32 %v332, %v1106
        %v1197 = vmul.f32 %v333, %v1106
        %v1198 = vmul.f32 %v334, %v1106
        %v1199 = vmul.f32 %v335, %v1106
        %v1200 = vmul.f32 %v336, %v1106
        %v1201 = vmul.f32 %v337, %v1106
        %v1202 = vmul.f32 %v338, %v1106
        %v1203 = vmul.f32 %v339, %v1106
        %v1204 = vmul.f32 %v340, %v1106
        %v1205 = vmul.f32 %v341, %v1106
        %v1206 = vmul.f32 %v342, %v1106
        %v1207 = vmul.f32 %v343, %v1106
        %v1208 = vmul.f32 %v344, %v1106
        %v1209 = vmul.f32 %v345, %v1106
        %v1210 = vmul.f32 %v346, %v1106
        %v1211 = vmul.f32 %v347, %v1106
        %v1212 = vmul.f32 %v348, %v1106
        %v1213 = vmul.f32 %v349, %v1106
        %v1214 = vmul.f32 %v350, %v1106
        %v1215 = vmul.f32 %v351, %v1106
        %v1216 = vmul.f32 %v352, %v1106
        %v1217 = vmul.f32 %v353, %v1106
        %v1218 = vmul.f32 %v354, %v1106
        %v1219 = vmul.f32 %v355, %v1106
        %v1220 = vmul.f32 %v356, %v1106
        %v1221 = vmul.f32 %v357, %v1106
        %v1222 = vmul.f32 %v358, %v1106
        %v1223 = vmul.f32 %v359, %v1106
        %v1224 = vmul.f32 %v360, %v1106
        %v1225 = vmul.f32 %v361, %v1106
        %v1226 = vmul.f32 %v362, %v1106
        %v1227 = vmul.f32 %v363, %v1106
        %v1228 = vmul.f32 %v364, %v1106
        %v1229 = vmul.f32 %v365, %v1106
        %v1230 = vmul.f32 %v366, %v1106
        %v1231 = vmul.f32 %v367, %v1106
        %v1232 = vmul.f32 %v368, %v1106
        %v1233 = vmul.f32 %v369, %v1106
        %v1234 = vmul.f32 %v370, %v1106
        %v1235 = vmul.f32 %v371, %v1106
        %v1236 = vmul.f32 %v372, %v1106
        %v1237 = vmul.f32 %v373, %v1106
        %v1238 = vmul.f32 %v374, %v1106
        %v1239 = vmul.f32 %v375, %v1106
        %v1240 = vmul.f32 %v376, %v1106
        %v1241 = vmul.f32 %v377, %v1106
        %v1242 = vmul.f32 %v378, %v1106
        %v1243 = vmul.f32 %v379, %v1106
        %v1244 = vmul.f32 %v380, %v1106
        %v1245 = vmul.f32 %v381, %v1106
        %v1246 = vmul.f32 %v382, %v1106
        %v1247 = vmul.f32 %v383, %v1106
        %v1248 = vmul.f32 %v384, %v1106
        %v1249 = vmul.f32 %v385, %v1106
        %v1250 = vmul.f32 %v386, %v1106
        %v1251 = vmul.f32 %v387, %v1106
        %v1252 = vmul.f32 %v388, %v1106
        %v1253 = vmul.f32 %v389, %v1106
        %v1254 = vmul.f32 %v390, %v1106
        %v1255 = vmul.f32 %v391, %v1106
        %v1256 = vmul.f32 %v392, %v1106
        %v1257 = vmul.f32 %v393, %v1106
        %v1258 = vmul.f32 %v394, %v1106
        %v1259 = vmul.f32 %v395, %v1106
        %v1260 = vmul.f32 %v396, %v1106
        %v1261 = vmul.f32 %v397, %v1106
        %v1262 = vmul.f32 %v398, %v1106
        %v1263 = vmul.f32 %v399, %v1106
        %v1264 = vmul.f32 %v400, %v1106
        %v1265 = vmul.f32 %v401, %v1106
        %v1266 = vmul.f32 %v402, %v1106
        %v1267 = vmul.f32 %v403, %v1106
        %v1268 = vmul.f32 %v404, %v1106
        %v1269 = vmul.f32 %v405, %v1106
        %v1270 = vmul.f32 %v406, %v1106
        %v1271 = vmul.f32 %v407, %v1106
        %v1272 = vmul.f32 %v408, %v1106
        %v1273 = vmul.f32 %v409, %v1106
        %v1274 = vmul.f32 %v410, %v1106
        %v1275 = vmul.f32 %v411, %v1106
        %v1276 = vmul.f32 %v412, %v1106
        %v1277 = vmul.f32 %v413, %v1106
        %v1278 = vmul.f32 %v414, %v1106
        %v1279 = vmul.f32 %v415, %v1106
        %v1280 = vmul.f32 %v416, %v1106
        %v1281 = vmul.f32 %v417, %v1106
        %v1282 = vmul.f32 %v418, %v1106
        %v1283 = vmul.f32 %v419, %v1106
        %v1284 = vmul.f32 %v420, %v1106
        %v1285 = vmul.f32 %v421, %v1106
        %v1286 = vmul.f32 %v422, %v1106
        %v1287 = vmul.f32 %v423, %v1106
        %v1288 = vmul.f32 %v424, %v1106
        %v1289 = vmul.f32 %v425, %v1106
        %v1290 = vmul.f32 %v426, %v1106
        %v1291 = vmul.f32 %v427, %v1106
        %v1292 = vmul.f32 %v428, %v1106
        %v1293 = vmul.f32 %v429, %v1106
        %v1294 = vmul.f32 %v430, %v1106
        %v1295 = vmul.f32 %v431, %v1106
        %v1296 = vmul.f32 %v432, %v1106
        %v1297 = vmul.f32 %v433, %v1106
        %v1298 = vmul.f32 %v434, %v1106
        %v1299 = vmul.f32 %v435, %v1106
        %v1300 = vmul.f32 %v436, %v1106
        %v1301 = vmul.f32 %v437, %v1106
        %v1302 = vmul.f32 %v438, %v1106
        %v1303 = vmul.f32 %v439, %v1106
        %v1304 = vmul.f32 %v440, %v1106
        %v1305 = vmul.f32 %v441, %v1106
        %v1306 = vmul.f32 %v442, %v1106
        %v1307 = vmul.f32 %v443, %v1106
        %v1308 = vmul.f32 %v444, %v1106
        %v1309 = vmul.f32 %v445, %v1106
        %v1310 = vmul.f32 %v446, %v1106
        %v1311 = vmul.f32 %v447, %v1106
        %v1312 = vmul.f32 %v448, %v1106
        %v1313 = vmul.f32 %v449, %v1106
        %v1314 = vmul.f32 %v450, %v1106
        %v1315 = vmul.f32 %v451, %v1106
        %v1316 = vmul.f32 %v452, %v1106
        %v1317 = vmul.f32 %v453, %v1106
        %v1318 = vmul.f32 %v454, %v1106
        %v1319 = vmul.f32 %v455, %v1106
        %v1320 = vmul.f32 %v456, %v1106
        %v1321 = vmul.f32 %v457, %v1106
        %v1322 = vmul.f32 %v458, %v1106
        %v1323 = vmul.f32 %v459, %v1106
        %v1324 = vmul.f32 %v460, %v1106
        %v1325 = vmul.f32 %v461, %v1106
        %v1326 = vmul.f32 %v462, %v1106
        %v1327 = vmul.f32 %v463, %v1106
        %v1328 = vmul.f32 %v464, %v1106
        %v1329 = vmul.f32 %v465, %v1106
        %v1330 = vmul.f32 %v466, %v1106
        %v1331 = vmul.f32 %v467, %v1106
        %v1332 = vmul.f32 %v468, %v1106
        %v1333 = vmul.f32 %v469, %v1111
        %v1334 = vmul.f32 %v470, %v1111
        %v1335 = vmul.f32 %v471, %v1111
        %v1336 = vmul.f32 %v472, %v1111
        %v1337 = vmul.f32 %v473, %v1111
        %v1338 = vmul.f32 %v474, %v1111
        %v1339 = vmul.f32 %v475, %v1111
        %v1340 = vmul.f32 %v476, %v1111
        %v1341 = vmul.f32 %v477, %v1111
        %v1342 = vmul.f32 %v478, %v1111
        %v1343 = vmul.f32 %v479, %v1111
        %v1344 = vmul.f32 %v480, %v1111
        %v1345 = vmul.f32 %v481, %v1111
        %v1346 = vmul.f32 %v482, %v1111
        %v1347 = vmul.f32 %v483, %v1111
        %v1348 = vmul.f32 %v484, %v1111
        %v1349 = vmul.f32 %v485, %v1111
        %v1350 = vmul.f32 %v486, %v1111
        %v1351 = vmul.f32 %v487, %v1111
        %v1352 = vmul.f32 %v488, %v1111
        %v1353 = vmul.f32 %v489, %v1111
        %v1354 = vmul.f32 %v490, %v1111
        %v1355 = vmul.f32 %v491, %v1111
        %v1356 = vmul.f32 %v492, %v1111
        %v1357 = vmul.f32 %v493, %v1111
        %v1358 = vmul.f32 %v494, %v1111
        %v1359 = vmul.f32 %v495, %v1111
        %v1360 = vmul.f32 %v496, %v1111
        %v1361 = vmul.f32 %v497, %v1111
        %v1362 = vmul.f32 %v498, %v1111
        %v1363 = vmul.f32 %v499, %v1111
        %v1364 = vmul.f32 %v500, %v1111
        %v1365 = vmul.f32 %v501, %v1111
        %v1366 = vmul.f32 %v502, %v1111
        %v1367 = vmul.f32 %v503, %v1111
        %v1368 = vmul.f32 %v504, %v1111
        %v1369 = vmul.f32 %v505, %v1111
        %v1370 = vmul.f32 %v506, %v1111
        %v1371 = vmul.f32 %v507, %v1111
        %v1372 = vmul.f32 %v508, %v1111
        %v1373 = vmul.f32 %v509, %v1111
        %v1374 = vmul.f32 %v510, %v1111
        %v1375 = vmul.f32 %v511, %v1111
        %v1376 = vmul.f32 %v512, %v1111
        %v1377 = vmul.f32 %v513, %v1111
        %v1378 = vmul.f32 %v514, %v1111
        %v1379 = vmul.f32 %v515, %v1111
        %v1380 = vmul.f32 %v516, %v1111
        %v1381 = vmul.f32 %v517, %v1111
        %v1382 = vmul.f32 %v518, %v1111
        %v1383 = vmul.f32 %v519, %v1111
        %v1384 = vmul.f32 %v520, %v1111
        %v1385 = vmul.f32 %v521, %v1111
        %v1386 = vmul.f32 %v522, %v1111
        %v1387 = vmul.f32 %v523, %v1111
        %v1388 = vmul.f32 %v524, %v1111
        %v1389 = vmul.f32 %v525, %v1111
        %v1390 = vmul.f32 %v526, %v1111
        %v1391 = vmul.f32 %v527, %v1111
        %v1392 = vmul.f32 %v528, %v1111
        %v1393 = vmul.f32 %v529, %v1111
        %v1394 = vmul.f32 %v530, %v1111
        %v1395 = vmul.f32 %v531, %v1111
        %v1396 = vmul.f32 %v532, %v1111
        %v1397 = vmul.f32 %v533, %v1111
        %v1398 = vmul.f32 %v534, %v1111
        %v1399 = vmul.f32 %v535, %v1111
        %v1400 = vmul.f32 %v536, %v1111
        %v1401 = vmul.f32 %v537, %v1111
        %v1402 = vmul.f32 %v538, %v1111
        %v1403 = vmul.f32 %v539, %v1111
        %v1404 = vmul.f32 %v540, %v1111
        %v1405 = vmul.f32 %v541, %v1111
        %v1406 = vmul.f32 %v542, %v1111
        %v1407 = vmul.f32 %v543, %v1111
        %v1408 = vmul.f32 %v544, %v1111
        %v1409 = vmul.f32 %v545, %v1111
        %v1410 = vmul.f32 %v546, %v1111
        %v1411 = vmul.f32 %v547, %v1111
        %v1412 = vmul.f32 %v548, %v1111
        %v1413 = vmul.f32 %v549, %v1111
        %v1414 = vmul.f32 %v550, %v1111
        %v1415 = vmul.f32 %v551, %v1111
        %v1416 = vmul.f32 %v552, %v1111
        %v1417 = vmul.f32 %v553, %v1111
        %v1418 = vmul.f32 %v554, %v1111
        %v1419 = vmul.f32 %v555, %v1111
        %v1420 = vmul.f32 %v556, %v1111
        %v1421 = vmul.f32 %v557, %v1111
        %v1422 = vmul.f32 %v558, %v1111
        %v1423 = vmul.f32 %v559, %v1111
        %v1424 = vmul.f32 %v560, %v1111
        %v1425 = vmul.f32 %v561, %v1111
        %v1426 = vmul.f32 %v562, %v1111
        %v1427 = vmul.f32 %v563, %v1111
        %v1428 = vmul.f32 %v564, %v1111
        %v1429 = vmul.f32 %v565, %v1111
        %v1430 = vmul.f32 %v566, %v1111
        %v1431 = vmul.f32 %v567, %v1111
        %v1432 = vmul.f32 %v568, %v1111
        %v1433 = vmul.f32 %v569, %v1111
        %v1434 = vmul.f32 %v570, %v1111
        %v1435 = vmul.f32 %v571, %v1111
        %v1436 = vmul.f32 %v572, %v1111
        %v1437 = vmul.f32 %v573, %v1111
        %v1438 = vmul.f32 %v574, %v1111
        %v1439 = vmul.f32 %v575, %v1111
        %v1440 = vmul.f32 %v576, %v1111
        %v1441 = vmul.f32 %v577, %v1111
        %v1442 = vmul.f32 %v578, %v1111
        %v1443 = vmul.f32 %v579, %v1111
        %v1444 = vmul.f32 %v580, %v1111
        %v1445 = vmul.f32 %v581, %v1111
        %v1446 = vmul.f32 %v582, %v1111
        %v1447 = vmul.f32 %v583, %v1111
        %v1448 = vmul.f32 %v584, %v1111
        %v1449 = vmul.f32 %v585, %v1111
        %v1450 = vmul.f32 %v586, %v1111
        %v1451 = vmul.f32 %v587, %v1111
        %v1452 = vmul.f32 %v588, %v1111
        %v1453 = vmul.f32 %v589, %v1111
        %v1454 = vmul.f32 %v590, %v1111
        %v1455 = vmul.f32 %v591, %v1111
        %v1456 = vmul.f32 %v592, %v1111
        %v1457 = vmul.f32 %v593, %v1111
        %v1458 = vmul.f32 %v594, %v1111
        %v1459 = vmul.f32 %v595, %v1111
        %v1460 = vmul.f32 %v596, %v1111
        %v1461 = vmul.f32 %v597, %v1111
        %v1462 = vmul.f32 %v598, %v1111
        %v1463 = vmul.f32 %v599, %v1111
        %v1464 = vmul.f32 %v600, %v1111
        %v1465 = vmul.f32 %v601, %v1111
        %v1466 = vmul.f32 %v602, %v1111
        %v1467 = vmul.f32 %v603, %v1111
        %v1468 = vmul.f32 %v604, %v1111
        %v1469 = vmul.f32 %v605, %v1111
        %v1470 = vmul.f32 %v606, %v1111
        %v1471 = vmul.f32 %v607, %v1111
        %v1472 = vmul.f32 %v608, %v1111
        %v1473 = vmul.f32 %v609, %v1111
        %v1474 = vmul.f32 %v610, %v1111
        %v1475 = vmul.f32 %v611, %v1111
        %v1476 = vmul.f32 %v612, %v1111
        %v1477 = vmul.f32 %v613, %v1111
        %v1478 = vmul.f32 %v614, %v1111
        %v1479 = vmul.f32 %v615, %v1111
        %v1480 = vmul.f32 %v616, %v1111
        %v1481 = vmul.f32 %v617, %v1111
        %v1482 = vmul.f32 %v618, %v1111
        %v1483 = vmul.f32 %v619, %v1111
        %v1484 = vmul.f32 %v620, %v1111
        %v1485 = vmul.f32 %v621, %v1111
        %v1486 = vmul.f32 %v622, %v1111
        %v1487 = vmul.f32 %v623, %v1111
        %v1488 = vmul.f32 %v624, %v1111
        %v1489 = vmul.f32 %v625, %v1111
        %v1490 = vmul.f32 %v626, %v1111
        %v1491 = vmul.f32 %v627, %v1111
        %v1492 = vmul.f32 %v628, %v1111
        %v1493 = vmul.f32 %v629, %v1111
        %v1494 = vmul.f32 %v630, %v1111
        %v1495 = vmul.f32 %v631, %v1111
        %v1496 = vmul.f32 %v632, %v1111
        %v1497 = vmul.f32 %v633, %v1111
        %v1498 = vmul.f32 %v634, %v1111
        %v1499 = vmul.f32 %v635, %v1111
        %v1500 = vmul.f32 %v636, %v1111
        %v1501 = vmul.f32 %v637, %v1111
        %v1502 = vmul.f32 %v638, %v1111
        %v1503 = vmul.f32 %v639, %v1111
        %v1504 = vmul.f32 %v640, %v1111
        %v1505 = vmul.f32 %v641, %v1111
        %v1506 = vmul.f32 %v642, %v1111
        %v1507 = vmul.f32 %v643, %v1111
        %v1508 = vmul.f32 %v644, %v1111
        %v1509 = vmul.f32 %v645, %v1111
        %v1510 = vmul.f32 %v646, %v1111
        %v1511 = vmul.f32 %v647, %v1111
        %v1512 = vmul.f32 %v648, %v1111
        %v1513 = vmul.f32 %v649, %v1111
        %v1514 = vmul.f32 %v650, %v1111
        %v1515 = vmul.f32 %v651, %v1111
        %v1516 = vmul.f32 %v652, %v1111
        %v1517 = vmul.f32 %v653, %v1111
        %v1518 = vmul.f32 %v654, %v1111
        %v1519 = vmul.f32 %v655, %v1111
        %v1520 = vmul.f32 %v656, %v1111
        %v1521 = vmul.f32 %v657, %v1111
        %v1522 = vmul.f32 %v658, %v1111
        %v1523 = vmul.f32 %v659, %v1111
        %v1524 = vmul.f32 %v660, %v1111
        %v1525 = vmul.f32 %v661, %v1111
        %v1526 = vmul.f32 %v662, %v1111
        %v1527 = vmul.f32 %v663, %v1111
        %v1528 = vmul.f32 %v664, %v1111
        %v1529 = vmul.f32 %v665, %v1111
        %v1530 = vmul.f32 %v666, %v1111
        %v1531 = vmul.f32 %v667, %v1111
        %v1532 = vmul.f32 %v668, %v1111
        %v1533 = vmul.f32 %v669, %v1111
        %v1534 = vmul.f32 %v670, %v1111
        %v1535 = vmul.f32 %v671, %v1111
        %v1536 = vmul.f32 %v672, %v1111
        %v1537 = vmul.f32 %v673, %v1111
        %v1538 = vmul.f32 %v674, %v1111
        %v1539 = vmul.f32 %v675, %v1111
        %v1540 = vmul.f32 %v676, %v1111
        %v1541 = vmul.f32 %v677, %v1111
        %v1542 = vmul.f32 %v678, %v1111
        %v1543 = vmul.f32 %v679, %v1116
        %v1544 = vmul.f32 %v680, %v1116
        %v1545 = vmul.f32 %v681, %v1116
        %v1546 = vmul.f32 %v682, %v1116
        %v1547 = vmul.f32 %v683, %v1116
        %v1548 = vmul.f32 %v684, %v1116
        %v1549 = vmul.f32 %v685, %v1116
        %v1550 = vmul.f32 %v686, %v1116
        %v1551 = vmul.f32 %v687, %v1116
        %v1552 = vmul.f32 %v688, %v1116
        %v1553 = vmul.f32 %v689, %v1116
        %v1554 = vmul.f32 %v690, %v1116
        %v1555 = vmul.f32 %v691, %v1116
        %v1556 = vmul.f32 %v692, %v1116
        %v1557 = vmul.f32 %v693, %v1116
        %v1558 = vmul.f32 %v694, %v1116
        %v1559 = vmul.f32 %v695, %v1116
        %v1560 = vmul.f32 %v696, %v1116
        %v1561 = vmul.f32 %v697, %v1116
        %v1562 = vmul.f32 %v698, %v1116
        %v1563 = vmul.f32 %v699, %v1116
        %v1564 = vmul.f32 %v700, %v1116
        %v1565 = vmul.f32 %v701, %v1116
        %v1566 = vmul.f32 %v702, %v1116
        %v1567 = vmul.f32 %v703, %v1116
        %v1568 = vmul.f32 %v704, %v1116
        %v1569 = vmul.f32 %v705, %v1116
        %v1570 = vmul.f32 %v706, %v1116
        %v1571 = vmul.f32 %v707, %v1116
        %v1572 = vmul.f32 %v708, %v1116
        %v1573 = vmul.f32 %v709, %v1116
        %v1574 = vmul.f32 %v710, %v1116
        %v1575 = vmul.f32 %v711, %v1116
        %v1576 = vmul.f32 %v712, %v1116
        %v1577 = vmul.f32 %v713, %v1116
        %v1578 = vmul.f32 %v714, %v1116
        %v1579 = vmul.f32 %v715, %v1116
        %v1580 = vmul.f32 %v716, %v1116
        %v1581 = vmul.f32 %v717, %v1116
        %v1582 = vmul.f32 %v718, %v1116
        %v1583 = vmul.f32 %v719, %v1116
        %v1584 = vmul.f32 %v720, %v1116
        %v1585 = vmul.f32 %v721, %v1116
        %v1586 = vmul.f32 %v722, %v1116
        %v1587 = vmul.f32 %v723, %v1116
        %v1588 = vmul.f32 %v724, %v1116
        %v1589 = vmul.f32 %v725, %v1116
        %v1590 = vmul.f32 %v726, %v1116
        %v1591 = vmul.f32 %v727, %v1116
        %v1592 = vmul.f32 %v728, %v1116
        %v1593 = vmul.f32 %v729, %v1116
        %v1594 = vmul.f32 %v730, %v1116
        %v1595 = vmul.f32 %v731, %v1116
        %v1596 = vmul.f32 %v732, %v1116
        %v1597 = vmul.f32 %v733, %v1116
        %v1598 = vmul.f32 %v734, %v1116
        %v1599 = vmul.f32 %v735, %v1116
        %v1600 = vmul.f32 %v736, %v1116
        %v1601 = vmul.f32 %v737, %v1116
        %v1602 = vmul.f32 %v738, %v1116
        %v1603 = vmul.f32 %v739, %v1116
        %v1604 = vmul.f32 %v740, %v1116
        %v1605 = vmul.f32 %v741, %v1116
        %v1606 = vmul.f32 %v742, %v1116
        %v1607 = vmul.f32 %v743, %v1116
        %v1608 = vmul.f32 %v744, %v1116
        %v1609 = vmul.f32 %v745, %v1116
        %v1610 = vmul.f32 %v746, %v1116
        %v1611 = vmul.f32 %v747, %v1116
        %v1612 = vmul.f32 %v748, %v1116
        %v1613 = vmul.f32 %v749, %v1116
        %v1614 = vmul.f32 %v750, %v1116
        %v1615 = vmul.f32 %v751, %v1116
        %v1616 = vmul.f32 %v752, %v1116
        %v1617 = vmul.f32 %v753, %v1116
        %v1618 = vmul.f32 %v754, %v1116
        %v1619 = vmul.f32 %v755, %v1116
        %v1620 = vmul.f32 %v756, %v1116
        %v1621 = vmul.f32 %v757, %v1116
        %v1622 = vmul.f32 %v758, %v1116
        %v1623 = vmul.f32 %v759, %v1116
        %v1624 = vmul.f32 %v760, %v1116
        %v1625 = vmul.f32 %v761, %v1116
        %v1626 = vmul.f32 %v762, %v1116
        %v1627 = vmul.f32 %v763, %v1116
        %v1628 = vmul.f32 %v764, %v1116
        %v1629 = vmul.f32 %v765, %v1116
        %v1630 = vmul.f32 %v766, %v1116
        %v1631 = vmul.f32 %v767, %v1116
        %v1632 = vmul.f32 %v768, %v1116
        %v1633 = vmul.f32 %v769, %v1116
        %v1634 = vmul.f32 %v770, %v1116
        %v1635 = vmul.f32 %v771, %v1116
        %v1636 = vmul.f32 %v772, %v1116
        %v1637 = vmul.f32 %v773, %v1116
        %v1638 = vmul.f32 %v774, %v1116
        %v1639 = vmul.f32 %v775, %v1116
        %v1640 = vmul.f32 %v776, %v1116
        %v1641 = vmul.f32 %v777, %v1116
        %v1642 = vmul.f32 %v778, %v1116
        %v1643 = vmul.f32 %v779, %v1116
        %v1644 = vmul.f32 %v780, %v1116
        %v1645 = vmul.f32 %v781, %v1116
        %v1646 = vmul.f32 %v782, %v1116
        %v1647 = vmul.f32 %v783, %v1116
        %v1648 = vmul.f32 %v784, %v1116
        %v1649 = vmul.f32 %v785, %v1116
        %v1650 = vmul.f32 %v786, %v1116
        %v1651 = vmul.f32 %v787, %v1116
        %v1652 = vmul.f32 %v788, %v1116
        %v1653 = vmul.f32 %v789, %v1116
        %v1654 = vmul.f32 %v790, %v1116
        %v1655 = vmul.f32 %v791, %v1116
        %v1656 = vmul.f32 %v792, %v1116
        %v1657 = vmul.f32 %v793, %v1116
        %v1658 = vmul.f32 %v794, %v1116
        %v1659 = vmul.f32 %v795, %v1116
        %v1660 = vmul.f32 %v796, %v1116
        %v1661 = vmul.f32 %v797, %v1116
        %v1662 = vmul.f32 %v798, %v1116
        %v1663 = vmul.f32 %v799, %v1116
        %v1664 = vmul.f32 %v800, %v1116
        %v1665 = vmul.f32 %v801, %v1116
        %v1666 = vmul.f32 %v802, %v1116
        %v1667 = vmul.f32 %v803, %v1116
        %v1668 = vmul.f32 %v804, %v1116
        %v1669 = vmul.f32 %v805, %v1116
        %v1670 = vmul.f32 %v806, %v1116
        %v1671 = vmul.f32 %v807, %v1116
        %v1672 = vmul.f32 %v808, %v1116
        %v1673 = vmul.f32 %v809, %v1116
        %v1674 = vmul.f32 %v810, %v1116
        %v1675 = vmul.f32 %v811, %v1116
        %v1676 = vmul.f32 %v812, %v1116
        %v1677 = vmul.f32 %v813, %v1116
        %v1678 = vmul.f32 %v814, %v1116
        %v1679 = vmul.f32 %v815, %v1116
        %v1680 = vmul.f32 %v816, %v1116
        %v1681 = vmul.f32 %v817, %v1116
        %v1682 = vmul.f32 %v818, %v1116
        %v1683 = vmul.f32 %v819, %v1116
        %v1684 = vmul.f32 %v820, %v1116
        %v1685 = vmul.f32 %v821, %v1116
        %v1686 = vmul.f32 %v822, %v1116
        %v1687 = vmul.f32 %v823, %v1116
        %v1688 = vmul.f32 %v824, %v1116
        %v1689 = vmul.f32 %v825, %v1116
        %v1690 = vmul.f32 %v826, %v1116
        %v1691 = vmul.f32 %v827, %v1116
        %v1692 = vmul.f32 %v828, %v1116
        %v1693 = vmul.f32 %v829, %v1116
        %v1694 = vmul.f32 %v830, %v1116
        %v1695 = vmul.f32 %v831, %v1116
        %v1696 = vmul.f32 %v832, %v1116
        %v1697 = vmul.f32 %v833, %v1116
        %v1698 = vmul.f32 %v834, %v1116
        %v1699 = vmul.f32 %v835, %v1116
        %v1700 = vmul.f32 %v836, %v1116
        %v1701 = vmul.f32 %v837, %v1116
        %v1702 = vmul.f32 %v838, %v1116
        %v1703 = vmul.f32 %v839, %v1116
        %v1704 = vmul.f32 %v840, %v1116
        %v1705 = vmul.f32 %v841, %v1116
        %v1706 = vmul.f32 %v842, %v1116
        %v1707 = vmul.f32 %v843, %v1116
        %v1708 = vmul.f32 %v844, %v1116
        %v1709 = vmul.f32 %v845, %v1116
        %v1710 = vmul.f32 %v846, %v1116
        %v1711 = vmul.f32 %v847, %v1116
        %v1712 = vmul.f32 %v848, %v1116
        %v1713 = vmul.f32 %v849, %v1116
        %v1714 = vmul.f32 %v850, %v1116
        %v1715 = vmul.f32 %v851, %v1116
        %v1716 = vmul.f32 %v852, %v1116
        %v1717 = vmul.f32 %v853, %v1116
        %v1718 = vmul.f32 %v854, %v1116
        %v1719 = vmul.f32 %v855, %v1116
        %v1720 = vmul.f32 %v856, %v1116
        %v1721 = vmul.f32 %v857, %v1116
        %v1722 = vmul.f32 %v858, %v1116
        %v1723 = vmul.f32 %v859, %v1116
        %v1724 = vmul.f32 %v860, %v1116
        %v1725 = vmul.f32 %v861, %v1116
        %v1726 = vmul.f32 %v862, %v1116
        %v1727 = vmul.f32 %v863, %v1116
        %v1728 = vmul.f32 %v864, %v1116
        %v1729 = vmul.f32 %v865, %v1116
        %v1730 = vmul.f32 %v866, %v1116
        %v1731 = vmul.f32 %v867, %v1116
        %v1732 = vmul.f32 %v868, %v1116
        %v1733 = vmul.f32 %v869, %v1116
        %v1734 = vmul.f32 %v870, %v1116
        %v1735 = vmul.f32 %v871, %v1116
        %v1736 = vmul.f32 %v872, %v1116
        %v1737 = vmul.f32 %v873, %v1116
        %v1738 = vmul.f32 %v874, %v1116
        %v1739 = vmul.f32 %v875, %v1116
        %v1740 = vmul.f32 %v876, %v1116
        %v1741 = vmul.f32 %v877, %v1116
        %v1742 = vmul.f32 %v878, %v1116
        %v1743 = vmul.f32 %v879, %v1116
        %v1744 = vmul.f32 %v880, %v1116
        %v1745 = vmul.f32 %v881, %v1116
        %v1746 = vmul.f32 %v882, %v1116
        %v1747 = vmul.f32 %v883, %v1116
        %v1748 = vmul.f32 %v884, %v1116
        %v1749 = vmul.f32 %v885, %v1116
        %v1750 = vmul.f32 %v886, %v1116
        %v1751 = vmul.f32 %v887, %v1116
        %v1752 = vmul.f32 %v888, %v1116
        %v1753 = vmul.f32 %v889, %v1121
        %v1754 = vmul.f32 %v890, %v1121
        %v1755 = vmul.f32 %v891, %v1121
        %v1756 = vmul.f32 %v892, %v1121
        %v1757 = vmul.f32 %v893, %v1121
        %v1758 = vmul.f32 %v894, %v1121
        %v1759 = vmul.f32 %v895, %v1121
        %v1760 = vmul.f32 %v896, %v1121
        %v1761 = vmul.f32 %v897, %v1121
        %v1762 = vmul.f32 %v898, %v1121
        %v1763 = vmul.f32 %v899, %v1121
        %v1764 = vmul.f32 %v900, %v1121
        %v1765 = vmul.f32 %v901, %v1121
        %v1766 = vmul.f32 %v902, %v1121
        %v1767 = vmul.f32 %v903, %v1121
        %v1768 = vmul.f32 %v904, %v1121
        %v1769 = vmul.f32 %v905, %v1121
        %v1770 = vmul.f32 %v906, %v1121
        %v1771 = vmul.f32 %v907, %v1121
        %v1772 = vmul.f32 %v908, %v1121
        %v1773 = vmul.f32 %v909, %v1121
        %v1774 = vmul.f32 %v910, %v1121
        %v1775 = vmul.f32 %v911, %v1121
        %v1776 = vmul.f32 %v912, %v1121
        %v1777 = vmul.f32 %v913, %v1121
        %v1778 = vmul.f32 %v914, %v1121
        %v1779 = vmul.f32 %v915, %v1121
        %v1780 = vmul.f32 %v916, %v1121
        %v1781 = vmul.f32 %v917, %v1121
        %v1782 = vmul.f32 %v918, %v1121
        %v1783 = vmul.f32 %v919, %v1121
        %v1784 = vmul.f32 %v920, %v1121
        %v1785 = vmul.f32 %v921, %v1121
        %v1786 = vmul.f32 %v922, %v1121
        %v1787 = vmul.f32 %v923, %v1121
        %v1788 = vmul.f32 %v924, %v1121
        %v1789 = vmul.f32 %v925, %v1121
        %v1790 = vmul.f32 %v926, %v1121
        %v1791 = vmul.f32 %v927, %v1121
        %v1792 = vmul.f32 %v928, %v1121
        %v1793 = vmul.f32 %v929, %v1121
        %v1794 = vmul.f32 %v930, %v1121
        %v1795 = vmul.f32 %v931, %v1121
        %v1796 = vmul.f32 %v932, %v1121
        %v1797 = vmul.f32 %v933, %v1121
        %v1798 = vmul.f32 %v934, %v1121
        %v1799 = vmul.f32 %v935, %v1121
        %v1800 = vmul.f32 %v936, %v1121
        %v1801 = vmul.f32 %v937, %v1121
        %v1802 = vmul.f32 %v938, %v1121
        %v1803 = vmul.f32 %v939, %v1121
        %v1804 = vmul.f32 %v940, %v1121
        %v1805 = vmul.f32 %v941, %v1121
        %v1806 = vmul.f32 %v942, %v1121
        %v1807 = vmul.f32 %v943, %v1121
        %v1808 = vmul.f32 %v944, %v1121
        %v1809 = vmul.f32 %v945, %v1121
        %v1810 = vmul.f32 %v946, %v1121
        %v1811 = vmul.f32 %v947, %v1121
        %v1812 = vmul.f32 %v948, %v1121
        %v1813 = vmul.f32 %v949, %v1121
        %v1814 = vmul.f32 %v950, %v1121
        %v1815 = vmul.f32 %v951, %v1121
        %v1816 = vmul.f32 %v952, %v1121
        %v1817 = vmul.f32 %v953, %v1121
        %v1818 = vmul.f32 %v954, %v1121
        %v1819 = vmul.f32 %v955, %v1121
        %v1820 = vmul.f32 %v956, %v1121
        %v1821 = vmul.f32 %v957, %v1121
        %v1822 = vmul.f32 %v958, %v1121
        %v1823 = vmul.f32 %v959, %v1121
        %v1824 = vmul.f32 %v960, %v1121
        %v1825 = vmul.f32 %v961, %v1121
        %v1826 = vmul.f32 %v962, %v1121
        %v1827 = vmul.f32 %v963, %v1121
        %v1828 = vmul.f32 %v964, %v1121
        %v1829 = vmul.f32 %v965, %v1121
        %v1830 = vmul.f32 %v966, %v1121
        %v1831 = vmul.f32 %v967, %v1121
        %v1832 = vmul.f32 %v968, %v1121
        %v1833 = vmul.f32 %v969, %v1121
        %v1834 = vmul.f32 %v970, %v1121
        %v1835 = vmul.f32 %v971, %v1121
        %v1836 = vmul.f32 %v972, %v1121
        %v1837 = vmul.f32 %v973, %v1121
        %v1838 = vmul.f32 %v974, %v1121
        %v1839 = vmul.f32 %v975, %v1121
        %v1840 = vmul.f32 %v976, %v1121
        %v1841 = vmul.f32 %v977, %v1121
        %v1842 = vmul.f32 %v978, %v1121
        %v1843 = vmul.f32 %v979, %v1121
        %v1844 = vmul.f32 %v980, %v1121
        %v1845 = vmul.f32 %v981, %v1121
        %v1846 = vmul.f32 %v982, %v1121
        %v1847 = vmul.f32 %v983, %v1121
        %v1848 = vmul.f32 %v984, %v1121
        %v1849 = vmul.f32 %v985, %v1121
        %v1850 = vmul.f32 %v986, %v1121
        %v1851 = vmul.f32 %v987, %v1121
        %v1852 = vmul.f32 %v988, %v1121
        %v1853 = vmul.f32 %v989, %v1121
        %v1854 = vmul.f32 %v990, %v1121
        %v1855 = vmul.f32 %v991, %v1121
        %v1856 = vmul.f32 %v992, %v1121
        %v1857 = vmul.f32 %v993, %v1121
        %v1858 = vmul.f32 %v994, %v1121
        %v1859 = vmul.f32 %v995, %v1121
        %v1860 = vmul.f32 %v996, %v1121
        %v1861 = vmul.f32 %v997, %v1121
        %v1862 = vmul.f32 %v998, %v1121
        %v1863 = vmul.f32 %v999, %v1121
        %v1864 = vmul.f32 %v1000, %v1121
        %v1865 = vmul.f32 %v1001, %v1121
        %v1866 = vmul.f32 %v1002, %v1121
        %v1867 = vmul.f32 %v1003, %v1121
        %v1868 = vmul.f32 %v1004, %v1121
        %v1869 = vmul.f32 %v1005, %v1121
        %v1870 = vmul.f32 %v1006, %v1121
        %v1871 = vmul.f32 %v1007, %v1121
        %v1872 = vmul.f32 %v1008, %v1121
        %v1873 = vmul.f32 %v1009, %v1121
        %v1874 = vmul.f32 %v1010, %v1121
        %v1875 = vmul.f32 %v1011, %v1121
        %v1876 = vmul.f32 %v1012, %v1121
        %v1877 = vmul.f32 %v1013, %v1121
        %v1878 = vmul.f32 %v1014, %v1121
        %v1879 = vmul.f32 %v1015, %v1121
        %v1880 = vmul.f32 %v1016, %v1121
        %v1881 = vmul.f32 %v1017, %v1121
        %v1882 = vmul.f32 %v1018, %v1121
        %v1883 = vmul.f32 %v1019, %v1121
        %v1884 = vmul.f32 %v1020, %v1121
        %v1885 = vmul.f32 %v1021, %v1121
        %v1886 = vmul.f32 %v1022, %v1121
        %v1887 = vmul.f32 %v1023, %v1121
        %v1888 = vmul.f32 %v1024, %v1121
        %v1889 = vmul.f32 %v1025, %v1121
        %v1890 = vmul.f32 %v1026, %v1121
        %v1891 = vmul.f32 %v1027, %v1121
        %v1892 = vmul.f32 %v1028, %v1121
        %v1893 = vmul.f32 %v1029, %v1121
        %v1894 = vmul.f32 %v1030, %v1121
        %v1895 = vmul.f32 %v1031, %v1121
        %v1896 = vmul.f32 %v1032, %v1121
        %v1897 = vmul.f32 %v1033, %v1121
        %v1898 = vmul.f32 %v1034, %v1121
        %v1899 = vmul.f32 %v1035, %v1121
        %v1900 = vmul.f32 %v1036, %v1121
        %v1901 = vmul.f32 %v1037, %v1121
        %v1902 = vmul.f32 %v1038, %v1121
        %v1903 = vmul.f32 %v1039, %v1121
        %v1904 = vmul.f32 %v1040, %v1121
        %v1905 = vmul.f32 %v1041, %v1121
        %v1906 = vmul.f32 %v1042, %v1121
        %v1907 = vmul.f32 %v1043, %v1121
        %v1908 = vmul.f32 %v1044, %v1121
        %v1909 = vmul.f32 %v1045, %v1121
        %v1910 = vmul.f32 %v1046, %v1121
        %v1911 = vmul.f32 %v1047, %v1121
        %v1912 = vmul.f32 %v1048, %v1121
        %v1913 = vmul.f32 %v1049, %v1121
        %v1914 = vmul.f32 %v1050, %v1121
        %v1915 = vmul.f32 %v1051, %v1121
        %v1916 = vmul.f32 %v1052, %v1121
        %v1917 = vmul.f32 %v1053, %v1121
        %v1918 = vmul.f32 %v1054, %v1121
        %v1919 = vmul.f32 %v1055, %v1121
        %v1920 = vmul.f32 %v1056, %v1121
        %v1921 = vmul.f32 %v1057, %v1121
        %v1922 = vmul.f32 %v1058, %v1121
        %v1923 = vmul.f32 %v1059, %v1121
        %v1924 = vmul.f32 %v1060, %v1121
        %v1925 = vmul.f32 %v1061, %v1121
        %v1926 = vmul.f32 %v1062, %v1121
        %v1927 = vmul.f32 %v1063, %v1121
        %v1928 = vmul.f32 %v1064, %v1121
        %v1929 = vmul.f32 %v1065, %v1121
        %v1930 = vmul.f32 %v1066, %v1121
        %v1931 = vmul.f32 %v1067, %v1121
        %v1932 = vmul.f32 %v1068, %v1121
        %v1933 = vmul.f32 %v1069, %v1121
        %v1934 = vmul.f32 %v1070, %v1121
        %v1935 = vmul.f32 %v1071, %v1121
        %v1936 = vmul.f32 %v1072, %v1121
        %v1937 = vmul.f32 %v1073, %v1121
        %v1938 = vmul.f32 %v1074, %v1121
        %v1939 = vmul.f32 %v1075, %v1121
        %v1940 = vmul.f32 %v1076, %v1121
        %v1941 = vmul.f32 %v1077, %v1121
        %v1942 = vmul.f32 %v1078, %v1121
        %v1943 = vmul.f32 %v1079, %v1121
        %v1944 = vmul.f32 %v1080, %v1121
        %v1945 = vmul.f32 %v1081, %v1121
        %v1946 = vmul.f32 %v1082, %v1121
        %v1947 = vmul.f32 %v1083, %v1121
        %v1948 = vmul.f32 %v1084, %v1121
        %v1949 = vmul.f32 %v1085, %v1121
        %v1950 = vmul.f32 %v1086, %v1121
        %v1951 = vmul.f32 %v1087, %v1121
        %v1952 = vmul.f32 %v1088, %v1121
        %v1953 = vmul.f32 %v1089, %v1121
        %v1954 = vmul.f32 %v1090, %v1121
        %v1955 = vmul.f32 %v1091, %v1121
        %v1956 = vmul.f32 %v1092, %v1121
        %v1957 = vmul.f32 %v1093, %v1121
        %v1958 = vmul.f32 %v1094, %v1121
        %v1959 = vmul.f32 %v1095, %v1121
        %v1960 = vmul.f32 %v1096, %v1121
        %v1961 = vmul.f32 %v1097, %v1121
        %v1962 = vmul.f32 %v1098, %v1121
        %v1963 = vadd.f32 %v1123, %v1333
        %v1964 = vadd.f32 %v1963, %v1543
        %vm1965 = vcmask 1040384
        %v1966 = vsel %vm1965, %v1753, 0.0
        %v1967 = vadd.f32 %v1964, %v1966
        %v1968 = vrot.slane %v1967, 4
        %v1969 = vadd.f32 %v1967, %v1968
        %v1970 = vrot.slane %v1969, 2
        %v1971 = vadd.f32 %v1969, %v1970
        %v1972 = vrot.slane %v1971, 1
        %v1973 = vadd.f32 %v1971, %v1972
        %v1974 = vadd.f32 %v1124, %v1334
        %v1975 = vadd.f32 %v1974, %v1544
        %v1976 = vsel %vm1965, %v1754, 0.0
        %v1977 = vadd.f32 %v1975, %v1976
        %v1978 = vrot.slane %v1977, 4
        %v1979 = vadd.f32 %v1977, %v1978
        %v1980 = vrot.slane %v1979, 2
        %v1981 = vadd.f32 %v1979, %v1980
        %v1982 = vrot.slane %v1981, 1
        %v1983 = vadd.f32 %v1981, %v1982
        %v1984 = vadd.f32 %v1125, %v1335
        %v1985 = vadd.f32 %v1984, %v1545
        %v1986 = vsel %vm1965, %v1755, 0.0
        %v1987 = vadd.f32 %v1985, %v1986
        %v1988 = vrot.slane %v1987, 4
        %v1989 = vadd.f32 %v1987, %v1988
        %v1990 = vrot.slane %v1989, 2
        %v1991 = vadd.f32 %v1989, %v1990
        %v1992 = vrot.slane %v1991, 1
        %v1993 = vadd.f32 %v1991, %v1992
        %v1994 = vadd.f32 %v1126, %v1336
        %v1995 = vadd.f32 %v1994, %v1546
        %v1996 = vsel %vm1965, %v1756, 0.0
        %v1997 = vadd.f32 %v1995, %v1996
        %v1998 = vrot.slane %v1997, 4
        %v1999 = vadd.f32 %v1997, %v1998
        %v2000 = vrot.slane %v1999, 2
        %v2001 = vadd.f32 %v1999, %v2000
        %v2002 = vrot.slane %v2001, 1
        %v2003 = vadd.f32 %v2001, %v2002
        %v2004 = vadd.f32 %v1127, %v1337
        %v2005 = vadd.f32 %v2004, %v1547
        %v2006 = vsel %vm1965, %v1757, 0.0
        %v2007 = vadd.f32 %v2005, %v2006
        %v2008 = vrot.slane %v2007, 4
        %v2009 = vadd.f32 %v2007, %v2008
        %v2010 = vrot.slane %v2009, 2
        %v2011 = vadd.f32 %v2009, %v2010
        %v2012 = vrot.slane %v2011, 1
        %v2013 = vadd.f32 %v2011, %v2012
        %v2014 = vadd.f32 %v1128, %v1338
        %v2015 = vadd.f32 %v2014, %v1548
        %v2016 = vsel %vm1965, %v1758, 0.0
        %v2017 = vadd.f32 %v2015, %v2016
        %v2018 = vrot.slane %v2017, 4
        %v2019 = vadd.f32 %v2017, %v2018
        %v2020 = vrot.slane %v2019, 2
        %v2021 = vadd.f32 %v2019, %v2020
        %v2022 = vrot.slane %v2021, 1
        %v2023 = vadd.f32 %v2021, %v2022
        %v2024 = vadd.f32 %v1129, %v1339
        %v2025 = vadd.f32 %v2024, %v1549
        %v2026 = vsel %vm1965, %v1759, 0.0
        %v2027 = vadd.f32 %v2025, %v2026
        %v2028 = vrot.slane %v2027, 4
        %v2029 = vadd.f32 %v2027, %v2028
        %v2030 = vrot.slane %v2029, 2
        %v2031 = vadd.f32 %v2029, %v2030
        %v2032 = vrot.slane %v2031, 1
        %v2033 = vadd.f32 %v2031, %v2032
        %v2034 = vadd.f32 %v1130, %v1340
        %v2035 = vadd.f32 %v2034, %v1550
        %v2036 = vsel %vm1965, %v1760, 0.0
        %v2037 = vadd.f32 %v2035, %v2036
        %v2038 = vrot.slane %v2037, 4
        %v2039 = vadd.f32 %v2037, %v2038
        %v2040 = vrot.slane %v2039, 2
        %v2041 = vadd.f32 %v2039, %v2040
        %v2042 = vrot.slane %v2041, 1
        %v2043 = vadd.f32 %v2041, %v2042
        %v2044 = vadd.f32 %v1131, %v1341
        %v2045 = vadd.f32 %v2044, %v1551
        %v2046 = vsel %vm1965, %v1761, 0.0
        %v2047 = vadd.f32 %v2045, %v2046
        %v2048 = vrot.slane %v2047, 4
        %v2049 = vadd.f32 %v2047, %v2048
        %v2050 = vrot.slane %v2049, 2
        %v2051 = vadd.f32 %v2049, %v2050
        %v2052 = vrot.slane %v2051, 1
        %v2053 = vadd.f32 %v2051, %v2052
        %v2054 = vadd.f32 %v1132, %v1342
        %v2055 = vadd.f32 %v2054, %v1552
        %v2056 = vsel %vm1965, %v1762, 0.0
        %v2057 = vadd.f32 %v2055, %v2056
        %v2058 = vrot.slane %v2057, 4
        %v2059 = vadd.f32 %v2057, %v2058
        %v2060 = vrot.slane %v2059, 2
        %v2061 = vadd.f32 %v2059, %v2060
        %v2062 = vrot.slane %v2061, 1
        %v2063 = vadd.f32 %v2061, %v2062
        %v2064 = vadd.f32 %v1133, %v1343
        %v2065 = vadd.f32 %v2064, %v1553
        %v2066 = vsel %vm1965, %v1763, 0.0
        %v2067 = vadd.f32 %v2065, %v2066
        %v2068 = vrot.slane %v2067, 4
        %v2069 = vadd.f32 %v2067, %v2068
        %v2070 = vrot.slane %v2069, 2
        %v2071 = vadd.f32 %v2069, %v2070
        %v2072 = vrot.slane %v2071, 1
        %v2073 = vadd.f32 %v2071, %v2072
        %v2074 = vadd.f32 %v1134, %v1344
        %v2075 = vadd.f32 %v2074, %v1554
        %v2076 = vsel %vm1965, %v1764, 0.0
        %v2077 = vadd.f32 %v2075, %v2076
        %v2078 = vrot.slane %v2077, 4
        %v2079 = vadd.f32 %v2077, %v2078
        %v2080 = vrot.slane %v2079, 2
        %v2081 = vadd.f32 %v2079, %v2080
        %v2082 = vrot.slane %v2081, 1
        %v2083 = vadd.f32 %v2081, %v2082
        %v2084 = vadd.f32 %v1135, %v1345
        %v2085 = vadd.f32 %v2084, %v1555
        %v2086 = vsel %vm1965, %v1765, 0.0
        %v2087 = vadd.f32 %v2085, %v2086
        %v2088 = vrot.slane %v2087, 4
        %v2089 = vadd.f32 %v2087, %v2088
        %v2090 = vrot.slane %v2089, 2
        %v2091 = vadd.f32 %v2089, %v2090
        %v2092 = vrot.slane %v2091, 1
        %v2093 = vadd.f32 %v2091, %v2092
        %v2094 = vadd.f32 %v1136, %v1346
        %v2095 = vadd.f32 %v2094, %v1556
        %v2096 = vsel %vm1965, %v1766, 0.0
        %v2097 = vadd.f32 %v2095, %v2096
        %v2098 = vrot.slane %v2097, 4
        %v2099 = vadd.f32 %v2097, %v2098
        %v2100 = vrot.slane %v2099, 2
        %v2101 = vadd.f32 %v2099, %v2100
        %v2102 = vrot.slane %v2101, 1
        %v2103 = vadd.f32 %v2101, %v2102
        %v2104 = vadd.f32 %v1137, %v1347
        %v2105 = vadd.f32 %v2104, %v1557
        %v2106 = vsel %vm1965, %v1767, 0.0
        %v2107 = vadd.f32 %v2105, %v2106
        %v2108 = vrot.slane %v2107, 4
        %v2109 = vadd.f32 %v2107, %v2108
        %v2110 = vrot.slane %v2109, 2
        %v2111 = vadd.f32 %v2109, %v2110
        %v2112 = vrot.slane %v2111, 1
        %v2113 = vadd.f32 %v2111, %v2112
        %v2114 = vadd.f32 %v1138, %v1348
        %v2115 = vadd.f32 %v2114, %v1558
        %v2116 = vsel %vm1965, %v1768, 0.0
        %v2117 = vadd.f32 %v2115, %v2116
        %v2118 = vrot.slane %v2117, 4
        %v2119 = vadd.f32 %v2117, %v2118
        %v2120 = vrot.slane %v2119, 2
        %v2121 = vadd.f32 %v2119, %v2120
        %v2122 = vrot.slane %v2121, 1
        %v2123 = vadd.f32 %v2121, %v2122
        %v2124 = vadd.f32 %v1139, %v1349
        %v2125 = vadd.f32 %v2124, %v1559
        %v2126 = vsel %vm1965, %v1769, 0.0
        %v2127 = vadd.f32 %v2125, %v2126
        %v2128 = vrot.slane %v2127, 4
        %v2129 = vadd.f32 %v2127, %v2128
        %v2130 = vrot.slane %v2129, 2
        %v2131 = vadd.f32 %v2129, %v2130
        %v2132 = vrot.slane %v2131, 1
        %v2133 = vadd.f32 %v2131, %v2132
        %v2134 = vadd.f32 %v1140, %v1350
        %v2135 = vadd.f32 %v2134, %v1560
        %v2136 = vsel %vm1965, %v1770, 0.0
        %v2137 = vadd.f32 %v2135, %v2136
        %v2138 = vrot.slane %v2137, 4
        %v2139 = vadd.f32 %v2137, %v2138
        %v2140 = vrot.slane %v2139, 2
        %v2141 = vadd.f32 %v2139, %v2140
        %v2142 = vrot.slane %v2141, 1
        %v2143 = vadd.f32 %v2141, %v2142
        %v2144 = vadd.f32 %v1141, %v1351
        %v2145 = vadd.f32 %v2144, %v1561
        %v2146 = vsel %vm1965, %v1771, 0.0
        %v2147 = vadd.f32 %v2145, %v2146
        %v2148 = vrot.slane %v2147, 4
        %v2149 = vadd.f32 %v2147, %v2148
        %v2150 = vrot.slane %v2149, 2
        %v2151 = vadd.f32 %v2149, %v2150
        %v2152 = vrot.slane %v2151, 1
        %v2153 = vadd.f32 %v2151, %v2152
        %v2154 = vadd.f32 %v1142, %v1352
        %v2155 = vadd.f32 %v2154, %v1562
        %v2156 = vsel %vm1965, %v1772, 0.0
        %v2157 = vadd.f32 %v2155, %v2156
        %v2158 = vrot.slane %v2157, 4
        %v2159 = vadd.f32 %v2157, %v2158
        %v2160 = vrot.slane %v2159, 2
        %v2161 = vadd.f32 %v2159, %v2160
        %v2162 = vrot.slane %v2161, 1
        %v2163 = vadd.f32 %v2161, %v2162
        %v2164 = vadd.f32 %v1143, %v1353
        %v2165 = vadd.f32 %v2164, %v1563
        %v2166 = vsel %vm1965, %v1773, 0.0
        %v2167 = vadd.f32 %v2165, %v2166
        %v2168 = vrot.slane %v2167, 4
        %v2169 = vadd.f32 %v2167, %v2168
        %v2170 = vrot.slane %v2169, 2
        %v2171 = vadd.f32 %v2169, %v2170
        %v2172 = vrot.slane %v2171, 1
        %v2173 = vadd.f32 %v2171, %v2172
        %v2174 = vadd.f32 %v1144, %v1354
        %v2175 = vadd.f32 %v2174, %v1564
        %v2176 = vsel %vm1965, %v1774, 0.0
        %v2177 = vadd.f32 %v2175, %v2176
        %v2178 = vrot.slane %v2177, 4
        %v2179 = vadd.f32 %v2177, %v2178
        %v2180 = vrot.slane %v2179, 2
        %v2181 = vadd.f32 %v2179, %v2180
        %v2182 = vrot.slane %v2181, 1
        %v2183 = vadd.f32 %v2181, %v2182
        %v2184 = vadd.f32 %v1145, %v1355
        %v2185 = vadd.f32 %v2184, %v1565
        %v2186 = vsel %vm1965, %v1775, 0.0
        %v2187 = vadd.f32 %v2185, %v2186
        %v2188 = vrot.slane %v2187, 4
        %v2189 = vadd.f32 %v2187, %v2188
        %v2190 = vrot.slane %v2189, 2
        %v2191 = vadd.f32 %v2189, %v2190
        %v2192 = vrot.slane %v2191, 1
        %v2193 = vadd.f32 %v2191, %v2192
        %v2194 = vadd.f32 %v1146, %v1356
        %v2195 = vadd.f32 %v2194, %v1566
        %v2196 = vsel %vm1965, %v1776, 0.0
        %v2197 = vadd.f32 %v2195, %v2196
        %v2198 = vrot.slane %v2197, 4
        %v2199 = vadd.f32 %v2197, %v2198
        %v2200 = vrot.slane %v2199, 2
        %v2201 = vadd.f32 %v2199, %v2200
        %v2202 = vrot.slane %v2201, 1
        %v2203 = vadd.f32 %v2201, %v2202
        %v2204 = vadd.f32 %v1147, %v1357
        %v2205 = vadd.f32 %v2204, %v1567
        %v2206 = vsel %vm1965, %v1777, 0.0
        %v2207 = vadd.f32 %v2205, %v2206
        %v2208 = vrot.slane %v2207, 4
        %v2209 = vadd.f32 %v2207, %v2208
        %v2210 = vrot.slane %v2209, 2
        %v2211 = vadd.f32 %v2209, %v2210
        %v2212 = vrot.slane %v2211, 1
        %v2213 = vadd.f32 %v2211, %v2212
        %v2214 = vadd.f32 %v1148, %v1358
        %v2215 = vadd.f32 %v2214, %v1568
        %v2216 = vsel %vm1965, %v1778, 0.0
        %v2217 = vadd.f32 %v2215, %v2216
        %v2218 = vrot.slane %v2217, 4
        %v2219 = vadd.f32 %v2217, %v2218
        %v2220 = vrot.slane %v2219, 2
        %v2221 = vadd.f32 %v2219, %v2220
        %v2222 = vrot.slane %v2221, 1
        %v2223 = vadd.f32 %v2221, %v2222
        %v2224 = vadd.f32 %v1149, %v1359
        %v2225 = vadd.f32 %v2224, %v1569
        %v2226 = vsel %vm1965, %v1779, 0.0
        %v2227 = vadd.f32 %v2225, %v2226
        %v2228 = vrot.slane %v2227, 4
        %v2229 = vadd.f32 %v2227, %v2228
        %v2230 = vrot.slane %v2229, 2
        %v2231 = vadd.f32 %v2229, %v2230
        %v2232 = vrot.slane %v2231, 1
        %v2233 = vadd.f32 %v2231, %v2232
        %v2234 = vadd.f32 %v1150, %v1360
        %v2235 = vadd.f32 %v2234, %v1570
        %v2236 = vsel %vm1965, %v1780, 0.0
        %v2237 = vadd.f32 %v2235, %v2236
        %v2238 = vrot.slane %v2237, 4
        %v2239 = vadd.f32 %v2237, %v2238
        %v2240 = vrot.slane %v2239, 2
        %v2241 = vadd.f32 %v2239, %v2240
        %v2242 = vrot.slane %v2241, 1
        %v2243 = vadd.f32 %v2241, %v2242
        %v2244 = vadd.f32 %v1151, %v1361
        %v2245 = vadd.f32 %v2244, %v1571
        %v2246 = vsel %vm1965, %v1781, 0.0
        %v2247 = vadd.f32 %v2245, %v2246
        %v2248 = vrot.slane %v2247, 4
        %v2249 = vadd.f32 %v2247, %v2248
        %v2250 = vrot.slane %v2249, 2
        %v2251 = vadd.f32 %v2249, %v2250
        %v2252 = vrot.slane %v2251, 1
        %v2253 = vadd.f32 %v2251, %v2252
        %v2254 = vadd.f32 %v1152, %v1362
        %v2255 = vadd.f32 %v2254, %v1572
        %v2256 = vsel %vm1965, %v1782, 0.0
        %v2257 = vadd.f32 %v2255, %v2256
        %v2258 = vrot.slane %v2257, 4
        %v2259 = vadd.f32 %v2257, %v2258
        %v2260 = vrot.slane %v2259, 2
        %v2261 = vadd.f32 %v2259, %v2260
        %v2262 = vrot.slane %v2261, 1
        %v2263 = vadd.f32 %v2261, %v2262
        %v2264 = vadd.f32 %v1153, %v1363
        %v2265 = vadd.f32 %v2264, %v1573
        %v2266 = vsel %vm1965, %v1783, 0.0
        %v2267 = vadd.f32 %v2265, %v2266
        %v2268 = vrot.slane %v2267, 4
        %v2269 = vadd.f32 %v2267, %v2268
        %v2270 = vrot.slane %v2269, 2
        %v2271 = vadd.f32 %v2269, %v2270
        %v2272 = vrot.slane %v2271, 1
        %v2273 = vadd.f32 %v2271, %v2272
        %v2274 = vadd.f32 %v1154, %v1364
        %v2275 = vadd.f32 %v2274, %v1574
        %v2276 = vsel %vm1965, %v1784, 0.0
        %v2277 = vadd.f32 %v2275, %v2276
        %v2278 = vrot.slane %v2277, 4
        %v2279 = vadd.f32 %v2277, %v2278
        %v2280 = vrot.slane %v2279, 2
        %v2281 = vadd.f32 %v2279, %v2280
        %v2282 = vrot.slane %v2281, 1
        %v2283 = vadd.f32 %v2281, %v2282
        %v2284 = vadd.f32 %v1155, %v1365
        %v2285 = vadd.f32 %v2284, %v1575
        %v2286 = vsel %vm1965, %v1785, 0.0
        %v2287 = vadd.f32 %v2285, %v2286
        %v2288 = vrot.slane %v2287, 4
        %v2289 = vadd.f32 %v2287, %v2288
        %v2290 = vrot.slane %v2289, 2
        %v2291 = vadd.f32 %v2289, %v2290
        %v2292 = vrot.slane %v2291, 1
        %v2293 = vadd.f32 %v2291, %v2292
        %v2294 = vadd.f32 %v1156, %v1366
        %v2295 = vadd.f32 %v2294, %v1576
        %v2296 = vsel %vm1965, %v1786, 0.0
        %v2297 = vadd.f32 %v2295, %v2296
        %v2298 = vrot.slane %v2297, 4
        %v2299 = vadd.f32 %v2297, %v2298
        %v2300 = vrot.slane %v2299, 2
        %v2301 = vadd.f32 %v2299, %v2300
        %v2302 = vrot.slane %v2301, 1
        %v2303 = vadd.f32 %v2301, %v2302
        %v2304 = vadd.f32 %v1157, %v1367
        %v2305 = vadd.f32 %v2304, %v1577
        %v2306 = vsel %vm1965, %v1787, 0.0
        %v2307 = vadd.f32 %v2305, %v2306
        %v2308 = vrot.slane %v2307, 4
        %v2309 = vadd.f32 %v2307, %v2308
        %v2310 = vrot.slane %v2309, 2
        %v2311 = vadd.f32 %v2309, %v2310
        %v2312 = vrot.slane %v2311, 1
        %v2313 = vadd.f32 %v2311, %v2312
        %v2314 = vadd.f32 %v1158, %v1368
        %v2315 = vadd.f32 %v2314, %v1578
        %v2316 = vsel %vm1965, %v1788, 0.0
        %v2317 = vadd.f32 %v2315, %v2316
        %v2318 = vrot.slane %v2317, 4
        %v2319 = vadd.f32 %v2317, %v2318
        %v2320 = vrot.slane %v2319, 2
        %v2321 = vadd.f32 %v2319, %v2320
        %v2322 = vrot.slane %v2321, 1
        %v2323 = vadd.f32 %v2321, %v2322
        %v2324 = vadd.f32 %v1159, %v1369
        %v2325 = vadd.f32 %v2324, %v1579
        %v2326 = vsel %vm1965, %v1789, 0.0
        %v2327 = vadd.f32 %v2325, %v2326
        %v2328 = vrot.slane %v2327, 4
        %v2329 = vadd.f32 %v2327, %v2328
        %v2330 = vrot.slane %v2329, 2
        %v2331 = vadd.f32 %v2329, %v2330
        %v2332 = vrot.slane %v2331, 1
        %v2333 = vadd.f32 %v2331, %v2332
        %v2334 = vadd.f32 %v1160, %v1370
        %v2335 = vadd.f32 %v2334, %v1580
        %v2336 = vsel %vm1965, %v1790, 0.0
        %v2337 = vadd.f32 %v2335, %v2336
        %v2338 = vrot.slane %v2337, 4
        %v2339 = vadd.f32 %v2337, %v2338
        %v2340 = vrot.slane %v2339, 2
        %v2341 = vadd.f32 %v2339, %v2340
        %v2342 = vrot.slane %v2341, 1
        %v2343 = vadd.f32 %v2341, %v2342
        %v2344 = vadd.f32 %v1161, %v1371
        %v2345 = vadd.f32 %v2344, %v1581
        %v2346 = vsel %vm1965, %v1791, 0.0
        %v2347 = vadd.f32 %v2345, %v2346
        %v2348 = vrot.slane %v2347, 4
        %v2349 = vadd.f32 %v2347, %v2348
        %v2350 = vrot.slane %v2349, 2
        %v2351 = vadd.f32 %v2349, %v2350
        %v2352 = vrot.slane %v2351, 1
        %v2353 = vadd.f32 %v2351, %v2352
        %v2354 = vadd.f32 %v1162, %v1372
        %v2355 = vadd.f32 %v2354, %v1582
        %v2356 = vsel %vm1965, %v1792, 0.0
        %v2357 = vadd.f32 %v2355, %v2356
        %v2358 = vrot.slane %v2357, 4
        %v2359 = vadd.f32 %v2357, %v2358
        %v2360 = vrot.slane %v2359, 2
        %v2361 = vadd.f32 %v2359, %v2360
        %v2362 = vrot.slane %v2361, 1
        %v2363 = vadd.f32 %v2361, %v2362
        %v2364 = vadd.f32 %v1163, %v1373
        %v2365 = vadd.f32 %v2364, %v1583
        %v2366 = vsel %vm1965, %v1793, 0.0
        %v2367 = vadd.f32 %v2365, %v2366
        %v2368 = vrot.slane %v2367, 4
        %v2369 = vadd.f32 %v2367, %v2368
        %v2370 = vrot.slane %v2369, 2
        %v2371 = vadd.f32 %v2369, %v2370
        %v2372 = vrot.slane %v2371, 1
        %v2373 = vadd.f32 %v2371, %v2372
        %v2374 = vadd.f32 %v1164, %v1374
        %v2375 = vadd.f32 %v2374, %v1584
        %v2376 = vsel %vm1965, %v1794, 0.0
        %v2377 = vadd.f32 %v2375, %v2376
        %v2378 = vrot.slane %v2377, 4
        %v2379 = vadd.f32 %v2377, %v2378
        %v2380 = vrot.slane %v2379, 2
        %v2381 = vadd.f32 %v2379, %v2380
        %v2382 = vrot.slane %v2381, 1
        %v2383 = vadd.f32 %v2381, %v2382
        %v2384 = vadd.f32 %v1165, %v1375
        %v2385 = vadd.f32 %v2384, %v1585
        %v2386 = vsel %vm1965, %v1795, 0.0
        %v2387 = vadd.f32 %v2385, %v2386
        %v2388 = vrot.slane %v2387, 4
        %v2389 = vadd.f32 %v2387, %v2388
        %v2390 = vrot.slane %v2389, 2
        %v2391 = vadd.f32 %v2389, %v2390
        %v2392 = vrot.slane %v2391, 1
        %v2393 = vadd.f32 %v2391, %v2392
        %v2394 = vadd.f32 %v1166, %v1376
        %v2395 = vadd.f32 %v2394, %v1586
        %v2396 = vsel %vm1965, %v1796, 0.0
        %v2397 = vadd.f32 %v2395, %v2396
        %v2398 = vrot.slane %v2397, 4
        %v2399 = vadd.f32 %v2397, %v2398
        %v2400 = vrot.slane %v2399, 2
        %v2401 = vadd.f32 %v2399, %v2400
        %v2402 = vrot.slane %v2401, 1
        %v2403 = vadd.f32 %v2401, %v2402
        %v2404 = vadd.f32 %v1167, %v1377
        %v2405 = vadd.f32 %v2404, %v1587
        %v2406 = vsel %vm1965, %v1797, 0.0
        %v2407 = vadd.f32 %v2405, %v2406
        %v2408 = vrot.slane %v2407, 4
        %v2409 = vadd.f32 %v2407, %v2408
        %v2410 = vrot.slane %v2409, 2
        %v2411 = vadd.f32 %v2409, %v2410
        %v2412 = vrot.slane %v2411, 1
        %v2413 = vadd.f32 %v2411, %v2412
        %v2414 = vadd.f32 %v1168, %v1378
        %v2415 = vadd.f32 %v2414, %v1588
        %v2416 = vsel %vm1965, %v1798, 0.0
        %v2417 = vadd.f32 %v2415, %v2416
        %v2418 = vrot.slane %v2417, 4
        %v2419 = vadd.f32 %v2417, %v2418
        %v2420 = vrot.slane %v2419, 2
        %v2421 = vadd.f32 %v2419, %v2420
        %v2422 = vrot.slane %v2421, 1
        %v2423 = vadd.f32 %v2421, %v2422
        %v2424 = vadd.f32 %v1169, %v1379
        %v2425 = vadd.f32 %v2424, %v1589
        %v2426 = vsel %vm1965, %v1799, 0.0
        %v2427 = vadd.f32 %v2425, %v2426
        %v2428 = vrot.slane %v2427, 4
        %v2429 = vadd.f32 %v2427, %v2428
        %v2430 = vrot.slane %v2429, 2
        %v2431 = vadd.f32 %v2429, %v2430
        %v2432 = vrot.slane %v2431, 1
        %v2433 = vadd.f32 %v2431, %v2432
        %v2434 = vadd.f32 %v1170, %v1380
        %v2435 = vadd.f32 %v2434, %v1590
        %v2436 = vsel %vm1965, %v1800, 0.0
        %v2437 = vadd.f32 %v2435, %v2436
        %v2438 = vrot.slane %v2437, 4
        %v2439 = vadd.f32 %v2437, %v2438
        %v2440 = vrot.slane %v2439, 2
        %v2441 = vadd.f32 %v2439, %v2440
        %v2442 = vrot.slane %v2441, 1
        %v2443 = vadd.f32 %v2441, %v2442
        %v2444 = vadd.f32 %v1171, %v1381
        %v2445 = vadd.f32 %v2444, %v1591
        %v2446 = vsel %vm1965, %v1801, 0.0
        %v2447 = vadd.f32 %v2445, %v2446
        %v2448 = vrot.slane %v2447, 4
        %v2449 = vadd.f32 %v2447, %v2448
        %v2450 = vrot.slane %v2449, 2
        %v2451 = vadd.f32 %v2449, %v2450
        %v2452 = vrot.slane %v2451, 1
        %v2453 = vadd.f32 %v2451, %v2452
        %v2454 = vadd.f32 %v1172, %v1382
        %v2455 = vadd.f32 %v2454, %v1592
        %v2456 = vsel %vm1965, %v1802, 0.0
        %v2457 = vadd.f32 %v2455, %v2456
        %v2458 = vrot.slane %v2457, 4
        %v2459 = vadd.f32 %v2457, %v2458
        %v2460 = vrot.slane %v2459, 2
        %v2461 = vadd.f32 %v2459, %v2460
        %v2462 = vrot.slane %v2461, 1
        %v2463 = vadd.f32 %v2461, %v2462
        %v2464 = vadd.f32 %v1173, %v1383
        %v2465 = vadd.f32 %v2464, %v1593
        %v2466 = vsel %vm1965, %v1803, 0.0
        %v2467 = vadd.f32 %v2465, %v2466
        %v2468 = vrot.slane %v2467, 4
        %v2469 = vadd.f32 %v2467, %v2468
        %v2470 = vrot.slane %v2469, 2
        %v2471 = vadd.f32 %v2469, %v2470
        %v2472 = vrot.slane %v2471, 1
        %v2473 = vadd.f32 %v2471, %v2472
        %v2474 = vadd.f32 %v1174, %v1384
        %v2475 = vadd.f32 %v2474, %v1594
        %v2476 = vsel %vm1965, %v1804, 0.0
        %v2477 = vadd.f32 %v2475, %v2476
        %v2478 = vrot.slane %v2477, 4
        %v2479 = vadd.f32 %v2477, %v2478
        %v2480 = vrot.slane %v2479, 2
        %v2481 = vadd.f32 %v2479, %v2480
        %v2482 = vrot.slane %v2481, 1
        %v2483 = vadd.f32 %v2481, %v2482
        %v2484 = vadd.f32 %v1175, %v1385
        %v2485 = vadd.f32 %v2484, %v1595
        %v2486 = vsel %vm1965, %v1805, 0.0
        %v2487 = vadd.f32 %v2485, %v2486
        %v2488 = vrot.slane %v2487, 4
        %v2489 = vadd.f32 %v2487, %v2488
        %v2490 = vrot.slane %v2489, 2
        %v2491 = vadd.f32 %v2489, %v2490
        %v2492 = vrot.slane %v2491, 1
        %v2493 = vadd.f32 %v2491, %v2492
        %v2494 = vadd.f32 %v1176, %v1386
        %v2495 = vadd.f32 %v2494, %v1596
        %v2496 = vsel %vm1965, %v1806, 0.0
        %v2497 = vadd.f32 %v2495, %v2496
        %v2498 = vrot.slane %v2497, 4
        %v2499 = vadd.f32 %v2497, %v2498
        %v2500 = vrot.slane %v2499, 2
        %v2501 = vadd.f32 %v2499, %v2500
        %v2502 = vrot.slane %v2501, 1
        %v2503 = vadd.f32 %v2501, %v2502
        %v2504 = vadd.f32 %v1177, %v1387
        %v2505 = vadd.f32 %v2504, %v1597
        %v2506 = vsel %vm1965, %v1807, 0.0
        %v2507 = vadd.f32 %v2505, %v2506
        %v2508 = vrot.slane %v2507, 4
        %v2509 = vadd.f32 %v2507, %v2508
        %v2510 = vrot.slane %v2509, 2
        %v2511 = vadd.f32 %v2509, %v2510
        %v2512 = vrot.slane %v2511, 1
        %v2513 = vadd.f32 %v2511, %v2512
        %v2514 = vadd.f32 %v1178, %v1388
        %v2515 = vadd.f32 %v2514, %v1598
        %v2516 = vsel %vm1965, %v1808, 0.0
        %v2517 = vadd.f32 %v2515, %v2516
        %v2518 = vrot.slane %v2517, 4
        %v2519 = vadd.f32 %v2517, %v2518
        %v2520 = vrot.slane %v2519, 2
        %v2521 = vadd.f32 %v2519, %v2520
        %v2522 = vrot.slane %v2521, 1
        %v2523 = vadd.f32 %v2521, %v2522
        %v2524 = vadd.f32 %v1179, %v1389
        %v2525 = vadd.f32 %v2524, %v1599
        %v2526 = vsel %vm1965, %v1809, 0.0
        %v2527 = vadd.f32 %v2525, %v2526
        %v2528 = vrot.slane %v2527, 4
        %v2529 = vadd.f32 %v2527, %v2528
        %v2530 = vrot.slane %v2529, 2
        %v2531 = vadd.f32 %v2529, %v2530
        %v2532 = vrot.slane %v2531, 1
        %v2533 = vadd.f32 %v2531, %v2532
        %v2534 = vadd.f32 %v1180, %v1390
        %v2535 = vadd.f32 %v2534, %v1600
        %v2536 = vsel %vm1965, %v1810, 0.0
        %v2537 = vadd.f32 %v2535, %v2536
        %v2538 = vrot.slane %v2537, 4
        %v2539 = vadd.f32 %v2537, %v2538
        %v2540 = vrot.slane %v2539, 2
        %v2541 = vadd.f32 %v2539, %v2540
        %v2542 = vrot.slane %v2541, 1
        %v2543 = vadd.f32 %v2541, %v2542
        %v2544 = vadd.f32 %v1181, %v1391
        %v2545 = vadd.f32 %v2544, %v1601
        %v2546 = vsel %vm1965, %v1811, 0.0
        %v2547 = vadd.f32 %v2545, %v2546
        %v2548 = vrot.slane %v2547, 4
        %v2549 = vadd.f32 %v2547, %v2548
        %v2550 = vrot.slane %v2549, 2
        %v2551 = vadd.f32 %v2549, %v2550
        %v2552 = vrot.slane %v2551, 1
        %v2553 = vadd.f32 %v2551, %v2552
        %v2554 = vadd.f32 %v1182, %v1392
        %v2555 = vadd.f32 %v2554, %v1602
        %v2556 = vsel %vm1965, %v1812, 0.0
        %v2557 = vadd.f32 %v2555, %v2556
        %v2558 = vrot.slane %v2557, 4
        %v2559 = vadd.f32 %v2557, %v2558
        %v2560 = vrot.slane %v2559, 2
        %v2561 = vadd.f32 %v2559, %v2560
        %v2562 = vrot.slane %v2561, 1
        %v2563 = vadd.f32 %v2561, %v2562
        %v2564 = vadd.f32 %v1183, %v1393
        %v2565 = vadd.f32 %v2564, %v1603
        %v2566 = vsel %vm1965, %v1813, 0.0
        %v2567 = vadd.f32 %v2565, %v2566
        %v2568 = vrot.slane %v2567, 4
        %v2569 = vadd.f32 %v2567, %v2568
        %v2570 = vrot.slane %v2569, 2
        %v2571 = vadd.f32 %v2569, %v2570
        %v2572 = vrot.slane %v2571, 1
        %v2573 = vadd.f32 %v2571, %v2572
        %v2574 = vadd.f32 %v1184, %v1394
        %v2575 = vadd.f32 %v2574, %v1604
        %v2576 = vsel %vm1965, %v1814, 0.0
        %v2577 = vadd.f32 %v2575, %v2576
        %v2578 = vrot.slane %v2577, 4
        %v2579 = vadd.f32 %v2577, %v2578
        %v2580 = vrot.slane %v2579, 2
        %v2581 = vadd.f32 %v2579, %v2580
        %v2582 = vrot.slane %v2581, 1
        %v2583 = vadd.f32 %v2581, %v2582
        %v2584 = vadd.f32 %v1185, %v1395
        %v2585 = vadd.f32 %v2584, %v1605
        %v2586 = vsel %vm1965, %v1815, 0.0
        %v2587 = vadd.f32 %v2585, %v2586
        %v2588 = vrot.slane %v2587, 4
        %v2589 = vadd.f32 %v2587, %v2588
        %v2590 = vrot.slane %v2589, 2
        %v2591 = vadd.f32 %v2589, %v2590
        %v2592 = vrot.slane %v2591, 1
        %v2593 = vadd.f32 %v2591, %v2592
        %v2594 = vadd.f32 %v1186, %v1396
        %v2595 = vadd.f32 %v2594, %v1606
        %v2596 = vsel %vm1965, %v1816, 0.0
        %v2597 = vadd.f32 %v2595, %v2596
        %v2598 = vrot.slane %v2597, 4
        %v2599 = vadd.f32 %v2597, %v2598
        %v2600 = vrot.slane %v2599, 2
        %v2601 = vadd.f32 %v2599, %v2600
        %v2602 = vrot.slane %v2601, 1
        %v2603 = vadd.f32 %v2601, %v2602
        %v2604 = vadd.f32 %v1187, %v1397
        %v2605 = vadd.f32 %v2604, %v1607
        %v2606 = vsel %vm1965, %v1817, 0.0
        %v2607 = vadd.f32 %v2605, %v2606
        %v2608 = vrot.slane %v2607, 4
        %v2609 = vadd.f32 %v2607, %v2608
        %v2610 = vrot.slane %v2609, 2
        %v2611 = vadd.f32 %v2609, %v2610
        %v2612 = vrot.slane %v2611, 1
        %v2613 = vadd.f32 %v2611, %v2612
        %v2614 = vadd.f32 %v1188, %v1398
        %v2615 = vadd.f32 %v2614, %v1608
        %v2616 = vsel %vm1965, %v1818, 0.0
        %v2617 = vadd.f32 %v2615, %v2616
        %v2618 = vrot.slane %v2617, 4
        %v2619 = vadd.f32 %v2617, %v2618
        %v2620 = vrot.slane %v2619, 2
        %v2621 = vadd.f32 %v2619, %v2620
        %v2622 = vrot.slane %v2621, 1
        %v2623 = vadd.f32 %v2621, %v2622
        %v2624 = vadd.f32 %v1189, %v1399
        %v2625 = vadd.f32 %v2624, %v1609
        %v2626 = vsel %vm1965, %v1819, 0.0
        %v2627 = vadd.f32 %v2625, %v2626
        %v2628 = vrot.slane %v2627, 4
        %v2629 = vadd.f32 %v2627, %v2628
        %v2630 = vrot.slane %v2629, 2
        %v2631 = vadd.f32 %v2629, %v2630
        %v2632 = vrot.slane %v2631, 1
        %v2633 = vadd.f32 %v2631, %v2632
        %v2634 = vadd.f32 %v1190, %v1400
        %v2635 = vadd.f32 %v2634, %v1610
        %v2636 = vsel %vm1965, %v1820, 0.0
        %v2637 = vadd.f32 %v2635, %v2636
        %v2638 = vrot.slane %v2637, 4
        %v2639 = vadd.f32 %v2637, %v2638
        %v2640 = vrot.slane %v2639, 2
        %v2641 = vadd.f32 %v2639, %v2640
        %v2642 = vrot.slane %v2641, 1
        %v2643 = vadd.f32 %v2641, %v2642
        %v2644 = vadd.f32 %v1191, %v1401
        %v2645 = vadd.f32 %v2644, %v1611
        %v2646 = vsel %vm1965, %v1821, 0.0
        %v2647 = vadd.f32 %v2645, %v2646
        %v2648 = vrot.slane %v2647, 4
        %v2649 = vadd.f32 %v2647, %v2648
        %v2650 = vrot.slane %v2649, 2
        %v2651 = vadd.f32 %v2649, %v2650
        %v2652 = vrot.slane %v2651, 1
        %v2653 = vadd.f32 %v2651, %v2652
        %v2654 = vadd.f32 %v1192, %v1402
        %v2655 = vadd.f32 %v2654, %v1612
        %v2656 = vsel %vm1965, %v1822, 0.0
        %v2657 = vadd.f32 %v2655, %v2656
        %v2658 = vrot.slane %v2657, 4
        %v2659 = vadd.f32 %v2657, %v2658
        %v2660 = vrot.slane %v2659, 2
        %v2661 = vadd.f32 %v2659, %v2660
        %v2662 = vrot.slane %v2661, 1
        %v2663 = vadd.f32 %v2661, %v2662
        %v2664 = vadd.f32 %v1193, %v1403
        %v2665 = vadd.f32 %v2664, %v1613
        %v2666 = vsel %vm1965, %v1823, 0.0
        %v2667 = vadd.f32 %v2665, %v2666
        %v2668 = vrot.slane %v2667, 4
        %v2669 = vadd.f32 %v2667, %v2668
        %v2670 = vrot.slane %v2669, 2
        %v2671 = vadd.f32 %v2669, %v2670
        %v2672 = vrot.slane %v2671, 1
        %v2673 = vadd.f32 %v2671, %v2672
        %v2674 = vadd.f32 %v1194, %v1404
        %v2675 = vadd.f32 %v2674, %v1614
        %v2676 = vsel %vm1965, %v1824, 0.0
        %v2677 = vadd.f32 %v2675, %v2676
        %v2678 = vrot.slane %v2677, 4
        %v2679 = vadd.f32 %v2677, %v2678
        %v2680 = vrot.slane %v2679, 2
        %v2681 = vadd.f32 %v2679, %v2680
        %v2682 = vrot.slane %v2681, 1
        %v2683 = vadd.f32 %v2681, %v2682
        %v2684 = vadd.f32 %v1195, %v1405
        %v2685 = vadd.f32 %v2684, %v1615
        %v2686 = vsel %vm1965, %v1825, 0.0
        %v2687 = vadd.f32 %v2685, %v2686
        %v2688 = vrot.slane %v2687, 4
        %v2689 = vadd.f32 %v2687, %v2688
        %v2690 = vrot.slane %v2689, 2
        %v2691 = vadd.f32 %v2689, %v2690
        %v2692 = vrot.slane %v2691, 1
        %v2693 = vadd.f32 %v2691, %v2692
        %v2694 = vadd.f32 %v1196, %v1406
        %v2695 = vadd.f32 %v2694, %v1616
        %v2696 = vsel %vm1965, %v1826, 0.0
        %v2697 = vadd.f32 %v2695, %v2696
        %v2698 = vrot.slane %v2697, 4
        %v2699 = vadd.f32 %v2697, %v2698
        %v2700 = vrot.slane %v2699, 2
        %v2701 = vadd.f32 %v2699, %v2700
        %v2702 = vrot.slane %v2701, 1
        %v2703 = vadd.f32 %v2701, %v2702
        %v2704 = vadd.f32 %v1197, %v1407
        %v2705 = vadd.f32 %v2704, %v1617
        %v2706 = vsel %vm1965, %v1827, 0.0
        %v2707 = vadd.f32 %v2705, %v2706
        %v2708 = vrot.slane %v2707, 4
        %v2709 = vadd.f32 %v2707, %v2708
        %v2710 = vrot.slane %v2709, 2
        %v2711 = vadd.f32 %v2709, %v2710
        %v2712 = vrot.slane %v2711, 1
        %v2713 = vadd.f32 %v2711, %v2712
        %v2714 = vadd.f32 %v1198, %v1408
        %v2715 = vadd.f32 %v2714, %v1618
        %v2716 = vsel %vm1965, %v1828, 0.0
        %v2717 = vadd.f32 %v2715, %v2716
        %v2718 = vrot.slane %v2717, 4
        %v2719 = vadd.f32 %v2717, %v2718
        %v2720 = vrot.slane %v2719, 2
        %v2721 = vadd.f32 %v2719, %v2720
        %v2722 = vrot.slane %v2721, 1
        %v2723 = vadd.f32 %v2721, %v2722
        %v2724 = vadd.f32 %v1199, %v1409
        %v2725 = vadd.f32 %v2724, %v1619
        %v2726 = vsel %vm1965, %v1829, 0.0
        %v2727 = vadd.f32 %v2725, %v2726
        %v2728 = vrot.slane %v2727, 4
        %v2729 = vadd.f32 %v2727, %v2728
        %v2730 = vrot.slane %v2729, 2
        %v2731 = vadd.f32 %v2729, %v2730
        %v2732 = vrot.slane %v2731, 1
        %v2733 = vadd.f32 %v2731, %v2732
        %v2734 = vadd.f32 %v1200, %v1410
        %v2735 = vadd.f32 %v2734, %v1620
        %v2736 = vsel %vm1965, %v1830, 0.0
        %v2737 = vadd.f32 %v2735, %v2736
        %v2738 = vrot.slane %v2737, 4
        %v2739 = vadd.f32 %v2737, %v2738
        %v2740 = vrot.slane %v2739, 2
        %v2741 = vadd.f32 %v2739, %v2740
        %v2742 = vrot.slane %v2741, 1
        %v2743 = vadd.f32 %v2741, %v2742
        %v2744 = vadd.f32 %v1201, %v1411
        %v2745 = vadd.f32 %v2744, %v1621
        %v2746 = vsel %vm1965, %v1831, 0.0
        %v2747 = vadd.f32 %v2745, %v2746
        %v2748 = vrot.slane %v2747, 4
        %v2749 = vadd.f32 %v2747, %v2748
        %v2750 = vrot.slane %v2749, 2
        %v2751 = vadd.f32 %v2749, %v2750
        %v2752 = vrot.slane %v2751, 1
        %v2753 = vadd.f32 %v2751, %v2752
        %v2754 = vadd.f32 %v1202, %v1412
        %v2755 = vadd.f32 %v2754, %v1622
        %v2756 = vsel %vm1965, %v1832, 0.0
        %v2757 = vadd.f32 %v2755, %v2756
        %v2758 = vrot.slane %v2757, 4
        %v2759 = vadd.f32 %v2757, %v2758
        %v2760 = vrot.slane %v2759, 2
        %v2761 = vadd.f32 %v2759, %v2760
        %v2762 = vrot.slane %v2761, 1
        %v2763 = vadd.f32 %v2761, %v2762
        %v2764 = vadd.f32 %v1203, %v1413
        %v2765 = vadd.f32 %v2764, %v1623
        %v2766 = vsel %vm1965, %v1833, 0.0
        %v2767 = vadd.f32 %v2765, %v2766
        %v2768 = vrot.slane %v2767, 4
        %v2769 = vadd.f32 %v2767, %v2768
        %v2770 = vrot.slane %v2769, 2
        %v2771 = vadd.f32 %v2769, %v2770
        %v2772 = vrot.slane %v2771, 1
        %v2773 = vadd.f32 %v2771, %v2772
        %v2774 = vadd.f32 %v1204, %v1414
        %v2775 = vadd.f32 %v2774, %v1624
        %v2776 = vsel %vm1965, %v1834, 0.0
        %v2777 = vadd.f32 %v2775, %v2776
        %v2778 = vrot.slane %v2777, 4
        %v2779 = vadd.f32 %v2777, %v2778
        %v2780 = vrot.slane %v2779, 2
        %v2781 = vadd.f32 %v2779, %v2780
        %v2782 = vrot.slane %v2781, 1
        %v2783 = vadd.f32 %v2781, %v2782
        %v2784 = vadd.f32 %v1205, %v1415
        %v2785 = vadd.f32 %v2784, %v1625
        %v2786 = vsel %vm1965, %v1835, 0.0
        %v2787 = vadd.f32 %v2785, %v2786
        %v2788 = vrot.slane %v2787, 4
        %v2789 = vadd.f32 %v2787, %v2788
        %v2790 = vrot.slane %v2789, 2
        %v2791 = vadd.f32 %v2789, %v2790
        %v2792 = vrot.slane %v2791, 1
        %v2793 = vadd.f32 %v2791, %v2792
        %v2794 = vadd.f32 %v1206, %v1416
        %v2795 = vadd.f32 %v2794, %v1626
        %v2796 = vsel %vm1965, %v1836, 0.0
        %v2797 = vadd.f32 %v2795, %v2796
        %v2798 = vrot.slane %v2797, 4
        %v2799 = vadd.f32 %v2797, %v2798
        %v2800 = vrot.slane %v2799, 2
        %v2801 = vadd.f32 %v2799, %v2800
        %v2802 = vrot.slane %v2801, 1
        %v2803 = vadd.f32 %v2801, %v2802
        %v2804 = vadd.f32 %v1207, %v1417
        %v2805 = vadd.f32 %v2804, %v1627
        %v2806 = vsel %vm1965, %v1837, 0.0
        %v2807 = vadd.f32 %v2805, %v2806
        %v2808 = vrot.slane %v2807, 4
        %v2809 = vadd.f32 %v2807, %v2808
        %v2810 = vrot.slane %v2809, 2
        %v2811 = vadd.f32 %v2809, %v2810
        %v2812 = vrot.slane %v2811, 1
        %v2813 = vadd.f32 %v2811, %v2812
        %v2814 = vadd.f32 %v1208, %v1418
        %v2815 = vadd.f32 %v2814, %v1628
        %v2816 = vsel %vm1965, %v1838, 0.0
        %v2817 = vadd.f32 %v2815, %v2816
        %v2818 = vrot.slane %v2817, 4
        %v2819 = vadd.f32 %v2817, %v2818
        %v2820 = vrot.slane %v2819, 2
        %v2821 = vadd.f32 %v2819, %v2820
        %v2822 = vrot.slane %v2821, 1
        %v2823 = vadd.f32 %v2821, %v2822
        %v2824 = vadd.f32 %v1209, %v1419
        %v2825 = vadd.f32 %v2824, %v1629
        %v2826 = vsel %vm1965, %v1839, 0.0
        %v2827 = vadd.f32 %v2825, %v2826
        %v2828 = vrot.slane %v2827, 4
        %v2829 = vadd.f32 %v2827, %v2828
        %v2830 = vrot.slane %v2829, 2
        %v2831 = vadd.f32 %v2829, %v2830
        %v2832 = vrot.slane %v2831, 1
        %v2833 = vadd.f32 %v2831, %v2832
        %v2834 = vadd.f32 %v1210, %v1420
        %v2835 = vadd.f32 %v2834, %v1630
        %v2836 = vsel %vm1965, %v1840, 0.0
        %v2837 = vadd.f32 %v2835, %v2836
        %v2838 = vrot.slane %v2837, 4
        %v2839 = vadd.f32 %v2837, %v2838
        %v2840 = vrot.slane %v2839, 2
        %v2841 = vadd.f32 %v2839, %v2840
        %v2842 = vrot.slane %v2841, 1
        %v2843 = vadd.f32 %v2841, %v2842
        %v2844 = vadd.f32 %v1211, %v1421
        %v2845 = vadd.f32 %v2844, %v1631
        %v2846 = vsel %vm1965, %v1841, 0.0
        %v2847 = vadd.f32 %v2845, %v2846
        %v2848 = vrot.slane %v2847, 4
        %v2849 = vadd.f32 %v2847, %v2848
        %v2850 = vrot.slane %v2849, 2
        %v2851 = vadd.f32 %v2849, %v2850
        %v2852 = vrot.slane %v2851, 1
        %v2853 = vadd.f32 %v2851, %v2852
        %v2854 = vadd.f32 %v1212, %v1422
        %v2855 = vadd.f32 %v2854, %v1632
        %v2856 = vsel %vm1965, %v1842, 0.0
        %v2857 = vadd.f32 %v2855, %v2856
        %v2858 = vrot.slane %v2857, 4
        %v2859 = vadd.f32 %v2857, %v2858
        %v2860 = vrot.slane %v2859, 2
        %v2861 = vadd.f32 %v2859, %v2860
        %v2862 = vrot.slane %v2861, 1
        %v2863 = vadd.f32 %v2861, %v2862
        %v2864 = vadd.f32 %v1213, %v1423
        %v2865 = vadd.f32 %v2864, %v1633
        %v2866 = vsel %vm1965, %v1843, 0.0
        %v2867 = vadd.f32 %v2865, %v2866
        %v2868 = vrot.slane %v2867, 4
        %v2869 = vadd.f32 %v2867, %v2868
        %v2870 = vrot.slane %v2869, 2
        %v2871 = vadd.f32 %v2869, %v2870
        %v2872 = vrot.slane %v2871, 1
        %v2873 = vadd.f32 %v2871, %v2872
        %v2874 = vadd.f32 %v1214, %v1424
        %v2875 = vadd.f32 %v2874, %v1634
        %v2876 = vsel %vm1965, %v1844, 0.0
        %v2877 = vadd.f32 %v2875, %v2876
        %v2878 = vrot.slane %v2877, 4
        %v2879 = vadd.f32 %v2877, %v2878
        %v2880 = vrot.slane %v2879, 2
        %v2881 = vadd.f32 %v2879, %v2880
        %v2882 = vrot.slane %v2881, 1
        %v2883 = vadd.f32 %v2881, %v2882
        %v2884 = vadd.f32 %v1215, %v1425
        %v2885 = vadd.f32 %v2884, %v1635
        %v2886 = vsel %vm1965, %v1845, 0.0
        %v2887 = vadd.f32 %v2885, %v2886
        %v2888 = vrot.slane %v2887, 4
        %v2889 = vadd.f32 %v2887, %v2888
        %v2890 = vrot.slane %v2889, 2
        %v2891 = vadd.f32 %v2889, %v2890
        %v2892 = vrot.slane %v2891, 1
        %v2893 = vadd.f32 %v2891, %v2892
        %v2894 = vadd.f32 %v1216, %v1426
        %v2895 = vadd.f32 %v2894, %v1636
        %v2896 = vsel %vm1965, %v1846, 0.0
        %v2897 = vadd.f32 %v2895, %v2896
        %v2898 = vrot.slane %v2897, 4
        %v2899 = vadd.f32 %v2897, %v2898
        %v2900 = vrot.slane %v2899, 2
        %v2901 = vadd.f32 %v2899, %v2900
        %v2902 = vrot.slane %v2901, 1
        %v2903 = vadd.f32 %v2901, %v2902
        %v2904 = vadd.f32 %v1217, %v1427
        %v2905 = vadd.f32 %v2904, %v1637
        %v2906 = vsel %vm1965, %v1847, 0.0
        %v2907 = vadd.f32 %v2905, %v2906
        %v2908 = vrot.slane %v2907, 4
        %v2909 = vadd.f32 %v2907, %v2908
        %v2910 = vrot.slane %v2909, 2
        %v2911 = vadd.f32 %v2909, %v2910
        %v2912 = vrot.slane %v2911, 1
        %v2913 = vadd.f32 %v2911, %v2912
        %v2914 = vadd.f32 %v1218, %v1428
        %v2915 = vadd.f32 %v2914, %v1638
        %v2916 = vsel %vm1965, %v1848, 0.0
        %v2917 = vadd.f32 %v2915, %v2916
        %v2918 = vrot.slane %v2917, 4
        %v2919 = vadd.f32 %v2917, %v2918
        %v2920 = vrot.slane %v2919, 2
        %v2921 = vadd.f32 %v2919, %v2920
        %v2922 = vrot.slane %v2921, 1
        %v2923 = vadd.f32 %v2921, %v2922
        %v2924 = vadd.f32 %v1219, %v1429
        %v2925 = vadd.f32 %v2924, %v1639
        %v2926 = vsel %vm1965, %v1849, 0.0
        %v2927 = vadd.f32 %v2925, %v2926
        %v2928 = vrot.slane %v2927, 4
        %v2929 = vadd.f32 %v2927, %v2928
        %v2930 = vrot.slane %v2929, 2
        %v2931 = vadd.f32 %v2929, %v2930
        %v2932 = vrot.slane %v2931, 1
        %v2933 = vadd.f32 %v2931, %v2932
        %v2934 = vadd.f32 %v1220, %v1430
        %v2935 = vadd.f32 %v2934, %v1640
        %v2936 = vsel %vm1965, %v1850, 0.0
        %v2937 = vadd.f32 %v2935, %v2936
        %v2938 = vrot.slane %v2937, 4
        %v2939 = vadd.f32 %v2937, %v2938
        %v2940 = vrot.slane %v2939, 2
        %v2941 = vadd.f32 %v2939, %v2940
        %v2942 = vrot.slane %v2941, 1
        %v2943 = vadd.f32 %v2941, %v2942
        %v2944 = vadd.f32 %v1221, %v1431
        %v2945 = vadd.f32 %v2944, %v1641
        %v2946 = vsel %vm1965, %v1851, 0.0
        %v2947 = vadd.f32 %v2945, %v2946
        %v2948 = vrot.slane %v2947, 4
        %v2949 = vadd.f32 %v2947, %v2948
        %v2950 = vrot.slane %v2949, 2
        %v2951 = vadd.f32 %v2949, %v2950
        %v2952 = vrot.slane %v2951, 1
        %v2953 = vadd.f32 %v2951, %v2952
        %v2954 = vadd.f32 %v1222, %v1432
        %v2955 = vadd.f32 %v2954, %v1642
        %v2956 = vsel %vm1965, %v1852, 0.0
        %v2957 = vadd.f32 %v2955, %v2956
        %v2958 = vrot.slane %v2957, 4
        %v2959 = vadd.f32 %v2957, %v2958
        %v2960 = vrot.slane %v2959, 2
        %v2961 = vadd.f32 %v2959, %v2960
        %v2962 = vrot.slane %v2961, 1
        %v2963 = vadd.f32 %v2961, %v2962
        %v2964 = vadd.f32 %v1223, %v1433
        %v2965 = vadd.f32 %v2964, %v1643
        %v2966 = vsel %vm1965, %v1853, 0.0
        %v2967 = vadd.f32 %v2965, %v2966
        %v2968 = vrot.slane %v2967, 4
        %v2969 = vadd.f32 %v2967, %v2968
        %v2970 = vrot.slane %v2969, 2
        %v2971 = vadd.f32 %v2969, %v2970
        %v2972 = vrot.slane %v2971, 1
        %v2973 = vadd.f32 %v2971, %v2972
        %v2974 = vadd.f32 %v1224, %v1434
        %v2975 = vadd.f32 %v2974, %v1644
        %v2976 = vsel %vm1965, %v1854, 0.0
        %v2977 = vadd.f32 %v2975, %v2976
        %v2978 = vrot.slane %v2977, 4
        %v2979 = vadd.f32 %v2977, %v2978
        %v2980 = vrot.slane %v2979, 2
        %v2981 = vadd.f32 %v2979, %v2980
        %v2982 = vrot.slane %v2981, 1
        %v2983 = vadd.f32 %v2981, %v2982
        %v2984 = vadd.f32 %v1225, %v1435
        %v2985 = vadd.f32 %v2984, %v1645
        %v2986 = vsel %vm1965, %v1855, 0.0
        %v2987 = vadd.f32 %v2985, %v2986
        %v2988 = vrot.slane %v2987, 4
        %v2989 = vadd.f32 %v2987, %v2988
        %v2990 = vrot.slane %v2989, 2
        %v2991 = vadd.f32 %v2989, %v2990
        %v2992 = vrot.slane %v2991, 1
        %v2993 = vadd.f32 %v2991, %v2992
        %v2994 = vadd.f32 %v1226, %v1436
        %v2995 = vadd.f32 %v2994, %v1646
        %v2996 = vsel %vm1965, %v1856, 0.0
        %v2997 = vadd.f32 %v2995, %v2996
        %v2998 = vrot.slane %v2997, 4
        %v2999 = vadd.f32 %v2997, %v2998
        %v3000 = vrot.slane %v2999, 2
        %v3001 = vadd.f32 %v2999, %v3000
        %v3002 = vrot.slane %v3001, 1
        %v3003 = vadd.f32 %v3001, %v3002
        %v3004 = vadd.f32 %v1227, %v1437
        %v3005 = vadd.f32 %v3004, %v1647
        %v3006 = vsel %vm1965, %v1857, 0.0
        %v3007 = vadd.f32 %v3005, %v3006
        %v3008 = vrot.slane %v3007, 4
        %v3009 = vadd.f32 %v3007, %v3008
        %v3010 = vrot.slane %v3009, 2
        %v3011 = vadd.f32 %v3009, %v3010
        %v3012 = vrot.slane %v3011, 1
        %v3013 = vadd.f32 %v3011, %v3012
        %v3014 = vadd.f32 %v1228, %v1438
        %v3015 = vadd.f32 %v3014, %v1648
        %v3016 = vsel %vm1965, %v1858, 0.0
        %v3017 = vadd.f32 %v3015, %v3016
        %v3018 = vrot.slane %v3017, 4
        %v3019 = vadd.f32 %v3017, %v3018
        %v3020 = vrot.slane %v3019, 2
        %v3021 = vadd.f32 %v3019, %v3020
        %v3022 = vrot.slane %v3021, 1
        %v3023 = vadd.f32 %v3021, %v3022
        %v3024 = vadd.f32 %v1229, %v1439
        %v3025 = vadd.f32 %v3024, %v1649
        %v3026 = vsel %vm1965, %v1859, 0.0
        %v3027 = vadd.f32 %v3025, %v3026
        %v3028 = vrot.slane %v3027, 4
        %v3029 = vadd.f32 %v3027, %v3028
        %v3030 = vrot.slane %v3029, 2
        %v3031 = vadd.f32 %v3029, %v3030
        %v3032 = vrot.slane %v3031, 1
        %v3033 = vadd.f32 %v3031, %v3032
        %v3034 = vadd.f32 %v1230, %v1440
        %v3035 = vadd.f32 %v3034, %v1650
        %v3036 = vsel %vm1965, %v1860, 0.0
        %v3037 = vadd.f32 %v3035, %v3036
        %v3038 = vrot.slane %v3037, 4
        %v3039 = vadd.f32 %v3037, %v3038
        %v3040 = vrot.slane %v3039, 2
        %v3041 = vadd.f32 %v3039, %v3040
        %v3042 = vrot.slane %v3041, 1
        %v3043 = vadd.f32 %v3041, %v3042
        %v3044 = vadd.f32 %v1231, %v1441
        %v3045 = vadd.f32 %v3044, %v1651
        %v3046 = vsel %vm1965, %v1861, 0.0
        %v3047 = vadd.f32 %v3045, %v3046
        %v3048 = vrot.slane %v3047, 4
        %v3049 = vadd.f32 %v3047, %v3048
        %v3050 = vrot.slane %v3049, 2
        %v3051 = vadd.f32 %v3049, %v3050
        %v3052 = vrot.slane %v3051, 1
        %v3053 = vadd.f32 %v3051, %v3052
        %v3054 = vadd.f32 %v1232, %v1442
        %v3055 = vadd.f32 %v3054, %v1652
        %v3056 = vsel %vm1965, %v1862, 0.0
        %v3057 = vadd.f32 %v3055, %v3056
        %v3058 = vrot.slane %v3057, 4
        %v3059 = vadd.f32 %v3057, %v3058
        %v3060 = vrot.slane %v3059, 2
        %v3061 = vadd.f32 %v3059, %v3060
        %v3062 = vrot.slane %v3061, 1
        %v3063 = vadd.f32 %v3061, %v3062
        %v3064 = vadd.f32 %v1233, %v1443
        %v3065 = vadd.f32 %v3064, %v1653
        %v3066 = vsel %vm1965, %v1863, 0.0
        %v3067 = vadd.f32 %v3065, %v3066
        %v3068 = vrot.slane %v3067, 4
        %v3069 = vadd.f32 %v3067, %v3068
        %v3070 = vrot.slane %v3069, 2
        %v3071 = vadd.f32 %v3069, %v3070
        %v3072 = vrot.slane %v3071, 1
        %v3073 = vadd.f32 %v3071, %v3072
        %v3074 = vadd.f32 %v1234, %v1444
        %v3075 = vadd.f32 %v3074, %v1654
        %v3076 = vsel %vm1965, %v1864, 0.0
        %v3077 = vadd.f32 %v3075, %v3076
        %v3078 = vrot.slane %v3077, 4
        %v3079 = vadd.f32 %v3077, %v3078
        %v3080 = vrot.slane %v3079, 2
        %v3081 = vadd.f32 %v3079, %v3080
        %v3082 = vrot.slane %v3081, 1
        %v3083 = vadd.f32 %v3081, %v3082
        %v3084 = vadd.f32 %v1235, %v1445
        %v3085 = vadd.f32 %v3084, %v1655
        %v3086 = vsel %vm1965, %v1865, 0.0
        %v3087 = vadd.f32 %v3085, %v3086
        %v3088 = vrot.slane %v3087, 4
        %v3089 = vadd.f32 %v3087, %v3088
        %v3090 = vrot.slane %v3089, 2
        %v3091 = vadd.f32 %v3089, %v3090
        %v3092 = vrot.slane %v3091, 1
        %v3093 = vadd.f32 %v3091, %v3092
        %v3094 = vadd.f32 %v1236, %v1446
        %v3095 = vadd.f32 %v3094, %v1656
        %v3096 = vsel %vm1965, %v1866, 0.0
        %v3097 = vadd.f32 %v3095, %v3096
        %v3098 = vrot.slane %v3097, 4
        %v3099 = vadd.f32 %v3097, %v3098
        %v3100 = vrot.slane %v3099, 2
        %v3101 = vadd.f32 %v3099, %v3100
        %v3102 = vrot.slane %v3101, 1
        %v3103 = vadd.f32 %v3101, %v3102
        %v3104 = vadd.f32 %v1237, %v1447
        %v3105 = vadd.f32 %v3104, %v1657
        %v3106 = vsel %vm1965, %v1867, 0.0
        %v3107 = vadd.f32 %v3105, %v3106
        %v3108 = vrot.slane %v3107, 4
        %v3109 = vadd.f32 %v3107, %v3108
        %v3110 = vrot.slane %v3109, 2
        %v3111 = vadd.f32 %v3109, %v3110
        %v3112 = vrot.slane %v3111, 1
        %v3113 = vadd.f32 %v3111, %v3112
        %v3114 = vadd.f32 %v1238, %v1448
        %v3115 = vadd.f32 %v3114, %v1658
        %v3116 = vsel %vm1965, %v1868, 0.0
        %v3117 = vadd.f32 %v3115, %v3116
        %v3118 = vrot.slane %v3117, 4
        %v3119 = vadd.f32 %v3117, %v3118
        %v3120 = vrot.slane %v3119, 2
        %v3121 = vadd.f32 %v3119, %v3120
        %v3122 = vrot.slane %v3121, 1
        %v3123 = vadd.f32 %v3121, %v3122
        %v3124 = vadd.f32 %v1239, %v1449
        %v3125 = vadd.f32 %v3124, %v1659
        %v3126 = vsel %vm1965, %v1869, 0.0
        %v3127 = vadd.f32 %v3125, %v3126
        %v3128 = vrot.slane %v3127, 4
        %v3129 = vadd.f32 %v3127, %v3128
        %v3130 = vrot.slane %v3129, 2
        %v3131 = vadd.f32 %v3129, %v3130
        %v3132 = vrot.slane %v3131, 1
        %v3133 = vadd.f32 %v3131, %v3132
        %v3134 = vadd.f32 %v1240, %v1450
        %v3135 = vadd.f32 %v3134, %v1660
        %v3136 = vsel %vm1965, %v1870, 0.0
        %v3137 = vadd.f32 %v3135, %v3136
        %v3138 = vrot.slane %v3137, 4
        %v3139 = vadd.f32 %v3137, %v3138
        %v3140 = vrot.slane %v3139, 2
        %v3141 = vadd.f32 %v3139, %v3140
        %v3142 = vrot.slane %v3141, 1
        %v3143 = vadd.f32 %v3141, %v3142
        %v3144 = vadd.f32 %v1241, %v1451
        %v3145 = vadd.f32 %v3144, %v1661
        %v3146 = vsel %vm1965, %v1871, 0.0
        %v3147 = vadd.f32 %v3145, %v3146
        %v3148 = vrot.slane %v3147, 4
        %v3149 = vadd.f32 %v3147, %v3148
        %v3150 = vrot.slane %v3149, 2
        %v3151 = vadd.f32 %v3149, %v3150
        %v3152 = vrot.slane %v3151, 1
        %v3153 = vadd.f32 %v3151, %v3152
        %v3154 = vadd.f32 %v1242, %v1452
        %v3155 = vadd.f32 %v3154, %v1662
        %v3156 = vsel %vm1965, %v1872, 0.0
        %v3157 = vadd.f32 %v3155, %v3156
        %v3158 = vrot.slane %v3157, 4
        %v3159 = vadd.f32 %v3157, %v3158
        %v3160 = vrot.slane %v3159, 2
        %v3161 = vadd.f32 %v3159, %v3160
        %v3162 = vrot.slane %v3161, 1
        %v3163 = vadd.f32 %v3161, %v3162
        %v3164 = vadd.f32 %v1243, %v1453
        %v3165 = vadd.f32 %v3164, %v1663
        %v3166 = vsel %vm1965, %v1873, 0.0
        %v3167 = vadd.f32 %v3165, %v3166
        %v3168 = vrot.slane %v3167, 4
        %v3169 = vadd.f32 %v3167, %v3168
        %v3170 = vrot.slane %v3169, 2
        %v3171 = vadd.f32 %v3169, %v3170
        %v3172 = vrot.slane %v3171, 1
        %v3173 = vadd.f32 %v3171, %v3172
        %v3174 = vadd.f32 %v1244, %v1454
        %v3175 = vadd.f32 %v3174, %v1664
        %v3176 = vsel %vm1965, %v1874, 0.0
        %v3177 = vadd.f32 %v3175, %v3176
        %v3178 = vrot.slane %v3177, 4
        %v3179 = vadd.f32 %v3177, %v3178
        %v3180 = vrot.slane %v3179, 2
        %v3181 = vadd.f32 %v3179, %v3180
        %v3182 = vrot.slane %v3181, 1
        %v3183 = vadd.f32 %v3181, %v3182
        %v3184 = vadd.f32 %v1245, %v1455
        %v3185 = vadd.f32 %v3184, %v1665
        %v3186 = vsel %vm1965, %v1875, 0.0
        %v3187 = vadd.f32 %v3185, %v3186
        %v3188 = vrot.slane %v3187, 4
        %v3189 = vadd.f32 %v3187, %v3188
        %v3190 = vrot.slane %v3189, 2
        %v3191 = vadd.f32 %v3189, %v3190
        %v3192 = vrot.slane %v3191, 1
        %v3193 = vadd.f32 %v3191, %v3192
        %v3194 = vadd.f32 %v1246, %v1456
        %v3195 = vadd.f32 %v3194, %v1666
        %v3196 = vsel %vm1965, %v1876, 0.0
        %v3197 = vadd.f32 %v3195, %v3196
        %v3198 = vrot.slane %v3197, 4
        %v3199 = vadd.f32 %v3197, %v3198
        %v3200 = vrot.slane %v3199, 2
        %v3201 = vadd.f32 %v3199, %v3200
        %v3202 = vrot.slane %v3201, 1
        %v3203 = vadd.f32 %v3201, %v3202
        %v3204 = vadd.f32 %v1247, %v1457
        %v3205 = vadd.f32 %v3204, %v1667
        %v3206 = vsel %vm1965, %v1877, 0.0
        %v3207 = vadd.f32 %v3205, %v3206
        %v3208 = vrot.slane %v3207, 4
        %v3209 = vadd.f32 %v3207, %v3208
        %v3210 = vrot.slane %v3209, 2
        %v3211 = vadd.f32 %v3209, %v3210
        %v3212 = vrot.slane %v3211, 1
        %v3213 = vadd.f32 %v3211, %v3212
        %v3214 = vadd.f32 %v1248, %v1458
        %v3215 = vadd.f32 %v3214, %v1668
        %v3216 = vsel %vm1965, %v1878, 0.0
        %v3217 = vadd.f32 %v3215, %v3216
        %v3218 = vrot.slane %v3217, 4
        %v3219 = vadd.f32 %v3217, %v3218
        %v3220 = vrot.slane %v3219, 2
        %v3221 = vadd.f32 %v3219, %v3220
        %v3222 = vrot.slane %v3221, 1
        %v3223 = vadd.f32 %v3221, %v3222
        %v3224 = vadd.f32 %v1249, %v1459
        %v3225 = vadd.f32 %v3224, %v1669
        %v3226 = vsel %vm1965, %v1879, 0.0
        %v3227 = vadd.f32 %v3225, %v3226
        %v3228 = vrot.slane %v3227, 4
        %v3229 = vadd.f32 %v3227, %v3228
        %v3230 = vrot.slane %v3229, 2
        %v3231 = vadd.f32 %v3229, %v3230
        %v3232 = vrot.slane %v3231, 1
        %v3233 = vadd.f32 %v3231, %v3232
        %v3234 = vadd.f32 %v1250, %v1460
        %v3235 = vadd.f32 %v3234, %v1670
        %v3236 = vsel %vm1965, %v1880, 0.0
        %v3237 = vadd.f32 %v3235, %v3236
        %v3238 = vrot.slane %v3237, 4
        %v3239 = vadd.f32 %v3237, %v3238
        %v3240 = vrot.slane %v3239, 2
        %v3241 = vadd.f32 %v3239, %v3240
        %v3242 = vrot.slane %v3241, 1
        %v3243 = vadd.f32 %v3241, %v3242
        %v3244 = vadd.f32 %v1251, %v1461
        %v3245 = vadd.f32 %v3244, %v1671
        %v3246 = vsel %vm1965, %v1881, 0.0
        %v3247 = vadd.f32 %v3245, %v3246
        %v3248 = vrot.slane %v3247, 4
        %v3249 = vadd.f32 %v3247, %v3248
        %v3250 = vrot.slane %v3249, 2
        %v3251 = vadd.f32 %v3249, %v3250
        %v3252 = vrot.slane %v3251, 1
        %v3253 = vadd.f32 %v3251, %v3252
        %v3254 = vadd.f32 %v1252, %v1462
        %v3255 = vadd.f32 %v3254, %v1672
        %v3256 = vsel %vm1965, %v1882, 0.0
        %v3257 = vadd.f32 %v3255, %v3256
        %v3258 = vrot.slane %v3257, 4
        %v3259 = vadd.f32 %v3257, %v3258
        %v3260 = vrot.slane %v3259, 2
        %v3261 = vadd.f32 %v3259, %v3260
        %v3262 = vrot.slane %v3261, 1
        %v3263 = vadd.f32 %v3261, %v3262
        %v3264 = vadd.f32 %v1253, %v1463
        %v3265 = vadd.f32 %v3264, %v1673
        %v3266 = vsel %vm1965, %v1883, 0.0
        %v3267 = vadd.f32 %v3265, %v3266
        %v3268 = vrot.slane %v3267, 4
        %v3269 = vadd.f32 %v3267, %v3268
        %v3270 = vrot.slane %v3269, 2
        %v3271 = vadd.f32 %v3269, %v3270
        %v3272 = vrot.slane %v3271, 1
        %v3273 = vadd.f32 %v3271, %v3272
        %v3274 = vadd.f32 %v1254, %v1464
        %v3275 = vadd.f32 %v3274, %v1674
        %v3276 = vsel %vm1965, %v1884, 0.0
        %v3277 = vadd.f32 %v3275, %v3276
        %v3278 = vrot.slane %v3277, 4
        %v3279 = vadd.f32 %v3277, %v3278
        %v3280 = vrot.slane %v3279, 2
        %v3281 = vadd.f32 %v3279, %v3280
        %v3282 = vrot.slane %v3281, 1
        %v3283 = vadd.f32 %v3281, %v3282
        %v3284 = vadd.f32 %v1255, %v1465
        %v3285 = vadd.f32 %v3284, %v1675
        %v3286 = vsel %vm1965, %v1885, 0.0
        %v3287 = vadd.f32 %v3285, %v3286
        %v3288 = vrot.slane %v3287, 4
        %v3289 = vadd.f32 %v3287, %v3288
        %v3290 = vrot.slane %v3289, 2
        %v3291 = vadd.f32 %v3289, %v3290
        %v3292 = vrot.slane %v3291, 1
        %v3293 = vadd.f32 %v3291, %v3292
        %v3294 = vadd.f32 %v1256, %v1466
        %v3295 = vadd.f32 %v3294, %v1676
        %v3296 = vsel %vm1965, %v1886, 0.0
        %v3297 = vadd.f32 %v3295, %v3296
        %v3298 = vrot.slane %v3297, 4
        %v3299 = vadd.f32 %v3297, %v3298
        %v3300 = vrot.slane %v3299, 2
        %v3301 = vadd.f32 %v3299, %v3300
        %v3302 = vrot.slane %v3301, 1
        %v3303 = vadd.f32 %v3301, %v3302
        %v3304 = vadd.f32 %v1257, %v1467
        %v3305 = vadd.f32 %v3304, %v1677
        %v3306 = vsel %vm1965, %v1887, 0.0
        %v3307 = vadd.f32 %v3305, %v3306
        %v3308 = vrot.slane %v3307, 4
        %v3309 = vadd.f32 %v3307, %v3308
        %v3310 = vrot.slane %v3309, 2
        %v3311 = vadd.f32 %v3309, %v3310
        %v3312 = vrot.slane %v3311, 1
        %v3313 = vadd.f32 %v3311, %v3312
        %v3314 = vadd.f32 %v1258, %v1468
        %v3315 = vadd.f32 %v3314, %v1678
        %v3316 = vsel %vm1965, %v1888, 0.0
        %v3317 = vadd.f32 %v3315, %v3316
        %v3318 = vrot.slane %v3317, 4
        %v3319 = vadd.f32 %v3317, %v3318
        %v3320 = vrot.slane %v3319, 2
        %v3321 = vadd.f32 %v3319, %v3320
        %v3322 = vrot.slane %v3321, 1
        %v3323 = vadd.f32 %v3321, %v3322
        %v3324 = vadd.f32 %v1259, %v1469
        %v3325 = vadd.f32 %v3324, %v1679
        %v3326 = vsel %vm1965, %v1889, 0.0
        %v3327 = vadd.f32 %v3325, %v3326
        %v3328 = vrot.slane %v3327, 4
        %v3329 = vadd.f32 %v3327, %v3328
        %v3330 = vrot.slane %v3329, 2
        %v3331 = vadd.f32 %v3329, %v3330
        %v3332 = vrot.slane %v3331, 1
        %v3333 = vadd.f32 %v3331, %v3332
        %v3334 = vadd.f32 %v1260, %v1470
        %v3335 = vadd.f32 %v3334, %v1680
        %v3336 = vsel %vm1965, %v1890, 0.0
        %v3337 = vadd.f32 %v3335, %v3336
        %v3338 = vrot.slane %v3337, 4
        %v3339 = vadd.f32 %v3337, %v3338
        %v3340 = vrot.slane %v3339, 2
        %v3341 = vadd.f32 %v3339, %v3340
        %v3342 = vrot.slane %v3341, 1
        %v3343 = vadd.f32 %v3341, %v3342
        %v3344 = vadd.f32 %v1261, %v1471
        %v3345 = vadd.f32 %v3344, %v1681
        %v3346 = vsel %vm1965, %v1891, 0.0
        %v3347 = vadd.f32 %v3345, %v3346
        %v3348 = vrot.slane %v3347, 4
        %v3349 = vadd.f32 %v3347, %v3348
        %v3350 = vrot.slane %v3349, 2
        %v3351 = vadd.f32 %v3349, %v3350
        %v3352 = vrot.slane %v3351, 1
        %v3353 = vadd.f32 %v3351, %v3352
        %v3354 = vadd.f32 %v1262, %v1472
        %v3355 = vadd.f32 %v3354, %v1682
        %v3356 = vsel %vm1965, %v1892, 0.0
        %v3357 = vadd.f32 %v3355, %v3356
        %v3358 = vrot.slane %v3357, 4
        %v3359 = vadd.f32 %v3357, %v3358
        %v3360 = vrot.slane %v3359, 2
        %v3361 = vadd.f32 %v3359, %v3360
        %v3362 = vrot.slane %v3361, 1
        %v3363 = vadd.f32 %v3361, %v3362
        %v3364 = vadd.f32 %v1263, %v1473
        %v3365 = vadd.f32 %v3364, %v1683
        %v3366 = vsel %vm1965, %v1893, 0.0
        %v3367 = vadd.f32 %v3365, %v3366
        %v3368 = vrot.slane %v3367, 4
        %v3369 = vadd.f32 %v3367, %v3368
        %v3370 = vrot.slane %v3369, 2
        %v3371 = vadd.f32 %v3369, %v3370
        %v3372 = vrot.slane %v3371, 1
        %v3373 = vadd.f32 %v3371, %v3372
        %v3374 = vadd.f32 %v1264, %v1474
        %v3375 = vadd.f32 %v3374, %v1684
        %v3376 = vsel %vm1965, %v1894, 0.0
        %v3377 = vadd.f32 %v3375, %v3376
        %v3378 = vrot.slane %v3377, 4
        %v3379 = vadd.f32 %v3377, %v3378
        %v3380 = vrot.slane %v3379, 2
        %v3381 = vadd.f32 %v3379, %v3380
        %v3382 = vrot.slane %v3381, 1
        %v3383 = vadd.f32 %v3381, %v3382
        %v3384 = vadd.f32 %v1265, %v1475
        %v3385 = vadd.f32 %v3384, %v1685
        %v3386 = vsel %vm1965, %v1895, 0.0
        %v3387 = vadd.f32 %v3385, %v3386
        %v3388 = vrot.slane %v3387, 4
        %v3389 = vadd.f32 %v3387, %v3388
        %v3390 = vrot.slane %v3389, 2
        %v3391 = vadd.f32 %v3389, %v3390
        %v3392 = vrot.slane %v3391, 1
        %v3393 = vadd.f32 %v3391, %v3392
        %v3394 = vadd.f32 %v1266, %v1476
        %v3395 = vadd.f32 %v3394, %v1686
        %v3396 = vsel %vm1965, %v1896, 0.0
        %v3397 = vadd.f32 %v3395, %v3396
        %v3398 = vrot.slane %v3397, 4
        %v3399 = vadd.f32 %v3397, %v3398
        %v3400 = vrot.slane %v3399, 2
        %v3401 = vadd.f32 %v3399, %v3400
        %v3402 = vrot.slane %v3401, 1
        %v3403 = vadd.f32 %v3401, %v3402
        %v3404 = vadd.f32 %v1267, %v1477
        %v3405 = vadd.f32 %v3404, %v1687
        %v3406 = vsel %vm1965, %v1897, 0.0
        %v3407 = vadd.f32 %v3405, %v3406
        %v3408 = vrot.slane %v3407, 4
        %v3409 = vadd.f32 %v3407, %v3408
        %v3410 = vrot.slane %v3409, 2
        %v3411 = vadd.f32 %v3409, %v3410
        %v3412 = vrot.slane %v3411, 1
        %v3413 = vadd.f32 %v3411, %v3412
        %v3414 = vadd.f32 %v1268, %v1478
        %v3415 = vadd.f32 %v3414, %v1688
        %v3416 = vsel %vm1965, %v1898, 0.0
        %v3417 = vadd.f32 %v3415, %v3416
        %v3418 = vrot.slane %v3417, 4
        %v3419 = vadd.f32 %v3417, %v3418
        %v3420 = vrot.slane %v3419, 2
        %v3421 = vadd.f32 %v3419, %v3420
        %v3422 = vrot.slane %v3421, 1
        %v3423 = vadd.f32 %v3421, %v3422
        %v3424 = vadd.f32 %v1269, %v1479
        %v3425 = vadd.f32 %v3424, %v1689
        %v3426 = vsel %vm1965, %v1899, 0.0
        %v3427 = vadd.f32 %v3425, %v3426
        %v3428 = vrot.slane %v3427, 4
        %v3429 = vadd.f32 %v3427, %v3428
        %v3430 = vrot.slane %v3429, 2
        %v3431 = vadd.f32 %v3429, %v3430
        %v3432 = vrot.slane %v3431, 1
        %v3433 = vadd.f32 %v3431, %v3432
        %v3434 = vadd.f32 %v1270, %v1480
        %v3435 = vadd.f32 %v3434, %v1690
        %v3436 = vsel %vm1965, %v1900, 0.0
        %v3437 = vadd.f32 %v3435, %v3436
        %v3438 = vrot.slane %v3437, 4
        %v3439 = vadd.f32 %v3437, %v3438
        %v3440 = vrot.slane %v3439, 2
        %v3441 = vadd.f32 %v3439, %v3440
        %v3442 = vrot.slane %v3441, 1
        %v3443 = vadd.f32 %v3441, %v3442
        %v3444 = vadd.f32 %v1271, %v1481
        %v3445 = vadd.f32 %v3444, %v1691
        %v3446 = vsel %vm1965, %v1901, 0.0
        %v3447 = vadd.f32 %v3445, %v3446
        %v3448 = vrot.slane %v3447, 4
        %v3449 = vadd.f32 %v3447, %v3448
        %v3450 = vrot.slane %v3449, 2
        %v3451 = vadd.f32 %v3449, %v3450
        %v3452 = vrot.slane %v3451, 1
        %v3453 = vadd.f32 %v3451, %v3452
        %v3454 = vadd.f32 %v1272, %v1482
        %v3455 = vadd.f32 %v3454, %v1692
        %v3456 = vsel %vm1965, %v1902, 0.0
        %v3457 = vadd.f32 %v3455, %v3456
        %v3458 = vrot.slane %v3457, 4
        %v3459 = vadd.f32 %v3457, %v3458
        %v3460 = vrot.slane %v3459, 2
        %v3461 = vadd.f32 %v3459, %v3460
        %v3462 = vrot.slane %v3461, 1
        %v3463 = vadd.f32 %v3461, %v3462
        %v3464 = vadd.f32 %v1273, %v1483
        %v3465 = vadd.f32 %v3464, %v1693
        %v3466 = vsel %vm1965, %v1903, 0.0
        %v3467 = vadd.f32 %v3465, %v3466
        %v3468 = vrot.slane %v3467, 4
        %v3469 = vadd.f32 %v3467, %v3468
        %v3470 = vrot.slane %v3469, 2
        %v3471 = vadd.f32 %v3469, %v3470
        %v3472 = vrot.slane %v3471, 1
        %v3473 = vadd.f32 %v3471, %v3472
        %v3474 = vadd.f32 %v1274, %v1484
        %v3475 = vadd.f32 %v3474, %v1694
        %v3476 = vsel %vm1965, %v1904, 0.0
        %v3477 = vadd.f32 %v3475, %v3476
        %v3478 = vrot.slane %v3477, 4
        %v3479 = vadd.f32 %v3477, %v3478
        %v3480 = vrot.slane %v3479, 2
        %v3481 = vadd.f32 %v3479, %v3480
        %v3482 = vrot.slane %v3481, 1
        %v3483 = vadd.f32 %v3481, %v3482
        %v3484 = vadd.f32 %v1275, %v1485
        %v3485 = vadd.f32 %v3484, %v1695
        %v3486 = vsel %vm1965, %v1905, 0.0
        %v3487 = vadd.f32 %v3485, %v3486
        %v3488 = vrot.slane %v3487, 4
        %v3489 = vadd.f32 %v3487, %v3488
        %v3490 = vrot.slane %v3489, 2
        %v3491 = vadd.f32 %v3489, %v3490
        %v3492 = vrot.slane %v3491, 1
        %v3493 = vadd.f32 %v3491, %v3492
        %v3494 = vadd.f32 %v1276, %v1486
        %v3495 = vadd.f32 %v3494, %v1696
        %v3496 = vsel %vm1965, %v1906, 0.0
        %v3497 = vadd.f32 %v3495, %v3496
        %v3498 = vrot.slane %v3497, 4
        %v3499 = vadd.f32 %v3497, %v3498
        %v3500 = vrot.slane %v3499, 2
        %v3501 = vadd.f32 %v3499, %v3500
        %v3502 = vrot.slane %v3501, 1
        %v3503 = vadd.f32 %v3501, %v3502
        %v3504 = vadd.f32 %v1277, %v1487
        %v3505 = vadd.f32 %v3504, %v1697
        %v3506 = vsel %vm1965, %v1907, 0.0
        %v3507 = vadd.f32 %v3505, %v3506
        %v3508 = vrot.slane %v3507, 4
        %v3509 = vadd.f32 %v3507, %v3508
        %v3510 = vrot.slane %v3509, 2
        %v3511 = vadd.f32 %v3509, %v3510
        %v3512 = vrot.slane %v3511, 1
        %v3513 = vadd.f32 %v3511, %v3512
        %v3514 = vadd.f32 %v1278, %v1488
        %v3515 = vadd.f32 %v3514, %v1698
        %v3516 = vsel %vm1965, %v1908, 0.0
        %v3517 = vadd.f32 %v3515, %v3516
        %v3518 = vrot.slane %v3517, 4
        %v3519 = vadd.f32 %v3517, %v3518
        %v3520 = vrot.slane %v3519, 2
        %v3521 = vadd.f32 %v3519, %v3520
        %v3522 = vrot.slane %v3521, 1
        %v3523 = vadd.f32 %v3521, %v3522
        %v3524 = vadd.f32 %v1279, %v1489
        %v3525 = vadd.f32 %v3524, %v1699
        %v3526 = vsel %vm1965, %v1909, 0.0
        %v3527 = vadd.f32 %v3525, %v3526
        %v3528 = vrot.slane %v3527, 4
        %v3529 = vadd.f32 %v3527, %v3528
        %v3530 = vrot.slane %v3529, 2
        %v3531 = vadd.f32 %v3529, %v3530
        %v3532 = vrot.slane %v3531, 1
        %v3533 = vadd.f32 %v3531, %v3532
        %v3534 = vadd.f32 %v1280, %v1490
        %v3535 = vadd.f32 %v3534, %v1700
        %v3536 = vsel %vm1965, %v1910, 0.0
        %v3537 = vadd.f32 %v3535, %v3536
        %v3538 = vrot.slane %v3537, 4
        %v3539 = vadd.f32 %v3537, %v3538
        %v3540 = vrot.slane %v3539, 2
        %v3541 = vadd.f32 %v3539, %v3540
        %v3542 = vrot.slane %v3541, 1
        %v3543 = vadd.f32 %v3541, %v3542
        %v3544 = vadd.f32 %v1281, %v1491
        %v3545 = vadd.f32 %v3544, %v1701
        %v3546 = vsel %vm1965, %v1911, 0.0
        %v3547 = vadd.f32 %v3545, %v3546
        %v3548 = vrot.slane %v3547, 4
        %v3549 = vadd.f32 %v3547, %v3548
        %v3550 = vrot.slane %v3549, 2
        %v3551 = vadd.f32 %v3549, %v3550
        %v3552 = vrot.slane %v3551, 1
        %v3553 = vadd.f32 %v3551, %v3552
        %v3554 = vadd.f32 %v1282, %v1492
        %v3555 = vadd.f32 %v3554, %v1702
        %v3556 = vsel %vm1965, %v1912, 0.0
        %v3557 = vadd.f32 %v3555, %v3556
        %v3558 = vrot.slane %v3557, 4
        %v3559 = vadd.f32 %v3557, %v3558
        %v3560 = vrot.slane %v3559, 2
        %v3561 = vadd.f32 %v3559, %v3560
        %v3562 = vrot.slane %v3561, 1
        %v3563 = vadd.f32 %v3561, %v3562
        %v3564 = vadd.f32 %v1283, %v1493
        %v3565 = vadd.f32 %v3564, %v1703
        %v3566 = vsel %vm1965, %v1913, 0.0
        %v3567 = vadd.f32 %v3565, %v3566
        %v3568 = vrot.slane %v3567, 4
        %v3569 = vadd.f32 %v3567, %v3568
        %v3570 = vrot.slane %v3569, 2
        %v3571 = vadd.f32 %v3569, %v3570
        %v3572 = vrot.slane %v3571, 1
        %v3573 = vadd.f32 %v3571, %v3572
        %v3574 = vadd.f32 %v1284, %v1494
        %v3575 = vadd.f32 %v3574, %v1704
        %v3576 = vsel %vm1965, %v1914, 0.0
        %v3577 = vadd.f32 %v3575, %v3576
        %v3578 = vrot.slane %v3577, 4
        %v3579 = vadd.f32 %v3577, %v3578
        %v3580 = vrot.slane %v3579, 2
        %v3581 = vadd.f32 %v3579, %v3580
        %v3582 = vrot.slane %v3581, 1
        %v3583 = vadd.f32 %v3581, %v3582
        %v3584 = vadd.f32 %v1285, %v1495
        %v3585 = vadd.f32 %v3584, %v1705
        %v3586 = vsel %vm1965, %v1915, 0.0
        %v3587 = vadd.f32 %v3585, %v3586
        %v3588 = vrot.slane %v3587, 4
        %v3589 = vadd.f32 %v3587, %v3588
        %v3590 = vrot.slane %v3589, 2
        %v3591 = vadd.f32 %v3589, %v3590
        %v3592 = vrot.slane %v3591, 1
        %v3593 = vadd.f32 %v3591, %v3592
        %v3594 = vadd.f32 %v1286, %v1496
        %v3595 = vadd.f32 %v3594, %v1706
        %v3596 = vsel %vm1965, %v1916, 0.0
        %v3597 = vadd.f32 %v3595, %v3596
        %v3598 = vrot.slane %v3597, 4
        %v3599 = vadd.f32 %v3597, %v3598
        %v3600 = vrot.slane %v3599, 2
        %v3601 = vadd.f32 %v3599, %v3600
        %v3602 = vrot.slane %v3601, 1
        %v3603 = vadd.f32 %v3601, %v3602
        %v3604 = vadd.f32 %v1287, %v1497
        %v3605 = vadd.f32 %v3604, %v1707
        %v3606 = vsel %vm1965, %v1917, 0.0
        %v3607 = vadd.f32 %v3605, %v3606
        %v3608 = vrot.slane %v3607, 4
        %v3609 = vadd.f32 %v3607, %v3608
        %v3610 = vrot.slane %v3609, 2
        %v3611 = vadd.f32 %v3609, %v3610
        %v3612 = vrot.slane %v3611, 1
        %v3613 = vadd.f32 %v3611, %v3612
        %v3614 = vadd.f32 %v1288, %v1498
        %v3615 = vadd.f32 %v3614, %v1708
        %v3616 = vsel %vm1965, %v1918, 0.0
        %v3617 = vadd.f32 %v3615, %v3616
        %v3618 = vrot.slane %v3617, 4
        %v3619 = vadd.f32 %v3617, %v3618
        %v3620 = vrot.slane %v3619, 2
        %v3621 = vadd.f32 %v3619, %v3620
        %v3622 = vrot.slane %v3621, 1
        %v3623 = vadd.f32 %v3621, %v3622
        %v3624 = vadd.f32 %v1289, %v1499
        %v3625 = vadd.f32 %v3624, %v1709
        %v3626 = vsel %vm1965, %v1919, 0.0
        %v3627 = vadd.f32 %v3625, %v3626
        %v3628 = vrot.slane %v3627, 4
        %v3629 = vadd.f32 %v3627, %v3628
        %v3630 = vrot.slane %v3629, 2
        %v3631 = vadd.f32 %v3629, %v3630
        %v3632 = vrot.slane %v3631, 1
        %v3633 = vadd.f32 %v3631, %v3632
        %v3634 = vadd.f32 %v1290, %v1500
        %v3635 = vadd.f32 %v3634, %v1710
        %v3636 = vsel %vm1965, %v1920, 0.0
        %v3637 = vadd.f32 %v3635, %v3636
        %v3638 = vrot.slane %v3637, 4
        %v3639 = vadd.f32 %v3637, %v3638
        %v3640 = vrot.slane %v3639, 2
        %v3641 = vadd.f32 %v3639, %v3640
        %v3642 = vrot.slane %v3641, 1
        %v3643 = vadd.f32 %v3641, %v3642
        %v3644 = vadd.f32 %v1291, %v1501
        %v3645 = vadd.f32 %v3644, %v1711
        %v3646 = vsel %vm1965, %v1921, 0.0
        %v3647 = vadd.f32 %v3645, %v3646
        %v3648 = vrot.slane %v3647, 4
        %v3649 = vadd.f32 %v3647, %v3648
        %v3650 = vrot.slane %v3649, 2
        %v3651 = vadd.f32 %v3649, %v3650
        %v3652 = vrot.slane %v3651, 1
        %v3653 = vadd.f32 %v3651, %v3652
        %v3654 = vadd.f32 %v1292, %v1502
        %v3655 = vadd.f32 %v3654, %v1712
        %v3656 = vsel %vm1965, %v1922, 0.0
        %v3657 = vadd.f32 %v3655, %v3656
        %v3658 = vrot.slane %v3657, 4
        %v3659 = vadd.f32 %v3657, %v3658
        %v3660 = vrot.slane %v3659, 2
        %v3661 = vadd.f32 %v3659, %v3660
        %v3662 = vrot.slane %v3661, 1
        %v3663 = vadd.f32 %v3661, %v3662
        %v3664 = vadd.f32 %v1293, %v1503
        %v3665 = vadd.f32 %v3664, %v1713
        %v3666 = vsel %vm1965, %v1923, 0.0
        %v3667 = vadd.f32 %v3665, %v3666
        %v3668 = vrot.slane %v3667, 4
        %v3669 = vadd.f32 %v3667, %v3668
        %v3670 = vrot.slane %v3669, 2
        %v3671 = vadd.f32 %v3669, %v3670
        %v3672 = vrot.slane %v3671, 1
        %v3673 = vadd.f32 %v3671, %v3672
        %v3674 = vadd.f32 %v1294, %v1504
        %v3675 = vadd.f32 %v3674, %v1714
        %v3676 = vsel %vm1965, %v1924, 0.0
        %v3677 = vadd.f32 %v3675, %v3676
        %v3678 = vrot.slane %v3677, 4
        %v3679 = vadd.f32 %v3677, %v3678
        %v3680 = vrot.slane %v3679, 2
        %v3681 = vadd.f32 %v3679, %v3680
        %v3682 = vrot.slane %v3681, 1
        %v3683 = vadd.f32 %v3681, %v3682
        %v3684 = vadd.f32 %v1295, %v1505
        %v3685 = vadd.f32 %v3684, %v1715
        %v3686 = vsel %vm1965, %v1925, 0.0
        %v3687 = vadd.f32 %v3685, %v3686
        %v3688 = vrot.slane %v3687, 4
        %v3689 = vadd.f32 %v3687, %v3688
        %v3690 = vrot.slane %v3689, 2
        %v3691 = vadd.f32 %v3689, %v3690
        %v3692 = vrot.slane %v3691, 1
        %v3693 = vadd.f32 %v3691, %v3692
        %v3694 = vadd.f32 %v1296, %v1506
        %v3695 = vadd.f32 %v3694, %v1716
        %v3696 = vsel %vm1965, %v1926, 0.0
        %v3697 = vadd.f32 %v3695, %v3696
        %v3698 = vrot.slane %v3697, 4
        %v3699 = vadd.f32 %v3697, %v3698
        %v3700 = vrot.slane %v3699, 2
        %v3701 = vadd.f32 %v3699, %v3700
        %v3702 = vrot.slane %v3701, 1
        %v3703 = vadd.f32 %v3701, %v3702
        %v3704 = vadd.f32 %v1297, %v1507
        %v3705 = vadd.f32 %v3704, %v1717
        %v3706 = vsel %vm1965, %v1927, 0.0
        %v3707 = vadd.f32 %v3705, %v3706
        %v3708 = vrot.slane %v3707, 4
        %v3709 = vadd.f32 %v3707, %v3708
        %v3710 = vrot.slane %v3709, 2
        %v3711 = vadd.f32 %v3709, %v3710
        %v3712 = vrot.slane %v3711, 1
        %v3713 = vadd.f32 %v3711, %v3712
        %v3714 = vadd.f32 %v1298, %v1508
        %v3715 = vadd.f32 %v3714, %v1718
        %v3716 = vsel %vm1965, %v1928, 0.0
        %v3717 = vadd.f32 %v3715, %v3716
        %v3718 = vrot.slane %v3717, 4
        %v3719 = vadd.f32 %v3717, %v3718
        %v3720 = vrot.slane %v3719, 2
        %v3721 = vadd.f32 %v3719, %v3720
        %v3722 = vrot.slane %v3721, 1
        %v3723 = vadd.f32 %v3721, %v3722
        %v3724 = vadd.f32 %v1299, %v1509
        %v3725 = vadd.f32 %v3724, %v1719
        %v3726 = vsel %vm1965, %v1929, 0.0
        %v3727 = vadd.f32 %v3725, %v3726
        %v3728 = vrot.slane %v3727, 4
        %v3729 = vadd.f32 %v3727, %v3728
        %v3730 = vrot.slane %v3729, 2
        %v3731 = vadd.f32 %v3729, %v3730
        %v3732 = vrot.slane %v3731, 1
        %v3733 = vadd.f32 %v3731, %v3732
        %v3734 = vadd.f32 %v1300, %v1510
        %v3735 = vadd.f32 %v3734, %v1720
        %v3736 = vsel %vm1965, %v1930, 0.0
        %v3737 = vadd.f32 %v3735, %v3736
        %v3738 = vrot.slane %v3737, 4
        %v3739 = vadd.f32 %v3737, %v3738
        %v3740 = vrot.slane %v3739, 2
        %v3741 = vadd.f32 %v3739, %v3740
        %v3742 = vrot.slane %v3741, 1
        %v3743 = vadd.f32 %v3741, %v3742
        %v3744 = vadd.f32 %v1301, %v1511
        %v3745 = vadd.f32 %v3744, %v1721
        %v3746 = vsel %vm1965, %v1931, 0.0
        %v3747 = vadd.f32 %v3745, %v3746
        %v3748 = vrot.slane %v3747, 4
        %v3749 = vadd.f32 %v3747, %v3748
        %v3750 = vrot.slane %v3749, 2
        %v3751 = vadd.f32 %v3749, %v3750
        %v3752 = vrot.slane %v3751, 1
        %v3753 = vadd.f32 %v3751, %v3752
        %v3754 = vadd.f32 %v1302, %v1512
        %v3755 = vadd.f32 %v3754, %v1722
        %v3756 = vsel %vm1965, %v1932, 0.0
        %v3757 = vadd.f32 %v3755, %v3756
        %v3758 = vrot.slane %v3757, 4
        %v3759 = vadd.f32 %v3757, %v3758
        %v3760 = vrot.slane %v3759, 2
        %v3761 = vadd.f32 %v3759, %v3760
        %v3762 = vrot.slane %v3761, 1
        %v3763 = vadd.f32 %v3761, %v3762
        %v3764 = vadd.f32 %v1303, %v1513
        %v3765 = vadd.f32 %v3764, %v1723
        %v3766 = vsel %vm1965, %v1933, 0.0
        %v3767 = vadd.f32 %v3765, %v3766
        %v3768 = vrot.slane %v3767, 4
        %v3769 = vadd.f32 %v3767, %v3768
        %v3770 = vrot.slane %v3769, 2
        %v3771 = vadd.f32 %v3769, %v3770
        %v3772 = vrot.slane %v3771, 1
        %v3773 = vadd.f32 %v3771, %v3772
        %v3774 = vadd.f32 %v1304, %v1514
        %v3775 = vadd.f32 %v3774, %v1724
        %v3776 = vsel %vm1965, %v1934, 0.0
        %v3777 = vadd.f32 %v3775, %v3776
        %v3778 = vrot.slane %v3777, 4
        %v3779 = vadd.f32 %v3777, %v3778
        %v3780 = vrot.slane %v3779, 2
        %v3781 = vadd.f32 %v3779, %v3780
        %v3782 = vrot.slane %v3781, 1
        %v3783 = vadd.f32 %v3781, %v3782
        %v3784 = vadd.f32 %v1305, %v1515
        %v3785 = vadd.f32 %v3784, %v1725
        %v3786 = vsel %vm1965, %v1935, 0.0
        %v3787 = vadd.f32 %v3785, %v3786
        %v3788 = vrot.slane %v3787, 4
        %v3789 = vadd.f32 %v3787, %v3788
        %v3790 = vrot.slane %v3789, 2
        %v3791 = vadd.f32 %v3789, %v3790
        %v3792 = vrot.slane %v3791, 1
        %v3793 = vadd.f32 %v3791, %v3792
        %v3794 = vadd.f32 %v1306, %v1516
        %v3795 = vadd.f32 %v3794, %v1726
        %v3796 = vsel %vm1965, %v1936, 0.0
        %v3797 = vadd.f32 %v3795, %v3796
        %v3798 = vrot.slane %v3797, 4
        %v3799 = vadd.f32 %v3797, %v3798
        %v3800 = vrot.slane %v3799, 2
        %v3801 = vadd.f32 %v3799, %v3800
        %v3802 = vrot.slane %v3801, 1
        %v3803 = vadd.f32 %v3801, %v3802
        %v3804 = vadd.f32 %v1307, %v1517
        %v3805 = vadd.f32 %v3804, %v1727
        %v3806 = vsel %vm1965, %v1937, 0.0
        %v3807 = vadd.f32 %v3805, %v3806
        %v3808 = vrot.slane %v3807, 4
        %v3809 = vadd.f32 %v3807, %v3808
        %v3810 = vrot.slane %v3809, 2
        %v3811 = vadd.f32 %v3809, %v3810
        %v3812 = vrot.slane %v3811, 1
        %v3813 = vadd.f32 %v3811, %v3812
        %v3814 = vadd.f32 %v1308, %v1518
        %v3815 = vadd.f32 %v3814, %v1728
        %v3816 = vsel %vm1965, %v1938, 0.0
        %v3817 = vadd.f32 %v3815, %v3816
        %v3818 = vrot.slane %v3817, 4
        %v3819 = vadd.f32 %v3817, %v3818
        %v3820 = vrot.slane %v3819, 2
        %v3821 = vadd.f32 %v3819, %v3820
        %v3822 = vrot.slane %v3821, 1
        %v3823 = vadd.f32 %v3821, %v3822
        %v3824 = vadd.f32 %v1309, %v1519
        %v3825 = vadd.f32 %v3824, %v1729
        %v3826 = vsel %vm1965, %v1939, 0.0
        %v3827 = vadd.f32 %v3825, %v3826
        %v3828 = vrot.slane %v3827, 4
        %v3829 = vadd.f32 %v3827, %v3828
        %v3830 = vrot.slane %v3829, 2
        %v3831 = vadd.f32 %v3829, %v3830
        %v3832 = vrot.slane %v3831, 1
        %v3833 = vadd.f32 %v3831, %v3832
        %v3834 = vadd.f32 %v1310, %v1520
        %v3835 = vadd.f32 %v3834, %v1730
        %v3836 = vsel %vm1965, %v1940, 0.0
        %v3837 = vadd.f32 %v3835, %v3836
        %v3838 = vrot.slane %v3837, 4
        %v3839 = vadd.f32 %v3837, %v3838
        %v3840 = vrot.slane %v3839, 2
        %v3841 = vadd.f32 %v3839, %v3840
        %v3842 = vrot.slane %v3841, 1
        %v3843 = vadd.f32 %v3841, %v3842
        %v3844 = vadd.f32 %v1311, %v1521
        %v3845 = vadd.f32 %v3844, %v1731
        %v3846 = vsel %vm1965, %v1941, 0.0
        %v3847 = vadd.f32 %v3845, %v3846
        %v3848 = vrot.slane %v3847, 4
        %v3849 = vadd.f32 %v3847, %v3848
        %v3850 = vrot.slane %v3849, 2
        %v3851 = vadd.f32 %v3849, %v3850
        %v3852 = vrot.slane %v3851, 1
        %v3853 = vadd.f32 %v3851, %v3852
        %v3854 = vadd.f32 %v1312, %v1522
        %v3855 = vadd.f32 %v3854, %v1732
        %v3856 = vsel %vm1965, %v1942, 0.0
        %v3857 = vadd.f32 %v3855, %v3856
        %v3858 = vrot.slane %v3857, 4
        %v3859 = vadd.f32 %v3857, %v3858
        %v3860 = vrot.slane %v3859, 2
        %v3861 = vadd.f32 %v3859, %v3860
        %v3862 = vrot.slane %v3861, 1
        %v3863 = vadd.f32 %v3861, %v3862
        %v3864 = vadd.f32 %v1313, %v1523
        %v3865 = vadd.f32 %v3864, %v1733
        %v3866 = vsel %vm1965, %v1943, 0.0
        %v3867 = vadd.f32 %v3865, %v3866
        %v3868 = vrot.slane %v3867, 4
        %v3869 = vadd.f32 %v3867, %v3868
        %v3870 = vrot.slane %v3869, 2
        %v3871 = vadd.f32 %v3869, %v3870
        %v3872 = vrot.slane %v3871, 1
        %v3873 = vadd.f32 %v3871, %v3872
        %v3874 = vadd.f32 %v1314, %v1524
        %v3875 = vadd.f32 %v3874, %v1734
        %v3876 = vsel %vm1965, %v1944, 0.0
        %v3877 = vadd.f32 %v3875, %v3876
        %v3878 = vrot.slane %v3877, 4
        %v3879 = vadd.f32 %v3877, %v3878
        %v3880 = vrot.slane %v3879, 2
        %v3881 = vadd.f32 %v3879, %v3880
        %v3882 = vrot.slane %v3881, 1
        %v3883 = vadd.f32 %v3881, %v3882
        %v3884 = vadd.f32 %v1315, %v1525
        %v3885 = vadd.f32 %v3884, %v1735
        %v3886 = vsel %vm1965, %v1945, 0.0
        %v3887 = vadd.f32 %v3885, %v3886
        %v3888 = vrot.slane %v3887, 4
        %v3889 = vadd.f32 %v3887, %v3888
        %v3890 = vrot.slane %v3889, 2
        %v3891 = vadd.f32 %v3889, %v3890
        %v3892 = vrot.slane %v3891, 1
        %v3893 = vadd.f32 %v3891, %v3892
        %v3894 = vadd.f32 %v1316, %v1526
        %v3895 = vadd.f32 %v3894, %v1736
        %v3896 = vsel %vm1965, %v1946, 0.0
        %v3897 = vadd.f32 %v3895, %v3896
        %v3898 = vrot.slane %v3897, 4
        %v3899 = vadd.f32 %v3897, %v3898
        %v3900 = vrot.slane %v3899, 2
        %v3901 = vadd.f32 %v3899, %v3900
        %v3902 = vrot.slane %v3901, 1
        %v3903 = vadd.f32 %v3901, %v3902
        %v3904 = vadd.f32 %v1317, %v1527
        %v3905 = vadd.f32 %v3904, %v1737
        %v3906 = vsel %vm1965, %v1947, 0.0
        %v3907 = vadd.f32 %v3905, %v3906
        %v3908 = vrot.slane %v3907, 4
        %v3909 = vadd.f32 %v3907, %v3908
        %v3910 = vrot.slane %v3909, 2
        %v3911 = vadd.f32 %v3909, %v3910
        %v3912 = vrot.slane %v3911, 1
        %v3913 = vadd.f32 %v3911, %v3912
        %v3914 = vadd.f32 %v1318, %v1528
        %v3915 = vadd.f32 %v3914, %v1738
        %v3916 = vsel %vm1965, %v1948, 0.0
        %v3917 = vadd.f32 %v3915, %v3916
        %v3918 = vrot.slane %v3917, 4
        %v3919 = vadd.f32 %v3917, %v3918
        %v3920 = vrot.slane %v3919, 2
        %v3921 = vadd.f32 %v3919, %v3920
        %v3922 = vrot.slane %v3921, 1
        %v3923 = vadd.f32 %v3921, %v3922
        %v3924 = vadd.f32 %v1319, %v1529
        %v3925 = vadd.f32 %v3924, %v1739
        %v3926 = vsel %vm1965, %v1949, 0.0
        %v3927 = vadd.f32 %v3925, %v3926
        %v3928 = vrot.slane %v3927, 4
        %v3929 = vadd.f32 %v3927, %v3928
        %v3930 = vrot.slane %v3929, 2
        %v3931 = vadd.f32 %v3929, %v3930
        %v3932 = vrot.slane %v3931, 1
        %v3933 = vadd.f32 %v3931, %v3932
        %v3934 = vadd.f32 %v1320, %v1530
        %v3935 = vadd.f32 %v3934, %v1740
        %v3936 = vsel %vm1965, %v1950, 0.0
        %v3937 = vadd.f32 %v3935, %v3936
        %v3938 = vrot.slane %v3937, 4
        %v3939 = vadd.f32 %v3937, %v3938
        %v3940 = vrot.slane %v3939, 2
        %v3941 = vadd.f32 %v3939, %v3940
        %v3942 = vrot.slane %v3941, 1
        %v3943 = vadd.f32 %v3941, %v3942
        %v3944 = vadd.f32 %v1321, %v1531
        %v3945 = vadd.f32 %v3944, %v1741
        %v3946 = vsel %vm1965, %v1951, 0.0
        %v3947 = vadd.f32 %v3945, %v3946
        %v3948 = vrot.slane %v3947, 4
        %v3949 = vadd.f32 %v3947, %v3948
        %v3950 = vrot.slane %v3949, 2
        %v3951 = vadd.f32 %v3949, %v3950
        %v3952 = vrot.slane %v3951, 1
        %v3953 = vadd.f32 %v3951, %v3952
        %v3954 = vadd.f32 %v1322, %v1532
        %v3955 = vadd.f32 %v3954, %v1742
        %v3956 = vsel %vm1965, %v1952, 0.0
        %v3957 = vadd.f32 %v3955, %v3956
        %v3958 = vrot.slane %v3957, 4
        %v3959 = vadd.f32 %v3957, %v3958
        %v3960 = vrot.slane %v3959, 2
        %v3961 = vadd.f32 %v3959, %v3960
        %v3962 = vrot.slane %v3961, 1
        %v3963 = vadd.f32 %v3961, %v3962
        %v3964 = vadd.f32 %v1323, %v1533
        %v3965 = vadd.f32 %v3964, %v1743
        %v3966 = vsel %vm1965, %v1953, 0.0
        %v3967 = vadd.f32 %v3965, %v3966
        %v3968 = vrot.slane %v3967, 4
        %v3969 = vadd.f32 %v3967, %v3968
        %v3970 = vrot.slane %v3969, 2
        %v3971 = vadd.f32 %v3969, %v3970
        %v3972 = vrot.slane %v3971, 1
        %v3973 = vadd.f32 %v3971, %v3972
        %v3974 = vadd.f32 %v1324, %v1534
        %v3975 = vadd.f32 %v3974, %v1744
        %v3976 = vsel %vm1965, %v1954, 0.0
        %v3977 = vadd.f32 %v3975, %v3976
        %v3978 = vrot.slane %v3977, 4
        %v3979 = vadd.f32 %v3977, %v3978
        %v3980 = vrot.slane %v3979, 2
        %v3981 = vadd.f32 %v3979, %v3980
        %v3982 = vrot.slane %v3981, 1
        %v3983 = vadd.f32 %v3981, %v3982
        %v3984 = vadd.f32 %v1325, %v1535
        %v3985 = vadd.f32 %v3984, %v1745
        %v3986 = vsel %vm1965, %v1955, 0.0
        %v3987 = vadd.f32 %v3985, %v3986
        %v3988 = vrot.slane %v3987, 4
        %v3989 = vadd.f32 %v3987, %v3988
        %v3990 = vrot.slane %v3989, 2
        %v3991 = vadd.f32 %v3989, %v3990
        %v3992 = vrot.slane %v3991, 1
        %v3993 = vadd.f32 %v3991, %v3992
        %v3994 = vadd.f32 %v1326, %v1536
        %v3995 = vadd.f32 %v3994, %v1746
        %v3996 = vsel %vm1965, %v1956, 0.0
        %v3997 = vadd.f32 %v3995, %v3996
        %v3998 = vrot.slane %v3997, 4
        %v3999 = vadd.f32 %v3997, %v3998
        %v4000 = vrot.slane %v3999, 2
        %v4001 = vadd.f32 %v3999, %v4000
        %v4002 = vrot.slane %v4001, 1
        %v4003 = vadd.f32 %v4001, %v4002
        %v4004 = vadd.f32 %v1327, %v1537
        %v4005 = vadd.f32 %v4004, %v1747
        %v4006 = vsel %vm1965, %v1957, 0.0
        %v4007 = vadd.f32 %v4005, %v4006
        %v4008 = vrot.slane %v4007, 4
        %v4009 = vadd.f32 %v4007, %v4008
        %v4010 = vrot.slane %v4009, 2
        %v4011 = vadd.f32 %v4009, %v4010
        %v4012 = vrot.slane %v4011, 1
        %v4013 = vadd.f32 %v4011, %v4012
        %v4014 = vadd.f32 %v1328, %v1538
        %v4015 = vadd.f32 %v4014, %v1748
        %v4016 = vsel %vm1965, %v1958, 0.0
        %v4017 = vadd.f32 %v4015, %v4016
        %v4018 = vrot.slane %v4017, 4
        %v4019 = vadd.f32 %v4017, %v4018
        %v4020 = vrot.slane %v4019, 2
        %v4021 = vadd.f32 %v4019, %v4020
        %v4022 = vrot.slane %v4021, 1
        %v4023 = vadd.f32 %v4021, %v4022
        %v4024 = vadd.f32 %v1329, %v1539
        %v4025 = vadd.f32 %v4024, %v1749
        %v4026 = vsel %vm1965, %v1959, 0.0
        %v4027 = vadd.f32 %v4025, %v4026
        %v4028 = vrot.slane %v4027, 4
        %v4029 = vadd.f32 %v4027, %v4028
        %v4030 = vrot.slane %v4029, 2
        %v4031 = vadd.f32 %v4029, %v4030
        %v4032 = vrot.slane %v4031, 1
        %v4033 = vadd.f32 %v4031, %v4032
        %v4034 = vadd.f32 %v1330, %v1540
        %v4035 = vadd.f32 %v4034, %v1750
        %v4036 = vsel %vm1965, %v1960, 0.0
        %v4037 = vadd.f32 %v4035, %v4036
        %v4038 = vrot.slane %v4037, 4
        %v4039 = vadd.f32 %v4037, %v4038
        %v4040 = vrot.slane %v4039, 2
        %v4041 = vadd.f32 %v4039, %v4040
        %v4042 = vrot.slane %v4041, 1
        %v4043 = vadd.f32 %v4041, %v4042
        %v4044 = vadd.f32 %v1331, %v1541
        %v4045 = vadd.f32 %v4044, %v1751
        %v4046 = vsel %vm1965, %v1961, 0.0
        %v4047 = vadd.f32 %v4045, %v4046
        %v4048 = vrot.slane %v4047, 4
        %v4049 = vadd.f32 %v4047, %v4048
        %v4050 = vrot.slane %v4049, 2
        %v4051 = vadd.f32 %v4049, %v4050
        %v4052 = vrot.slane %v4051, 1
        %v4053 = vadd.f32 %v4051, %v4052
        %v4054 = vadd.f32 %v1332, %v1542
        %v4055 = vadd.f32 %v4054, %v1752
        %v4056 = vsel %vm1965, %v1962, 0.0
        %v4057 = vadd.f32 %v4055, %v4056
        %v4058 = vrot.slane %v4057, 4
        %v4059 = vadd.f32 %v4057, %v4058
        %v4060 = vrot.slane %v4059, 2
        %v4061 = vadd.f32 %v4059, %v4060
        %v4062 = vrot.slane %v4061, 1
        %v4063 = vadd.f32 %v4061, %v4062
        %v4274 = vcombine.low %v1973, %v1983
        %v4275 = vcombine.low %v1993, %v2003
        %v4276 = vcombine.low %v2013, %v2023
        %v4277 = vcombine.low %v2033, %v2043
        %v4279 = vunpack.c.l.s4 1966171168
        %v4280 = vunpack.c.0.s8 %v4279
        %v4281 = vlaneseq
        %v4282 = vshrl.u32 %v4281, 7
        %v4283 = vsub.s32 %v4280, %v4282
        %v4284 = vrot.slane %v4274, %v4283
        %v4286 = vunpack.c.l.s4 1966171168
        %v4287 = vunpack.c.0.s8 %v4286
        %v4288 = vlaneseq
        %v4289 = vshrl.u32 %v4288, 7
        %v4290 = vsub.s32 %v4287, %v4289
        %v4291 = vrot.slane %v4275, %v4290
        %v4293 = vunpack.c.l.s4 1966171168
        %v4294 = vunpack.c.0.s8 %v4293
        %v4295 = vlaneseq
        %v4296 = vshrl.u32 %v4295, 7
        %v4297 = vsub.s32 %v4294, %v4296
        %v4298 = vrot.slane %v4276, %v4297
        %v4300 = vunpack.c.l.s4 1966171168
        %v4301 = vunpack.c.0.s8 %v4300
        %v4302 = vlaneseq
        %v4303 = vshrl.u32 %v4302, 7
        %v4304 = vsub.s32 %v4301, %v4303
        %v4305 = vrot.slane %v4277, %v4304
        %v4306 = vcombine.low %v4284, %v4291
        %v4307 = vcombine.low %v4298, %v4305
        %v4309 = vunpack.c.l.s4 1966171168
        %v4310 = vunpack.c.0.s8 %v4309
        %v4311 = vlaneseq
        %v4312 = vshrl.u32 %v4311, 7
        %v4313 = vsub.s32 %v4310, %v4312
        %v4314 = vrot.slane %v4306, %v4313
        %v4316 = vunpack.c.l.s4 1966171168
        %v4317 = vunpack.c.0.s8 %v4316
        %v4318 = vlaneseq
        %v4319 = vshrl.u32 %v4318, 7
        %v4320 = vsub.s32 %v4317, %v4319
        %v4321 = vrot.slane %v4307, %v4320
        %v4322 = vcombine.low %v4314, %v4321
        %v4323 = vcombine.low %v2053, %v2063
        %v4324 = vcombine.low %v2073, %v2083
        %v4325 = vcombine.low %v2093, %v2103
        %v4326 = vcombine.low %v2113, %v2123
        %v4328 = vunpack.c.l.s4 1966171168
        %v4329 = vunpack.c.0.s8 %v4328
        %v4330 = vlaneseq
        %v4331 = vshrl.u32 %v4330, 7
        %v4332 = vsub.s32 %v4329, %v4331
        %v4333 = vrot.slane %v4323, %v4332
        %v4335 = vunpack.c.l.s4 1966171168
        %v4336 = vunpack.c.0.s8 %v4335
        %v4337 = vlaneseq
        %v4338 = vshrl.u32 %v4337, 7
        %v4339 = vsub.s32 %v4336, %v4338
        %v4340 = vrot.slane %v4324, %v4339
        %v4342 = vunpack.c.l.s4 1966171168
        %v4343 = vunpack.c.0.s8 %v4342
        %v4344 = vlaneseq
        %v4345 = vshrl.u32 %v4344, 7
        %v4346 = vsub.s32 %v4343, %v4345
        %v4347 = vrot.slane %v4325, %v4346
        %v4349 = vunpack.c.l.s4 1966171168
        %v4350 = vunpack.c.0.s8 %v4349
        %v4351 = vlaneseq
        %v4352 = vshrl.u32 %v4351, 7
        %v4353 = vsub.s32 %v4350, %v4352
        %v4354 = vrot.slane %v4326, %v4353
        %v4355 = vcombine.low %v4333, %v4340
        %v4356 = vcombine.low %v4347, %v4354
        %v4358 = vunpack.c.l.s4 1966171168
        %v4359 = vunpack.c.0.s8 %v4358
        %v4360 = vlaneseq
        %v4361 = vshrl.u32 %v4360, 7
        %v4362 = vsub.s32 %v4359, %v4361
        %v4363 = vrot.slane %v4355, %v4362
        %v4365 = vunpack.c.l.s4 1966171168
        %v4366 = vunpack.c.0.s8 %v4365
        %v4367 = vlaneseq
        %v4368 = vshrl.u32 %v4367, 7
        %v4369 = vsub.s32 %v4366, %v4368
        %v4370 = vrot.slane %v4356, %v4369
        %v4371 = vcombine.low %v4363, %v4370
        %v4372 = vcombine.low %v2133, %v2143
        %v4373 = vcombine.low %v2153, %v2163
        %v4374 = vcombine.low %v2173, %v2183
        %v4375 = vcombine.low %v2193, %v2203
        %v4377 = vunpack.c.l.s4 1966171168
        %v4378 = vunpack.c.0.s8 %v4377
        %v4379 = vlaneseq
        %v4380 = vshrl.u32 %v4379, 7
        %v4381 = vsub.s32 %v4378, %v4380
        %v4382 = vrot.slane %v4372, %v4381
        %v4384 = vunpack.c.l.s4 1966171168
        %v4385 = vunpack.c.0.s8 %v4384
        %v4386 = vlaneseq
        %v4387 = vshrl.u32 %v4386, 7
        %v4388 = vsub.s32 %v4385, %v4387
        %v4389 = vrot.slane %v4373, %v4388
        %v4391 = vunpack.c.l.s4 1966171168
        %v4392 = vunpack.c.0.s8 %v4391
        %v4393 = vlaneseq
        %v4394 = vshrl.u32 %v4393, 7
        %v4395 = vsub.s32 %v4392, %v4394
        %v4396 = vrot.slane %v4374, %v4395
        %v4398 = vunpack.c.l.s4 1966171168
        %v4399 = vunpack.c.0.s8 %v4398
        %v4400 = vlaneseq
        %v4401 = vshrl.u32 %v4400, 7
        %v4402 = vsub.s32 %v4399, %v4401
        %v4403 = vrot.slane %v4375, %v4402
        %v4404 = vcombine.low %v4382, %v4389
        %v4405 = vcombine.low %v4396, %v4403
        %v4407 = vunpack.c.l.s4 1966171168
        %v4408 = vunpack.c.0.s8 %v4407
        %v4409 = vlaneseq
        %v4410 = vshrl.u32 %v4409, 7
        %v4411 = vsub.s32 %v4408, %v4410
        %v4412 = vrot.slane %v4404, %v4411
        %v4414 = vunpack.c.l.s4 1966171168
        %v4415 = vunpack.c.0.s8 %v4414
        %v4416 = vlaneseq
        %v4417 = vshrl.u32 %v4416, 7
        %v4418 = vsub.s32 %v4415, %v4417
        %v4419 = vrot.slane %v4405, %v4418
        %v4420 = vcombine.low %v4412, %v4419
        %v4421 = vcombine.low %v2213, %v2223
        %v4422 = vcombine.low %v2233, %v2243
        %v4423 = vcombine.low %v2253, %v2263
        %v4424 = vcombine.low %v2273, %v2283
        %v4426 = vunpack.c.l.s4 1966171168
        %v4427 = vunpack.c.0.s8 %v4426
        %v4428 = vlaneseq
        %v4429 = vshrl.u32 %v4428, 7
        %v4430 = vsub.s32 %v4427, %v4429
        %v4431 = vrot.slane %v4421, %v4430
        %v4433 = vunpack.c.l.s4 1966171168
        %v4434 = vunpack.c.0.s8 %v4433
        %v4435 = vlaneseq
        %v4436 = vshrl.u32 %v4435, 7
        %v4437 = vsub.s32 %v4434, %v4436
        %v4438 = vrot.slane %v4422, %v4437
        %v4440 = vunpack.c.l.s4 1966171168
        %v4441 = vunpack.c.0.s8 %v4440
        %v4442 = vlaneseq
        %v4443 = vshrl.u32 %v4442, 7
        %v4444 = vsub.s32 %v4441, %v4443
        %v4445 = vrot.slane %v4423, %v4444
        %v4447 = vunpack.c.l.s4 1966171168
        %v4448 = vunpack.c.0.s8 %v4447
        %v4449 = vlaneseq
        %v4450 = vshrl.u32 %v4449, 7
        %v4451 = vsub.s32 %v4448, %v4450
        %v4452 = vrot.slane %v4424, %v4451
        %v4453 = vcombine.low %v4431, %v4438
        %v4454 = vcombine.low %v4445, %v4452
        %v4456 = vunpack.c.l.s4 1966171168
        %v4457 = vunpack.c.0.s8 %v4456
        %v4458 = vlaneseq
        %v4459 = vshrl.u32 %v4458, 7
        %v4460 = vsub.s32 %v4457, %v4459
        %v4461 = vrot.slane %v4453, %v4460
        %v4463 = vunpack.c.l.s4 1966171168
        %v4464 = vunpack.c.0.s8 %v4463
        %v4465 = vlaneseq
        %v4466 = vshrl.u32 %v4465, 7
        %v4467 = vsub.s32 %v4464, %v4466
        %v4468 = vrot.slane %v4454, %v4467
        %v4469 = vcombine.low %v4461, %v4468
        %v4470 = vcombine.low %v2293, %v2303
        %v4471 = vcombine.low %v2313, %v2323
        %v4472 = vcombine.low %v2333, %v2343
        %v4473 = vcombine.low %v2353, %v2363
        %v4475 = vunpack.c.l.s4 1966171168
        %v4476 = vunpack.c.0.s8 %v4475
        %v4477 = vlaneseq
        %v4478 = vshrl.u32 %v4477, 7
        %v4479 = vsub.s32 %v4476, %v4478
        %v4480 = vrot.slane %v4470, %v4479
        %v4482 = vunpack.c.l.s4 1966171168
        %v4483 = vunpack.c.0.s8 %v4482
        %v4484 = vlaneseq
        %v4485 = vshrl.u32 %v4484, 7
        %v4486 = vsub.s32 %v4483, %v4485
        %v4487 = vrot.slane %v4471, %v4486
        %v4489 = vunpack.c.l.s4 1966171168
        %v4490 = vunpack.c.0.s8 %v4489
        %v4491 = vlaneseq
        %v4492 = vshrl.u32 %v4491, 7
        %v4493 = vsub.s32 %v4490, %v4492
        %v4494 = vrot.slane %v4472, %v4493
        %v4496 = vunpack.c.l.s4 1966171168
        %v4497 = vunpack.c.0.s8 %v4496
        %v4498 = vlaneseq
        %v4499 = vshrl.u32 %v4498, 7
        %v4500 = vsub.s32 %v4497, %v4499
        %v4501 = vrot.slane %v4473, %v4500
        %v4502 = vcombine.low %v4480, %v4487
        %v4503 = vcombine.low %v4494, %v4501
        %v4505 = vunpack.c.l.s4 1966171168
        %v4506 = vunpack.c.0.s8 %v4505
        %v4507 = vlaneseq
        %v4508 = vshrl.u32 %v4507, 7
        %v4509 = vsub.s32 %v4506, %v4508
        %v4510 = vrot.slane %v4502, %v4509
        %v4512 = vunpack.c.l.s4 1966171168
        %v4513 = vunpack.c.0.s8 %v4512
        %v4514 = vlaneseq
        %v4515 = vshrl.u32 %v4514, 7
        %v4516 = vsub.s32 %v4513, %v4515
        %v4517 = vrot.slane %v4503, %v4516
        %v4518 = vcombine.low %v4510, %v4517
        %v4519 = vcombine.low %v2373, %v2383
        %v4520 = vcombine.low %v2393, %v2403
        %v4521 = vcombine.low %v2413, %v2423
        %v4522 = vcombine.low %v2433, %v2443
        %v4524 = vunpack.c.l.s4 1966171168
        %v4525 = vunpack.c.0.s8 %v4524
        %v4526 = vlaneseq
        %v4527 = vshrl.u32 %v4526, 7
        %v4528 = vsub.s32 %v4525, %v4527
        %v4529 = vrot.slane %v4519, %v4528
        %v4531 = vunpack.c.l.s4 1966171168
        %v4532 = vunpack.c.0.s8 %v4531
        %v4533 = vlaneseq
        %v4534 = vshrl.u32 %v4533, 7
        %v4535 = vsub.s32 %v4532, %v4534
        %v4536 = vrot.slane %v4520, %v4535
        %v4538 = vunpack.c.l.s4 1966171168
        %v4539 = vunpack.c.0.s8 %v4538
        %v4540 = vlaneseq
        %v4541 = vshrl.u32 %v4540, 7
        %v4542 = vsub.s32 %v4539, %v4541
        %v4543 = vrot.slane %v4521, %v4542
        %v4545 = vunpack.c.l.s4 1966171168
        %v4546 = vunpack.c.0.s8 %v4545
        %v4547 = vlaneseq
        %v4548 = vshrl.u32 %v4547, 7
        %v4549 = vsub.s32 %v4546, %v4548
        %v4550 = vrot.slane %v4522, %v4549
        %v4551 = vcombine.low %v4529, %v4536
        %v4552 = vcombine.low %v4543, %v4550
        %v4554 = vunpack.c.l.s4 1966171168
        %v4555 = vunpack.c.0.s8 %v4554
        %v4556 = vlaneseq
        %v4557 = vshrl.u32 %v4556, 7
        %v4558 = vsub.s32 %v4555, %v4557
        %v4559 = vrot.slane %v4551, %v4558
        %v4561 = vunpack.c.l.s4 1966171168
        %v4562 = vunpack.c.0.s8 %v4561
        %v4563 = vlaneseq
        %v4564 = vshrl.u32 %v4563, 7
        %v4565 = vsub.s32 %v4562, %v4564
        %v4566 = vrot.slane %v4552, %v4565
        %v4567 = vcombine.low %v4559, %v4566
        %v4568 = vcombine.low %v2453, %v2463
        %v4569 = vcombine.low %v2473, %v2483
        %v4570 = vcombine.low %v2493, %v2503
        %v4571 = vcombine.low %v2513, %v2523
        %v4573 = vunpack.c.l.s4 1966171168
        %v4574 = vunpack.c.0.s8 %v4573
        %v4575 = vlaneseq
        %v4576 = vshrl.u32 %v4575, 7
        %v4577 = vsub.s32 %v4574, %v4576
        %v4578 = vrot.slane %v4568, %v4577
        %v4580 = vunpack.c.l.s4 1966171168
        %v4581 = vunpack.c.0.s8 %v4580
        %v4582 = vlaneseq
        %v4583 = vshrl.u32 %v4582, 7
        %v4584 = vsub.s32 %v4581, %v4583
        %v4585 = vrot.slane %v4569, %v4584
        %v4587 = vunpack.c.l.s4 1966171168
        %v4588 = vunpack.c.0.s8 %v4587
        %v4589 = vlaneseq
        %v4590 = vshrl.u32 %v4589, 7
        %v4591 = vsub.s32 %v4588, %v4590
        %v4592 = vrot.slane %v4570, %v4591
        %v4594 = vunpack.c.l.s4 1966171168
        %v4595 = vunpack.c.0.s8 %v4594
        %v4596 = vlaneseq
        %v4597 = vshrl.u32 %v4596, 7
        %v4598 = vsub.s32 %v4595, %v4597
        %v4599 = vrot.slane %v4571, %v4598
        %v4600 = vcombine.low %v4578, %v4585
        %v4601 = vcombine.low %v4592, %v4599
        %v4603 = vunpack.c.l.s4 1966171168
        %v4604 = vunpack.c.0.s8 %v4603
        %v4605 = vlaneseq
        %v4606 = vshrl.u32 %v4605, 7
        %v4607 = vsub.s32 %v4604, %v4606
        %v4608 = vrot.slane %v4600, %v4607
        %v4610 = vunpack.c.l.s4 1966171168
        %v4611 = vunpack.c.0.s8 %v4610
        %v4612 = vlaneseq
        %v4613 = vshrl.u32 %v4612, 7
        %v4614 = vsub.s32 %v4611, %v4613
        %v4615 = vrot.slane %v4601, %v4614
        %v4616 = vcombine.low %v4608, %v4615
        %v4617 = vcombine.low %v2533, %v2543
        %v4618 = vcombine.low %v2553, %v2563
        %v4619 = vcombine.low %v2573, %v2583
        %v4620 = vcombine.low %v2593, %v2603
        %v4622 = vunpack.c.l.s4 1966171168
        %v4623 = vunpack.c.0.s8 %v4622
        %v4624 = vlaneseq
        %v4625 = vshrl.u32 %v4624, 7
        %v4626 = vsub.s32 %v4623, %v4625
        %v4627 = vrot.slane %v4617, %v4626
        %v4629 = vunpack.c.l.s4 1966171168
        %v4630 = vunpack.c.0.s8 %v4629
        %v4631 = vlaneseq
        %v4632 = vshrl.u32 %v4631, 7
        %v4633 = vsub.s32 %v4630, %v4632
        %v4634 = vrot.slane %v4618, %v4633
        %v4636 = vunpack.c.l.s4 1966171168
        %v4637 = vunpack.c.0.s8 %v4636
        %v4638 = vlaneseq
        %v4639 = vshrl.u32 %v4638, 7
        %v4640 = vsub.s32 %v4637, %v4639
        %v4641 = vrot.slane %v4619, %v4640
        %v4643 = vunpack.c.l.s4 1966171168
        %v4644 = vunpack.c.0.s8 %v4643
        %v4645 = vlaneseq
        %v4646 = vshrl.u32 %v4645, 7
        %v4647 = vsub.s32 %v4644, %v4646
        %v4648 = vrot.slane %v4620, %v4647
        %v4649 = vcombine.low %v4627, %v4634
        %v4650 = vcombine.low %v4641, %v4648
        %v4652 = vunpack.c.l.s4 1966171168
        %v4653 = vunpack.c.0.s8 %v4652
        %v4654 = vlaneseq
        %v4655 = vshrl.u32 %v4654, 7
        %v4656 = vsub.s32 %v4653, %v4655
        %v4657 = vrot.slane %v4649, %v4656
        %v4659 = vunpack.c.l.s4 1966171168
        %v4660 = vunpack.c.0.s8 %v4659
        %v4661 = vlaneseq
        %v4662 = vshrl.u32 %v4661, 7
        %v4663 = vsub.s32 %v4660, %v4662
        %v4664 = vrot.slane %v4650, %v4663
        %v4665 = vcombine.low %v4657, %v4664
        %v4666 = vcombine.low %v2613, %v2623
        %v4667 = vcombine.low %v2633, %v2643
        %v4668 = vcombine.low %v2653, %v2663
        %v4669 = vcombine.low %v2673, %v2683
        %v4671 = vunpack.c.l.s4 1966171168
        %v4672 = vunpack.c.0.s8 %v4671
        %v4673 = vlaneseq
        %v4674 = vshrl.u32 %v4673, 7
        %v4675 = vsub.s32 %v4672, %v4674
        %v4676 = vrot.slane %v4666, %v4675
        %v4678 = vunpack.c.l.s4 1966171168
        %v4679 = vunpack.c.0.s8 %v4678
        %v4680 = vlaneseq
        %v4681 = vshrl.u32 %v4680, 7
        %v4682 = vsub.s32 %v4679, %v4681
        %v4683 = vrot.slane %v4667, %v4682
        %v4685 = vunpack.c.l.s4 1966171168
        %v4686 = vunpack.c.0.s8 %v4685
        %v4687 = vlaneseq
        %v4688 = vshrl.u32 %v4687, 7
        %v4689 = vsub.s32 %v4686, %v4688
        %v4690 = vrot.slane %v4668, %v4689
        %v4692 = vunpack.c.l.s4 1966171168
        %v4693 = vunpack.c.0.s8 %v4692
        %v4694 = vlaneseq
        %v4695 = vshrl.u32 %v4694, 7
        %v4696 = vsub.s32 %v4693, %v4695
        %v4697 = vrot.slane %v4669, %v4696
        %v4698 = vcombine.low %v4676, %v4683
        %v4699 = vcombine.low %v4690, %v4697
        %v4701 = vunpack.c.l.s4 1966171168
        %v4702 = vunpack.c.0.s8 %v4701
        %v4703 = vlaneseq
        %v4704 = vshrl.u32 %v4703, 7
        %v4705 = vsub.s32 %v4702, %v4704
        %v4706 = vrot.slane %v4698, %v4705
        %v4708 = vunpack.c.l.s4 1966171168
        %v4709 = vunpack.c.0.s8 %v4708
        %v4710 = vlaneseq
        %v4711 = vshrl.u32 %v4710, 7
        %v4712 = vsub.s32 %v4709, %v4711
        %v4713 = vrot.slane %v4699, %v4712
        %v4714 = vcombine.low %v4706, %v4713
        %v4715 = vcombine.low %v2693, %v2703
        %v4716 = vcombine.low %v2713, %v2723
        %v4717 = vcombine.low %v2733, %v2743
        %v4718 = vcombine.low %v2753, %v2763
        %v4720 = vunpack.c.l.s4 1966171168
        %v4721 = vunpack.c.0.s8 %v4720
        %v4722 = vlaneseq
        %v4723 = vshrl.u32 %v4722, 7
        %v4724 = vsub.s32 %v4721, %v4723
        %v4725 = vrot.slane %v4715, %v4724
        %v4727 = vunpack.c.l.s4 1966171168
        %v4728 = vunpack.c.0.s8 %v4727
        %v4729 = vlaneseq
        %v4730 = vshrl.u32 %v4729, 7
        %v4731 = vsub.s32 %v4728, %v4730
        %v4732 = vrot.slane %v4716, %v4731
        %v4734 = vunpack.c.l.s4 1966171168
        %v4735 = vunpack.c.0.s8 %v4734
        %v4736 = vlaneseq
        %v4737 = vshrl.u32 %v4736, 7
        %v4738 = vsub.s32 %v4735, %v4737
        %v4739 = vrot.slane %v4717, %v4738
        %v4741 = vunpack.c.l.s4 1966171168
        %v4742 = vunpack.c.0.s8 %v4741
        %v4743 = vlaneseq
        %v4744 = vshrl.u32 %v4743, 7
        %v4745 = vsub.s32 %v4742, %v4744
        %v4746 = vrot.slane %v4718, %v4745
        %v4747 = vcombine.low %v4725, %v4732
        %v4748 = vcombine.low %v4739, %v4746
        %v4750 = vunpack.c.l.s4 1966171168
        %v4751 = vunpack.c.0.s8 %v4750
        %v4752 = vlaneseq
        %v4753 = vshrl.u32 %v4752, 7
        %v4754 = vsub.s32 %v4751, %v4753
        %v4755 = vrot.slane %v4747, %v4754
        %v4757 = vunpack.c.l.s4 1966171168
        %v4758 = vunpack.c.0.s8 %v4757
        %v4759 = vlaneseq
        %v4760 = vshrl.u32 %v4759, 7
        %v4761 = vsub.s32 %v4758, %v4760
        %v4762 = vrot.slane %v4748, %v4761
        %v4763 = vcombine.low %v4755, %v4762
        %v4764 = vcombine.low %v2773, %v2783
        %v4765 = vcombine.low %v2793, %v2803
        %v4766 = vcombine.low %v2813, %v2823
        %v4767 = vcombine.low %v2833, %v2843
        %v4769 = vunpack.c.l.s4 1966171168
        %v4770 = vunpack.c.0.s8 %v4769
        %v4771 = vlaneseq
        %v4772 = vshrl.u32 %v4771, 7
        %v4773 = vsub.s32 %v4770, %v4772
        %v4774 = vrot.slane %v4764, %v4773
        %v4776 = vunpack.c.l.s4 1966171168
        %v4777 = vunpack.c.0.s8 %v4776
        %v4778 = vlaneseq
        %v4779 = vshrl.u32 %v4778, 7
        %v4780 = vsub.s32 %v4777, %v4779
        %v4781 = vrot.slane %v4765, %v4780
        %v4783 = vunpack.c.l.s4 1966171168
        %v4784 = vunpack.c.0.s8 %v4783
        %v4785 = vlaneseq
        %v4786 = vshrl.u32 %v4785, 7
        %v4787 = vsub.s32 %v4784, %v4786
        %v4788 = vrot.slane %v4766, %v4787
        %v4790 = vunpack.c.l.s4 1966171168
        %v4791 = vunpack.c.0.s8 %v4790
        %v4792 = vlaneseq
        %v4793 = vshrl.u32 %v4792, 7
        %v4794 = vsub.s32 %v4791, %v4793
        %v4795 = vrot.slane %v4767, %v4794
        %v4796 = vcombine.low %v4774, %v4781
        %v4797 = vcombine.low %v4788, %v4795
        %v4799 = vunpack.c.l.s4 1966171168
        %v4800 = vunpack.c.0.s8 %v4799
        %v4801 = vlaneseq
        %v4802 = vshrl.u32 %v4801, 7
        %v4803 = vsub.s32 %v4800, %v4802
        %v4804 = vrot.slane %v4796, %v4803
        %v4806 = vunpack.c.l.s4 1966171168
        %v4807 = vunpack.c.0.s8 %v4806
        %v4808 = vlaneseq
        %v4809 = vshrl.u32 %v4808, 7
        %v4810 = vsub.s32 %v4807, %v4809
        %v4811 = vrot.slane %v4797, %v4810
        %v4812 = vcombine.low %v4804, %v4811
        %v4813 = vcombine.low %v2853, %v2863
        %v4814 = vcombine.low %v2873, %v2883
        %v4815 = vcombine.low %v2893, %v2903
        %v4816 = vcombine.low %v2913, %v2923
        %v4818 = vunpack.c.l.s4 1966171168
        %v4819 = vunpack.c.0.s8 %v4818
        %v4820 = vlaneseq
        %v4821 = vshrl.u32 %v4820, 7
        %v4822 = vsub.s32 %v4819, %v4821
        %v4823 = vrot.slane %v4813, %v4822
        %v4825 = vunpack.c.l.s4 1966171168
        %v4826 = vunpack.c.0.s8 %v4825
        %v4827 = vlaneseq
        %v4828 = vshrl.u32 %v4827, 7
        %v4829 = vsub.s32 %v4826, %v4828
        %v4830 = vrot.slane %v4814, %v4829
        %v4832 = vunpack.c.l.s4 1966171168
        %v4833 = vunpack.c.0.s8 %v4832
        %v4834 = vlaneseq
        %v4835 = vshrl.u32 %v4834, 7
        %v4836 = vsub.s32 %v4833, %v4835
        %v4837 = vrot.slane %v4815, %v4836
        %v4839 = vunpack.c.l.s4 1966171168
        %v4840 = vunpack.c.0.s8 %v4839
        %v4841 = vlaneseq
        %v4842 = vshrl.u32 %v4841, 7
        %v4843 = vsub.s32 %v4840, %v4842
        %v4844 = vrot.slane %v4816, %v4843
        %v4845 = vcombine.low %v4823, %v4830
        %v4846 = vcombine.low %v4837, %v4844
        %v4848 = vunpack.c.l.s4 1966171168
        %v4849 = vunpack.c.0.s8 %v4848
        %v4850 = vlaneseq
        %v4851 = vshrl.u32 %v4850, 7
        %v4852 = vsub.s32 %v4849, %v4851
        %v4853 = vrot.slane %v4845, %v4852
        %v4855 = vunpack.c.l.s4 1966171168
        %v4856 = vunpack.c.0.s8 %v4855
        %v4857 = vlaneseq
        %v4858 = vshrl.u32 %v4857, 7
        %v4859 = vsub.s32 %v4856, %v4858
        %v4860 = vrot.slane %v4846, %v4859
        %v4861 = vcombine.low %v4853, %v4860
        %v4862 = vcombine.low %v2933, %v2943
        %v4863 = vcombine.low %v2953, %v2963
        %v4864 = vcombine.low %v2973, %v2983
        %v4865 = vcombine.low %v2993, %v3003
        %v4867 = vunpack.c.l.s4 1966171168
        %v4868 = vunpack.c.0.s8 %v4867
        %v4869 = vlaneseq
        %v4870 = vshrl.u32 %v4869, 7
        %v4871 = vsub.s32 %v4868, %v4870
        %v4872 = vrot.slane %v4862, %v4871
        %v4874 = vunpack.c.l.s4 1966171168
        %v4875 = vunpack.c.0.s8 %v4874
        %v4876 = vlaneseq
        %v4877 = vshrl.u32 %v4876, 7
        %v4878 = vsub.s32 %v4875, %v4877
        %v4879 = vrot.slane %v4863, %v4878
        %v4881 = vunpack.c.l.s4 1966171168
        %v4882 = vunpack.c.0.s8 %v4881
        %v4883 = vlaneseq
        %v4884 = vshrl.u32 %v4883, 7
        %v4885 = vsub.s32 %v4882, %v4884
        %v4886 = vrot.slane %v4864, %v4885
        %v4888 = vunpack.c.l.s4 1966171168
        %v4889 = vunpack.c.0.s8 %v4888
        %v4890 = vlaneseq
        %v4891 = vshrl.u32 %v4890, 7
        %v4892 = vsub.s32 %v4889, %v4891
        %v4893 = vrot.slane %v4865, %v4892
        %v4894 = vcombine.low %v4872, %v4879
        %v4895 = vcombine.low %v4886, %v4893
        %v4897 = vunpack.c.l.s4 1966171168
        %v4898 = vunpack.c.0.s8 %v4897
        %v4899 = vlaneseq
        %v4900 = vshrl.u32 %v4899, 7
        %v4901 = vsub.s32 %v4898, %v4900
        %v4902 = vrot.slane %v4894, %v4901
        %v4904 = vunpack.c.l.s4 1966171168
        %v4905 = vunpack.c.0.s8 %v4904
        %v4906 = vlaneseq
        %v4907 = vshrl.u32 %v4906, 7
        %v4908 = vsub.s32 %v4905, %v4907
        %v4909 = vrot.slane %v4895, %v4908
        %v4910 = vcombine.low %v4902, %v4909
        %v4911 = vcombine.low %v3013, %v3023
        %v4912 = vcombine.low %v3033, %v3043
        %v4913 = vcombine.low %v3053, %v3063
        %v4914 = vcombine.low %v3073, %v3083
        %v4916 = vunpack.c.l.s4 1966171168
        %v4917 = vunpack.c.0.s8 %v4916
        %v4918 = vlaneseq
        %v4919 = vshrl.u32 %v4918, 7
        %v4920 = vsub.s32 %v4917, %v4919
        %v4921 = vrot.slane %v4911, %v4920
        %v4923 = vunpack.c.l.s4 1966171168
        %v4924 = vunpack.c.0.s8 %v4923
        %v4925 = vlaneseq
        %v4926 = vshrl.u32 %v4925, 7
        %v4927 = vsub.s32 %v4924, %v4926
        %v4928 = vrot.slane %v4912, %v4927
        %v4930 = vunpack.c.l.s4 1966171168
        %v4931 = vunpack.c.0.s8 %v4930
        %v4932 = vlaneseq
        %v4933 = vshrl.u32 %v4932, 7
        %v4934 = vsub.s32 %v4931, %v4933
        %v4935 = vrot.slane %v4913, %v4934
        %v4937 = vunpack.c.l.s4 1966171168
        %v4938 = vunpack.c.0.s8 %v4937
        %v4939 = vlaneseq
        %v4940 = vshrl.u32 %v4939, 7
        %v4941 = vsub.s32 %v4938, %v4940
        %v4942 = vrot.slane %v4914, %v4941
        %v4943 = vcombine.low %v4921, %v4928
        %v4944 = vcombine.low %v4935, %v4942
        %v4946 = vunpack.c.l.s4 1966171168
        %v4947 = vunpack.c.0.s8 %v4946
        %v4948 = vlaneseq
        %v4949 = vshrl.u32 %v4948, 7
        %v4950 = vsub.s32 %v4947, %v4949
        %v4951 = vrot.slane %v4943, %v4950
        %v4953 = vunpack.c.l.s4 1966171168
        %v4954 = vunpack.c.0.s8 %v4953
        %v4955 = vlaneseq
        %v4956 = vshrl.u32 %v4955, 7
        %v4957 = vsub.s32 %v4954, %v4956
        %v4958 = vrot.slane %v4944, %v4957
        %v4959 = vcombine.low %v4951, %v4958
        %v4960 = vcombine.low %v3093, %v3103
        %v4961 = vcombine.low %v3113, %v3123
        %v4962 = vcombine.low %v3133, %v3143
        %v4963 = vcombine.low %v3153, %v3163
        %v4965 = vunpack.c.l.s4 1966171168
        %v4966 = vunpack.c.0.s8 %v4965
        %v4967 = vlaneseq
        %v4968 = vshrl.u32 %v4967, 7
        %v4969 = vsub.s32 %v4966, %v4968
        %v4970 = vrot.slane %v4960, %v4969
        %v4972 = vunpack.c.l.s4 1966171168
        %v4973 = vunpack.c.0.s8 %v4972
        %v4974 = vlaneseq
        %v4975 = vshrl.u32 %v4974, 7
        %v4976 = vsub.s32 %v4973, %v4975
        %v4977 = vrot.slane %v4961, %v4976
        %v4979 = vunpack.c.l.s4 1966171168
        %v4980 = vunpack.c.0.s8 %v4979
        %v4981 = vlaneseq
        %v4982 = vshrl.u32 %v4981, 7
        %v4983 = vsub.s32 %v4980, %v4982
        %v4984 = vrot.slane %v4962, %v4983
        %v4986 = vunpack.c.l.s4 1966171168
        %v4987 = vunpack.c.0.s8 %v4986
        %v4988 = vlaneseq
        %v4989 = vshrl.u32 %v4988, 7
        %v4990 = vsub.s32 %v4987, %v4989
        %v4991 = vrot.slane %v4963, %v4990
        %v4992 = vcombine.low %v4970, %v4977
        %v4993 = vcombine.low %v4984, %v4991
        %v4995 = vunpack.c.l.s4 1966171168
        %v4996 = vunpack.c.0.s8 %v4995
        %v4997 = vlaneseq
        %v4998 = vshrl.u32 %v4997, 7
        %v4999 = vsub.s32 %v4996, %v4998
        %v5000 = vrot.slane %v4992, %v4999
        %v5002 = vunpack.c.l.s4 1966171168
        %v5003 = vunpack.c.0.s8 %v5002
        %v5004 = vlaneseq
        %v5005 = vshrl.u32 %v5004, 7
        %v5006 = vsub.s32 %v5003, %v5005
        %v5007 = vrot.slane %v4993, %v5006
        %v5008 = vcombine.low %v5000, %v5007
        %v5009 = vcombine.low %v3173, %v3183
        %v5010 = vcombine.low %v3193, %v3203
        %v5011 = vcombine.low %v3213, %v3223
        %v5012 = vcombine.low %v3233, %v3243
        %v5014 = vunpack.c.l.s4 1966171168
        %v5015 = vunpack.c.0.s8 %v5014
        %v5016 = vlaneseq
        %v5017 = vshrl.u32 %v5016, 7
        %v5018 = vsub.s32 %v5015, %v5017
        %v5019 = vrot.slane %v5009, %v5018
        %v5021 = vunpack.c.l.s4 1966171168
        %v5022 = vunpack.c.0.s8 %v5021
        %v5023 = vlaneseq
        %v5024 = vshrl.u32 %v5023, 7
        %v5025 = vsub.s32 %v5022, %v5024
        %v5026 = vrot.slane %v5010, %v5025
        %v5028 = vunpack.c.l.s4 1966171168
        %v5029 = vunpack.c.0.s8 %v5028
        %v5030 = vlaneseq
        %v5031 = vshrl.u32 %v5030, 7
        %v5032 = vsub.s32 %v5029, %v5031
        %v5033 = vrot.slane %v5011, %v5032
        %v5035 = vunpack.c.l.s4 1966171168
        %v5036 = vunpack.c.0.s8 %v5035
        %v5037 = vlaneseq
        %v5038 = vshrl.u32 %v5037, 7
        %v5039 = vsub.s32 %v5036, %v5038
        %v5040 = vrot.slane %v5012, %v5039
        %v5041 = vcombine.low %v5019, %v5026
        %v5042 = vcombine.low %v5033, %v5040
        %v5044 = vunpack.c.l.s4 1966171168
        %v5045 = vunpack.c.0.s8 %v5044
        %v5046 = vlaneseq
        %v5047 = vshrl.u32 %v5046, 7
        %v5048 = vsub.s32 %v5045, %v5047
        %v5049 = vrot.slane %v5041, %v5048
        %v5051 = vunpack.c.l.s4 1966171168
        %v5052 = vunpack.c.0.s8 %v5051
        %v5053 = vlaneseq
        %v5054 = vshrl.u32 %v5053, 7
        %v5055 = vsub.s32 %v5052, %v5054
        %v5056 = vrot.slane %v5042, %v5055
        %v5057 = vcombine.low %v5049, %v5056
        %v5058 = vcombine.low %v3253, %v3263
        %v5059 = vcombine.low %v3273, %v3283
        %v5060 = vcombine.low %v3293, %v3303
        %v5061 = vcombine.low %v3313, %v3323
        %v5063 = vunpack.c.l.s4 1966171168
        %v5064 = vunpack.c.0.s8 %v5063
        %v5065 = vlaneseq
        %v5066 = vshrl.u32 %v5065, 7
        %v5067 = vsub.s32 %v5064, %v5066
        %v5068 = vrot.slane %v5058, %v5067
        %v5070 = vunpack.c.l.s4 1966171168
        %v5071 = vunpack.c.0.s8 %v5070
        %v5072 = vlaneseq
        %v5073 = vshrl.u32 %v5072, 7
        %v5074 = vsub.s32 %v5071, %v5073
        %v5075 = vrot.slane %v5059, %v5074
        %v5077 = vunpack.c.l.s4 1966171168
        %v5078 = vunpack.c.0.s8 %v5077
        %v5079 = vlaneseq
        %v5080 = vshrl.u32 %v5079, 7
        %v5081 = vsub.s32 %v5078, %v5080
        %v5082 = vrot.slane %v5060, %v5081
        %v5084 = vunpack.c.l.s4 1966171168
        %v5085 = vunpack.c.0.s8 %v5084
        %v5086 = vlaneseq
        %v5087 = vshrl.u32 %v5086, 7
        %v5088 = vsub.s32 %v5085, %v5087
        %v5089 = vrot.slane %v5061, %v5088
        %v5090 = vcombine.low %v5068, %v5075
        %v5091 = vcombine.low %v5082, %v5089
        %v5093 = vunpack.c.l.s4 1966171168
        %v5094 = vunpack.c.0.s8 %v5093
        %v5095 = vlaneseq
        %v5096 = vshrl.u32 %v5095, 7
        %v5097 = vsub.s32 %v5094, %v5096
        %v5098 = vrot.slane %v5090, %v5097
        %v5100 = vunpack.c.l.s4 1966171168
        %v5101 = vunpack.c.0.s8 %v5100
        %v5102 = vlaneseq
        %v5103 = vshrl.u32 %v5102, 7
        %v5104 = vsub.s32 %v5101, %v5103
        %v5105 = vrot.slane %v5091, %v5104
        %v5106 = vcombine.low %v5098, %v5105
        %v5107 = vcombine.low %v3333, %v3343
        %v5108 = vcombine.low %v3353, %v3363
        %v5109 = vcombine.low %v3373, %v3383
        %v5110 = vcombine.low %v3393, %v3403
        %v5112 = vunpack.c.l.s4 1966171168
        %v5113 = vunpack.c.0.s8 %v5112
        %v5114 = vlaneseq
        %v5115 = vshrl.u32 %v5114, 7
        %v5116 = vsub.s32 %v5113, %v5115
        %v5117 = vrot.slane %v5107, %v5116
        %v5119 = vunpack.c.l.s4 1966171168
        %v5120 = vunpack.c.0.s8 %v5119
        %v5121 = vlaneseq
        %v5122 = vshrl.u32 %v5121, 7
        %v5123 = vsub.s32 %v5120, %v5122
        %v5124 = vrot.slane %v5108, %v5123
        %v5126 = vunpack.c.l.s4 1966171168
        %v5127 = vunpack.c.0.s8 %v5126
        %v5128 = vlaneseq
        %v5129 = vshrl.u32 %v5128, 7
        %v5130 = vsub.s32 %v5127, %v5129
        %v5131 = vrot.slane %v5109, %v5130
        %v5133 = vunpack.c.l.s4 1966171168
        %v5134 = vunpack.c.0.s8 %v5133
        %v5135 = vlaneseq
        %v5136 = vshrl.u32 %v5135, 7
        %v5137 = vsub.s32 %v5134, %v5136
        %v5138 = vrot.slane %v5110, %v5137
        %v5139 = vcombine.low %v5117, %v5124
        %v5140 = vcombine.low %v5131, %v5138
        %v5142 = vunpack.c.l.s4 1966171168
        %v5143 = vunpack.c.0.s8 %v5142
        %v5144 = vlaneseq
        %v5145 = vshrl.u32 %v5144, 7
        %v5146 = vsub.s32 %v5143, %v5145
        %v5147 = vrot.slane %v5139, %v5146
        %v5149 = vunpack.c.l.s4 1966171168
        %v5150 = vunpack.c.0.s8 %v5149
        %v5151 = vlaneseq
        %v5152 = vshrl.u32 %v5151, 7
        %v5153 = vsub.s32 %v5150, %v5152
        %v5154 = vrot.slane %v5140, %v5153
        %v5155 = vcombine.low %v5147, %v5154
        %v5156 = vcombine.low %v3413, %v3423
        %v5157 = vcombine.low %v3433, %v3443
        %v5158 = vcombine.low %v3453, %v3463
        %v5159 = vcombine.low %v3473, %v3483
        %v5161 = vunpack.c.l.s4 1966171168
        %v5162 = vunpack.c.0.s8 %v5161
        %v5163 = vlaneseq
        %v5164 = vshrl.u32 %v5163, 7
        %v5165 = vsub.s32 %v5162, %v5164
        %v5166 = vrot.slane %v5156, %v5165
        %v5168 = vunpack.c.l.s4 1966171168
        %v5169 = vunpack.c.0.s8 %v5168
        %v5170 = vlaneseq
        %v5171 = vshrl.u32 %v5170, 7
        %v5172 = vsub.s32 %v5169, %v5171
        %v5173 = vrot.slane %v5157, %v5172
        %v5175 = vunpack.c.l.s4 1966171168
        %v5176 = vunpack.c.0.s8 %v5175
        %v5177 = vlaneseq
        %v5178 = vshrl.u32 %v5177, 7
        %v5179 = vsub.s32 %v5176, %v5178
        %v5180 = vrot.slane %v5158, %v5179
        %v5182 = vunpack.c.l.s4 1966171168
        %v5183 = vunpack.c.0.s8 %v5182
        %v5184 = vlaneseq
        %v5185 = vshrl.u32 %v5184, 7
        %v5186 = vsub.s32 %v5183, %v5185
        %v5187 = vrot.slane %v5159, %v5186
        %v5188 = vcombine.low %v5166, %v5173
        %v5189 = vcombine.low %v5180, %v5187
        %v5191 = vunpack.c.l.s4 1966171168
        %v5192 = vunpack.c.0.s8 %v5191
        %v5193 = vlaneseq
        %v5194 = vshrl.u32 %v5193, 7
        %v5195 = vsub.s32 %v5192, %v5194
        %v5196 = vrot.slane %v5188, %v5195
        %v5198 = vunpack.c.l.s4 1966171168
        %v5199 = vunpack.c.0.s8 %v5198
        %v5200 = vlaneseq
        %v5201 = vshrl.u32 %v5200, 7
        %v5202 = vsub.s32 %v5199, %v5201
        %v5203 = vrot.slane %v5189, %v5202
        %v5204 = vcombine.low %v5196, %v5203
        %v5205 = vcombine.low %v3493, %v3503
        %v5206 = vcombine.low %v3513, %v3523
        %v5207 = vcombine.low %v3533, %v3543
        %v5208 = vcombine.low %v3553, %v3563
        %v5210 = vunpack.c.l.s4 1966171168
        %v5211 = vunpack.c.0.s8 %v5210
        %v5212 = vlaneseq
        %v5213 = vshrl.u32 %v5212, 7
        %v5214 = vsub.s32 %v5211, %v5213
        %v5215 = vrot.slane %v5205, %v5214
        %v5217 = vunpack.c.l.s4 1966171168
        %v5218 = vunpack.c.0.s8 %v5217
        %v5219 = vlaneseq
        %v5220 = vshrl.u32 %v5219, 7
        %v5221 = vsub.s32 %v5218, %v5220
        %v5222 = vrot.slane %v5206, %v5221
        %v5224 = vunpack.c.l.s4 1966171168
        %v5225 = vunpack.c.0.s8 %v5224
        %v5226 = vlaneseq
        %v5227 = vshrl.u32 %v5226, 7
        %v5228 = vsub.s32 %v5225, %v5227
        %v5229 = vrot.slane %v5207, %v5228
        %v5231 = vunpack.c.l.s4 1966171168
        %v5232 = vunpack.c.0.s8 %v5231
        %v5233 = vlaneseq
        %v5234 = vshrl.u32 %v5233, 7
        %v5235 = vsub.s32 %v5232, %v5234
        %v5236 = vrot.slane %v5208, %v5235
        %v5237 = vcombine.low %v5215, %v5222
        %v5238 = vcombine.low %v5229, %v5236
        %v5240 = vunpack.c.l.s4 1966171168
        %v5241 = vunpack.c.0.s8 %v5240
        %v5242 = vlaneseq
        %v5243 = vshrl.u32 %v5242, 7
        %v5244 = vsub.s32 %v5241, %v5243
        %v5245 = vrot.slane %v5237, %v5244
        %v5247 = vunpack.c.l.s4 1966171168
        %v5248 = vunpack.c.0.s8 %v5247
        %v5249 = vlaneseq
        %v5250 = vshrl.u32 %v5249, 7
        %v5251 = vsub.s32 %v5248, %v5250
        %v5252 = vrot.slane %v5238, %v5251
        %v5253 = vcombine.low %v5245, %v5252
        %v5254 = vcombine.low %v3573, %v3583
        %v5255 = vcombine.low %v3593, %v3603
        %v5256 = vcombine.low %v3613, %v3623
        %v5257 = vcombine.low %v3633, %v3643
        %v5259 = vunpack.c.l.s4 1966171168
        %v5260 = vunpack.c.0.s8 %v5259
        %v5261 = vlaneseq
        %v5262 = vshrl.u32 %v5261, 7
        %v5263 = vsub.s32 %v5260, %v5262
        %v5264 = vrot.slane %v5254, %v5263
        %v5266 = vunpack.c.l.s4 1966171168
        %v5267 = vunpack.c.0.s8 %v5266
        %v5268 = vlaneseq
        %v5269 = vshrl.u32 %v5268, 7
        %v5270 = vsub.s32 %v5267, %v5269
        %v5271 = vrot.slane %v5255, %v5270
        %v5273 = vunpack.c.l.s4 1966171168
        %v5274 = vunpack.c.0.s8 %v5273
        %v5275 = vlaneseq
        %v5276 = vshrl.u32 %v5275, 7
        %v5277 = vsub.s32 %v5274, %v5276
        %v5278 = vrot.slane %v5256, %v5277
        %v5280 = vunpack.c.l.s4 1966171168
        %v5281 = vunpack.c.0.s8 %v5280
        %v5282 = vlaneseq
        %v5283 = vshrl.u32 %v5282, 7
        %v5284 = vsub.s32 %v5281, %v5283
        %v5285 = vrot.slane %v5257, %v5284
        %v5286 = vcombine.low %v5264, %v5271
        %v5287 = vcombine.low %v5278, %v5285
        %v5289 = vunpack.c.l.s4 1966171168
        %v5290 = vunpack.c.0.s8 %v5289
        %v5291 = vlaneseq
        %v5292 = vshrl.u32 %v5291, 7
        %v5293 = vsub.s32 %v5290, %v5292
        %v5294 = vrot.slane %v5286, %v5293
        %v5296 = vunpack.c.l.s4 1966171168
        %v5297 = vunpack.c.0.s8 %v5296
        %v5298 = vlaneseq
        %v5299 = vshrl.u32 %v5298, 7
        %v5300 = vsub.s32 %v5297, %v5299
        %v5301 = vrot.slane %v5287, %v5300
        %v5302 = vcombine.low %v5294, %v5301
        %v5303 = vcombine.low %v3653, %v3663
        %v5304 = vcombine.low %v3673, %v3683
        %v5305 = vcombine.low %v3693, %v3703
        %v5306 = vcombine.low %v3713, %v3723
        %v5308 = vunpack.c.l.s4 1966171168
        %v5309 = vunpack.c.0.s8 %v5308
        %v5310 = vlaneseq
        %v5311 = vshrl.u32 %v5310, 7
        %v5312 = vsub.s32 %v5309, %v5311
        %v5313 = vrot.slane %v5303, %v5312
        %v5315 = vunpack.c.l.s4 1966171168
        %v5316 = vunpack.c.0.s8 %v5315
        %v5317 = vlaneseq
        %v5318 = vshrl.u32 %v5317, 7
        %v5319 = vsub.s32 %v5316, %v5318
        %v5320 = vrot.slane %v5304, %v5319
        %v5322 = vunpack.c.l.s4 1966171168
        %v5323 = vunpack.c.0.s8 %v5322
        %v5324 = vlaneseq
        %v5325 = vshrl.u32 %v5324, 7
        %v5326 = vsub.s32 %v5323, %v5325
        %v5327 = vrot.slane %v5305, %v5326
        %v5329 = vunpack.c.l.s4 1966171168
        %v5330 = vunpack.c.0.s8 %v5329
        %v5331 = vlaneseq
        %v5332 = vshrl.u32 %v5331, 7
        %v5333 = vsub.s32 %v5330, %v5332
        %v5334 = vrot.slane %v5306, %v5333
        %v5335 = vcombine.low %v5313, %v5320
        %v5336 = vcombine.low %v5327, %v5334
        %v5338 = vunpack.c.l.s4 1966171168
        %v5339 = vunpack.c.0.s8 %v5338
        %v5340 = vlaneseq
        %v5341 = vshrl.u32 %v5340, 7
        %v5342 = vsub.s32 %v5339, %v5341
        %v5343 = vrot.slane %v5335, %v5342
        %v5345 = vunpack.c.l.s4 1966171168
        %v5346 = vunpack.c.0.s8 %v5345
        %v5347 = vlaneseq
        %v5348 = vshrl.u32 %v5347, 7
        %v5349 = vsub.s32 %v5346, %v5348
        %v5350 = vrot.slane %v5336, %v5349
        %v5351 = vcombine.low %v5343, %v5350
        %v5352 = vcombine.low %v3733, %v3743
        %v5353 = vcombine.low %v3753, %v3763
        %v5354 = vcombine.low %v3773, %v3783
        %v5355 = vcombine.low %v3793, %v3803
        %v5357 = vunpack.c.l.s4 1966171168
        %v5358 = vunpack.c.0.s8 %v5357
        %v5359 = vlaneseq
        %v5360 = vshrl.u32 %v5359, 7
        %v5361 = vsub.s32 %v5358, %v5360
        %v5362 = vrot.slane %v5352, %v5361
        %v5364 = vunpack.c.l.s4 1966171168
        %v5365 = vunpack.c.0.s8 %v5364
        %v5366 = vlaneseq
        %v5367 = vshrl.u32 %v5366, 7
        %v5368 = vsub.s32 %v5365, %v5367
        %v5369 = vrot.slane %v5353, %v5368
        %v5371 = vunpack.c.l.s4 1966171168
        %v5372 = vunpack.c.0.s8 %v5371
        %v5373 = vlaneseq
        %v5374 = vshrl.u32 %v5373, 7
        %v5375 = vsub.s32 %v5372, %v5374
        %v5376 = vrot.slane %v5354, %v5375
        %v5378 = vunpack.c.l.s4 1966171168
        %v5379 = vunpack.c.0.s8 %v5378
        %v5380 = vlaneseq
        %v5381 = vshrl.u32 %v5380, 7
        %v5382 = vsub.s32 %v5379, %v5381
        %v5383 = vrot.slane %v5355, %v5382
        %v5384 = vcombine.low %v5362, %v5369
        %v5385 = vcombine.low %v5376, %v5383
        %v5387 = vunpack.c.l.s4 1966171168
        %v5388 = vunpack.c.0.s8 %v5387
        %v5389 = vlaneseq
        %v5390 = vshrl.u32 %v5389, 7
        %v5391 = vsub.s32 %v5388, %v5390
        %v5392 = vrot.slane %v5384, %v5391
        %v5394 = vunpack.c.l.s4 1966171168
        %v5395 = vunpack.c.0.s8 %v5394
        %v5396 = vlaneseq
        %v5397 = vshrl.u32 %v5396, 7
        %v5398 = vsub.s32 %v5395, %v5397
        %v5399 = vrot.slane %v5385, %v5398
        %v5400 = vcombine.low %v5392, %v5399
        %v5401 = vcombine.low %v3813, %v3823
        %v5402 = vcombine.low %v3833, %v3843
        %v5403 = vcombine.low %v3853, %v3863
        %v5404 = vcombine.low %v3873, %v3883
        %v5406 = vunpack.c.l.s4 1966171168
        %v5407 = vunpack.c.0.s8 %v5406
        %v5408 = vlaneseq
        %v5409 = vshrl.u32 %v5408, 7
        %v5410 = vsub.s32 %v5407, %v5409
        %v5411 = vrot.slane %v5401, %v5410
        %v5413 = vunpack.c.l.s4 1966171168
        %v5414 = vunpack.c.0.s8 %v5413
        %v5415 = vlaneseq
        %v5416 = vshrl.u32 %v5415, 7
        %v5417 = vsub.s32 %v5414, %v5416
        %v5418 = vrot.slane %v5402, %v5417
        %v5420 = vunpack.c.l.s4 1966171168
        %v5421 = vunpack.c.0.s8 %v5420
        %v5422 = vlaneseq
        %v5423 = vshrl.u32 %v5422, 7
        %v5424 = vsub.s32 %v5421, %v5423
        %v5425 = vrot.slane %v5403, %v5424
        %v5427 = vunpack.c.l.s4 1966171168
        %v5428 = vunpack.c.0.s8 %v5427
        %v5429 = vlaneseq
        %v5430 = vshrl.u32 %v5429, 7
        %v5431 = vsub.s32 %v5428, %v5430
        %v5432 = vrot.slane %v5404, %v5431
        %v5433 = vcombine.low %v5411, %v5418
        %v5434 = vcombine.low %v5425, %v5432
        %v5436 = vunpack.c.l.s4 1966171168
        %v5437 = vunpack.c.0.s8 %v5436
        %v5438 = vlaneseq
        %v5439 = vshrl.u32 %v5438, 7
        %v5440 = vsub.s32 %v5437, %v5439
        %v5441 = vrot.slane %v5433, %v5440
        %v5443 = vunpack.c.l.s4 1966171168
        %v5444 = vunpack.c.0.s8 %v5443
        %v5445 = vlaneseq
        %v5446 = vshrl.u32 %v5445, 7
        %v5447 = vsub.s32 %v5444, %v5446
        %v5448 = vrot.slane %v5434, %v5447
        %v5449 = vcombine.low %v5441, %v5448
        %v5450 = vcombine.low %v3893, %v3903
        %v5451 = vcombine.low %v3913, %v3923
        %v5452 = vcombine.low %v3933, %v3943
        %v5453 = vcombine.low %v3953, %v3963
        %v5455 = vunpack.c.l.s4 1966171168
        %v5456 = vunpack.c.0.s8 %v5455
        %v5457 = vlaneseq
        %v5458 = vshrl.u32 %v5457, 7
        %v5459 = vsub.s32 %v5456, %v5458
        %v5460 = vrot.slane %v5450, %v5459
        %v5462 = vunpack.c.l.s4 1966171168
        %v5463 = vunpack.c.0.s8 %v5462
        %v5464 = vlaneseq
        %v5465 = vshrl.u32 %v5464, 7
        %v5466 = vsub.s32 %v5463, %v5465
        %v5467 = vrot.slane %v5451, %v5466
        %v5469 = vunpack.c.l.s4 1966171168
        %v5470 = vunpack.c.0.s8 %v5469
        %v5471 = vlaneseq
        %v5472 = vshrl.u32 %v5471, 7
        %v5473 = vsub.s32 %v5470, %v5472
        %v5474 = vrot.slane %v5452, %v5473
        %v5476 = vunpack.c.l.s4 1966171168
        %v5477 = vunpack.c.0.s8 %v5476
        %v5478 = vlaneseq
        %v5479 = vshrl.u32 %v5478, 7
        %v5480 = vsub.s32 %v5477, %v5479
        %v5481 = vrot.slane %v5453, %v5480
        %v5482 = vcombine.low %v5460, %v5467
        %v5483 = vcombine.low %v5474, %v5481
        %v5485 = vunpack.c.l.s4 1966171168
        %v5486 = vunpack.c.0.s8 %v5485
        %v5487 = vlaneseq
        %v5488 = vshrl.u32 %v5487, 7
        %v5489 = vsub.s32 %v5486, %v5488
        %v5490 = vrot.slane %v5482, %v5489
        %v5492 = vunpack.c.l.s4 1966171168
        %v5493 = vunpack.c.0.s8 %v5492
        %v5494 = vlaneseq
        %v5495 = vshrl.u32 %v5494, 7
        %v5496 = vsub.s32 %v5493, %v5495
        %v5497 = vrot.slane %v5483, %v5496
        %v5498 = vcombine.low %v5490, %v5497
        %v5499 = vcombine.low %v3973, %v3983
        %v5500 = vcombine.low %v3993, %v4003
        %v5501 = vcombine.low %v4013, %v4023
        %v5502 = vcombine.low %v4033, %v4043
        %v5504 = vunpack.c.l.s4 1966171168
        %v5505 = vunpack.c.0.s8 %v5504
        %v5506 = vlaneseq
        %v5507 = vshrl.u32 %v5506, 7
        %v5508 = vsub.s32 %v5505, %v5507
        %v5509 = vrot.slane %v5499, %v5508
        %v5511 = vunpack.c.l.s4 1966171168
        %v5512 = vunpack.c.0.s8 %v5511
        %v5513 = vlaneseq
        %v5514 = vshrl.u32 %v5513, 7
        %v5515 = vsub.s32 %v5512, %v5514
        %v5516 = vrot.slane %v5500, %v5515
        %v5518 = vunpack.c.l.s4 1966171168
        %v5519 = vunpack.c.0.s8 %v5518
        %v5520 = vlaneseq
        %v5521 = vshrl.u32 %v5520, 7
        %v5522 = vsub.s32 %v5519, %v5521
        %v5523 = vrot.slane %v5501, %v5522
        %v5525 = vunpack.c.l.s4 1966171168
        %v5526 = vunpack.c.0.s8 %v5525
        %v5527 = vlaneseq
        %v5528 = vshrl.u32 %v5527, 7
        %v5529 = vsub.s32 %v5526, %v5528
        %v5530 = vrot.slane %v5502, %v5529
        %v5531 = vcombine.low %v5509, %v5516
        %v5532 = vcombine.low %v5523, %v5530
        %v5534 = vunpack.c.l.s4 1966171168
        %v5535 = vunpack.c.0.s8 %v5534
        %v5536 = vlaneseq
        %v5537 = vshrl.u32 %v5536, 7
        %v5538 = vsub.s32 %v5535, %v5537
        %v5539 = vrot.slane %v5531, %v5538
        %v5541 = vunpack.c.l.s4 1966171168
        %v5542 = vunpack.c.0.s8 %v5541
        %v5543 = vlaneseq
        %v5544 = vshrl.u32 %v5543, 7
        %v5545 = vsub.s32 %v5542, %v5544
        %v5546 = vrot.slane %v5532, %v5545
        %v5547 = vcombine.low %v5539, %v5546
        %v5548 = vcombine.low %v4053, %v4063
        %v5550 = vunpack.c.l.s4 1966171168
        %v5551 = vunpack.c.0.s8 %v5550
        %v5552 = vlaneseq
        %v5553 = vshrl.u32 %v5552, 7
        %v5554 = vsub.s32 %v5551, %v5553
        %v5555 = vrot.slane %v5548, %v5554
        %v5557 = vunpack.c.l.s4 1966171168
        %v5558 = vunpack.c.0.s8 %v5557
        %v5559 = vlaneseq
        %v5560 = vshrl.u32 %v5559, 7
        %v5561 = vsub.s32 %v5558, %v5560
        %v5562 = vrot.slane %v5555, %v5561
        %5590 = vst [vmem:[%s255] ss:$2 sm:$0xff] %v4322
        %s5591 = scalar_lea.vmem %s255, 16 [#allocation7]
        %5592 = vst [vmem:[%s5591] ss:$2 sm:$0xff] %v4371
        %s5593 = scalar_lea.vmem %s255, 32 [#allocation7]
        %5594 = vst [vmem:[%s5593] ss:$2 sm:$0xff] %v4420
        %s5595 = scalar_lea.vmem %s255, 48 [#allocation7]
        %5596 = vst [vmem:[%s5595] ss:$2 sm:$0xff] %v4469
        %s5597 = scalar_lea.vmem %s255, 64 [#allocation7]
        %5598 = vst [vmem:[%s5597] ss:$2 sm:$0xff] %v4518
        %s5599 = scalar_lea.vmem %s255, 80 [#allocation7]
        %5600 = vst [vmem:[%s5599] ss:$2 sm:$0xff] %v4567
        %s5601 = scalar_lea.vmem %s255, 96 [#allocation7]
        %5602 = vst [vmem:[%s5601] ss:$2 sm:$0xff] %v4616
        %s5603 = scalar_lea.vmem %s255, 112 [#allocation7]
        %5604 = vst [vmem:[%s5603] ss:$2 sm:$0xff] %v4665
        %s5605 = scalar_lea.vmem %s255, 128 [#allocation7]
        %5606 = vst [vmem:[%s5605] ss:$2 sm:$0xff] %v4714
        %s5607 = scalar_lea.vmem %s255, 144 [#allocation7]
        %5608 = vst [vmem:[%s5607] ss:$2 sm:$0xff] %v4763
        %s5609 = scalar_lea.vmem %s255, 160 [#allocation7]
        %5610 = vst [vmem:[%s5609] ss:$2 sm:$0xff] %v4812
        %s5611 = scalar_lea.vmem %s255, 176 [#allocation7]
        %5612 = vst [vmem:[%s5611] ss:$2 sm:$0xff] %v4861
        %s5613 = scalar_lea.vmem %s255, 192 [#allocation7]
        %5614 = vst [vmem:[%s5613] ss:$2 sm:$0xff] %v4910
        %s5615 = scalar_lea.vmem %s255, 208 [#allocation7]
        %5616 = vst [vmem:[%s5615] ss:$2 sm:$0xff] %v4959
        %s5617 = scalar_lea.vmem %s255, 224 [#allocation7]
        %5618 = vst [vmem:[%s5617] ss:$2 sm:$0xff] %v5008
        %s5619 = scalar_lea.vmem %s255, 240 [#allocation7]
        %5620 = vst [vmem:[%s5619] ss:$2 sm:$0xff] %v5057
        %s5621 = scalar_lea.vmem %s255, 256 [#allocation7]
        %5622 = vst [vmem:[%s5621] ss:$2 sm:$0xff] %v5106
        %s5623 = scalar_lea.vmem %s255, 272 [#allocation7]
        %5624 = vst [vmem:[%s5623] ss:$2 sm:$0xff] %v5155
        %s5625 = scalar_lea.vmem %s255, 288 [#allocation7]
        %5626 = vst [vmem:[%s5625] ss:$2 sm:$0xff] %v5204
        %s5627 = scalar_lea.vmem %s255, 304 [#allocation7]
        %5628 = vst [vmem:[%s5627] ss:$2 sm:$0xff] %v5253
        %s5629 = scalar_lea.vmem %s255, 320 [#allocation7]
        %5630 = vst [vmem:[%s5629] ss:$2 sm:$0xff] %v5302
        %s5631 = scalar_lea.vmem %s255, 336 [#allocation7]
        %5632 = vst [vmem:[%s5631] ss:$2 sm:$0xff] %v5351
        %s5633 = scalar_lea.vmem %s255, 352 [#allocation7]
        %5634 = vst [vmem:[%s5633] ss:$2 sm:$0xff] %v5400
        %s5635 = scalar_lea.vmem %s255, 368 [#allocation7]
        %5636 = vst [vmem:[%s5635] ss:$2 sm:$0xff] %v5449
        %s5637 = scalar_lea.vmem %s255, 384 [#allocation7]
        %5638 = vst [vmem:[%s5637] ss:$2 sm:$0xff] %v5498
        %s5639 = scalar_lea.vmem %s255, 400 [#allocation7]
        %5640 = vst [vmem:[%s5639] ss:$2 sm:$0xff] %v5547
        %v5641 = vlaneseq
        %vm5642 = vcmp.ge.s32.totalorder %v5641, 0
        %vm5643 = vcmp.lt.s32.totalorder %v5641, 256
        %vm5644 = vmand %vm5642, %vm5643
        %s5645 = scalar_lea.vmem %s255, 416 [#allocation7]
        %5646 = vst.msk [vmem:[%s5645] ss:$2 sm:$0x3] %vm5644, %v5562
        %v5647 = vld [vmem:[%s226] sm:$0xff]
        %v5648 = vld [vmem:[%s226 + $0x8] sm:$0xff]
        %v5649 = vld [vmem:[%s226 + $0x10] sm:$0xff]
        %v5650 = vld [vmem:[%s226 + $0x18] sm:$0xff]
        %v5651 = vld [vmem:[%s226 + $0x20] sm:$0xff]
        %v5652 = vld [vmem:[%s226 + $0x28] sm:$0xff]
        %v5653 = vld [vmem:[%s226 + $0x30] sm:$0xff]
        %v5654 = vld [vmem:[%s226 + $0x38] sm:$0xff]
        %v5655 = vld [vmem:[%s226 + $0x40] sm:$0xff]
        %v5656 = vld [vmem:[%s226 + $0x48] sm:$0xff]
        %v5657 = vld [vmem:[%s226 + $0x50] sm:$0xff]
        %v5658 = vld [vmem:[%s226 + $0x58] sm:$0xff]
        %v5659 = vld [vmem:[%s226 + $0x60] sm:$0xff]
        %v5660 = vld [vmem:[%s226 + $0x68] sm:$0xff]
        %v5661 = vld [vmem:[%s226 + $0x70] sm:$0xff]
        %v5662 = vld [vmem:[%s226 + $0x78] sm:$0xff]
        %v5663 = vld [vmem:[%s226 + $0x80] sm:$0xff]
        %v5664 = vld [vmem:[%s226 + $0x88] sm:$0xff]
        %v5665 = vld [vmem:[%s226 + $0x90] sm:$0xff]
        %v5666 = vld [vmem:[%s226 + $0x98] sm:$0xff]
        %v5667 = vld [vmem:[%s226 + $0xa0] sm:$0xff]
        %v5668 = vld [vmem:[%s226 + $0xa8] sm:$0xff]
        %v5669 = vld [vmem:[%s226 + $0xb0] sm:$0xff]
        %v5670 = vld [vmem:[%s226 + $0xb8] sm:$0xff]
        %v5671 = vld [vmem:[%s226 + $0xc0] sm:$0xff]
        %v5672 = vld [vmem:[%s226 + $0xc8] sm:$0xff]
        %v5673 = vld [vmem:[%s226 + $0xd0] sm:$0xff]
        %v5674 = vld [vmem:[%s226 + $0xd8] sm:$0xff]
        %v5675 = vld [vmem:[%s226 + $0xe0] sm:$0xff]
        %v5676 = vld [vmem:[%s226 + $0xe8] sm:$0xff]
        %v5677 = vld [vmem:[%s226 + $0xf0] sm:$0xff]
        %v5678 = vld [vmem:[%s226 + $0xf8] sm:$0xff]
        %v5679 = vld [vmem:[%s226 + $0x100] sm:$0xff]
        %v5680 = vld [vmem:[%s226 + $0x108] sm:$0xff]
        %v5681 = vld [vmem:[%s226 + $0x110] sm:$0xff]
        %v5682 = vld [vmem:[%s226 + $0x118] sm:$0xff]
        %v5683 = vld [vmem:[%s226 + $0x120] sm:$0xff]
        %v5684 = vld [vmem:[%s226 + $0x128] sm:$0xff]
        %v5685 = vld [vmem:[%s226 + $0x130] sm:$0xff]
        %v5686 = vld [vmem:[%s226 + $0x138] sm:$0xff]
        %v5687 = vld [vmem:[%s226 + $0x140] sm:$0xff]
        %v5688 = vld [vmem:[%s226 + $0x148] sm:$0xff]
        %v5689 = vld [vmem:[%s226 + $0x150] sm:$0xff]
        %v5690 = vld [vmem:[%s226 + $0x158] sm:$0xff]
        %v5691 = vld [vmem:[%s226 + $0x160] sm:$0xff]
        %v5692 = vld [vmem:[%s226 + $0x168] sm:$0xff]
        %v5693 = vld [vmem:[%s226 + $0x170] sm:$0xff]
        %v5694 = vld [vmem:[%s226 + $0x178] sm:$0xff]
        %v5695 = vld [vmem:[%s226 + $0x180] sm:$0xff]
        %v5696 = vld [vmem:[%s226 + $0x188] sm:$0xff]
        %v5697 = vld [vmem:[%s226 + $0x190] sm:$0xff]
        %v5698 = vld [vmem:[%s226 + $0x198] sm:$0xff]
        %v5699 = vld [vmem:[%s226 + $0x1a0] sm:$0xff]
        %v5700 = vld [vmem:[%s226 + $0x1a8] sm:$0xff]
        %v5701 = vld [vmem:[%s226 + $0x1b0] sm:$0xff]
        %v5702 = vld [vmem:[%s226 + $0x1b8] sm:$0xff]
        %v5703 = vld [vmem:[%s226 + $0x1c0] sm:$0xff]
        %v5704 = vld [vmem:[%s226 + $0x1c8] sm:$0xff]
        %v5705 = vld [vmem:[%s226 + $0x1d0] sm:$0xff]
        %v5706 = vld [vmem:[%s226 + $0x1d8] sm:$0xff]
        %v5707 = vld [vmem:[%s226 + $0x1e0] sm:$0xff]
        %v5708 = vld [vmem:[%s226 + $0x1e8] sm:$0xff]
        %v5709 = vld [vmem:[%s226 + $0x1f0] sm:$0xff]
        %v5710 = vld [vmem:[%s226 + $0x1f8] sm:$0xff]
        %v5711 = vld [vmem:[%s226 + $0x200] sm:$0xff]
        %v5712 = vld [vmem:[%s226 + $0x208] sm:$0xff]
        %v5713 = vld [vmem:[%s226 + $0x210] sm:$0xff]
        %v5714 = vld [vmem:[%s226 + $0x218] sm:$0xff]
        %v5715 = vld [vmem:[%s226 + $0x220] sm:$0xff]
        %v5716 = vld [vmem:[%s226 + $0x228] sm:$0xff]
        %v5717 = vld [vmem:[%s226 + $0x230] sm:$0xff]
        %v5718 = vld [vmem:[%s226 + $0x238] sm:$0xff]
        %v5719 = vld [vmem:[%s226 + $0x240] sm:$0xff]
        %v5720 = vld [vmem:[%s226 + $0x248] sm:$0xff]
        %v5721 = vld [vmem:[%s226 + $0x250] sm:$0xff]
        %v5722 = vld [vmem:[%s226 + $0x258] sm:$0xff]
        %v5723 = vld [vmem:[%s226 + $0x260] sm:$0xff]
        %v5724 = vld [vmem:[%s226 + $0x268] sm:$0xff]
        %v5725 = vld [vmem:[%s226 + $0x270] sm:$0xff]
        %v5726 = vld [vmem:[%s226 + $0x278] sm:$0xff]
        %v5727 = vld [vmem:[%s226 + $0x280] sm:$0xff]
        %v5728 = vld [vmem:[%s226 + $0x288] sm:$0xff]
        %v5729 = vld [vmem:[%s226 + $0x290] sm:$0xff]
        %v5730 = vld [vmem:[%s226 + $0x298] sm:$0xff]
        %v5731 = vld [vmem:[%s226 + $0x2a0] sm:$0xff]
        %v5732 = vld [vmem:[%s226 + $0x2a8] sm:$0xff]
        %v5733 = vld [vmem:[%s226 + $0x2b0] sm:$0xff]
        %v5734 = vld [vmem:[%s226 + $0x2b8] sm:$0xff]
        %v5735 = vld [vmem:[%s226 + $0x2c0] sm:$0xff]
        %v5736 = vld [vmem:[%s226 + $0x2c8] sm:$0xff]
        %v5737 = vld [vmem:[%s226 + $0x2d0] sm:$0xff]
        %v5738 = vld [vmem:[%s226 + $0x2d8] sm:$0xff]
        %v5739 = vld [vmem:[%s226 + $0x2e0] sm:$0xff]
        %v5740 = vld [vmem:[%s226 + $0x2e8] sm:$0xff]
        %v5741 = vld [vmem:[%s226 + $0x2f0] sm:$0xff]
        %v5742 = vld [vmem:[%s226 + $0x2f8] sm:$0xff]
        %v5743 = vld [vmem:[%s226 + $0x300] sm:$0xff]
        %v5744 = vld [vmem:[%s226 + $0x308] sm:$0xff]
        %v5745 = vld [vmem:[%s226 + $0x310] sm:$0xff]
        %v5746 = vld [vmem:[%s226 + $0x318] sm:$0xff]
        %v5747 = vld [vmem:[%s226 + $0x320] sm:$0xff]
        %v5748 = vld [vmem:[%s226 + $0x328] sm:$0xff]
        %v5749 = vld [vmem:[%s226 + $0x330] sm:$0xff]
        %v5750 = vld [vmem:[%s226 + $0x338] sm:$0xff]
        %v5751 = vld [vmem:[%s226 + $0x340] sm:$0xff]
        %v5752 = vld [vmem:[%s226 + $0x348] sm:$0xff]
        %v5753 = vld [vmem:[%s226 + $0x350] sm:$0xff]
        %v5754 = vld [vmem:[%s226 + $0x358] sm:$0xff]
        %v5755 = vld [vmem:[%s226 + $0x360] sm:$0xff]
        %v5756 = vld [vmem:[%s226 + $0x368] sm:$0xff]
        %v5757 = vld [vmem:[%s226 + $0x370] sm:$0xff]
        %v5758 = vld [vmem:[%s226 + $0x378] sm:$0xff]
        %v5759 = vld [vmem:[%s226 + $0x380] sm:$0xff]
        %v5760 = vld [vmem:[%s226 + $0x388] sm:$0xff]
        %v5761 = vld [vmem:[%s226 + $0x390] sm:$0xff]
        %v5762 = vld [vmem:[%s226 + $0x398] sm:$0xff]
        %v5763 = vld [vmem:[%s226 + $0x3a0] sm:$0xff]
        %v5764 = vld [vmem:[%s226 + $0x3a8] sm:$0xff]
        %v5765 = vld [vmem:[%s226 + $0x3b0] sm:$0xff]
        %v5766 = vld [vmem:[%s226 + $0x3b8] sm:$0xff]
        %v5767 = vld [vmem:[%s226 + $0x3c0] sm:$0xff]
        %v5768 = vld [vmem:[%s226 + $0x3c8] sm:$0xff]
        %v5769 = vld [vmem:[%s226 + $0x3d0] sm:$0xff]
        %v5770 = vld [vmem:[%s226 + $0x3d8] sm:$0xff]
        %v5771 = vld [vmem:[%s226 + $0x3e0] sm:$0xff]
        %v5772 = vld [vmem:[%s226 + $0x3e8] sm:$0xff]
        %v5773 = vld [vmem:[%s226 + $0x3f0] sm:$0xff]
        %v5774 = vld [vmem:[%s226 + $0x3f8] sm:$0xff]
        %v5775 = vld [vmem:[%s226 + $0x400] sm:$0xff]
        %v5776 = vld [vmem:[%s226 + $0x408] sm:$0xff]
        %v5777 = vld [vmem:[%s226 + $0x410] sm:$0xff]
        %v5778 = vld [vmem:[%s226 + $0x418] sm:$0xff]
        %v5779 = vld [vmem:[%s226 + $0x420] sm:$0xff]
        %v5780 = vld [vmem:[%s226 + $0x428] sm:$0xff]
        %v5781 = vld [vmem:[%s226 + $0x430] sm:$0xff]
        %v5782 = vld [vmem:[%s226 + $0x438] sm:$0xff]
        %v5783 = vld [vmem:[%s226 + $0x440] sm:$0xff]
        %v5784 = vld [vmem:[%s226 + $0x448] sm:$0xff]
        %v5785 = vld [vmem:[%s226 + $0x450] sm:$0xff]
        %v5786 = vld [vmem:[%s226 + $0x458] sm:$0xff]
        %v5787 = vld [vmem:[%s226 + $0x460] sm:$0xff]
        %v5788 = vld [vmem:[%s226 + $0x468] sm:$0xff]
        %v5789 = vld [vmem:[%s226 + $0x470] sm:$0xff]
        %v5790 = vld [vmem:[%s226 + $0x478] sm:$0xff]
        %v5791 = vld [vmem:[%s226 + $0x480] sm:$0xff]
        %v5792 = vld [vmem:[%s226 + $0x488] sm:$0xff]
        %v5793 = vld [vmem:[%s226 + $0x490] sm:$0xff]
        %v5794 = vld [vmem:[%s226 + $0x498] sm:$0xff]
        %v5795 = vld [vmem:[%s226 + $0x4a0] sm:$0xff]
        %v5796 = vld [vmem:[%s226 + $0x4a8] sm:$0xff]
        %v5797 = vld [vmem:[%s226 + $0x4b0] sm:$0xff]
        %v5798 = vld [vmem:[%s226 + $0x4b8] sm:$0xff]
        %v5799 = vld [vmem:[%s226 + $0x4c0] sm:$0xff]
        %v5800 = vld [vmem:[%s226 + $0x4c8] sm:$0xff]
        %v5801 = vld [vmem:[%s226 + $0x4d0] sm:$0xff]
        %v5802 = vld [vmem:[%s226 + $0x4d8] sm:$0xff]
        %v5803 = vld [vmem:[%s226 + $0x4e0] sm:$0xff]
        %v5804 = vld [vmem:[%s226 + $0x4e8] sm:$0xff]
        %v5805 = vld [vmem:[%s226 + $0x4f0] sm:$0xff]
        %v5806 = vld [vmem:[%s226 + $0x4f8] sm:$0xff]
        %v5807 = vld [vmem:[%s226 + $0x500] sm:$0xff]
        %v5808 = vld [vmem:[%s226 + $0x508] sm:$0xff]
        %v5809 = vld [vmem:[%s226 + $0x510] sm:$0xff]
        %v5810 = vld [vmem:[%s226 + $0x518] sm:$0xff]
        %v5811 = vld [vmem:[%s226 + $0x520] sm:$0xff]
        %v5812 = vld [vmem:[%s226 + $0x528] sm:$0xff]
        %v5813 = vld [vmem:[%s226 + $0x530] sm:$0xff]
        %v5814 = vld [vmem:[%s226 + $0x538] sm:$0xff]
        %v5815 = vld [vmem:[%s226 + $0x540] sm:$0xff]
        %v5816 = vld [vmem:[%s226 + $0x548] sm:$0xff]
        %v5817 = vld [vmem:[%s226 + $0x550] sm:$0xff]
        %v5818 = vld [vmem:[%s226 + $0x558] sm:$0xff]
        %v5819 = vld [vmem:[%s226 + $0x560] sm:$0xff]
        %v5820 = vld [vmem:[%s226 + $0x568] sm:$0xff]
        %v5821 = vld [vmem:[%s226 + $0x570] sm:$0xff]
        %v5822 = vld [vmem:[%s226 + $0x578] sm:$0xff]
        %v5823 = vld [vmem:[%s226 + $0x580] sm:$0xff]
        %v5824 = vld [vmem:[%s226 + $0x588] sm:$0xff]
        %v5825 = vld [vmem:[%s226 + $0x590] sm:$0xff]
        %v5826 = vld [vmem:[%s226 + $0x598] sm:$0xff]
        %v5827 = vld [vmem:[%s226 + $0x5a0] sm:$0xff]
        %v5828 = vld [vmem:[%s226 + $0x5a8] sm:$0xff]
        %v5829 = vld [vmem:[%s226 + $0x5b0] sm:$0xff]
        %v5830 = vld [vmem:[%s226 + $0x5b8] sm:$0xff]
        %v5831 = vld [vmem:[%s226 + $0x5c0] sm:$0xff]
        %v5832 = vld [vmem:[%s226 + $0x5c8] sm:$0xff]
        %v5833 = vld [vmem:[%s226 + $0x5d0] sm:$0xff]
        %v5834 = vld [vmem:[%s226 + $0x5d8] sm:$0xff]
        %v5835 = vld [vmem:[%s226 + $0x5e0] sm:$0xff]
        %v5836 = vld [vmem:[%s226 + $0x5e8] sm:$0xff]
        %v5837 = vld [vmem:[%s226 + $0x5f0] sm:$0xff]
        %v5838 = vld [vmem:[%s226 + $0x5f8] sm:$0xff]
        %v5839 = vld [vmem:[%s226 + $0x600] sm:$0xff]
        %v5840 = vld [vmem:[%s226 + $0x608] sm:$0xff]
        %v5841 = vld [vmem:[%s226 + $0x610] sm:$0xff]
        %v5842 = vld [vmem:[%s226 + $0x618] sm:$0xff]
        %v5843 = vld [vmem:[%s226 + $0x620] sm:$0xff]
        %v5844 = vld [vmem:[%s226 + $0x628] sm:$0xff]
        %v5845 = vld [vmem:[%s226 + $0x630] sm:$0xff]
        %v5846 = vld [vmem:[%s226 + $0x638] sm:$0xff]
        %v5847 = vld [vmem:[%s226 + $0x640] sm:$0xff]
        %v5848 = vld [vmem:[%s226 + $0x648] sm:$0xff]
        %v5849 = vld [vmem:[%s226 + $0x650] sm:$0xff]
        %v5850 = vld [vmem:[%s226 + $0x658] sm:$0xff]
        %v5851 = vld [vmem:[%s226 + $0x660] sm:$0xff]
        %v5852 = vld [vmem:[%s226 + $0x668] sm:$0xff]
        %v5853 = vld [vmem:[%s226 + $0x670] sm:$0xff]
        %v5854 = vld [vmem:[%s226 + $0x678] sm:$0xff]
        %v5855 = vld [vmem:[%s226 + $0x680] sm:$0xff]
        %v5856 = vld [vmem:[%s226 + $0x688] sm:$0xff]
        %v5857 = vld [vmem:[%s226 + $0x690] sm:$0xff]
        %v5858 = vld [vmem:[%s226 + $0x698] sm:$0xff]
        %v5859 = vld [vmem:[%s226 + $0x6a0] sm:$0xff]
        %v5860 = vld [vmem:[%s226 + $0x6a8] sm:$0xff]
        %v5861 = vld [vmem:[%s226 + $0x6b0] sm:$0xff]
        %v5862 = vld [vmem:[%s226 + $0x6b8] sm:$0xff]
        %v5863 = vld [vmem:[%s226 + $0x6c0] sm:$0xff]
        %v5864 = vld [vmem:[%s226 + $0x6c8] sm:$0xff]
        %v5865 = vld [vmem:[%s226 + $0x6d0] sm:$0xff]
        %v5866 = vld [vmem:[%s226 + $0x6d8] sm:$0xff]
        %v5867 = vld [vmem:[%s226 + $0x6e0] sm:$0xff]
        %v5868 = vld [vmem:[%s226 + $0x6e8] sm:$0xff]
        %v5869 = vld [vmem:[%s226 + $0x6f0] sm:$0xff]
        %v5870 = vld [vmem:[%s226 + $0x6f8] sm:$0xff]
        %v5871 = vld [vmem:[%s226 + $0x700] sm:$0xff]
        %v5872 = vld [vmem:[%s226 + $0x708] sm:$0xff]
        %v5873 = vld [vmem:[%s226 + $0x710] sm:$0xff]
        %v5874 = vld [vmem:[%s226 + $0x718] sm:$0xff]
        %v5875 = vld [vmem:[%s226 + $0x720] sm:$0xff]
        %v5876 = vld [vmem:[%s226 + $0x728] sm:$0xff]
        %v5877 = vld [vmem:[%s226 + $0x730] sm:$0xff]
        %v5878 = vld [vmem:[%s226 + $0x738] sm:$0xff]
        %v5879 = vld [vmem:[%s226 + $0x740] sm:$0xff]
        %v5880 = vld [vmem:[%s226 + $0x748] sm:$0xff]
        %v5881 = vld [vmem:[%s226 + $0x750] sm:$0xff]
        %v5882 = vld [vmem:[%s226 + $0x758] sm:$0xff]
        %v5883 = vld [vmem:[%s226 + $0x760] sm:$0xff]
        %v5884 = vld [vmem:[%s226 + $0x768] sm:$0xff]
        %v5885 = vld [vmem:[%s226 + $0x770] sm:$0xff]
        %v5886 = vld [vmem:[%s226 + $0x778] sm:$0xff]
        %v5887 = vld [vmem:[%s226 + $0x780] sm:$0xff]
        %v5888 = vld [vmem:[%s226 + $0x788] sm:$0xff]
        %v5889 = vld [vmem:[%s226 + $0x790] sm:$0xff]
        %v5890 = vld [vmem:[%s226 + $0x798] sm:$0xff]
        %v5891 = vld [vmem:[%s226 + $0x7a0] sm:$0xff]
        %v5892 = vld [vmem:[%s226 + $0x7a8] sm:$0xff]
        %v5893 = vld [vmem:[%s226 + $0x7b0] sm:$0xff]
        %v5894 = vld [vmem:[%s226 + $0x7b8] sm:$0xff]
        %v5895 = vld [vmem:[%s226 + $0x7c0] sm:$0xff]
        %v5896 = vld [vmem:[%s226 + $0x7c8] sm:$0xff]
        %v5897 = vld [vmem:[%s226 + $0x7d0] sm:$0xff]
        %v5898 = vld [vmem:[%s226 + $0x7d8] sm:$0xff]
        %v5899 = vld [vmem:[%s226 + $0x7e0] sm:$0xff]
        %v5900 = vld [vmem:[%s226 + $0x7e8] sm:$0xff]
        %v5901 = vld [vmem:[%s226 + $0x7f0] sm:$0xff]
        %v5902 = vld [vmem:[%s226 + $0x7f8] sm:$0xff]
        %v5903 = vld [vmem:[%s226 + $0x800] sm:$0xff]
        %v5904 = vld [vmem:[%s226 + $0x808] sm:$0xff]
        %v5905 = vld [vmem:[%s226 + $0x810] sm:$0xff]
        %v5906 = vld [vmem:[%s226 + $0x818] sm:$0xff]
        %v5907 = vld [vmem:[%s226 + $0x820] sm:$0xff]
        %v5908 = vld [vmem:[%s226 + $0x828] sm:$0xff]
        %v5909 = vld [vmem:[%s226 + $0x830] sm:$0xff]
        %v5910 = vld [vmem:[%s226 + $0x838] sm:$0xff]
        %v5911 = vld [vmem:[%s226 + $0x840] sm:$0xff]
        %v5912 = vld [vmem:[%s226 + $0x848] sm:$0xff]
        %v5913 = vld [vmem:[%s226 + $0x850] sm:$0xff]
        %v5914 = vld [vmem:[%s226 + $0x858] sm:$0xff]
        %v5915 = vld [vmem:[%s226 + $0x860] sm:$0xff]
        %v5916 = vld [vmem:[%s226 + $0x868] sm:$0xff]
        %v5917 = vld [vmem:[%s226 + $0x870] sm:$0xff]
        %v5918 = vld [vmem:[%s226 + $0x878] sm:$0xff]
        %v5919 = vld [vmem:[%s226 + $0x880] sm:$0xff]
        %v5920 = vld [vmem:[%s226 + $0x888] sm:$0xff]
        %v5921 = vld [vmem:[%s226 + $0x890] sm:$0xff]
        %v5922 = vld [vmem:[%s226 + $0x898] sm:$0xff]
        %v5923 = vld [vmem:[%s226 + $0x8a0] sm:$0xff]
        %v5924 = vld [vmem:[%s226 + $0x8a8] sm:$0xff]
        %v5925 = vld [vmem:[%s226 + $0x8b0] sm:$0xff]
        %v5926 = vld [vmem:[%s226 + $0x8b8] sm:$0xff]
        %v5927 = vld [vmem:[%s226 + $0x8c0] sm:$0xff]
        %v5928 = vld [vmem:[%s226 + $0x8c8] sm:$0xff]
        %v5929 = vld [vmem:[%s226 + $0x8d0] sm:$0xff]
        %v5930 = vld [vmem:[%s226 + $0x8d8] sm:$0xff]
        %v5931 = vld [vmem:[%s226 + $0x8e0] sm:$0xff]
        %v5932 = vld [vmem:[%s226 + $0x8e8] sm:$0xff]
        %v5933 = vld [vmem:[%s226 + $0x8f0] sm:$0xff]
        %v5934 = vld [vmem:[%s226 + $0x8f8] sm:$0xff]
        %v5935 = vld [vmem:[%s226 + $0x900] sm:$0xff]
        %v5936 = vld [vmem:[%s226 + $0x908] sm:$0xff]
        %v5937 = vld [vmem:[%s226 + $0x910] sm:$0xff]
        %v5938 = vld [vmem:[%s226 + $0x918] sm:$0xff]
        %v5939 = vld [vmem:[%s226 + $0x920] sm:$0xff]
        %v5940 = vld [vmem:[%s226 + $0x928] sm:$0xff]
        %v5941 = vld [vmem:[%s226 + $0x930] sm:$0xff]
        %v5942 = vld [vmem:[%s226 + $0x938] sm:$0xff]
        %v5943 = vld [vmem:[%s226 + $0x940] sm:$0xff]
        %v5944 = vld [vmem:[%s226 + $0x948] sm:$0xff]
        %v5945 = vld [vmem:[%s226 + $0x950] sm:$0xff]
        %v5946 = vld [vmem:[%s226 + $0x958] sm:$0xff]
        %v5947 = vld [vmem:[%s226 + $0x960] sm:$0xff]
        %v5948 = vld [vmem:[%s226 + $0x968] sm:$0xff]
        %v5949 = vld [vmem:[%s226 + $0x970] sm:$0xff]
        %v5950 = vld [vmem:[%s226 + $0x978] sm:$0xff]
        %v5951 = vld [vmem:[%s226 + $0x980] sm:$0xff]
        %v5952 = vld [vmem:[%s226 + $0x988] sm:$0xff]
        %v5953 = vld [vmem:[%s226 + $0x990] sm:$0xff]
        %v5954 = vld [vmem:[%s226 + $0x998] sm:$0xff]
        %v5955 = vld [vmem:[%s226 + $0x9a0] sm:$0xff]
        %v5956 = vld [vmem:[%s226 + $0x9a8] sm:$0xff]
        %v5957 = vld [vmem:[%s226 + $0x9b0] sm:$0xff]
        %v5958 = vld [vmem:[%s226 + $0x9b8] sm:$0xff]
        %v5959 = vld [vmem:[%s226 + $0x9c0] sm:$0xff]
        %v5960 = vld [vmem:[%s226 + $0x9c8] sm:$0xff]
        %v5961 = vld [vmem:[%s226 + $0x9d0] sm:$0xff]
        %v5962 = vld [vmem:[%s226 + $0x9d8] sm:$0xff]
        %v5963 = vld [vmem:[%s226 + $0x9e0] sm:$0xff]
        %v5964 = vld [vmem:[%s226 + $0x9e8] sm:$0xff]
        %v5965 = vld [vmem:[%s226 + $0x9f0] sm:$0xff]
        %v5966 = vld [vmem:[%s226 + $0x9f8] sm:$0xff]
        %v5967 = vld [vmem:[%s226 + $0xa00] sm:$0xff]
        %v5968 = vld [vmem:[%s226 + $0xa08] sm:$0xff]
        %v5969 = vld [vmem:[%s226 + $0xa10] sm:$0xff]
        %v5970 = vld [vmem:[%s226 + $0xa18] sm:$0xff]
        %v5971 = vld [vmem:[%s226 + $0xa20] sm:$0xff]
        %v5972 = vld [vmem:[%s226 + $0xa28] sm:$0xff]
        %v5973 = vld [vmem:[%s226 + $0xa30] sm:$0xff]
        %v5974 = vld [vmem:[%s226 + $0xa38] sm:$0xff]
        %v5975 = vld [vmem:[%s226 + $0xa40] sm:$0xff]
        %v5976 = vld [vmem:[%s226 + $0xa48] sm:$0xff]
        %v5977 = vld [vmem:[%s226 + $0xa50] sm:$0xff]
        %v5978 = vld [vmem:[%s226 + $0xa58] sm:$0xff]
        %v5979 = vld [vmem:[%s226 + $0xa60] sm:$0xff]
        %v5980 = vld [vmem:[%s226 + $0xa68] sm:$0xff]
        %v5981 = vld [vmem:[%s226 + $0xa70] sm:$0xff]
        %v5982 = vld [vmem:[%s226 + $0xa78] sm:$0xff]
        %v5983 = vld [vmem:[%s226 + $0xa80] sm:$0xff]
        %v5984 = vld [vmem:[%s226 + $0xa88] sm:$0xff]
        %v5985 = vld [vmem:[%s226 + $0xa90] sm:$0xff]
        %v5986 = vld [vmem:[%s226 + $0xa98] sm:$0xff]
        %v5987 = vld [vmem:[%s226 + $0xaa0] sm:$0xff]
        %v5988 = vld [vmem:[%s226 + $0xaa8] sm:$0xff]
        %v5989 = vld [vmem:[%s226 + $0xab0] sm:$0xff]
        %v5990 = vld [vmem:[%s226 + $0xab8] sm:$0xff]
        %v5991 = vld [vmem:[%s226 + $0xac0] sm:$0xff]
        %v5992 = vld [vmem:[%s226 + $0xac8] sm:$0xff]
        %v5993 = vld [vmem:[%s226 + $0xad0] sm:$0xff]
        %v5994 = vld [vmem:[%s226 + $0xad8] sm:$0xff]
        %v5995 = vld [vmem:[%s226 + $0xae0] sm:$0xff]
        %v5996 = vld [vmem:[%s226 + $0xae8] sm:$0xff]
        %v5997 = vld [vmem:[%s226 + $0xaf0] sm:$0xff]
        %v5998 = vld [vmem:[%s226 + $0xaf8] sm:$0xff]
        %v5999 = vld [vmem:[%s226 + $0xb00] sm:$0xff]
        %v6000 = vld [vmem:[%s226 + $0xb08] sm:$0xff]
        %v6001 = vld [vmem:[%s226 + $0xb10] sm:$0xff]
        %v6002 = vld [vmem:[%s226 + $0xb18] sm:$0xff]
        %v6003 = vld [vmem:[%s226 + $0xb20] sm:$0xff]
        %v6004 = vld [vmem:[%s226 + $0xb28] sm:$0xff]
        %v6005 = vld [vmem:[%s226 + $0xb30] sm:$0xff]
        %v6006 = vld [vmem:[%s226 + $0xb38] sm:$0xff]
        %v6007 = vld [vmem:[%s226 + $0xb40] sm:$0xff]
        %v6008 = vld [vmem:[%s226 + $0xb48] sm:$0xff]
        %v6009 = vld [vmem:[%s226 + $0xb50] sm:$0xff]
        %v6010 = vld [vmem:[%s226 + $0xb58] sm:$0xff]
        %v6011 = vld [vmem:[%s226 + $0xb60] sm:$0xff]
        %v6012 = vld [vmem:[%s226 + $0xb68] sm:$0xff]
        %v6013 = vld [vmem:[%s226 + $0xb70] sm:$0xff]
        %v6014 = vld [vmem:[%s226 + $0xb78] sm:$0xff]
        %v6015 = vld [vmem:[%s226 + $0xb80] sm:$0xff]
        %v6016 = vld [vmem:[%s226 + $0xb88] sm:$0xff]
        %v6017 = vld [vmem:[%s226 + $0xb90] sm:$0xff]
        %v6018 = vld [vmem:[%s226 + $0xb98] sm:$0xff]
        %v6019 = vld [vmem:[%s226 + $0xba0] sm:$0xff]
        %v6020 = vld [vmem:[%s226 + $0xba8] sm:$0xff]
        %v6021 = vld [vmem:[%s226 + $0xbb0] sm:$0xff]
        %v6022 = vld [vmem:[%s226 + $0xbb8] sm:$0xff]
        %v6023 = vld [vmem:[%s226 + $0xbc0] sm:$0xff]
        %v6024 = vld [vmem:[%s226 + $0xbc8] sm:$0xff]
        %v6025 = vld [vmem:[%s226 + $0xbd0] sm:$0xff]
        %v6026 = vld [vmem:[%s226 + $0xbd8] sm:$0xff]
        %v6027 = vld [vmem:[%s226 + $0xbe0] sm:$0xff]
        %v6028 = vld [vmem:[%s226 + $0xbe8] sm:$0xff]
        %v6029 = vld [vmem:[%s226 + $0xbf0] sm:$0xff]
        %v6030 = vld [vmem:[%s226 + $0xbf8] sm:$0xff]
        %v6031 = vld [vmem:[%s226 + $0xc00] sm:$0xff]
        %v6032 = vld [vmem:[%s226 + $0xc08] sm:$0xff]
        %v6033 = vld [vmem:[%s226 + $0xc10] sm:$0xff]
        %v6034 = vld [vmem:[%s226 + $0xc18] sm:$0xff]
        %v6035 = vld [vmem:[%s226 + $0xc20] sm:$0xff]
        %v6036 = vld [vmem:[%s226 + $0xc28] sm:$0xff]
        %v6037 = vld [vmem:[%s226 + $0xc30] sm:$0xff]
        %v6038 = vld [vmem:[%s226 + $0xc38] sm:$0xff]
        %v6039 = vld [vmem:[%s226 + $0xc40] sm:$0xff]
        %v6040 = vld [vmem:[%s226 + $0xc48] sm:$0xff]
        %v6041 = vld [vmem:[%s226 + $0xc50] sm:$0xff]
        %v6042 = vld [vmem:[%s226 + $0xc58] sm:$0xff]
        %v6043 = vld [vmem:[%s226 + $0xc60] sm:$0xff]
        %v6044 = vld [vmem:[%s226 + $0xc68] sm:$0xff]
        %v6045 = vld [vmem:[%s226 + $0xc70] sm:$0xff]
        %v6046 = vld [vmem:[%s226 + $0xc78] sm:$0xff]
        %v6047 = vld [vmem:[%s226 + $0xc80] sm:$0xff]
        %v6048 = vld [vmem:[%s226 + $0xc88] sm:$0xff]
        %v6049 = vld [vmem:[%s226 + $0xc90] sm:$0xff]
        %v6050 = vld [vmem:[%s226 + $0xc98] sm:$0xff]
        %v6051 = vld [vmem:[%s226 + $0xca0] sm:$0xff]
        %v6052 = vld [vmem:[%s226 + $0xca8] sm:$0xff]
        %v6053 = vld [vmem:[%s226 + $0xcb0] sm:$0xff]
        %v6054 = vld [vmem:[%s226 + $0xcb8] sm:$0xff]
        %v6055 = vld [vmem:[%s226 + $0xcc0] sm:$0xff]
        %v6056 = vld [vmem:[%s226 + $0xcc8] sm:$0xff]
        %v6057 = vld [vmem:[%s226 + $0xcd0] sm:$0xff]
        %v6058 = vld [vmem:[%s226 + $0xcd8] sm:$0xff]
        %v6059 = vld [vmem:[%s226 + $0xce0] sm:$0xff]
        %v6060 = vld [vmem:[%s226 + $0xce8] sm:$0xff]
        %v6061 = vld [vmem:[%s226 + $0xcf0] sm:$0xff]
        %v6062 = vld [vmem:[%s226 + $0xcf8] sm:$0xff]
        %v6063 = vld [vmem:[%s226 + $0xd00] sm:$0xff]
        %v6064 = vld [vmem:[%s226 + $0xd08] sm:$0xff]
        %v6065 = vld [vmem:[%s226 + $0xd10] sm:$0xff]
        %v6066 = vld [vmem:[%s226 + $0xd18] sm:$0xff]
        %v6067 = vld [vmem:[%s226 + $0xd20] sm:$0x1]
        %v6068 = vld [vmem:[%s226 + $0xd28] sm:$0x1]
        %v6069 = vld [vmem:[%s226 + $0xd30] sm:$0x1]
        %v6070 = vld [vmem:[%s226 + $0xd38] sm:$0x1]
        %v6071 = vld [vmem:[%s226 + $0xd40] sm:$0x1]
        %v6072 = vld [vmem:[%s226 + $0xd48] sm:$0x1]
        %v6073 = vld [vmem:[%s226 + $0xd50] sm:$0x1]
        %v6074 = vld [vmem:[%s226 + $0xd58] sm:$0x1]
        %v6075 = vld [vmem:[%s226 + $0xd60] sm:$0x1]
        %v6076 = vld [vmem:[%s226 + $0xd68] sm:$0x1]
        %v6077 = vld [vmem:[%s226 + $0xd70] sm:$0x1]
        %v6078 = vld [vmem:[%s226 + $0xd78] sm:$0x1]
        %v6079 = vld [vmem:[%s226 + $0xd80] sm:$0x1]
        %v6080 = vld [vmem:[%s226 + $0xd88] sm:$0x1]
        %v6081 = vld [vmem:[%s226 + $0xd90] sm:$0x1]
        %v6082 = vld [vmem:[%s226 + $0xd98] sm:$0x1]
        %v6083 = vld [vmem:[%s226 + $0xda0] sm:$0x1]
        %v6084 = vld [vmem:[%s226 + $0xda8] sm:$0x1]
        %v6085 = vld [vmem:[%s226 + $0xdb0] sm:$0x1]
        %v6086 = vld [vmem:[%s226 + $0xdb8] sm:$0x1]
        %v6087 = vld [vmem:[%s226 + $0xdc0] sm:$0x1]
        %v6088 = vld [vmem:[%s226 + $0xdc8] sm:$0x1]
        %v6089 = vld [vmem:[%s226 + $0xdd0] sm:$0x1]
        %v6090 = vld [vmem:[%s226 + $0xdd8] sm:$0x1]
        %v6091 = vld [vmem:[%s226 + $0xde0] sm:$0x1]
        %v6092 = vld [vmem:[%s226 + $0xde8] sm:$0x1]
        %v6093 = vld [vmem:[%s226 + $0xdf0] sm:$0x1]
        %v6094 = vld [vmem:[%s226 + $0xdf8] sm:$0x1]
        %v6095 = vld [vmem:[%s226 + $0xe00] sm:$0x1]
        %v6096 = vld [vmem:[%s226 + $0xe08] sm:$0x1]
        %v6097 = vld [vmem:[%s226 + $0xe10] sm:$0x1]
        %v6098 = vld [vmem:[%s226 + $0xe18] sm:$0x1]
        %v6099 = vld [vmem:[%s226 + $0xe20] sm:$0x1]
        %v6100 = vld [vmem:[%s226 + $0xe28] sm:$0x1]
        %v6101 = vld [vmem:[%s226 + $0xe30] sm:$0x1]
        %v6102 = vld [vmem:[%s226 + $0xe38] sm:$0x1]
        %v6103 = vld [vmem:[%s226 + $0xe40] sm:$0x1]
        %v6104 = vld [vmem:[%s226 + $0xe48] sm:$0x1]
        %v6105 = vld [vmem:[%s226 + $0xe50] sm:$0x1]
        %v6106 = vld [vmem:[%s226 + $0xe58] sm:$0x1]
        %v6107 = vld [vmem:[%s226 + $0xe60] sm:$0x1]
        %v6108 = vld [vmem:[%s226 + $0xe68] sm:$0x1]
        %v6109 = vld [vmem:[%s226 + $0xe70] sm:$0x1]
        %v6110 = vld [vmem:[%s226 + $0xe78] sm:$0x1]
        %v6111 = vld [vmem:[%s226 + $0xe80] sm:$0x1]
        %v6112 = vld [vmem:[%s226 + $0xe88] sm:$0x1]
        %v6113 = vld [vmem:[%s226 + $0xe90] sm:$0x1]
        %v6114 = vld [vmem:[%s226 + $0xe98] sm:$0x1]
        %v6115 = vld [vmem:[%s226 + $0xea0] sm:$0x1]
        %v6116 = vld [vmem:[%s226 + $0xea8] sm:$0x1]
        %v6117 = vld [vmem:[%s226 + $0xeb0] sm:$0x1]
        %v6118 = vld [vmem:[%s226 + $0xeb8] sm:$0x1]
        %v6119 = vld [vmem:[%s226 + $0xec0] sm:$0x1]
        %v6120 = vld [vmem:[%s226 + $0xec8] sm:$0x1]
        %v6121 = vld [vmem:[%s226 + $0xed0] sm:$0x1]
        %v6122 = vld [vmem:[%s226 + $0xed8] sm:$0x1]
        %v6123 = vld [vmem:[%s226 + $0xee0] sm:$0x1]
        %v6124 = vld [vmem:[%s226 + $0xee8] sm:$0x1]
        %v6125 = vld [vmem:[%s226 + $0xef0] sm:$0x1]
        %v6126 = vld [vmem:[%s226 + $0xef8] sm:$0x1]
        %v6127 = vld [vmem:[%s226 + $0xf00] sm:$0x1]
        %v6128 = vld [vmem:[%s226 + $0xf08] sm:$0x1]
        %v6129 = vld [vmem:[%s226 + $0xf10] sm:$0x1]
        %v6130 = vld [vmem:[%s226 + $0xf18] sm:$0x1]
        %v6131 = vld [vmem:[%s226 + $0xf20] sm:$0x1]
        %v6132 = vld [vmem:[%s226 + $0xf28] sm:$0x1]
        %v6133 = vld [vmem:[%s226 + $0xf30] sm:$0x1]
        %v6134 = vld [vmem:[%s226 + $0xf38] sm:$0x1]
        %v6135 = vld [vmem:[%s226 + $0xf40] sm:$0x1]
        %v6136 = vld [vmem:[%s226 + $0xf48] sm:$0x1]
        %v6137 = vld [vmem:[%s226 + $0xf50] sm:$0x1]
        %v6138 = vld [vmem:[%s226 + $0xf58] sm:$0x1]
        %v6139 = vld [vmem:[%s226 + $0xf60] sm:$0x1]
        %v6140 = vld [vmem:[%s226 + $0xf68] sm:$0x1]
        %v6141 = vld [vmem:[%s226 + $0xf70] sm:$0x1]
        %v6142 = vld [vmem:[%s226 + $0xf78] sm:$0x1]
        %v6143 = vld [vmem:[%s226 + $0xf80] sm:$0x1]
        %v6144 = vld [vmem:[%s226 + $0xf88] sm:$0x1]
        %v6145 = vld [vmem:[%s226 + $0xf90] sm:$0x1]
        %v6146 = vld [vmem:[%s226 + $0xf98] sm:$0x1]
        %v6147 = vld [vmem:[%s226 + $0xfa0] sm:$0x1]
        %v6148 = vld [vmem:[%s226 + $0xfa8] sm:$0x1]
        %v6149 = vld [vmem:[%s226 + $0xfb0] sm:$0x1]
        %v6150 = vld [vmem:[%s226 + $0xfb8] sm:$0x1]
        %v6151 = vld [vmem:[%s226 + $0xfc0] sm:$0x1]
        %v6152 = vld [vmem:[%s226 + $0xfc8] sm:$0x1]
        %v6153 = vld [vmem:[%s226 + $0xfd0] sm:$0x1]
        %v6154 = vld [vmem:[%s226 + $0xfd8] sm:$0x1]
        %v6155 = vld [vmem:[%s226 + $0xfe0] sm:$0x1]
        %v6156 = vld [vmem:[%s226 + $0xfe8] sm:$0x1]
        %v6157 = vld [vmem:[%s226 + $0xff0] sm:$0x1]
        %v6158 = vld [vmem:[%s226 + $0xff8] sm:$0x1]
        %v6159 = vld [vmem:[%s226 + $0x1000] sm:$0x1]
        %v6160 = vld [vmem:[%s226 + $0x1008] sm:$0x1]
        %v6161 = vld [vmem:[%s226 + $0x1010] sm:$0x1]
        %v6162 = vld [vmem:[%s226 + $0x1018] sm:$0x1]
        %v6163 = vld [vmem:[%s226 + $0x1020] sm:$0x1]
        %v6164 = vld [vmem:[%s226 + $0x1028] sm:$0x1]
        %v6165 = vld [vmem:[%s226 + $0x1030] sm:$0x1]
        %v6166 = vld [vmem:[%s226 + $0x1038] sm:$0x1]
        %v6167 = vld [vmem:[%s226 + $0x1040] sm:$0x1]
        %v6168 = vld [vmem:[%s226 + $0x1048] sm:$0x1]
        %v6169 = vld [vmem:[%s226 + $0x1050] sm:$0x1]
        %v6170 = vld [vmem:[%s226 + $0x1058] sm:$0x1]
        %v6171 = vld [vmem:[%s226 + $0x1060] sm:$0x1]
        %v6172 = vld [vmem:[%s226 + $0x1068] sm:$0x1]
        %v6173 = vld [vmem:[%s226 + $0x1070] sm:$0x1]
        %v6174 = vld [vmem:[%s226 + $0x1078] sm:$0x1]
        %v6175 = vld [vmem:[%s226 + $0x1080] sm:$0x1]
        %v6176 = vld [vmem:[%s226 + $0x1088] sm:$0x1]
        %v6177 = vld [vmem:[%s226 + $0x1090] sm:$0x1]
        %v6178 = vld [vmem:[%s226 + $0x1098] sm:$0x1]
        %v6179 = vld [vmem:[%s226 + $0x10a0] sm:$0x1]
        %v6180 = vld [vmem:[%s226 + $0x10a8] sm:$0x1]
        %v6181 = vld [vmem:[%s226 + $0x10b0] sm:$0x1]
        %v6182 = vld [vmem:[%s226 + $0x10b8] sm:$0x1]
        %v6183 = vld [vmem:[%s226 + $0x10c0] sm:$0x1]
        %v6184 = vld [vmem:[%s226 + $0x10c8] sm:$0x1]
        %v6185 = vld [vmem:[%s226 + $0x10d0] sm:$0x1]
        %v6186 = vld [vmem:[%s226 + $0x10d8] sm:$0x1]
        %v6187 = vld [vmem:[%s226 + $0x10e0] sm:$0x1]
        %v6188 = vld [vmem:[%s226 + $0x10e8] sm:$0x1]
        %v6189 = vld [vmem:[%s226 + $0x10f0] sm:$0x1]
        %v6190 = vld [vmem:[%s226 + $0x10f8] sm:$0x1]
        %v6191 = vld [vmem:[%s226 + $0x1100] sm:$0x1]
        %v6192 = vld [vmem:[%s226 + $0x1108] sm:$0x1]
        %v6193 = vld [vmem:[%s226 + $0x1110] sm:$0x1]
        %v6194 = vld [vmem:[%s226 + $0x1118] sm:$0x1]
        %v6195 = vld [vmem:[%s226 + $0x1120] sm:$0x1]
        %v6196 = vld [vmem:[%s226 + $0x1128] sm:$0x1]
        %v6197 = vld [vmem:[%s226 + $0x1130] sm:$0x1]
        %v6198 = vld [vmem:[%s226 + $0x1138] sm:$0x1]
        %v6199 = vld [vmem:[%s226 + $0x1140] sm:$0x1]
        %v6200 = vld [vmem:[%s226 + $0x1148] sm:$0x1]
        %v6201 = vld [vmem:[%s226 + $0x1150] sm:$0x1]
        %v6202 = vld [vmem:[%s226 + $0x1158] sm:$0x1]
        %v6203 = vld [vmem:[%s226 + $0x1160] sm:$0x1]
        %v6204 = vld [vmem:[%s226 + $0x1168] sm:$0x1]
        %v6205 = vld [vmem:[%s226 + $0x1170] sm:$0x1]
        %v6206 = vld [vmem:[%s226 + $0x1178] sm:$0x1]
        %v6207 = vld [vmem:[%s226 + $0x1180] sm:$0x1]
        %v6208 = vld [vmem:[%s226 + $0x1188] sm:$0x1]
        %v6209 = vld [vmem:[%s226 + $0x1190] sm:$0x1]
        %v6210 = vld [vmem:[%s226 + $0x1198] sm:$0x1]
        %v6211 = vld [vmem:[%s226 + $0x11a0] sm:$0x1]
        %v6212 = vld [vmem:[%s226 + $0x11a8] sm:$0x1]
        %v6213 = vld [vmem:[%s226 + $0x11b0] sm:$0x1]
        %v6214 = vld [vmem:[%s226 + $0x11b8] sm:$0x1]
        %v6215 = vld [vmem:[%s226 + $0x11c0] sm:$0x1]
        %v6216 = vld [vmem:[%s226 + $0x11c8] sm:$0x1]
        %v6217 = vld [vmem:[%s226 + $0x11d0] sm:$0x1]
        %v6218 = vld [vmem:[%s226 + $0x11d8] sm:$0x1]
        %v6219 = vld [vmem:[%s226 + $0x11e0] sm:$0x1]
        %v6220 = vld [vmem:[%s226 + $0x11e8] sm:$0x1]
        %v6221 = vld [vmem:[%s226 + $0x11f0] sm:$0x1]
        %v6222 = vld [vmem:[%s226 + $0x11f8] sm:$0x1]
        %v6223 = vld [vmem:[%s226 + $0x1200] sm:$0x1]
        %v6224 = vld [vmem:[%s226 + $0x1208] sm:$0x1]
        %v6225 = vld [vmem:[%s226 + $0x1210] sm:$0x1]
        %v6226 = vld [vmem:[%s226 + $0x1218] sm:$0x1]
        %v6227 = vld [vmem:[%s226 + $0x1220] sm:$0x1]
        %v6228 = vld [vmem:[%s226 + $0x1228] sm:$0x1]
        %v6229 = vld [vmem:[%s226 + $0x1230] sm:$0x1]
        %v6230 = vld [vmem:[%s226 + $0x1238] sm:$0x1]
        %v6231 = vld [vmem:[%s226 + $0x1240] sm:$0x1]
        %v6232 = vld [vmem:[%s226 + $0x1248] sm:$0x1]
        %v6233 = vld [vmem:[%s226 + $0x1250] sm:$0x1]
        %v6234 = vld [vmem:[%s226 + $0x1258] sm:$0x1]
        %v6235 = vld [vmem:[%s226 + $0x1260] sm:$0x1]
        %v6236 = vld [vmem:[%s226 + $0x1268] sm:$0x1]
        %v6237 = vld [vmem:[%s226 + $0x1270] sm:$0x1]
        %v6238 = vld [vmem:[%s226 + $0x1278] sm:$0x1]
        %v6239 = vld [vmem:[%s226 + $0x1280] sm:$0x1]
        %v6240 = vld [vmem:[%s226 + $0x1288] sm:$0x1]
        %v6241 = vld [vmem:[%s226 + $0x1290] sm:$0x1]
        %v6242 = vld [vmem:[%s226 + $0x1298] sm:$0x1]
        %v6243 = vld [vmem:[%s226 + $0x12a0] sm:$0x1]
        %v6244 = vld [vmem:[%s226 + $0x12a8] sm:$0x1]
        %v6245 = vld [vmem:[%s226 + $0x12b0] sm:$0x1]
        %v6246 = vld [vmem:[%s226 + $0x12b8] sm:$0x1]
        %v6247 = vld [vmem:[%s226 + $0x12c0] sm:$0x1]
        %v6248 = vld [vmem:[%s226 + $0x12c8] sm:$0x1]
        %v6249 = vld [vmem:[%s226 + $0x12d0] sm:$0x1]
        %v6250 = vld [vmem:[%s226 + $0x12d8] sm:$0x1]
        %v6251 = vld [vmem:[%s226 + $0x12e0] sm:$0x1]
        %v6252 = vld [vmem:[%s226 + $0x12e8] sm:$0x1]
        %v6253 = vld [vmem:[%s226 + $0x12f0] sm:$0x1]
        %v6254 = vld [vmem:[%s226 + $0x12f8] sm:$0x1]
        %v6255 = vld [vmem:[%s226 + $0x1300] sm:$0x1]
        %v6256 = vld [vmem:[%s226 + $0x1308] sm:$0x1]
        %v6257 = vld [vmem:[%s226 + $0x1310] sm:$0x1]
        %v6258 = vld [vmem:[%s226 + $0x1318] sm:$0x1]
        %v6259 = vld [vmem:[%s226 + $0x1320] sm:$0x1]
        %v6260 = vld [vmem:[%s226 + $0x1328] sm:$0x1]
        %v6261 = vld [vmem:[%s226 + $0x1330] sm:$0x1]
        %v6262 = vld [vmem:[%s226 + $0x1338] sm:$0x1]
        %v6263 = vld [vmem:[%s226 + $0x1340] sm:$0x1]
        %v6264 = vld [vmem:[%s226 + $0x1348] sm:$0x1]
        %v6265 = vld [vmem:[%s226 + $0x1350] sm:$0x1]
        %v6266 = vld [vmem:[%s226 + $0x1358] sm:$0x1]
        %v6267 = vld [vmem:[%s226 + $0x1360] sm:$0x1]
        %v6268 = vld [vmem:[%s226 + $0x1368] sm:$0x1]
        %v6269 = vld [vmem:[%s226 + $0x1370] sm:$0x1]
        %v6270 = vld [vmem:[%s226 + $0x1378] sm:$0x1]
        %v6271 = vld [vmem:[%s226 + $0x1380] sm:$0x1]
        %v6272 = vld [vmem:[%s226 + $0x1388] sm:$0x1]
        %v6273 = vld [vmem:[%s226 + $0x1390] sm:$0x1]
        %v6274 = vld [vmem:[%s226 + $0x1398] sm:$0x1]
        %v6275 = vld [vmem:[%s226 + $0x13a0] sm:$0x1]
        %v6276 = vld [vmem:[%s226 + $0x13a8] sm:$0x1]
        %v6277 = vld [vmem:[%s1] sm:$0xff]
        %v6278 = vld [vmem:[%s1 + $0x8] sm:$0xff]
        %v6279 = vld [vmem:[%s1 + $0x10] sm:$0x1]
        %6281 = vset.pattern.permute.xlu0 0
        %6282 = vperm.xlu0 %6281, %v6277
        %v6283 = vpop.permute.xlu0 %6282
        %6286 = vset.pattern.permute.xlu0 0
        %6287 = vperm.xlu0 %6286, %v6278
        %v6288 = vpop.permute.xlu0 %6287
        %6291 = vset.pattern.permute.xlu0 0
        %6292 = vperm.xlu0 %6291, %v6279
        %v6293 = vpop.permute.xlu0 %6292
        %v6295 = vmul.f32 %v5647, %v6283
        %v6296 = vmul.f32 %v5648, %v6283
        %v6297 = vmul.f32 %v5649, %v6283
        %v6298 = vmul.f32 %v5650, %v6283
        %v6299 = vmul.f32 %v5651, %v6283
        %v6300 = vmul.f32 %v5652, %v6283
        %v6301 = vmul.f32 %v5653, %v6283
        %v6302 = vmul.f32 %v5654, %v6283
        %v6303 = vmul.f32 %v5655, %v6283
        %v6304 = vmul.f32 %v5656, %v6283
        %v6305 = vmul.f32 %v5657, %v6283
        %v6306 = vmul.f32 %v5658, %v6283
        %v6307 = vmul.f32 %v5659, %v6283
        %v6308 = vmul.f32 %v5660, %v6283
        %v6309 = vmul.f32 %v5661, %v6283
        %v6310 = vmul.f32 %v5662, %v6283
        %v6311 = vmul.f32 %v5663, %v6283
        %v6312 = vmul.f32 %v5664, %v6283
        %v6313 = vmul.f32 %v5665, %v6283
        %v6314 = vmul.f32 %v5666, %v6283
        %v6315 = vmul.f32 %v5667, %v6283
        %v6316 = vmul.f32 %v5668, %v6283
        %v6317 = vmul.f32 %v5669, %v6283
        %v6318 = vmul.f32 %v5670, %v6283
        %v6319 = vmul.f32 %v5671, %v6283
        %v6320 = vmul.f32 %v5672, %v6283
        %v6321 = vmul.f32 %v5673, %v6283
        %v6322 = vmul.f32 %v5674, %v6283
        %v6323 = vmul.f32 %v5675, %v6283
        %v6324 = vmul.f32 %v5676, %v6283
        %v6325 = vmul.f32 %v5677, %v6283
        %v6326 = vmul.f32 %v5678, %v6283
        %v6327 = vmul.f32 %v5679, %v6283
        %v6328 = vmul.f32 %v5680, %v6283
        %v6329 = vmul.f32 %v5681, %v6283
        %v6330 = vmul.f32 %v5682, %v6283
        %v6331 = vmul.f32 %v5683, %v6283
        %v6332 = vmul.f32 %v5684, %v6283
        %v6333 = vmul.f32 %v5685, %v6283
        %v6334 = vmul.f32 %v5686, %v6283
        %v6335 = vmul.f32 %v5687, %v6283
        %v6336 = vmul.f32 %v5688, %v6283
        %v6337 = vmul.f32 %v5689, %v6283
        %v6338 = vmul.f32 %v5690, %v6283
        %v6339 = vmul.f32 %v5691, %v6283
        %v6340 = vmul.f32 %v5692, %v6283
        %v6341 = vmul.f32 %v5693, %v6283
        %v6342 = vmul.f32 %v5694, %v6283
        %v6343 = vmul.f32 %v5695, %v6283
        %v6344 = vmul.f32 %v5696, %v6283
        %v6345 = vmul.f32 %v5697, %v6283
        %v6346 = vmul.f32 %v5698, %v6283
        %v6347 = vmul.f32 %v5699, %v6283
        %v6348 = vmul.f32 %v5700, %v6283
        %v6349 = vmul.f32 %v5701, %v6283
        %v6350 = vmul.f32 %v5702, %v6283
        %v6351 = vmul.f32 %v5703, %v6283
        %v6352 = vmul.f32 %v5704, %v6283
        %v6353 = vmul.f32 %v5705, %v6283
        %v6354 = vmul.f32 %v5706, %v6283
        %v6355 = vmul.f32 %v5707, %v6283
        %v6356 = vmul.f32 %v5708, %v6283
        %v6357 = vmul.f32 %v5709, %v6283
        %v6358 = vmul.f32 %v5710, %v6283
        %v6359 = vmul.f32 %v5711, %v6283
        %v6360 = vmul.f32 %v5712, %v6283
        %v6361 = vmul.f32 %v5713, %v6283
        %v6362 = vmul.f32 %v5714, %v6283
        %v6363 = vmul.f32 %v5715, %v6283
        %v6364 = vmul.f32 %v5716, %v6283
        %v6365 = vmul.f32 %v5717, %v6283
        %v6366 = vmul.f32 %v5718, %v6283
        %v6367 = vmul.f32 %v5719, %v6283
        %v6368 = vmul.f32 %v5720, %v6283
        %v6369 = vmul.f32 %v5721, %v6283
        %v6370 = vmul.f32 %v5722, %v6283
        %v6371 = vmul.f32 %v5723, %v6283
        %v6372 = vmul.f32 %v5724, %v6283
        %v6373 = vmul.f32 %v5725, %v6283
        %v6374 = vmul.f32 %v5726, %v6283
        %v6375 = vmul.f32 %v5727, %v6283
        %v6376 = vmul.f32 %v5728, %v6283
        %v6377 = vmul.f32 %v5729, %v6283
        %v6378 = vmul.f32 %v5730, %v6283
        %v6379 = vmul.f32 %v5731, %v6283
        %v6380 = vmul.f32 %v5732, %v6283
        %v6381 = vmul.f32 %v5733, %v6283
        %v6382 = vmul.f32 %v5734, %v6283
        %v6383 = vmul.f32 %v5735, %v6283
        %v6384 = vmul.f32 %v5736, %v6283
        %v6385 = vmul.f32 %v5737, %v6283
        %v6386 = vmul.f32 %v5738, %v6283
        %v6387 = vmul.f32 %v5739, %v6283
        %v6388 = vmul.f32 %v5740, %v6283
        %v6389 = vmul.f32 %v5741, %v6283
        %v6390 = vmul.f32 %v5742, %v6283
        %v6391 = vmul.f32 %v5743, %v6283
        %v6392 = vmul.f32 %v5744, %v6283
        %v6393 = vmul.f32 %v5745, %v6283
        %v6394 = vmul.f32 %v5746, %v6283
        %v6395 = vmul.f32 %v5747, %v6283
        %v6396 = vmul.f32 %v5748, %v6283
        %v6397 = vmul.f32 %v5749, %v6283
        %v6398 = vmul.f32 %v5750, %v6283
        %v6399 = vmul.f32 %v5751, %v6283
        %v6400 = vmul.f32 %v5752, %v6283
        %v6401 = vmul.f32 %v5753, %v6283
        %v6402 = vmul.f32 %v5754, %v6283
        %v6403 = vmul.f32 %v5755, %v6283
        %v6404 = vmul.f32 %v5756, %v6283
        %v6405 = vmul.f32 %v5757, %v6283
        %v6406 = vmul.f32 %v5758, %v6283
        %v6407 = vmul.f32 %v5759, %v6283
        %v6408 = vmul.f32 %v5760, %v6283
        %v6409 = vmul.f32 %v5761, %v6283
        %v6410 = vmul.f32 %v5762, %v6283
        %v6411 = vmul.f32 %v5763, %v6283
        %v6412 = vmul.f32 %v5764, %v6283
        %v6413 = vmul.f32 %v5765, %v6283
        %v6414 = vmul.f32 %v5766, %v6283
        %v6415 = vmul.f32 %v5767, %v6283
        %v6416 = vmul.f32 %v5768, %v6283
        %v6417 = vmul.f32 %v5769, %v6283
        %v6418 = vmul.f32 %v5770, %v6283
        %v6419 = vmul.f32 %v5771, %v6283
        %v6420 = vmul.f32 %v5772, %v6283
        %v6421 = vmul.f32 %v5773, %v6283
        %v6422 = vmul.f32 %v5774, %v6283
        %v6423 = vmul.f32 %v5775, %v6283
        %v6424 = vmul.f32 %v5776, %v6283
        %v6425 = vmul.f32 %v5777, %v6283
        %v6426 = vmul.f32 %v5778, %v6283
        %v6427 = vmul.f32 %v5779, %v6283
        %v6428 = vmul.f32 %v5780, %v6283
        %v6429 = vmul.f32 %v5781, %v6283
        %v6430 = vmul.f32 %v5782, %v6283
        %v6431 = vmul.f32 %v5783, %v6283
        %v6432 = vmul.f32 %v5784, %v6283
        %v6433 = vmul.f32 %v5785, %v6283
        %v6434 = vmul.f32 %v5786, %v6283
        %v6435 = vmul.f32 %v5787, %v6283
        %v6436 = vmul.f32 %v5788, %v6283
        %v6437 = vmul.f32 %v5789, %v6283
        %v6438 = vmul.f32 %v5790, %v6283
        %v6439 = vmul.f32 %v5791, %v6283
        %v6440 = vmul.f32 %v5792, %v6283
        %v6441 = vmul.f32 %v5793, %v6283
        %v6442 = vmul.f32 %v5794, %v6283
        %v6443 = vmul.f32 %v5795, %v6283
        %v6444 = vmul.f32 %v5796, %v6283
        %v6445 = vmul.f32 %v5797, %v6283
        %v6446 = vmul.f32 %v5798, %v6283
        %v6447 = vmul.f32 %v5799, %v6283
        %v6448 = vmul.f32 %v5800, %v6283
        %v6449 = vmul.f32 %v5801, %v6283
        %v6450 = vmul.f32 %v5802, %v6283
        %v6451 = vmul.f32 %v5803, %v6283
        %v6452 = vmul.f32 %v5804, %v6283
        %v6453 = vmul.f32 %v5805, %v6283
        %v6454 = vmul.f32 %v5806, %v6283
        %v6455 = vmul.f32 %v5807, %v6283
        %v6456 = vmul.f32 %v5808, %v6283
        %v6457 = vmul.f32 %v5809, %v6283
        %v6458 = vmul.f32 %v5810, %v6283
        %v6459 = vmul.f32 %v5811, %v6283
        %v6460 = vmul.f32 %v5812, %v6283
        %v6461 = vmul.f32 %v5813, %v6283
        %v6462 = vmul.f32 %v5814, %v6283
        %v6463 = vmul.f32 %v5815, %v6283
        %v6464 = vmul.f32 %v5816, %v6283
        %v6465 = vmul.f32 %v5817, %v6283
        %v6466 = vmul.f32 %v5818, %v6283
        %v6467 = vmul.f32 %v5819, %v6283
        %v6468 = vmul.f32 %v5820, %v6283
        %v6469 = vmul.f32 %v5821, %v6283
        %v6470 = vmul.f32 %v5822, %v6283
        %v6471 = vmul.f32 %v5823, %v6283
        %v6472 = vmul.f32 %v5824, %v6283
        %v6473 = vmul.f32 %v5825, %v6283
        %v6474 = vmul.f32 %v5826, %v6283
        %v6475 = vmul.f32 %v5827, %v6283
        %v6476 = vmul.f32 %v5828, %v6283
        %v6477 = vmul.f32 %v5829, %v6283
        %v6478 = vmul.f32 %v5830, %v6283
        %v6479 = vmul.f32 %v5831, %v6283
        %v6480 = vmul.f32 %v5832, %v6283
        %v6481 = vmul.f32 %v5833, %v6283
        %v6482 = vmul.f32 %v5834, %v6283
        %v6483 = vmul.f32 %v5835, %v6283
        %v6484 = vmul.f32 %v5836, %v6283
        %v6485 = vmul.f32 %v5837, %v6283
        %v6486 = vmul.f32 %v5838, %v6283
        %v6487 = vmul.f32 %v5839, %v6283
        %v6488 = vmul.f32 %v5840, %v6283
        %v6489 = vmul.f32 %v5841, %v6283
        %v6490 = vmul.f32 %v5842, %v6283
        %v6491 = vmul.f32 %v5843, %v6283
        %v6492 = vmul.f32 %v5844, %v6283
        %v6493 = vmul.f32 %v5845, %v6283
        %v6494 = vmul.f32 %v5846, %v6283
        %v6495 = vmul.f32 %v5847, %v6283
        %v6496 = vmul.f32 %v5848, %v6283
        %v6497 = vmul.f32 %v5849, %v6283
        %v6498 = vmul.f32 %v5850, %v6283
        %v6499 = vmul.f32 %v5851, %v6283
        %v6500 = vmul.f32 %v5852, %v6283
        %v6501 = vmul.f32 %v5853, %v6283
        %v6502 = vmul.f32 %v5854, %v6283
        %v6503 = vmul.f32 %v5855, %v6283
        %v6504 = vmul.f32 %v5856, %v6283
        %v6505 = vmul.f32 %v5857, %v6288
        %v6506 = vmul.f32 %v5858, %v6288
        %v6507 = vmul.f32 %v5859, %v6288
        %v6508 = vmul.f32 %v5860, %v6288
        %v6509 = vmul.f32 %v5861, %v6288
        %v6510 = vmul.f32 %v5862, %v6288
        %v6511 = vmul.f32 %v5863, %v6288
        %v6512 = vmul.f32 %v5864, %v6288
        %v6513 = vmul.f32 %v5865, %v6288
        %v6514 = vmul.f32 %v5866, %v6288
        %v6515 = vmul.f32 %v5867, %v6288
        %v6516 = vmul.f32 %v5868, %v6288
        %v6517 = vmul.f32 %v5869, %v6288
        %v6518 = vmul.f32 %v5870, %v6288
        %v6519 = vmul.f32 %v5871, %v6288
        %v6520 = vmul.f32 %v5872, %v6288
        %v6521 = vmul.f32 %v5873, %v6288
        %v6522 = vmul.f32 %v5874, %v6288
        %v6523 = vmul.f32 %v5875, %v6288
        %v6524 = vmul.f32 %v5876, %v6288
        %v6525 = vmul.f32 %v5877, %v6288
        %v6526 = vmul.f32 %v5878, %v6288
        %v6527 = vmul.f32 %v5879, %v6288
        %v6528 = vmul.f32 %v5880, %v6288
        %v6529 = vmul.f32 %v5881, %v6288
        %v6530 = vmul.f32 %v5882, %v6288
        %v6531 = vmul.f32 %v5883, %v6288
        %v6532 = vmul.f32 %v5884, %v6288
        %v6533 = vmul.f32 %v5885, %v6288
        %v6534 = vmul.f32 %v5886, %v6288
        %v6535 = vmul.f32 %v5887, %v6288
        %v6536 = vmul.f32 %v5888, %v6288
        %v6537 = vmul.f32 %v5889, %v6288
        %v6538 = vmul.f32 %v5890, %v6288
        %v6539 = vmul.f32 %v5891, %v6288
        %v6540 = vmul.f32 %v5892, %v6288
        %v6541 = vmul.f32 %v5893, %v6288
        %v6542 = vmul.f32 %v5894, %v6288
        %v6543 = vmul.f32 %v5895, %v6288
        %v6544 = vmul.f32 %v5896, %v6288
        %v6545 = vmul.f32 %v5897, %v6288
        %v6546 = vmul.f32 %v5898, %v6288
        %v6547 = vmul.f32 %v5899, %v6288
        %v6548 = vmul.f32 %v5900, %v6288
        %v6549 = vmul.f32 %v5901, %v6288
        %v6550 = vmul.f32 %v5902, %v6288
        %v6551 = vmul.f32 %v5903, %v6288
        %v6552 = vmul.f32 %v5904, %v6288
        %v6553 = vmul.f32 %v5905, %v6288
        %v6554 = vmul.f32 %v5906, %v6288
        %v6555 = vmul.f32 %v5907, %v6288
        %v6556 = vmul.f32 %v5908, %v6288
        %v6557 = vmul.f32 %v5909, %v6288
        %v6558 = vmul.f32 %v5910, %v6288
        %v6559 = vmul.f32 %v5911, %v6288
        %v6560 = vmul.f32 %v5912, %v6288
        %v6561 = vmul.f32 %v5913, %v6288
        %v6562 = vmul.f32 %v5914, %v6288
        %v6563 = vmul.f32 %v5915, %v6288
        %v6564 = vmul.f32 %v5916, %v6288
        %v6565 = vmul.f32 %v5917, %v6288
        %v6566 = vmul.f32 %v5918, %v6288
        %v6567 = vmul.f32 %v5919, %v6288
        %v6568 = vmul.f32 %v5920, %v6288
        %v6569 = vmul.f32 %v5921, %v6288
        %v6570 = vmul.f32 %v5922, %v6288
        %v6571 = vmul.f32 %v5923, %v6288
        %v6572 = vmul.f32 %v5924, %v6288
        %v6573 = vmul.f32 %v5925, %v6288
        %v6574 = vmul.f32 %v5926, %v6288
        %v6575 = vmul.f32 %v5927, %v6288
        %v6576 = vmul.f32 %v5928, %v6288
        %v6577 = vmul.f32 %v5929, %v6288
        %v6578 = vmul.f32 %v5930, %v6288
        %v6579 = vmul.f32 %v5931, %v6288
        %v6580 = vmul.f32 %v5932, %v6288
        %v6581 = vmul.f32 %v5933, %v6288
        %v6582 = vmul.f32 %v5934, %v6288
        %v6583 = vmul.f32 %v5935, %v6288
        %v6584 = vmul.f32 %v5936, %v6288
        %v6585 = vmul.f32 %v5937, %v6288
        %v6586 = vmul.f32 %v5938, %v6288
        %v6587 = vmul.f32 %v5939, %v6288
        %v6588 = vmul.f32 %v5940, %v6288
        %v6589 = vmul.f32 %v5941, %v6288
        %v6590 = vmul.f32 %v5942, %v6288
        %v6591 = vmul.f32 %v5943, %v6288
        %v6592 = vmul.f32 %v5944, %v6288
        %v6593 = vmul.f32 %v5945, %v6288
        %v6594 = vmul.f32 %v5946, %v6288
        %v6595 = vmul.f32 %v5947, %v6288
        %v6596 = vmul.f32 %v5948, %v6288
        %v6597 = vmul.f32 %v5949, %v6288
        %v6598 = vmul.f32 %v5950, %v6288
        %v6599 = vmul.f32 %v5951, %v6288
        %v6600 = vmul.f32 %v5952, %v6288
        %v6601 = vmul.f32 %v5953, %v6288
        %v6602 = vmul.f32 %v5954, %v6288
        %v6603 = vmul.f32 %v5955, %v6288
        %v6604 = vmul.f32 %v5956, %v6288
        %v6605 = vmul.f32 %v5957, %v6288
        %v6606 = vmul.f32 %v5958, %v6288
        %v6607 = vmul.f32 %v5959, %v6288
        %v6608 = vmul.f32 %v5960, %v6288
        %v6609 = vmul.f32 %v5961, %v6288
        %v6610 = vmul.f32 %v5962, %v6288
        %v6611 = vmul.f32 %v5963, %v6288
        %v6612 = vmul.f32 %v5964, %v6288
        %v6613 = vmul.f32 %v5965, %v6288
        %v6614 = vmul.f32 %v5966, %v6288
        %v6615 = vmul.f32 %v5967, %v6288
        %v6616 = vmul.f32 %v5968, %v6288
        %v6617 = vmul.f32 %v5969, %v6288
        %v6618 = vmul.f32 %v5970, %v6288
        %v6619 = vmul.f32 %v5971, %v6288
        %v6620 = vmul.f32 %v5972, %v6288
        %v6621 = vmul.f32 %v5973, %v6288
        %v6622 = vmul.f32 %v5974, %v6288
        %v6623 = vmul.f32 %v5975, %v6288
        %v6624 = vmul.f32 %v5976, %v6288
        %v6625 = vmul.f32 %v5977, %v6288
        %v6626 = vmul.f32 %v5978, %v6288
        %v6627 = vmul.f32 %v5979, %v6288
        %v6628 = vmul.f32 %v5980, %v6288
        %v6629 = vmul.f32 %v5981, %v6288
        %v6630 = vmul.f32 %v5982, %v6288
        %v6631 = vmul.f32 %v5983, %v6288
        %v6632 = vmul.f32 %v5984, %v6288
        %v6633 = vmul.f32 %v5985, %v6288
        %v6634 = vmul.f32 %v5986, %v6288
        %v6635 = vmul.f32 %v5987, %v6288
        %v6636 = vmul.f32 %v5988, %v6288
        %v6637 = vmul.f32 %v5989, %v6288
        %v6638 = vmul.f32 %v5990, %v6288
        %v6639 = vmul.f32 %v5991, %v6288
        %v6640 = vmul.f32 %v5992, %v6288
        %v6641 = vmul.f32 %v5993, %v6288
        %v6642 = vmul.f32 %v5994, %v6288
        %v6643 = vmul.f32 %v5995, %v6288
        %v6644 = vmul.f32 %v5996, %v6288
        %v6645 = vmul.f32 %v5997, %v6288
        %v6646 = vmul.f32 %v5998, %v6288
        %v6647 = vmul.f32 %v5999, %v6288
        %v6648 = vmul.f32 %v6000, %v6288
        %v6649 = vmul.f32 %v6001, %v6288
        %v6650 = vmul.f32 %v6002, %v6288
        %v6651 = vmul.f32 %v6003, %v6288
        %v6652 = vmul.f32 %v6004, %v6288
        %v6653 = vmul.f32 %v6005, %v6288
        %v6654 = vmul.f32 %v6006, %v6288
        %v6655 = vmul.f32 %v6007, %v6288
        %v6656 = vmul.f32 %v6008, %v6288
        %v6657 = vmul.f32 %v6009, %v6288
        %v6658 = vmul.f32 %v6010, %v6288
        %v6659 = vmul.f32 %v6011, %v6288
        %v6660 = vmul.f32 %v6012, %v6288
        %v6661 = vmul.f32 %v6013, %v6288
        %v6662 = vmul.f32 %v6014, %v6288
        %v6663 = vmul.f32 %v6015, %v6288
        %v6664 = vmul.f32 %v6016, %v6288
        %v6665 = vmul.f32 %v6017, %v6288
        %v6666 = vmul.f32 %v6018, %v6288
        %v6667 = vmul.f32 %v6019, %v6288
        %v6668 = vmul.f32 %v6020, %v6288
        %v6669 = vmul.f32 %v6021, %v6288
        %v6670 = vmul.f32 %v6022, %v6288
        %v6671 = vmul.f32 %v6023, %v6288
        %v6672 = vmul.f32 %v6024, %v6288
        %v6673 = vmul.f32 %v6025, %v6288
        %v6674 = vmul.f32 %v6026, %v6288
        %v6675 = vmul.f32 %v6027, %v6288
        %v6676 = vmul.f32 %v6028, %v6288
        %v6677 = vmul.f32 %v6029, %v6288
        %v6678 = vmul.f32 %v6030, %v6288
        %v6679 = vmul.f32 %v6031, %v6288
        %v6680 = vmul.f32 %v6032, %v6288
        %v6681 = vmul.f32 %v6033, %v6288
        %v6682 = vmul.f32 %v6034, %v6288
        %v6683 = vmul.f32 %v6035, %v6288
        %v6684 = vmul.f32 %v6036, %v6288
        %v6685 = vmul.f32 %v6037, %v6288
        %v6686 = vmul.f32 %v6038, %v6288
        %v6687 = vmul.f32 %v6039, %v6288
        %v6688 = vmul.f32 %v6040, %v6288
        %v6689 = vmul.f32 %v6041, %v6288
        %v6690 = vmul.f32 %v6042, %v6288
        %v6691 = vmul.f32 %v6043, %v6288
        %v6692 = vmul.f32 %v6044, %v6288
        %v6693 = vmul.f32 %v6045, %v6288
        %v6694 = vmul.f32 %v6046, %v6288
        %v6695 = vmul.f32 %v6047, %v6288
        %v6696 = vmul.f32 %v6048, %v6288
        %v6697 = vmul.f32 %v6049, %v6288
        %v6698 = vmul.f32 %v6050, %v6288
        %v6699 = vmul.f32 %v6051, %v6288
        %v6700 = vmul.f32 %v6052, %v6288
        %v6701 = vmul.f32 %v6053, %v6288
        %v6702 = vmul.f32 %v6054, %v6288
        %v6703 = vmul.f32 %v6055, %v6288
        %v6704 = vmul.f32 %v6056, %v6288
        %v6705 = vmul.f32 %v6057, %v6288
        %v6706 = vmul.f32 %v6058, %v6288
        %v6707 = vmul.f32 %v6059, %v6288
        %v6708 = vmul.f32 %v6060, %v6288
        %v6709 = vmul.f32 %v6061, %v6288
        %v6710 = vmul.f32 %v6062, %v6288
        %v6711 = vmul.f32 %v6063, %v6288
        %v6712 = vmul.f32 %v6064, %v6288
        %v6713 = vmul.f32 %v6065, %v6288
        %v6714 = vmul.f32 %v6066, %v6288
        %v6715 = vmul.f32 %v6067, %v6293
        %v6716 = vmul.f32 %v6068, %v6293
        %v6717 = vmul.f32 %v6069, %v6293
        %v6718 = vmul.f32 %v6070, %v6293
        %v6719 = vmul.f32 %v6071, %v6293
        %v6720 = vmul.f32 %v6072, %v6293
        %v6721 = vmul.f32 %v6073, %v6293
        %v6722 = vmul.f32 %v6074, %v6293
        %v6723 = vmul.f32 %v6075, %v6293
        %v6724 = vmul.f32 %v6076, %v6293
        %v6725 = vmul.f32 %v6077, %v6293
        %v6726 = vmul.f32 %v6078, %v6293
        %v6727 = vmul.f32 %v6079, %v6293
        %v6728 = vmul.f32 %v6080, %v6293
        %v6729 = vmul.f32 %v6081, %v6293
        %v6730 = vmul.f32 %v6082, %v6293
        %v6731 = vmul.f32 %v6083, %v6293
        %v6732 = vmul.f32 %v6084, %v6293
        %v6733 = vmul.f32 %v6085, %v6293
        %v6734 = vmul.f32 %v6086, %v6293
        %v6735 = vmul.f32 %v6087, %v6293
        %v6736 = vmul.f32 %v6088, %v6293
        %v6737 = vmul.f32 %v6089, %v6293
        %v6738 = vmul.f32 %v6090, %v6293
        %v6739 = vmul.f32 %v6091, %v6293
        %v6740 = vmul.f32 %v6092, %v6293
        %v6741 = vmul.f32 %v6093, %v6293
        %v6742 = vmul.f32 %v6094, %v6293
        %v6743 = vmul.f32 %v6095, %v6293
        %v6744 = vmul.f32 %v6096, %v6293
        %v6745 = vmul.f32 %v6097, %v6293
        %v6746 = vmul.f32 %v6098, %v6293
        %v6747 = vmul.f32 %v6099, %v6293
        %v6748 = vmul.f32 %v6100, %v6293
        %v6749 = vmul.f32 %v6101, %v6293
        %v6750 = vmul.f32 %v6102, %v6293
        %v6751 = vmul.f32 %v6103, %v6293
        %v6752 = vmul.f32 %v6104, %v6293
        %v6753 = vmul.f32 %v6105, %v6293
        %v6754 = vmul.f32 %v6106, %v6293
        %v6755 = vmul.f32 %v6107, %v6293
        %v6756 = vmul.f32 %v6108, %v6293
        %v6757 = vmul.f32 %v6109, %v6293
        %v6758 = vmul.f32 %v6110, %v6293
        %v6759 = vmul.f32 %v6111, %v6293
        %v6760 = vmul.f32 %v6112, %v6293
        %v6761 = vmul.f32 %v6113, %v6293
        %v6762 = vmul.f32 %v6114, %v6293
        %v6763 = vmul.f32 %v6115, %v6293
        %v6764 = vmul.f32 %v6116, %v6293
        %v6765 = vmul.f32 %v6117, %v6293
        %v6766 = vmul.f32 %v6118, %v6293
        %v6767 = vmul.f32 %v6119, %v6293
        %v6768 = vmul.f32 %v6120, %v6293
        %v6769 = vmul.f32 %v6121, %v6293
        %v6770 = vmul.f32 %v6122, %v6293
        %v6771 = vmul.f32 %v6123, %v6293
        %v6772 = vmul.f32 %v6124, %v6293
        %v6773 = vmul.f32 %v6125, %v6293
        %v6774 = vmul.f32 %v6126, %v6293
        %v6775 = vmul.f32 %v6127, %v6293
        %v6776 = vmul.f32 %v6128, %v6293
        %v6777 = vmul.f32 %v6129, %v6293
        %v6778 = vmul.f32 %v6130, %v6293
        %v6779 = vmul.f32 %v6131, %v6293
        %v6780 = vmul.f32 %v6132, %v6293
        %v6781 = vmul.f32 %v6133, %v6293
        %v6782 = vmul.f32 %v6134, %v6293
        %v6783 = vmul.f32 %v6135, %v6293
        %v6784 = vmul.f32 %v6136, %v6293
        %v6785 = vmul.f32 %v6137, %v6293
        %v6786 = vmul.f32 %v6138, %v6293
        %v6787 = vmul.f32 %v6139, %v6293
        %v6788 = vmul.f32 %v6140, %v6293
        %v6789 = vmul.f32 %v6141, %v6293
        %v6790 = vmul.f32 %v6142, %v6293
        %v6791 = vmul.f32 %v6143, %v6293
        %v6792 = vmul.f32 %v6144, %v6293
        %v6793 = vmul.f32 %v6145, %v6293
        %v6794 = vmul.f32 %v6146, %v6293
        %v6795 = vmul.f32 %v6147, %v6293
        %v6796 = vmul.f32 %v6148, %v6293
        %v6797 = vmul.f32 %v6149, %v6293
        %v6798 = vmul.f32 %v6150, %v6293
        %v6799 = vmul.f32 %v6151, %v6293
        %v6800 = vmul.f32 %v6152, %v6293
        %v6801 = vmul.f32 %v6153, %v6293
        %v6802 = vmul.f32 %v6154, %v6293
        %v6803 = vmul.f32 %v6155, %v6293
        %v6804 = vmul.f32 %v6156, %v6293
        %v6805 = vmul.f32 %v6157, %v6293
        %v6806 = vmul.f32 %v6158, %v6293
        %v6807 = vmul.f32 %v6159, %v6293
        %v6808 = vmul.f32 %v6160, %v6293
        %v6809 = vmul.f32 %v6161, %v6293
        %v6810 = vmul.f32 %v6162, %v6293
        %v6811 = vmul.f32 %v6163, %v6293
        %v6812 = vmul.f32 %v6164, %v6293
        %v6813 = vmul.f32 %v6165, %v6293
        %v6814 = vmul.f32 %v6166, %v6293
        %v6815 = vmul.f32 %v6167, %v6293
        %v6816 = vmul.f32 %v6168, %v6293
        %v6817 = vmul.f32 %v6169, %v6293
        %v6818 = vmul.f32 %v6170, %v6293
        %v6819 = vmul.f32 %v6171, %v6293
        %v6820 = vmul.f32 %v6172, %v6293
        %v6821 = vmul.f32 %v6173, %v6293
        %v6822 = vmul.f32 %v6174, %v6293
        %v6823 = vmul.f32 %v6175, %v6293
        %v6824 = vmul.f32 %v6176, %v6293
        %v6825 = vmul.f32 %v6177, %v6293
        %v6826 = vmul.f32 %v6178, %v6293
        %v6827 = vmul.f32 %v6179, %v6293
        %v6828 = vmul.f32 %v6180, %v6293
        %v6829 = vmul.f32 %v6181, %v6293
        %v6830 = vmul.f32 %v6182, %v6293
        %v6831 = vmul.f32 %v6183, %v6293
        %v6832 = vmul.f32 %v6184, %v6293
        %v6833 = vmul.f32 %v6185, %v6293
        %v6834 = vmul.f32 %v6186, %v6293
        %v6835 = vmul.f32 %v6187, %v6293
        %v6836 = vmul.f32 %v6188, %v6293
        %v6837 = vmul.f32 %v6189, %v6293
        %v6838 = vmul.f32 %v6190, %v6293
        %v6839 = vmul.f32 %v6191, %v6293
        %v6840 = vmul.f32 %v6192, %v6293
        %v6841 = vmul.f32 %v6193, %v6293
        %v6842 = vmul.f32 %v6194, %v6293
        %v6843 = vmul.f32 %v6195, %v6293
        %v6844 = vmul.f32 %v6196, %v6293
        %v6845 = vmul.f32 %v6197, %v6293
        %v6846 = vmul.f32 %v6198, %v6293
        %v6847 = vmul.f32 %v6199, %v6293
        %v6848 = vmul.f32 %v6200, %v6293
        %v6849 = vmul.f32 %v6201, %v6293
        %v6850 = vmul.f32 %v6202, %v6293
        %v6851 = vmul.f32 %v6203, %v6293
        %v6852 = vmul.f32 %v6204, %v6293
        %v6853 = vmul.f32 %v6205, %v6293
        %v6854 = vmul.f32 %v6206, %v6293
        %v6855 = vmul.f32 %v6207, %v6293
        %v6856 = vmul.f32 %v6208, %v6293
        %v6857 = vmul.f32 %v6209, %v6293
        %v6858 = vmul.f32 %v6210, %v6293
        %v6859 = vmul.f32 %v6211, %v6293
        %v6860 = vmul.f32 %v6212, %v6293
        %v6861 = vmul.f32 %v6213, %v6293
        %v6862 = vmul.f32 %v6214, %v6293
        %v6863 = vmul.f32 %v6215, %v6293
        %v6864 = vmul.f32 %v6216, %v6293
        %v6865 = vmul.f32 %v6217, %v6293
        %v6866 = vmul.f32 %v6218, %v6293
        %v6867 = vmul.f32 %v6219, %v6293
        %v6868 = vmul.f32 %v6220, %v6293
        %v6869 = vmul.f32 %v6221, %v6293
        %v6870 = vmul.f32 %v6222, %v6293
        %v6871 = vmul.f32 %v6223, %v6293
        %v6872 = vmul.f32 %v6224, %v6293
        %v6873 = vmul.f32 %v6225, %v6293
        %v6874 = vmul.f32 %v6226, %v6293
        %v6875 = vmul.f32 %v6227, %v6293
        %v6876 = vmul.f32 %v6228, %v6293
        %v6877 = vmul.f32 %v6229, %v6293
        %v6878 = vmul.f32 %v6230, %v6293
        %v6879 = vmul.f32 %v6231, %v6293
        %v6880 = vmul.f32 %v6232, %v6293
        %v6881 = vmul.f32 %v6233, %v6293
        %v6882 = vmul.f32 %v6234, %v6293
        %v6883 = vmul.f32 %v6235, %v6293
        %v6884 = vmul.f32 %v6236, %v6293
        %v6885 = vmul.f32 %v6237, %v6293
        %v6886 = vmul.f32 %v6238, %v6293
        %v6887 = vmul.f32 %v6239, %v6293
        %v6888 = vmul.f32 %v6240, %v6293
        %v6889 = vmul.f32 %v6241, %v6293
        %v6890 = vmul.f32 %v6242, %v6293
        %v6891 = vmul.f32 %v6243, %v6293
        %v6892 = vmul.f32 %v6244, %v6293
        %v6893 = vmul.f32 %v6245, %v6293
        %v6894 = vmul.f32 %v6246, %v6293
        %v6895 = vmul.f32 %v6247, %v6293
        %v6896 = vmul.f32 %v6248, %v6293
        %v6897 = vmul.f32 %v6249, %v6293
        %v6898 = vmul.f32 %v6250, %v6293
        %v6899 = vmul.f32 %v6251, %v6293
        %v6900 = vmul.f32 %v6252, %v6293
        %v6901 = vmul.f32 %v6253, %v6293
        %v6902 = vmul.f32 %v6254, %v6293
        %v6903 = vmul.f32 %v6255, %v6293
        %v6904 = vmul.f32 %v6256, %v6293
        %v6905 = vmul.f32 %v6257, %v6293
        %v6906 = vmul.f32 %v6258, %v6293
        %v6907 = vmul.f32 %v6259, %v6293
        %v6908 = vmul.f32 %v6260, %v6293
        %v6909 = vmul.f32 %v6261, %v6293
        %v6910 = vmul.f32 %v6262, %v6293
        %v6911 = vmul.f32 %v6263, %v6293
        %v6912 = vmul.f32 %v6264, %v6293
        %v6913 = vmul.f32 %v6265, %v6293
        %v6914 = vmul.f32 %v6266, %v6293
        %v6915 = vmul.f32 %v6267, %v6293
        %v6916 = vmul.f32 %v6268, %v6293
        %v6917 = vmul.f32 %v6269, %v6293
        %v6918 = vmul.f32 %v6270, %v6293
        %v6919 = vmul.f32 %v6271, %v6293
        %v6920 = vmul.f32 %v6272, %v6293
        %v6921 = vmul.f32 %v6273, %v6293
        %v6922 = vmul.f32 %v6274, %v6293
        %v6923 = vmul.f32 %v6275, %v6293
        %v6924 = vmul.f32 %v6276, %v6293
        %v6925 = vadd.f32 %v6295, %v6505
        %v6926 = vsel %vm1965, %v6715, 0.0
        %v6927 = vadd.f32 %v6925, %v6926
        %v6928 = vrot.slane %v6927, 4
        %v6929 = vadd.f32 %v6927, %v6928
        %v6930 = vrot.slane %v6929, 2
        %v6931 = vadd.f32 %v6929, %v6930
        %v6932 = vrot.slane %v6931, 1
        %v6933 = vadd.f32 %v6931, %v6932
        %v6934 = vadd.f32 %v6296, %v6506
        %v6935 = vsel %vm1965, %v6716, 0.0
        %v6936 = vadd.f32 %v6934, %v6935
        %v6937 = vrot.slane %v6936, 4
        %v6938 = vadd.f32 %v6936, %v6937
        %v6939 = vrot.slane %v6938, 2
        %v6940 = vadd.f32 %v6938, %v6939
        %v6941 = vrot.slane %v6940, 1
        %v6942 = vadd.f32 %v6940, %v6941
        %v6943 = vadd.f32 %v6297, %v6507
        %v6944 = vsel %vm1965, %v6717, 0.0
        %v6945 = vadd.f32 %v6943, %v6944
        %v6946 = vrot.slane %v6945, 4
        %v6947 = vadd.f32 %v6945, %v6946
        %v6948 = vrot.slane %v6947, 2
        %v6949 = vadd.f32 %v6947, %v6948
        %v6950 = vrot.slane %v6949, 1
        %v6951 = vadd.f32 %v6949, %v6950
        %v6952 = vadd.f32 %v6298, %v6508
        %v6953 = vsel %vm1965, %v6718, 0.0
        %v6954 = vadd.f32 %v6952, %v6953
        %v6955 = vrot.slane %v6954, 4
        %v6956 = vadd.f32 %v6954, %v6955
        %v6957 = vrot.slane %v6956, 2
        %v6958 = vadd.f32 %v6956, %v6957
        %v6959 = vrot.slane %v6958, 1
        %v6960 = vadd.f32 %v6958, %v6959
        %v6961 = vadd.f32 %v6299, %v6509
        %v6962 = vsel %vm1965, %v6719, 0.0
        %v6963 = vadd.f32 %v6961, %v6962
        %v6964 = vrot.slane %v6963, 4
        %v6965 = vadd.f32 %v6963, %v6964
        %v6966 = vrot.slane %v6965, 2
        %v6967 = vadd.f32 %v6965, %v6966
        %v6968 = vrot.slane %v6967, 1
        %v6969 = vadd.f32 %v6967, %v6968
        %v6970 = vadd.f32 %v6300, %v6510
        %v6971 = vsel %vm1965, %v6720, 0.0
        %v6972 = vadd.f32 %v6970, %v6971
        %v6973 = vrot.slane %v6972, 4
        %v6974 = vadd.f32 %v6972, %v6973
        %v6975 = vrot.slane %v6974, 2
        %v6976 = vadd.f32 %v6974, %v6975
        %v6977 = vrot.slane %v6976, 1
        %v6978 = vadd.f32 %v6976, %v6977
        %v6979 = vadd.f32 %v6301, %v6511
        %v6980 = vsel %vm1965, %v6721, 0.0
        %v6981 = vadd.f32 %v6979, %v6980
        %v6982 = vrot.slane %v6981, 4
        %v6983 = vadd.f32 %v6981, %v6982
        %v6984 = vrot.slane %v6983, 2
        %v6985 = vadd.f32 %v6983, %v6984
        %v6986 = vrot.slane %v6985, 1
        %v6987 = vadd.f32 %v6985, %v6986
        %v6988 = vadd.f32 %v6302, %v6512
        %v6989 = vsel %vm1965, %v6722, 0.0
        %v6990 = vadd.f32 %v6988, %v6989
        %v6991 = vrot.slane %v6990, 4
        %v6992 = vadd.f32 %v6990, %v6991
        %v6993 = vrot.slane %v6992, 2
        %v6994 = vadd.f32 %v6992, %v6993
        %v6995 = vrot.slane %v6994, 1
        %v6996 = vadd.f32 %v6994, %v6995
        %v6997 = vadd.f32 %v6303, %v6513
        %v6998 = vsel %vm1965, %v6723, 0.0
        %v6999 = vadd.f32 %v6997, %v6998
        %v7000 = vrot.slane %v6999, 4
        %v7001 = vadd.f32 %v6999, %v7000
        %v7002 = vrot.slane %v7001, 2
        %v7003 = vadd.f32 %v7001, %v7002
        %v7004 = vrot.slane %v7003, 1
        %v7005 = vadd.f32 %v7003, %v7004
        %v7006 = vadd.f32 %v6304, %v6514
        %v7007 = vsel %vm1965, %v6724, 0.0
        %v7008 = vadd.f32 %v7006, %v7007
        %v7009 = vrot.slane %v7008, 4
        %v7010 = vadd.f32 %v7008, %v7009
        %v7011 = vrot.slane %v7010, 2
        %v7012 = vadd.f32 %v7010, %v7011
        %v7013 = vrot.slane %v7012, 1
        %v7014 = vadd.f32 %v7012, %v7013
        %v7015 = vadd.f32 %v6305, %v6515
        %v7016 = vsel %vm1965, %v6725, 0.0
        %v7017 = vadd.f32 %v7015, %v7016
        %v7018 = vrot.slane %v7017, 4
        %v7019 = vadd.f32 %v7017, %v7018
        %v7020 = vrot.slane %v7019, 2
        %v7021 = vadd.f32 %v7019, %v7020
        %v7022 = vrot.slane %v7021, 1
        %v7023 = vadd.f32 %v7021, %v7022
        %v7024 = vadd.f32 %v6306, %v6516
        %v7025 = vsel %vm1965, %v6726, 0.0
        %v7026 = vadd.f32 %v7024, %v7025
        %v7027 = vrot.slane %v7026, 4
        %v7028 = vadd.f32 %v7026, %v7027
        %v7029 = vrot.slane %v7028, 2
        %v7030 = vadd.f32 %v7028, %v7029
        %v7031 = vrot.slane %v7030, 1
        %v7032 = vadd.f32 %v7030, %v7031
        %v7033 = vadd.f32 %v6307, %v6517
        %v7034 = vsel %vm1965, %v6727, 0.0
        %v7035 = vadd.f32 %v7033, %v7034
        %v7036 = vrot.slane %v7035, 4
        %v7037 = vadd.f32 %v7035, %v7036
        %v7038 = vrot.slane %v7037, 2
        %v7039 = vadd.f32 %v7037, %v7038
        %v7040 = vrot.slane %v7039, 1
        %v7041 = vadd.f32 %v7039, %v7040
        %v7042 = vadd.f32 %v6308, %v6518
        %v7043 = vsel %vm1965, %v6728, 0.0
        %v7044 = vadd.f32 %v7042, %v7043
        %v7045 = vrot.slane %v7044, 4
        %v7046 = vadd.f32 %v7044, %v7045
        %v7047 = vrot.slane %v7046, 2
        %v7048 = vadd.f32 %v7046, %v7047
        %v7049 = vrot.slane %v7048, 1
        %v7050 = vadd.f32 %v7048, %v7049
        %v7051 = vadd.f32 %v6309, %v6519
        %v7052 = vsel %vm1965, %v6729, 0.0
        %v7053 = vadd.f32 %v7051, %v7052
        %v7054 = vrot.slane %v7053, 4
        %v7055 = vadd.f32 %v7053, %v7054
        %v7056 = vrot.slane %v7055, 2
        %v7057 = vadd.f32 %v7055, %v7056
        %v7058 = vrot.slane %v7057, 1
        %v7059 = vadd.f32 %v7057, %v7058
        %v7060 = vadd.f32 %v6310, %v6520
        %v7061 = vsel %vm1965, %v6730, 0.0
        %v7062 = vadd.f32 %v7060, %v7061
        %v7063 = vrot.slane %v7062, 4
        %v7064 = vadd.f32 %v7062, %v7063
        %v7065 = vrot.slane %v7064, 2
        %v7066 = vadd.f32 %v7064, %v7065
        %v7067 = vrot.slane %v7066, 1
        %v7068 = vadd.f32 %v7066, %v7067
        %v7069 = vadd.f32 %v6311, %v6521
        %v7070 = vsel %vm1965, %v6731, 0.0
        %v7071 = vadd.f32 %v7069, %v7070
        %v7072 = vrot.slane %v7071, 4
        %v7073 = vadd.f32 %v7071, %v7072
        %v7074 = vrot.slane %v7073, 2
        %v7075 = vadd.f32 %v7073, %v7074
        %v7076 = vrot.slane %v7075, 1
        %v7077 = vadd.f32 %v7075, %v7076
        %v7078 = vadd.f32 %v6312, %v6522
        %v7079 = vsel %vm1965, %v6732, 0.0
        %v7080 = vadd.f32 %v7078, %v7079
        %v7081 = vrot.slane %v7080, 4
        %v7082 = vadd.f32 %v7080, %v7081
        %v7083 = vrot.slane %v7082, 2
        %v7084 = vadd.f32 %v7082, %v7083
        %v7085 = vrot.slane %v7084, 1
        %v7086 = vadd.f32 %v7084, %v7085
        %v7087 = vadd.f32 %v6313, %v6523
        %v7088 = vsel %vm1965, %v6733, 0.0
        %v7089 = vadd.f32 %v7087, %v7088
        %v7090 = vrot.slane %v7089, 4
        %v7091 = vadd.f32 %v7089, %v7090
        %v7092 = vrot.slane %v7091, 2
        %v7093 = vadd.f32 %v7091, %v7092
        %v7094 = vrot.slane %v7093, 1
        %v7095 = vadd.f32 %v7093, %v7094
        %v7096 = vadd.f32 %v6314, %v6524
        %v7097 = vsel %vm1965, %v6734, 0.0
        %v7098 = vadd.f32 %v7096, %v7097
        %v7099 = vrot.slane %v7098, 4
        %v7100 = vadd.f32 %v7098, %v7099
        %v7101 = vrot.slane %v7100, 2
        %v7102 = vadd.f32 %v7100, %v7101
        %v7103 = vrot.slane %v7102, 1
        %v7104 = vadd.f32 %v7102, %v7103
        %v7105 = vadd.f32 %v6315, %v6525
        %v7106 = vsel %vm1965, %v6735, 0.0
        %v7107 = vadd.f32 %v7105, %v7106
        %v7108 = vrot.slane %v7107, 4
        %v7109 = vadd.f32 %v7107, %v7108
        %v7110 = vrot.slane %v7109, 2
        %v7111 = vadd.f32 %v7109, %v7110
        %v7112 = vrot.slane %v7111, 1
        %v7113 = vadd.f32 %v7111, %v7112
        %v7114 = vadd.f32 %v6316, %v6526
        %v7115 = vsel %vm1965, %v6736, 0.0
        %v7116 = vadd.f32 %v7114, %v7115
        %v7117 = vrot.slane %v7116, 4
        %v7118 = vadd.f32 %v7116, %v7117
        %v7119 = vrot.slane %v7118, 2
        %v7120 = vadd.f32 %v7118, %v7119
        %v7121 = vrot.slane %v7120, 1
        %v7122 = vadd.f32 %v7120, %v7121
        %v7123 = vadd.f32 %v6317, %v6527
        %v7124 = vsel %vm1965, %v6737, 0.0
        %v7125 = vadd.f32 %v7123, %v7124
        %v7126 = vrot.slane %v7125, 4
        %v7127 = vadd.f32 %v7125, %v7126
        %v7128 = vrot.slane %v7127, 2
        %v7129 = vadd.f32 %v7127, %v7128
        %v7130 = vrot.slane %v7129, 1
        %v7131 = vadd.f32 %v7129, %v7130
        %v7132 = vadd.f32 %v6318, %v6528
        %v7133 = vsel %vm1965, %v6738, 0.0
        %v7134 = vadd.f32 %v7132, %v7133
        %v7135 = vrot.slane %v7134, 4
        %v7136 = vadd.f32 %v7134, %v7135
        %v7137 = vrot.slane %v7136, 2
        %v7138 = vadd.f32 %v7136, %v7137
        %v7139 = vrot.slane %v7138, 1
        %v7140 = vadd.f32 %v7138, %v7139
        %v7141 = vadd.f32 %v6319, %v6529
        %v7142 = vsel %vm1965, %v6739, 0.0
        %v7143 = vadd.f32 %v7141, %v7142
        %v7144 = vrot.slane %v7143, 4
        %v7145 = vadd.f32 %v7143, %v7144
        %v7146 = vrot.slane %v7145, 2
        %v7147 = vadd.f32 %v7145, %v7146
        %v7148 = vrot.slane %v7147, 1
        %v7149 = vadd.f32 %v7147, %v7148
        %v7150 = vadd.f32 %v6320, %v6530
        %v7151 = vsel %vm1965, %v6740, 0.0
        %v7152 = vadd.f32 %v7150, %v7151
        %v7153 = vrot.slane %v7152, 4
        %v7154 = vadd.f32 %v7152, %v7153
        %v7155 = vrot.slane %v7154, 2
        %v7156 = vadd.f32 %v7154, %v7155
        %v7157 = vrot.slane %v7156, 1
        %v7158 = vadd.f32 %v7156, %v7157
        %v7159 = vadd.f32 %v6321, %v6531
        %v7160 = vsel %vm1965, %v6741, 0.0
        %v7161 = vadd.f32 %v7159, %v7160
        %v7162 = vrot.slane %v7161, 4
        %v7163 = vadd.f32 %v7161, %v7162
        %v7164 = vrot.slane %v7163, 2
        %v7165 = vadd.f32 %v7163, %v7164
        %v7166 = vrot.slane %v7165, 1
        %v7167 = vadd.f32 %v7165, %v7166
        %v7168 = vadd.f32 %v6322, %v6532
        %v7169 = vsel %vm1965, %v6742, 0.0
        %v7170 = vadd.f32 %v7168, %v7169
        %v7171 = vrot.slane %v7170, 4
        %v7172 = vadd.f32 %v7170, %v7171
        %v7173 = vrot.slane %v7172, 2
        %v7174 = vadd.f32 %v7172, %v7173
        %v7175 = vrot.slane %v7174, 1
        %v7176 = vadd.f32 %v7174, %v7175
        %v7177 = vadd.f32 %v6323, %v6533
        %v7178 = vsel %vm1965, %v6743, 0.0
        %v7179 = vadd.f32 %v7177, %v7178
        %v7180 = vrot.slane %v7179, 4
        %v7181 = vadd.f32 %v7179, %v7180
        %v7182 = vrot.slane %v7181, 2
        %v7183 = vadd.f32 %v7181, %v7182
        %v7184 = vrot.slane %v7183, 1
        %v7185 = vadd.f32 %v7183, %v7184
        %v7186 = vadd.f32 %v6324, %v6534
        %v7187 = vsel %vm1965, %v6744, 0.0
        %v7188 = vadd.f32 %v7186, %v7187
        %v7189 = vrot.slane %v7188, 4
        %v7190 = vadd.f32 %v7188, %v7189
        %v7191 = vrot.slane %v7190, 2
        %v7192 = vadd.f32 %v7190, %v7191
        %v7193 = vrot.slane %v7192, 1
        %v7194 = vadd.f32 %v7192, %v7193
        %v7195 = vadd.f32 %v6325, %v6535
        %v7196 = vsel %vm1965, %v6745, 0.0
        %v7197 = vadd.f32 %v7195, %v7196
        %v7198 = vrot.slane %v7197, 4
        %v7199 = vadd.f32 %v7197, %v7198
        %v7200 = vrot.slane %v7199, 2
        %v7201 = vadd.f32 %v7199, %v7200
        %v7202 = vrot.slane %v7201, 1
        %v7203 = vadd.f32 %v7201, %v7202
        %v7204 = vadd.f32 %v6326, %v6536
        %v7205 = vsel %vm1965, %v6746, 0.0
        %v7206 = vadd.f32 %v7204, %v7205
        %v7207 = vrot.slane %v7206, 4
        %v7208 = vadd.f32 %v7206, %v7207
        %v7209 = vrot.slane %v7208, 2
        %v7210 = vadd.f32 %v7208, %v7209
        %v7211 = vrot.slane %v7210, 1
        %v7212 = vadd.f32 %v7210, %v7211
        %v7213 = vadd.f32 %v6327, %v6537
        %v7214 = vsel %vm1965, %v6747, 0.0
        %v7215 = vadd.f32 %v7213, %v7214
        %v7216 = vrot.slane %v7215, 4
        %v7217 = vadd.f32 %v7215, %v7216
        %v7218 = vrot.slane %v7217, 2
        %v7219 = vadd.f32 %v7217, %v7218
        %v7220 = vrot.slane %v7219, 1
        %v7221 = vadd.f32 %v7219, %v7220
        %v7222 = vadd.f32 %v6328, %v6538
        %v7223 = vsel %vm1965, %v6748, 0.0
        %v7224 = vadd.f32 %v7222, %v7223
        %v7225 = vrot.slane %v7224, 4
        %v7226 = vadd.f32 %v7224, %v7225
        %v7227 = vrot.slane %v7226, 2
        %v7228 = vadd.f32 %v7226, %v7227
        %v7229 = vrot.slane %v7228, 1
        %v7230 = vadd.f32 %v7228, %v7229
        %v7231 = vadd.f32 %v6329, %v6539
        %v7232 = vsel %vm1965, %v6749, 0.0
        %v7233 = vadd.f32 %v7231, %v7232
        %v7234 = vrot.slane %v7233, 4
        %v7235 = vadd.f32 %v7233, %v7234
        %v7236 = vrot.slane %v7235, 2
        %v7237 = vadd.f32 %v7235, %v7236
        %v7238 = vrot.slane %v7237, 1
        %v7239 = vadd.f32 %v7237, %v7238
        %v7240 = vadd.f32 %v6330, %v6540
        %v7241 = vsel %vm1965, %v6750, 0.0
        %v7242 = vadd.f32 %v7240, %v7241
        %v7243 = vrot.slane %v7242, 4
        %v7244 = vadd.f32 %v7242, %v7243
        %v7245 = vrot.slane %v7244, 2
        %v7246 = vadd.f32 %v7244, %v7245
        %v7247 = vrot.slane %v7246, 1
        %v7248 = vadd.f32 %v7246, %v7247
        %v7249 = vadd.f32 %v6331, %v6541
        %v7250 = vsel %vm1965, %v6751, 0.0
        %v7251 = vadd.f32 %v7249, %v7250
        %v7252 = vrot.slane %v7251, 4
        %v7253 = vadd.f32 %v7251, %v7252
        %v7254 = vrot.slane %v7253, 2
        %v7255 = vadd.f32 %v7253, %v7254
        %v7256 = vrot.slane %v7255, 1
        %v7257 = vadd.f32 %v7255, %v7256
        %v7258 = vadd.f32 %v6332, %v6542
        %v7259 = vsel %vm1965, %v6752, 0.0
        %v7260 = vadd.f32 %v7258, %v7259
        %v7261 = vrot.slane %v7260, 4
        %v7262 = vadd.f32 %v7260, %v7261
        %v7263 = vrot.slane %v7262, 2
        %v7264 = vadd.f32 %v7262, %v7263
        %v7265 = vrot.slane %v7264, 1
        %v7266 = vadd.f32 %v7264, %v7265
        %v7267 = vadd.f32 %v6333, %v6543
        %v7268 = vsel %vm1965, %v6753, 0.0
        %v7269 = vadd.f32 %v7267, %v7268
        %v7270 = vrot.slane %v7269, 4
        %v7271 = vadd.f32 %v7269, %v7270
        %v7272 = vrot.slane %v7271, 2
        %v7273 = vadd.f32 %v7271, %v7272
        %v7274 = vrot.slane %v7273, 1
        %v7275 = vadd.f32 %v7273, %v7274
        %v7276 = vadd.f32 %v6334, %v6544
        %v7277 = vsel %vm1965, %v6754, 0.0
        %v7278 = vadd.f32 %v7276, %v7277
        %v7279 = vrot.slane %v7278, 4
        %v7280 = vadd.f32 %v7278, %v7279
        %v7281 = vrot.slane %v7280, 2
        %v7282 = vadd.f32 %v7280, %v7281
        %v7283 = vrot.slane %v7282, 1
        %v7284 = vadd.f32 %v7282, %v7283
        %v7285 = vadd.f32 %v6335, %v6545
        %v7286 = vsel %vm1965, %v6755, 0.0
        %v7287 = vadd.f32 %v7285, %v7286
        %v7288 = vrot.slane %v7287, 4
        %v7289 = vadd.f32 %v7287, %v7288
        %v7290 = vrot.slane %v7289, 2
        %v7291 = vadd.f32 %v7289, %v7290
        %v7292 = vrot.slane %v7291, 1
        %v7293 = vadd.f32 %v7291, %v7292
        %v7294 = vadd.f32 %v6336, %v6546
        %v7295 = vsel %vm1965, %v6756, 0.0
        %v7296 = vadd.f32 %v7294, %v7295
        %v7297 = vrot.slane %v7296, 4
        %v7298 = vadd.f32 %v7296, %v7297
        %v7299 = vrot.slane %v7298, 2
        %v7300 = vadd.f32 %v7298, %v7299
        %v7301 = vrot.slane %v7300, 1
        %v7302 = vadd.f32 %v7300, %v7301
        %v7303 = vadd.f32 %v6337, %v6547
        %v7304 = vsel %vm1965, %v6757, 0.0
        %v7305 = vadd.f32 %v7303, %v7304
        %v7306 = vrot.slane %v7305, 4
        %v7307 = vadd.f32 %v7305, %v7306
        %v7308 = vrot.slane %v7307, 2
        %v7309 = vadd.f32 %v7307, %v7308
        %v7310 = vrot.slane %v7309, 1
        %v7311 = vadd.f32 %v7309, %v7310
        %v7312 = vadd.f32 %v6338, %v6548
        %v7313 = vsel %vm1965, %v6758, 0.0
        %v7314 = vadd.f32 %v7312, %v7313
        %v7315 = vrot.slane %v7314, 4
        %v7316 = vadd.f32 %v7314, %v7315
        %v7317 = vrot.slane %v7316, 2
        %v7318 = vadd.f32 %v7316, %v7317
        %v7319 = vrot.slane %v7318, 1
        %v7320 = vadd.f32 %v7318, %v7319
        %v7321 = vadd.f32 %v6339, %v6549
        %v7322 = vsel %vm1965, %v6759, 0.0
        %v7323 = vadd.f32 %v7321, %v7322
        %v7324 = vrot.slane %v7323, 4
        %v7325 = vadd.f32 %v7323, %v7324
        %v7326 = vrot.slane %v7325, 2
        %v7327 = vadd.f32 %v7325, %v7326
        %v7328 = vrot.slane %v7327, 1
        %v7329 = vadd.f32 %v7327, %v7328
        %v7330 = vadd.f32 %v6340, %v6550
        %v7331 = vsel %vm1965, %v6760, 0.0
        %v7332 = vadd.f32 %v7330, %v7331
        %v7333 = vrot.slane %v7332, 4
        %v7334 = vadd.f32 %v7332, %v7333
        %v7335 = vrot.slane %v7334, 2
        %v7336 = vadd.f32 %v7334, %v7335
        %v7337 = vrot.slane %v7336, 1
        %v7338 = vadd.f32 %v7336, %v7337
        %v7339 = vadd.f32 %v6341, %v6551
        %v7340 = vsel %vm1965, %v6761, 0.0
        %v7341 = vadd.f32 %v7339, %v7340
        %v7342 = vrot.slane %v7341, 4
        %v7343 = vadd.f32 %v7341, %v7342
        %v7344 = vrot.slane %v7343, 2
        %v7345 = vadd.f32 %v7343, %v7344
        %v7346 = vrot.slane %v7345, 1
        %v7347 = vadd.f32 %v7345, %v7346
        %v7348 = vadd.f32 %v6342, %v6552
        %v7349 = vsel %vm1965, %v6762, 0.0
        %v7350 = vadd.f32 %v7348, %v7349
        %v7351 = vrot.slane %v7350, 4
        %v7352 = vadd.f32 %v7350, %v7351
        %v7353 = vrot.slane %v7352, 2
        %v7354 = vadd.f32 %v7352, %v7353
        %v7355 = vrot.slane %v7354, 1
        %v7356 = vadd.f32 %v7354, %v7355
        %v7357 = vadd.f32 %v6343, %v6553
        %v7358 = vsel %vm1965, %v6763, 0.0
        %v7359 = vadd.f32 %v7357, %v7358
        %v7360 = vrot.slane %v7359, 4
        %v7361 = vadd.f32 %v7359, %v7360
        %v7362 = vrot.slane %v7361, 2
        %v7363 = vadd.f32 %v7361, %v7362
        %v7364 = vrot.slane %v7363, 1
        %v7365 = vadd.f32 %v7363, %v7364
        %v7366 = vadd.f32 %v6344, %v6554
        %v7367 = vsel %vm1965, %v6764, 0.0
        %v7368 = vadd.f32 %v7366, %v7367
        %v7369 = vrot.slane %v7368, 4
        %v7370 = vadd.f32 %v7368, %v7369
        %v7371 = vrot.slane %v7370, 2
        %v7372 = vadd.f32 %v7370, %v7371
        %v7373 = vrot.slane %v7372, 1
        %v7374 = vadd.f32 %v7372, %v7373
        %v7375 = vadd.f32 %v6345, %v6555
        %v7376 = vsel %vm1965, %v6765, 0.0
        %v7377 = vadd.f32 %v7375, %v7376
        %v7378 = vrot.slane %v7377, 4
        %v7379 = vadd.f32 %v7377, %v7378
        %v7380 = vrot.slane %v7379, 2
        %v7381 = vadd.f32 %v7379, %v7380
        %v7382 = vrot.slane %v7381, 1
        %v7383 = vadd.f32 %v7381, %v7382
        %v7384 = vadd.f32 %v6346, %v6556
        %v7385 = vsel %vm1965, %v6766, 0.0
        %v7386 = vadd.f32 %v7384, %v7385
        %v7387 = vrot.slane %v7386, 4
        %v7388 = vadd.f32 %v7386, %v7387
        %v7389 = vrot.slane %v7388, 2
        %v7390 = vadd.f32 %v7388, %v7389
        %v7391 = vrot.slane %v7390, 1
        %v7392 = vadd.f32 %v7390, %v7391
        %v7393 = vadd.f32 %v6347, %v6557
        %v7394 = vsel %vm1965, %v6767, 0.0
        %v7395 = vadd.f32 %v7393, %v7394
        %v7396 = vrot.slane %v7395, 4
        %v7397 = vadd.f32 %v7395, %v7396
        %v7398 = vrot.slane %v7397, 2
        %v7399 = vadd.f32 %v7397, %v7398
        %v7400 = vrot.slane %v7399, 1
        %v7401 = vadd.f32 %v7399, %v7400
        %v7402 = vadd.f32 %v6348, %v6558
        %v7403 = vsel %vm1965, %v6768, 0.0
        %v7404 = vadd.f32 %v7402, %v7403
        %v7405 = vrot.slane %v7404, 4
        %v7406 = vadd.f32 %v7404, %v7405
        %v7407 = vrot.slane %v7406, 2
        %v7408 = vadd.f32 %v7406, %v7407
        %v7409 = vrot.slane %v7408, 1
        %v7410 = vadd.f32 %v7408, %v7409
        %v7411 = vadd.f32 %v6349, %v6559
        %v7412 = vsel %vm1965, %v6769, 0.0
        %v7413 = vadd.f32 %v7411, %v7412
        %v7414 = vrot.slane %v7413, 4
        %v7415 = vadd.f32 %v7413, %v7414
        %v7416 = vrot.slane %v7415, 2
        %v7417 = vadd.f32 %v7415, %v7416
        %v7418 = vrot.slane %v7417, 1
        %v7419 = vadd.f32 %v7417, %v7418
        %v7420 = vadd.f32 %v6350, %v6560
        %v7421 = vsel %vm1965, %v6770, 0.0
        %v7422 = vadd.f32 %v7420, %v7421
        %v7423 = vrot.slane %v7422, 4
        %v7424 = vadd.f32 %v7422, %v7423
        %v7425 = vrot.slane %v7424, 2
        %v7426 = vadd.f32 %v7424, %v7425
        %v7427 = vrot.slane %v7426, 1
        %v7428 = vadd.f32 %v7426, %v7427
        %v7429 = vadd.f32 %v6351, %v6561
        %v7430 = vsel %vm1965, %v6771, 0.0
        %v7431 = vadd.f32 %v7429, %v7430
        %v7432 = vrot.slane %v7431, 4
        %v7433 = vadd.f32 %v7431, %v7432
        %v7434 = vrot.slane %v7433, 2
        %v7435 = vadd.f32 %v7433, %v7434
        %v7436 = vrot.slane %v7435, 1
        %v7437 = vadd.f32 %v7435, %v7436
        %v7438 = vadd.f32 %v6352, %v6562
        %v7439 = vsel %vm1965, %v6772, 0.0
        %v7440 = vadd.f32 %v7438, %v7439
        %v7441 = vrot.slane %v7440, 4
        %v7442 = vadd.f32 %v7440, %v7441
        %v7443 = vrot.slane %v7442, 2
        %v7444 = vadd.f32 %v7442, %v7443
        %v7445 = vrot.slane %v7444, 1
        %v7446 = vadd.f32 %v7444, %v7445
        %v7447 = vadd.f32 %v6353, %v6563
        %v7448 = vsel %vm1965, %v6773, 0.0
        %v7449 = vadd.f32 %v7447, %v7448
        %v7450 = vrot.slane %v7449, 4
        %v7451 = vadd.f32 %v7449, %v7450
        %v7452 = vrot.slane %v7451, 2
        %v7453 = vadd.f32 %v7451, %v7452
        %v7454 = vrot.slane %v7453, 1
        %v7455 = vadd.f32 %v7453, %v7454
        %v7456 = vadd.f32 %v6354, %v6564
        %v7457 = vsel %vm1965, %v6774, 0.0
        %v7458 = vadd.f32 %v7456, %v7457
        %v7459 = vrot.slane %v7458, 4
        %v7460 = vadd.f32 %v7458, %v7459
        %v7461 = vrot.slane %v7460, 2
        %v7462 = vadd.f32 %v7460, %v7461
        %v7463 = vrot.slane %v7462, 1
        %v7464 = vadd.f32 %v7462, %v7463
        %v7465 = vadd.f32 %v6355, %v6565
        %v7466 = vsel %vm1965, %v6775, 0.0
        %v7467 = vadd.f32 %v7465, %v7466
        %v7468 = vrot.slane %v7467, 4
        %v7469 = vadd.f32 %v7467, %v7468
        %v7470 = vrot.slane %v7469, 2
        %v7471 = vadd.f32 %v7469, %v7470
        %v7472 = vrot.slane %v7471, 1
        %v7473 = vadd.f32 %v7471, %v7472
        %v7474 = vadd.f32 %v6356, %v6566
        %v7475 = vsel %vm1965, %v6776, 0.0
        %v7476 = vadd.f32 %v7474, %v7475
        %v7477 = vrot.slane %v7476, 4
        %v7478 = vadd.f32 %v7476, %v7477
        %v7479 = vrot.slane %v7478, 2
        %v7480 = vadd.f32 %v7478, %v7479
        %v7481 = vrot.slane %v7480, 1
        %v7482 = vadd.f32 %v7480, %v7481
        %v7483 = vadd.f32 %v6357, %v6567
        %v7484 = vsel %vm1965, %v6777, 0.0
        %v7485 = vadd.f32 %v7483, %v7484
        %v7486 = vrot.slane %v7485, 4
        %v7487 = vadd.f32 %v7485, %v7486
        %v7488 = vrot.slane %v7487, 2
        %v7489 = vadd.f32 %v7487, %v7488
        %v7490 = vrot.slane %v7489, 1
        %v7491 = vadd.f32 %v7489, %v7490
        %v7492 = vadd.f32 %v6358, %v6568
        %v7493 = vsel %vm1965, %v6778, 0.0
        %v7494 = vadd.f32 %v7492, %v7493
        %v7495 = vrot.slane %v7494, 4
        %v7496 = vadd.f32 %v7494, %v7495
        %v7497 = vrot.slane %v7496, 2
        %v7498 = vadd.f32 %v7496, %v7497
        %v7499 = vrot.slane %v7498, 1
        %v7500 = vadd.f32 %v7498, %v7499
        %v7501 = vadd.f32 %v6359, %v6569
        %v7502 = vsel %vm1965, %v6779, 0.0
        %v7503 = vadd.f32 %v7501, %v7502
        %v7504 = vrot.slane %v7503, 4
        %v7505 = vadd.f32 %v7503, %v7504
        %v7506 = vrot.slane %v7505, 2
        %v7507 = vadd.f32 %v7505, %v7506
        %v7508 = vrot.slane %v7507, 1
        %v7509 = vadd.f32 %v7507, %v7508
        %v7510 = vadd.f32 %v6360, %v6570
        %v7511 = vsel %vm1965, %v6780, 0.0
        %v7512 = vadd.f32 %v7510, %v7511
        %v7513 = vrot.slane %v7512, 4
        %v7514 = vadd.f32 %v7512, %v7513
        %v7515 = vrot.slane %v7514, 2
        %v7516 = vadd.f32 %v7514, %v7515
        %v7517 = vrot.slane %v7516, 1
        %v7518 = vadd.f32 %v7516, %v7517
        %v7519 = vadd.f32 %v6361, %v6571
        %v7520 = vsel %vm1965, %v6781, 0.0
        %v7521 = vadd.f32 %v7519, %v7520
        %v7522 = vrot.slane %v7521, 4
        %v7523 = vadd.f32 %v7521, %v7522
        %v7524 = vrot.slane %v7523, 2
        %v7525 = vadd.f32 %v7523, %v7524
        %v7526 = vrot.slane %v7525, 1
        %v7527 = vadd.f32 %v7525, %v7526
        %v7528 = vadd.f32 %v6362, %v6572
        %v7529 = vsel %vm1965, %v6782, 0.0
        %v7530 = vadd.f32 %v7528, %v7529
        %v7531 = vrot.slane %v7530, 4
        %v7532 = vadd.f32 %v7530, %v7531
        %v7533 = vrot.slane %v7532, 2
        %v7534 = vadd.f32 %v7532, %v7533
        %v7535 = vrot.slane %v7534, 1
        %v7536 = vadd.f32 %v7534, %v7535
        %v7537 = vadd.f32 %v6363, %v6573
        %v7538 = vsel %vm1965, %v6783, 0.0
        %v7539 = vadd.f32 %v7537, %v7538
        %v7540 = vrot.slane %v7539, 4
        %v7541 = vadd.f32 %v7539, %v7540
        %v7542 = vrot.slane %v7541, 2
        %v7543 = vadd.f32 %v7541, %v7542
        %v7544 = vrot.slane %v7543, 1
        %v7545 = vadd.f32 %v7543, %v7544
        %v7546 = vadd.f32 %v6364, %v6574
        %v7547 = vsel %vm1965, %v6784, 0.0
        %v7548 = vadd.f32 %v7546, %v7547
        %v7549 = vrot.slane %v7548, 4
        %v7550 = vadd.f32 %v7548, %v7549
        %v7551 = vrot.slane %v7550, 2
        %v7552 = vadd.f32 %v7550, %v7551
        %v7553 = vrot.slane %v7552, 1
        %v7554 = vadd.f32 %v7552, %v7553
        %v7555 = vadd.f32 %v6365, %v6575
        %v7556 = vsel %vm1965, %v6785, 0.0
        %v7557 = vadd.f32 %v7555, %v7556
        %v7558 = vrot.slane %v7557, 4
        %v7559 = vadd.f32 %v7557, %v7558
        %v7560 = vrot.slane %v7559, 2
        %v7561 = vadd.f32 %v7559, %v7560
        %v7562 = vrot.slane %v7561, 1
        %v7563 = vadd.f32 %v7561, %v7562
        %v7564 = vadd.f32 %v6366, %v6576
        %v7565 = vsel %vm1965, %v6786, 0.0
        %v7566 = vadd.f32 %v7564, %v7565
        %v7567 = vrot.slane %v7566, 4
        %v7568 = vadd.f32 %v7566, %v7567
        %v7569 = vrot.slane %v7568, 2
        %v7570 = vadd.f32 %v7568, %v7569
        %v7571 = vrot.slane %v7570, 1
        %v7572 = vadd.f32 %v7570, %v7571
        %v7573 = vadd.f32 %v6367, %v6577
        %v7574 = vsel %vm1965, %v6787, 0.0
        %v7575 = vadd.f32 %v7573, %v7574
        %v7576 = vrot.slane %v7575, 4
        %v7577 = vadd.f32 %v7575, %v7576
        %v7578 = vrot.slane %v7577, 2
        %v7579 = vadd.f32 %v7577, %v7578
        %v7580 = vrot.slane %v7579, 1
        %v7581 = vadd.f32 %v7579, %v7580
        %v7582 = vadd.f32 %v6368, %v6578
        %v7583 = vsel %vm1965, %v6788, 0.0
        %v7584 = vadd.f32 %v7582, %v7583
        %v7585 = vrot.slane %v7584, 4
        %v7586 = vadd.f32 %v7584, %v7585
        %v7587 = vrot.slane %v7586, 2
        %v7588 = vadd.f32 %v7586, %v7587
        %v7589 = vrot.slane %v7588, 1
        %v7590 = vadd.f32 %v7588, %v7589
        %v7591 = vadd.f32 %v6369, %v6579
        %v7592 = vsel %vm1965, %v6789, 0.0
        %v7593 = vadd.f32 %v7591, %v7592
        %v7594 = vrot.slane %v7593, 4
        %v7595 = vadd.f32 %v7593, %v7594
        %v7596 = vrot.slane %v7595, 2
        %v7597 = vadd.f32 %v7595, %v7596
        %v7598 = vrot.slane %v7597, 1
        %v7599 = vadd.f32 %v7597, %v7598
        %v7600 = vadd.f32 %v6370, %v6580
        %v7601 = vsel %vm1965, %v6790, 0.0
        %v7602 = vadd.f32 %v7600, %v7601
        %v7603 = vrot.slane %v7602, 4
        %v7604 = vadd.f32 %v7602, %v7603
        %v7605 = vrot.slane %v7604, 2
        %v7606 = vadd.f32 %v7604, %v7605
        %v7607 = vrot.slane %v7606, 1
        %v7608 = vadd.f32 %v7606, %v7607
        %v7609 = vadd.f32 %v6371, %v6581
        %v7610 = vsel %vm1965, %v6791, 0.0
        %v7611 = vadd.f32 %v7609, %v7610
        %v7612 = vrot.slane %v7611, 4
        %v7613 = vadd.f32 %v7611, %v7612
        %v7614 = vrot.slane %v7613, 2
        %v7615 = vadd.f32 %v7613, %v7614
        %v7616 = vrot.slane %v7615, 1
        %v7617 = vadd.f32 %v7615, %v7616
        %v7618 = vadd.f32 %v6372, %v6582
        %v7619 = vsel %vm1965, %v6792, 0.0
        %v7620 = vadd.f32 %v7618, %v7619
        %v7621 = vrot.slane %v7620, 4
        %v7622 = vadd.f32 %v7620, %v7621
        %v7623 = vrot.slane %v7622, 2
        %v7624 = vadd.f32 %v7622, %v7623
        %v7625 = vrot.slane %v7624, 1
        %v7626 = vadd.f32 %v7624, %v7625
        %v7627 = vadd.f32 %v6373, %v6583
        %v7628 = vsel %vm1965, %v6793, 0.0
        %v7629 = vadd.f32 %v7627, %v7628
        %v7630 = vrot.slane %v7629, 4
        %v7631 = vadd.f32 %v7629, %v7630
        %v7632 = vrot.slane %v7631, 2
        %v7633 = vadd.f32 %v7631, %v7632
        %v7634 = vrot.slane %v7633, 1
        %v7635 = vadd.f32 %v7633, %v7634
        %v7636 = vadd.f32 %v6374, %v6584
        %v7637 = vsel %vm1965, %v6794, 0.0
        %v7638 = vadd.f32 %v7636, %v7637
        %v7639 = vrot.slane %v7638, 4
        %v7640 = vadd.f32 %v7638, %v7639
        %v7641 = vrot.slane %v7640, 2
        %v7642 = vadd.f32 %v7640, %v7641
        %v7643 = vrot.slane %v7642, 1
        %v7644 = vadd.f32 %v7642, %v7643
        %v7645 = vadd.f32 %v6375, %v6585
        %v7646 = vsel %vm1965, %v6795, 0.0
        %v7647 = vadd.f32 %v7645, %v7646
        %v7648 = vrot.slane %v7647, 4
        %v7649 = vadd.f32 %v7647, %v7648
        %v7650 = vrot.slane %v7649, 2
        %v7651 = vadd.f32 %v7649, %v7650
        %v7652 = vrot.slane %v7651, 1
        %v7653 = vadd.f32 %v7651, %v7652
        %v7654 = vadd.f32 %v6376, %v6586
        %v7655 = vsel %vm1965, %v6796, 0.0
        %v7656 = vadd.f32 %v7654, %v7655
        %v7657 = vrot.slane %v7656, 4
        %v7658 = vadd.f32 %v7656, %v7657
        %v7659 = vrot.slane %v7658, 2
        %v7660 = vadd.f32 %v7658, %v7659
        %v7661 = vrot.slane %v7660, 1
        %v7662 = vadd.f32 %v7660, %v7661
        %v7663 = vadd.f32 %v6377, %v6587
        %v7664 = vsel %vm1965, %v6797, 0.0
        %v7665 = vadd.f32 %v7663, %v7664
        %v7666 = vrot.slane %v7665, 4
        %v7667 = vadd.f32 %v7665, %v7666
        %v7668 = vrot.slane %v7667, 2
        %v7669 = vadd.f32 %v7667, %v7668
        %v7670 = vrot.slane %v7669, 1
        %v7671 = vadd.f32 %v7669, %v7670
        %v7672 = vadd.f32 %v6378, %v6588
        %v7673 = vsel %vm1965, %v6798, 0.0
        %v7674 = vadd.f32 %v7672, %v7673
        %v7675 = vrot.slane %v7674, 4
        %v7676 = vadd.f32 %v7674, %v7675
        %v7677 = vrot.slane %v7676, 2
        %v7678 = vadd.f32 %v7676, %v7677
        %v7679 = vrot.slane %v7678, 1
        %v7680 = vadd.f32 %v7678, %v7679
        %v7681 = vadd.f32 %v6379, %v6589
        %v7682 = vsel %vm1965, %v6799, 0.0
        %v7683 = vadd.f32 %v7681, %v7682
        %v7684 = vrot.slane %v7683, 4
        %v7685 = vadd.f32 %v7683, %v7684
        %v7686 = vrot.slane %v7685, 2
        %v7687 = vadd.f32 %v7685, %v7686
        %v7688 = vrot.slane %v7687, 1
        %v7689 = vadd.f32 %v7687, %v7688
        %v7690 = vadd.f32 %v6380, %v6590
        %v7691 = vsel %vm1965, %v6800, 0.0
        %v7692 = vadd.f32 %v7690, %v7691
        %v7693 = vrot.slane %v7692, 4
        %v7694 = vadd.f32 %v7692, %v7693
        %v7695 = vrot.slane %v7694, 2
        %v7696 = vadd.f32 %v7694, %v7695
        %v7697 = vrot.slane %v7696, 1
        %v7698 = vadd.f32 %v7696, %v7697
        %v7699 = vadd.f32 %v6381, %v6591
        %v7700 = vsel %vm1965, %v6801, 0.0
        %v7701 = vadd.f32 %v7699, %v7700
        %v7702 = vrot.slane %v7701, 4
        %v7703 = vadd.f32 %v7701, %v7702
        %v7704 = vrot.slane %v7703, 2
        %v7705 = vadd.f32 %v7703, %v7704
        %v7706 = vrot.slane %v7705, 1
        %v7707 = vadd.f32 %v7705, %v7706
        %v7708 = vadd.f32 %v6382, %v6592
        %v7709 = vsel %vm1965, %v6802, 0.0
        %v7710 = vadd.f32 %v7708, %v7709
        %v7711 = vrot.slane %v7710, 4
        %v7712 = vadd.f32 %v7710, %v7711
        %v7713 = vrot.slane %v7712, 2
        %v7714 = vadd.f32 %v7712, %v7713
        %v7715 = vrot.slane %v7714, 1
        %v7716 = vadd.f32 %v7714, %v7715
        %v7717 = vadd.f32 %v6383, %v6593
        %v7718 = vsel %vm1965, %v6803, 0.0
        %v7719 = vadd.f32 %v7717, %v7718
        %v7720 = vrot.slane %v7719, 4
        %v7721 = vadd.f32 %v7719, %v7720
        %v7722 = vrot.slane %v7721, 2
        %v7723 = vadd.f32 %v7721, %v7722
        %v7724 = vrot.slane %v7723, 1
        %v7725 = vadd.f32 %v7723, %v7724
        %v7726 = vadd.f32 %v6384, %v6594
        %v7727 = vsel %vm1965, %v6804, 0.0
        %v7728 = vadd.f32 %v7726, %v7727
        %v7729 = vrot.slane %v7728, 4
        %v7730 = vadd.f32 %v7728, %v7729
        %v7731 = vrot.slane %v7730, 2
        %v7732 = vadd.f32 %v7730, %v7731
        %v7733 = vrot.slane %v7732, 1
        %v7734 = vadd.f32 %v7732, %v7733
        %v7735 = vadd.f32 %v6385, %v6595
        %v7736 = vsel %vm1965, %v6805, 0.0
        %v7737 = vadd.f32 %v7735, %v7736
        %v7738 = vrot.slane %v7737, 4
        %v7739 = vadd.f32 %v7737, %v7738
        %v7740 = vrot.slane %v7739, 2
        %v7741 = vadd.f32 %v7739, %v7740
        %v7742 = vrot.slane %v7741, 1
        %v7743 = vadd.f32 %v7741, %v7742
        %v7744 = vadd.f32 %v6386, %v6596
        %v7745 = vsel %vm1965, %v6806, 0.0
        %v7746 = vadd.f32 %v7744, %v7745
        %v7747 = vrot.slane %v7746, 4
        %v7748 = vadd.f32 %v7746, %v7747
        %v7749 = vrot.slane %v7748, 2
        %v7750 = vadd.f32 %v7748, %v7749
        %v7751 = vrot.slane %v7750, 1
        %v7752 = vadd.f32 %v7750, %v7751
        %v7753 = vadd.f32 %v6387, %v6597
        %v7754 = vsel %vm1965, %v6807, 0.0
        %v7755 = vadd.f32 %v7753, %v7754
        %v7756 = vrot.slane %v7755, 4
        %v7757 = vadd.f32 %v7755, %v7756
        %v7758 = vrot.slane %v7757, 2
        %v7759 = vadd.f32 %v7757, %v7758
        %v7760 = vrot.slane %v7759, 1
        %v7761 = vadd.f32 %v7759, %v7760
        %v7762 = vadd.f32 %v6388, %v6598
        %v7763 = vsel %vm1965, %v6808, 0.0
        %v7764 = vadd.f32 %v7762, %v7763
        %v7765 = vrot.slane %v7764, 4
        %v7766 = vadd.f32 %v7764, %v7765
        %v7767 = vrot.slane %v7766, 2
        %v7768 = vadd.f32 %v7766, %v7767
        %v7769 = vrot.slane %v7768, 1
        %v7770 = vadd.f32 %v7768, %v7769
        %v7771 = vadd.f32 %v6389, %v6599
        %v7772 = vsel %vm1965, %v6809, 0.0
        %v7773 = vadd.f32 %v7771, %v7772
        %v7774 = vrot.slane %v7773, 4
        %v7775 = vadd.f32 %v7773, %v7774
        %v7776 = vrot.slane %v7775, 2
        %v7777 = vadd.f32 %v7775, %v7776
        %v7778 = vrot.slane %v7777, 1
        %v7779 = vadd.f32 %v7777, %v7778
        %v7780 = vadd.f32 %v6390, %v6600
        %v7781 = vsel %vm1965, %v6810, 0.0
        %v7782 = vadd.f32 %v7780, %v7781
        %v7783 = vrot.slane %v7782, 4
        %v7784 = vadd.f32 %v7782, %v7783
        %v7785 = vrot.slane %v7784, 2
        %v7786 = vadd.f32 %v7784, %v7785
        %v7787 = vrot.slane %v7786, 1
        %v7788 = vadd.f32 %v7786, %v7787
        %v7789 = vadd.f32 %v6391, %v6601
        %v7790 = vsel %vm1965, %v6811, 0.0
        %v7791 = vadd.f32 %v7789, %v7790
        %v7792 = vrot.slane %v7791, 4
        %v7793 = vadd.f32 %v7791, %v7792
        %v7794 = vrot.slane %v7793, 2
        %v7795 = vadd.f32 %v7793, %v7794
        %v7796 = vrot.slane %v7795, 1
        %v7797 = vadd.f32 %v7795, %v7796
        %v7798 = vadd.f32 %v6392, %v6602
        %v7799 = vsel %vm1965, %v6812, 0.0
        %v7800 = vadd.f32 %v7798, %v7799
        %v7801 = vrot.slane %v7800, 4
        %v7802 = vadd.f32 %v7800, %v7801
        %v7803 = vrot.slane %v7802, 2
        %v7804 = vadd.f32 %v7802, %v7803
        %v7805 = vrot.slane %v7804, 1
        %v7806 = vadd.f32 %v7804, %v7805
        %v7807 = vadd.f32 %v6393, %v6603
        %v7808 = vsel %vm1965, %v6813, 0.0
        %v7809 = vadd.f32 %v7807, %v7808
        %v7810 = vrot.slane %v7809, 4
        %v7811 = vadd.f32 %v7809, %v7810
        %v7812 = vrot.slane %v7811, 2
        %v7813 = vadd.f32 %v7811, %v7812
        %v7814 = vrot.slane %v7813, 1
        %v7815 = vadd.f32 %v7813, %v7814
        %v7816 = vadd.f32 %v6394, %v6604
        %v7817 = vsel %vm1965, %v6814, 0.0
        %v7818 = vadd.f32 %v7816, %v7817
        %v7819 = vrot.slane %v7818, 4
        %v7820 = vadd.f32 %v7818, %v7819
        %v7821 = vrot.slane %v7820, 2
        %v7822 = vadd.f32 %v7820, %v7821
        %v7823 = vrot.slane %v7822, 1
        %v7824 = vadd.f32 %v7822, %v7823
        %v7825 = vadd.f32 %v6395, %v6605
        %v7826 = vsel %vm1965, %v6815, 0.0
        %v7827 = vadd.f32 %v7825, %v7826
        %v7828 = vrot.slane %v7827, 4
        %v7829 = vadd.f32 %v7827, %v7828
        %v7830 = vrot.slane %v7829, 2
        %v7831 = vadd.f32 %v7829, %v7830
        %v7832 = vrot.slane %v7831, 1
        %v7833 = vadd.f32 %v7831, %v7832
        %v7834 = vadd.f32 %v6396, %v6606
        %v7835 = vsel %vm1965, %v6816, 0.0
        %v7836 = vadd.f32 %v7834, %v7835
        %v7837 = vrot.slane %v7836, 4
        %v7838 = vadd.f32 %v7836, %v7837
        %v7839 = vrot.slane %v7838, 2
        %v7840 = vadd.f32 %v7838, %v7839
        %v7841 = vrot.slane %v7840, 1
        %v7842 = vadd.f32 %v7840, %v7841
        %v7843 = vadd.f32 %v6397, %v6607
        %v7844 = vsel %vm1965, %v6817, 0.0
        %v7845 = vadd.f32 %v7843, %v7844
        %v7846 = vrot.slane %v7845, 4
        %v7847 = vadd.f32 %v7845, %v7846
        %v7848 = vrot.slane %v7847, 2
        %v7849 = vadd.f32 %v7847, %v7848
        %v7850 = vrot.slane %v7849, 1
        %v7851 = vadd.f32 %v7849, %v7850
        %v7852 = vadd.f32 %v6398, %v6608
        %v7853 = vsel %vm1965, %v6818, 0.0
        %v7854 = vadd.f32 %v7852, %v7853
        %v7855 = vrot.slane %v7854, 4
        %v7856 = vadd.f32 %v7854, %v7855
        %v7857 = vrot.slane %v7856, 2
        %v7858 = vadd.f32 %v7856, %v7857
        %v7859 = vrot.slane %v7858, 1
        %v7860 = vadd.f32 %v7858, %v7859
        %v7861 = vadd.f32 %v6399, %v6609
        %v7862 = vsel %vm1965, %v6819, 0.0
        %v7863 = vadd.f32 %v7861, %v7862
        %v7864 = vrot.slane %v7863, 4
        %v7865 = vadd.f32 %v7863, %v7864
        %v7866 = vrot.slane %v7865, 2
        %v7867 = vadd.f32 %v7865, %v7866
        %v7868 = vrot.slane %v7867, 1
        %v7869 = vadd.f32 %v7867, %v7868
        %v7870 = vadd.f32 %v6400, %v6610
        %v7871 = vsel %vm1965, %v6820, 0.0
        %v7872 = vadd.f32 %v7870, %v7871
        %v7873 = vrot.slane %v7872, 4
        %v7874 = vadd.f32 %v7872, %v7873
        %v7875 = vrot.slane %v7874, 2
        %v7876 = vadd.f32 %v7874, %v7875
        %v7877 = vrot.slane %v7876, 1
        %v7878 = vadd.f32 %v7876, %v7877
        %v7879 = vadd.f32 %v6401, %v6611
        %v7880 = vsel %vm1965, %v6821, 0.0
        %v7881 = vadd.f32 %v7879, %v7880
        %v7882 = vrot.slane %v7881, 4
        %v7883 = vadd.f32 %v7881, %v7882
        %v7884 = vrot.slane %v7883, 2
        %v7885 = vadd.f32 %v7883, %v7884
        %v7886 = vrot.slane %v7885, 1
        %v7887 = vadd.f32 %v7885, %v7886
        %v7888 = vadd.f32 %v6402, %v6612
        %v7889 = vsel %vm1965, %v6822, 0.0
        %v7890 = vadd.f32 %v7888, %v7889
        %v7891 = vrot.slane %v7890, 4
        %v7892 = vadd.f32 %v7890, %v7891
        %v7893 = vrot.slane %v7892, 2
        %v7894 = vadd.f32 %v7892, %v7893
        %v7895 = vrot.slane %v7894, 1
        %v7896 = vadd.f32 %v7894, %v7895
        %v7897 = vadd.f32 %v6403, %v6613
        %v7898 = vsel %vm1965, %v6823, 0.0
        %v7899 = vadd.f32 %v7897, %v7898
        %v7900 = vrot.slane %v7899, 4
        %v7901 = vadd.f32 %v7899, %v7900
        %v7902 = vrot.slane %v7901, 2
        %v7903 = vadd.f32 %v7901, %v7902
        %v7904 = vrot.slane %v7903, 1
        %v7905 = vadd.f32 %v7903, %v7904
        %v7906 = vadd.f32 %v6404, %v6614
        %v7907 = vsel %vm1965, %v6824, 0.0
        %v7908 = vadd.f32 %v7906, %v7907
        %v7909 = vrot.slane %v7908, 4
        %v7910 = vadd.f32 %v7908, %v7909
        %v7911 = vrot.slane %v7910, 2
        %v7912 = vadd.f32 %v7910, %v7911
        %v7913 = vrot.slane %v7912, 1
        %v7914 = vadd.f32 %v7912, %v7913
        %v7915 = vadd.f32 %v6405, %v6615
        %v7916 = vsel %vm1965, %v6825, 0.0
        %v7917 = vadd.f32 %v7915, %v7916
        %v7918 = vrot.slane %v7917, 4
        %v7919 = vadd.f32 %v7917, %v7918
        %v7920 = vrot.slane %v7919, 2
        %v7921 = vadd.f32 %v7919, %v7920
        %v7922 = vrot.slane %v7921, 1
        %v7923 = vadd.f32 %v7921, %v7922
        %v7924 = vadd.f32 %v6406, %v6616
        %v7925 = vsel %vm1965, %v6826, 0.0
        %v7926 = vadd.f32 %v7924, %v7925
        %v7927 = vrot.slane %v7926, 4
        %v7928 = vadd.f32 %v7926, %v7927
        %v7929 = vrot.slane %v7928, 2
        %v7930 = vadd.f32 %v7928, %v7929
        %v7931 = vrot.slane %v7930, 1
        %v7932 = vadd.f32 %v7930, %v7931
        %v7933 = vadd.f32 %v6407, %v6617
        %v7934 = vsel %vm1965, %v6827, 0.0
        %v7935 = vadd.f32 %v7933, %v7934
        %v7936 = vrot.slane %v7935, 4
        %v7937 = vadd.f32 %v7935, %v7936
        %v7938 = vrot.slane %v7937, 2
        %v7939 = vadd.f32 %v7937, %v7938
        %v7940 = vrot.slane %v7939, 1
        %v7941 = vadd.f32 %v7939, %v7940
        %v7942 = vadd.f32 %v6408, %v6618
        %v7943 = vsel %vm1965, %v6828, 0.0
        %v7944 = vadd.f32 %v7942, %v7943
        %v7945 = vrot.slane %v7944, 4
        %v7946 = vadd.f32 %v7944, %v7945
        %v7947 = vrot.slane %v7946, 2
        %v7948 = vadd.f32 %v7946, %v7947
        %v7949 = vrot.slane %v7948, 1
        %v7950 = vadd.f32 %v7948, %v7949
        %v7951 = vadd.f32 %v6409, %v6619
        %v7952 = vsel %vm1965, %v6829, 0.0
        %v7953 = vadd.f32 %v7951, %v7952
        %v7954 = vrot.slane %v7953, 4
        %v7955 = vadd.f32 %v7953, %v7954
        %v7956 = vrot.slane %v7955, 2
        %v7957 = vadd.f32 %v7955, %v7956
        %v7958 = vrot.slane %v7957, 1
        %v7959 = vadd.f32 %v7957, %v7958
        %v7960 = vadd.f32 %v6410, %v6620
        %v7961 = vsel %vm1965, %v6830, 0.0
        %v7962 = vadd.f32 %v7960, %v7961
        %v7963 = vrot.slane %v7962, 4
        %v7964 = vadd.f32 %v7962, %v7963
        %v7965 = vrot.slane %v7964, 2
        %v7966 = vadd.f32 %v7964, %v7965
        %v7967 = vrot.slane %v7966, 1
        %v7968 = vadd.f32 %v7966, %v7967
        %v7969 = vadd.f32 %v6411, %v6621
        %v7970 = vsel %vm1965, %v6831, 0.0
        %v7971 = vadd.f32 %v7969, %v7970
        %v7972 = vrot.slane %v7971, 4
        %v7973 = vadd.f32 %v7971, %v7972
        %v7974 = vrot.slane %v7973, 2
        %v7975 = vadd.f32 %v7973, %v7974
        %v7976 = vrot.slane %v7975, 1
        %v7977 = vadd.f32 %v7975, %v7976
        %v7978 = vadd.f32 %v6412, %v6622
        %v7979 = vsel %vm1965, %v6832, 0.0
        %v7980 = vadd.f32 %v7978, %v7979
        %v7981 = vrot.slane %v7980, 4
        %v7982 = vadd.f32 %v7980, %v7981
        %v7983 = vrot.slane %v7982, 2
        %v7984 = vadd.f32 %v7982, %v7983
        %v7985 = vrot.slane %v7984, 1
        %v7986 = vadd.f32 %v7984, %v7985
        %v7987 = vadd.f32 %v6413, %v6623
        %v7988 = vsel %vm1965, %v6833, 0.0
        %v7989 = vadd.f32 %v7987, %v7988
        %v7990 = vrot.slane %v7989, 4
        %v7991 = vadd.f32 %v7989, %v7990
        %v7992 = vrot.slane %v7991, 2
        %v7993 = vadd.f32 %v7991, %v7992
        %v7994 = vrot.slane %v7993, 1
        %v7995 = vadd.f32 %v7993, %v7994
        %v7996 = vadd.f32 %v6414, %v6624
        %v7997 = vsel %vm1965, %v6834, 0.0
        %v7998 = vadd.f32 %v7996, %v7997
        %v7999 = vrot.slane %v7998, 4
        %v8000 = vadd.f32 %v7998, %v7999
        %v8001 = vrot.slane %v8000, 2
        %v8002 = vadd.f32 %v8000, %v8001
        %v8003 = vrot.slane %v8002, 1
        %v8004 = vadd.f32 %v8002, %v8003
        %v8005 = vadd.f32 %v6415, %v6625
        %v8006 = vsel %vm1965, %v6835, 0.0
        %v8007 = vadd.f32 %v8005, %v8006
        %v8008 = vrot.slane %v8007, 4
        %v8009 = vadd.f32 %v8007, %v8008
        %v8010 = vrot.slane %v8009, 2
        %v8011 = vadd.f32 %v8009, %v8010
        %v8012 = vrot.slane %v8011, 1
        %v8013 = vadd.f32 %v8011, %v8012
        %v8014 = vadd.f32 %v6416, %v6626
        %v8015 = vsel %vm1965, %v6836, 0.0
        %v8016 = vadd.f32 %v8014, %v8015
        %v8017 = vrot.slane %v8016, 4
        %v8018 = vadd.f32 %v8016, %v8017
        %v8019 = vrot.slane %v8018, 2
        %v8020 = vadd.f32 %v8018, %v8019
        %v8021 = vrot.slane %v8020, 1
        %v8022 = vadd.f32 %v8020, %v8021
        %v8023 = vadd.f32 %v6417, %v6627
        %v8024 = vsel %vm1965, %v6837, 0.0
        %v8025 = vadd.f32 %v8023, %v8024
        %v8026 = vrot.slane %v8025, 4
        %v8027 = vadd.f32 %v8025, %v8026
        %v8028 = vrot.slane %v8027, 2
        %v8029 = vadd.f32 %v8027, %v8028
        %v8030 = vrot.slane %v8029, 1
        %v8031 = vadd.f32 %v8029, %v8030
        %v8032 = vadd.f32 %v6418, %v6628
        %v8033 = vsel %vm1965, %v6838, 0.0
        %v8034 = vadd.f32 %v8032, %v8033
        %v8035 = vrot.slane %v8034, 4
        %v8036 = vadd.f32 %v8034, %v8035
        %v8037 = vrot.slane %v8036, 2
        %v8038 = vadd.f32 %v8036, %v8037
        %v8039 = vrot.slane %v8038, 1
        %v8040 = vadd.f32 %v8038, %v8039
        %v8041 = vadd.f32 %v6419, %v6629
        %v8042 = vsel %vm1965, %v6839, 0.0
        %v8043 = vadd.f32 %v8041, %v8042
        %v8044 = vrot.slane %v8043, 4
        %v8045 = vadd.f32 %v8043, %v8044
        %v8046 = vrot.slane %v8045, 2
        %v8047 = vadd.f32 %v8045, %v8046
        %v8048 = vrot.slane %v8047, 1
        %v8049 = vadd.f32 %v8047, %v8048
        %v8050 = vadd.f32 %v6420, %v6630
        %v8051 = vsel %vm1965, %v6840, 0.0
        %v8052 = vadd.f32 %v8050, %v8051
        %v8053 = vrot.slane %v8052, 4
        %v8054 = vadd.f32 %v8052, %v8053
        %v8055 = vrot.slane %v8054, 2
        %v8056 = vadd.f32 %v8054, %v8055
        %v8057 = vrot.slane %v8056, 1
        %v8058 = vadd.f32 %v8056, %v8057
        %v8059 = vadd.f32 %v6421, %v6631
        %v8060 = vsel %vm1965, %v6841, 0.0
        %v8061 = vadd.f32 %v8059, %v8060
        %v8062 = vrot.slane %v8061, 4
        %v8063 = vadd.f32 %v8061, %v8062
        %v8064 = vrot.slane %v8063, 2
        %v8065 = vadd.f32 %v8063, %v8064
        %v8066 = vrot.slane %v8065, 1
        %v8067 = vadd.f32 %v8065, %v8066
        %v8068 = vadd.f32 %v6422, %v6632
        %v8069 = vsel %vm1965, %v6842, 0.0
        %v8070 = vadd.f32 %v8068, %v8069
        %v8071 = vrot.slane %v8070, 4
        %v8072 = vadd.f32 %v8070, %v8071
        %v8073 = vrot.slane %v8072, 2
        %v8074 = vadd.f32 %v8072, %v8073
        %v8075 = vrot.slane %v8074, 1
        %v8076 = vadd.f32 %v8074, %v8075
        %v8077 = vadd.f32 %v6423, %v6633
        %v8078 = vsel %vm1965, %v6843, 0.0
        %v8079 = vadd.f32 %v8077, %v8078
        %v8080 = vrot.slane %v8079, 4
        %v8081 = vadd.f32 %v8079, %v8080
        %v8082 = vrot.slane %v8081, 2
        %v8083 = vadd.f32 %v8081, %v8082
        %v8084 = vrot.slane %v8083, 1
        %v8085 = vadd.f32 %v8083, %v8084
        %v8086 = vadd.f32 %v6424, %v6634
        %v8087 = vsel %vm1965, %v6844, 0.0
        %v8088 = vadd.f32 %v8086, %v8087
        %v8089 = vrot.slane %v8088, 4
        %v8090 = vadd.f32 %v8088, %v8089
        %v8091 = vrot.slane %v8090, 2
        %v8092 = vadd.f32 %v8090, %v8091
        %v8093 = vrot.slane %v8092, 1
        %v8094 = vadd.f32 %v8092, %v8093
        %v8095 = vadd.f32 %v6425, %v6635
        %v8096 = vsel %vm1965, %v6845, 0.0
        %v8097 = vadd.f32 %v8095, %v8096
        %v8098 = vrot.slane %v8097, 4
        %v8099 = vadd.f32 %v8097, %v8098
        %v8100 = vrot.slane %v8099, 2
        %v8101 = vadd.f32 %v8099, %v8100
        %v8102 = vrot.slane %v8101, 1
        %v8103 = vadd.f32 %v8101, %v8102
        %v8104 = vadd.f32 %v6426, %v6636
        %v8105 = vsel %vm1965, %v6846, 0.0
        %v8106 = vadd.f32 %v8104, %v8105
        %v8107 = vrot.slane %v8106, 4
        %v8108 = vadd.f32 %v8106, %v8107
        %v8109 = vrot.slane %v8108, 2
        %v8110 = vadd.f32 %v8108, %v8109
        %v8111 = vrot.slane %v8110, 1
        %v8112 = vadd.f32 %v8110, %v8111
        %v8113 = vadd.f32 %v6427, %v6637
        %v8114 = vsel %vm1965, %v6847, 0.0
        %v8115 = vadd.f32 %v8113, %v8114
        %v8116 = vrot.slane %v8115, 4
        %v8117 = vadd.f32 %v8115, %v8116
        %v8118 = vrot.slane %v8117, 2
        %v8119 = vadd.f32 %v8117, %v8118
        %v8120 = vrot.slane %v8119, 1
        %v8121 = vadd.f32 %v8119, %v8120
        %v8122 = vadd.f32 %v6428, %v6638
        %v8123 = vsel %vm1965, %v6848, 0.0
        %v8124 = vadd.f32 %v8122, %v8123
        %v8125 = vrot.slane %v8124, 4
        %v8126 = vadd.f32 %v8124, %v8125
        %v8127 = vrot.slane %v8126, 2
        %v8128 = vadd.f32 %v8126, %v8127
        %v8129 = vrot.slane %v8128, 1
        %v8130 = vadd.f32 %v8128, %v8129
        %v8131 = vadd.f32 %v6429, %v6639
        %v8132 = vsel %vm1965, %v6849, 0.0
        %v8133 = vadd.f32 %v8131, %v8132
        %v8134 = vrot.slane %v8133, 4
        %v8135 = vadd.f32 %v8133, %v8134
        %v8136 = vrot.slane %v8135, 2
        %v8137 = vadd.f32 %v8135, %v8136
        %v8138 = vrot.slane %v8137, 1
        %v8139 = vadd.f32 %v8137, %v8138
        %v8140 = vadd.f32 %v6430, %v6640
        %v8141 = vsel %vm1965, %v6850, 0.0
        %v8142 = vadd.f32 %v8140, %v8141
        %v8143 = vrot.slane %v8142, 4
        %v8144 = vadd.f32 %v8142, %v8143
        %v8145 = vrot.slane %v8144, 2
        %v8146 = vadd.f32 %v8144, %v8145
        %v8147 = vrot.slane %v8146, 1
        %v8148 = vadd.f32 %v8146, %v8147
        %v8149 = vadd.f32 %v6431, %v6641
        %v8150 = vsel %vm1965, %v6851, 0.0
        %v8151 = vadd.f32 %v8149, %v8150
        %v8152 = vrot.slane %v8151, 4
        %v8153 = vadd.f32 %v8151, %v8152
        %v8154 = vrot.slane %v8153, 2
        %v8155 = vadd.f32 %v8153, %v8154
        %v8156 = vrot.slane %v8155, 1
        %v8157 = vadd.f32 %v8155, %v8156
        %v8158 = vadd.f32 %v6432, %v6642
        %v8159 = vsel %vm1965, %v6852, 0.0
        %v8160 = vadd.f32 %v8158, %v8159
        %v8161 = vrot.slane %v8160, 4
        %v8162 = vadd.f32 %v8160, %v8161
        %v8163 = vrot.slane %v8162, 2
        %v8164 = vadd.f32 %v8162, %v8163
        %v8165 = vrot.slane %v8164, 1
        %v8166 = vadd.f32 %v8164, %v8165
        %v8167 = vadd.f32 %v6433, %v6643
        %v8168 = vsel %vm1965, %v6853, 0.0
        %v8169 = vadd.f32 %v8167, %v8168
        %v8170 = vrot.slane %v8169, 4
        %v8171 = vadd.f32 %v8169, %v8170
        %v8172 = vrot.slane %v8171, 2
        %v8173 = vadd.f32 %v8171, %v8172
        %v8174 = vrot.slane %v8173, 1
        %v8175 = vadd.f32 %v8173, %v8174
        %v8176 = vadd.f32 %v6434, %v6644
        %v8177 = vsel %vm1965, %v6854, 0.0
        %v8178 = vadd.f32 %v8176, %v8177
        %v8179 = vrot.slane %v8178, 4
        %v8180 = vadd.f32 %v8178, %v8179
        %v8181 = vrot.slane %v8180, 2
        %v8182 = vadd.f32 %v8180, %v8181
        %v8183 = vrot.slane %v8182, 1
        %v8184 = vadd.f32 %v8182, %v8183
        %v8185 = vadd.f32 %v6435, %v6645
        %v8186 = vsel %vm1965, %v6855, 0.0
        %v8187 = vadd.f32 %v8185, %v8186
        %v8188 = vrot.slane %v8187, 4
        %v8189 = vadd.f32 %v8187, %v8188
        %v8190 = vrot.slane %v8189, 2
        %v8191 = vadd.f32 %v8189, %v8190
        %v8192 = vrot.slane %v8191, 1
        %v8193 = vadd.f32 %v8191, %v8192
        %v8194 = vadd.f32 %v6436, %v6646
        %v8195 = vsel %vm1965, %v6856, 0.0
        %v8196 = vadd.f32 %v8194, %v8195
        %v8197 = vrot.slane %v8196, 4
        %v8198 = vadd.f32 %v8196, %v8197
        %v8199 = vrot.slane %v8198, 2
        %v8200 = vadd.f32 %v8198, %v8199
        %v8201 = vrot.slane %v8200, 1
        %v8202 = vadd.f32 %v8200, %v8201
        %v8203 = vadd.f32 %v6437, %v6647
        %v8204 = vsel %vm1965, %v6857, 0.0
        %v8205 = vadd.f32 %v8203, %v8204
        %v8206 = vrot.slane %v8205, 4
        %v8207 = vadd.f32 %v8205, %v8206
        %v8208 = vrot.slane %v8207, 2
        %v8209 = vadd.f32 %v8207, %v8208
        %v8210 = vrot.slane %v8209, 1
        %v8211 = vadd.f32 %v8209, %v8210
        %v8212 = vadd.f32 %v6438, %v6648
        %v8213 = vsel %vm1965, %v6858, 0.0
        %v8214 = vadd.f32 %v8212, %v8213
        %v8215 = vrot.slane %v8214, 4
        %v8216 = vadd.f32 %v8214, %v8215
        %v8217 = vrot.slane %v8216, 2
        %v8218 = vadd.f32 %v8216, %v8217
        %v8219 = vrot.slane %v8218, 1
        %v8220 = vadd.f32 %v8218, %v8219
        %v8221 = vadd.f32 %v6439, %v6649
        %v8222 = vsel %vm1965, %v6859, 0.0
        %v8223 = vadd.f32 %v8221, %v8222
        %v8224 = vrot.slane %v8223, 4
        %v8225 = vadd.f32 %v8223, %v8224
        %v8226 = vrot.slane %v8225, 2
        %v8227 = vadd.f32 %v8225, %v8226
        %v8228 = vrot.slane %v8227, 1
        %v8229 = vadd.f32 %v8227, %v8228
        %v8230 = vadd.f32 %v6440, %v6650
        %v8231 = vsel %vm1965, %v6860, 0.0
        %v8232 = vadd.f32 %v8230, %v8231
        %v8233 = vrot.slane %v8232, 4
        %v8234 = vadd.f32 %v8232, %v8233
        %v8235 = vrot.slane %v8234, 2
        %v8236 = vadd.f32 %v8234, %v8235
        %v8237 = vrot.slane %v8236, 1
        %v8238 = vadd.f32 %v8236, %v8237
        %v8239 = vadd.f32 %v6441, %v6651
        %v8240 = vsel %vm1965, %v6861, 0.0
        %v8241 = vadd.f32 %v8239, %v8240
        %v8242 = vrot.slane %v8241, 4
        %v8243 = vadd.f32 %v8241, %v8242
        %v8244 = vrot.slane %v8243, 2
        %v8245 = vadd.f32 %v8243, %v8244
        %v8246 = vrot.slane %v8245, 1
        %v8247 = vadd.f32 %v8245, %v8246
        %v8248 = vadd.f32 %v6442, %v6652
        %v8249 = vsel %vm1965, %v6862, 0.0
        %v8250 = vadd.f32 %v8248, %v8249
        %v8251 = vrot.slane %v8250, 4
        %v8252 = vadd.f32 %v8250, %v8251
        %v8253 = vrot.slane %v8252, 2
        %v8254 = vadd.f32 %v8252, %v8253
        %v8255 = vrot.slane %v8254, 1
        %v8256 = vadd.f32 %v8254, %v8255
        %v8257 = vadd.f32 %v6443, %v6653
        %v8258 = vsel %vm1965, %v6863, 0.0
        %v8259 = vadd.f32 %v8257, %v8258
        %v8260 = vrot.slane %v8259, 4
        %v8261 = vadd.f32 %v8259, %v8260
        %v8262 = vrot.slane %v8261, 2
        %v8263 = vadd.f32 %v8261, %v8262
        %v8264 = vrot.slane %v8263, 1
        %v8265 = vadd.f32 %v8263, %v8264
        %v8266 = vadd.f32 %v6444, %v6654
        %v8267 = vsel %vm1965, %v6864, 0.0
        %v8268 = vadd.f32 %v8266, %v8267
        %v8269 = vrot.slane %v8268, 4
        %v8270 = vadd.f32 %v8268, %v8269
        %v8271 = vrot.slane %v8270, 2
        %v8272 = vadd.f32 %v8270, %v8271
        %v8273 = vrot.slane %v8272, 1
        %v8274 = vadd.f32 %v8272, %v8273
        %v8275 = vadd.f32 %v6445, %v6655
        %v8276 = vsel %vm1965, %v6865, 0.0
        %v8277 = vadd.f32 %v8275, %v8276
        %v8278 = vrot.slane %v8277, 4
        %v8279 = vadd.f32 %v8277, %v8278
        %v8280 = vrot.slane %v8279, 2
        %v8281 = vadd.f32 %v8279, %v8280
        %v8282 = vrot.slane %v8281, 1
        %v8283 = vadd.f32 %v8281, %v8282
        %v8284 = vadd.f32 %v6446, %v6656
        %v8285 = vsel %vm1965, %v6866, 0.0
        %v8286 = vadd.f32 %v8284, %v8285
        %v8287 = vrot.slane %v8286, 4
        %v8288 = vadd.f32 %v8286, %v8287
        %v8289 = vrot.slane %v8288, 2
        %v8290 = vadd.f32 %v8288, %v8289
        %v8291 = vrot.slane %v8290, 1
        %v8292 = vadd.f32 %v8290, %v8291
        %v8293 = vadd.f32 %v6447, %v6657
        %v8294 = vsel %vm1965, %v6867, 0.0
        %v8295 = vadd.f32 %v8293, %v8294
        %v8296 = vrot.slane %v8295, 4
        %v8297 = vadd.f32 %v8295, %v8296
        %v8298 = vrot.slane %v8297, 2
        %v8299 = vadd.f32 %v8297, %v8298
        %v8300 = vrot.slane %v8299, 1
        %v8301 = vadd.f32 %v8299, %v8300
        %v8302 = vadd.f32 %v6448, %v6658
        %v8303 = vsel %vm1965, %v6868, 0.0
        %v8304 = vadd.f32 %v8302, %v8303
        %v8305 = vrot.slane %v8304, 4
        %v8306 = vadd.f32 %v8304, %v8305
        %v8307 = vrot.slane %v8306, 2
        %v8308 = vadd.f32 %v8306, %v8307
        %v8309 = vrot.slane %v8308, 1
        %v8310 = vadd.f32 %v8308, %v8309
        %v8311 = vadd.f32 %v6449, %v6659
        %v8312 = vsel %vm1965, %v6869, 0.0
        %v8313 = vadd.f32 %v8311, %v8312
        %v8314 = vrot.slane %v8313, 4
        %v8315 = vadd.f32 %v8313, %v8314
        %v8316 = vrot.slane %v8315, 2
        %v8317 = vadd.f32 %v8315, %v8316
        %v8318 = vrot.slane %v8317, 1
        %v8319 = vadd.f32 %v8317, %v8318
        %v8320 = vadd.f32 %v6450, %v6660
        %v8321 = vsel %vm1965, %v6870, 0.0
        %v8322 = vadd.f32 %v8320, %v8321
        %v8323 = vrot.slane %v8322, 4
        %v8324 = vadd.f32 %v8322, %v8323
        %v8325 = vrot.slane %v8324, 2
        %v8326 = vadd.f32 %v8324, %v8325
        %v8327 = vrot.slane %v8326, 1
        %v8328 = vadd.f32 %v8326, %v8327
        %v8329 = vadd.f32 %v6451, %v6661
        %v8330 = vsel %vm1965, %v6871, 0.0
        %v8331 = vadd.f32 %v8329, %v8330
        %v8332 = vrot.slane %v8331, 4
        %v8333 = vadd.f32 %v8331, %v8332
        %v8334 = vrot.slane %v8333, 2
        %v8335 = vadd.f32 %v8333, %v8334
        %v8336 = vrot.slane %v8335, 1
        %v8337 = vadd.f32 %v8335, %v8336
        %v8338 = vadd.f32 %v6452, %v6662
        %v8339 = vsel %vm1965, %v6872, 0.0
        %v8340 = vadd.f32 %v8338, %v8339
        %v8341 = vrot.slane %v8340, 4
        %v8342 = vadd.f32 %v8340, %v8341
        %v8343 = vrot.slane %v8342, 2
        %v8344 = vadd.f32 %v8342, %v8343
        %v8345 = vrot.slane %v8344, 1
        %v8346 = vadd.f32 %v8344, %v8345
        %v8347 = vadd.f32 %v6453, %v6663
        %v8348 = vsel %vm1965, %v6873, 0.0
        %v8349 = vadd.f32 %v8347, %v8348
        %v8350 = vrot.slane %v8349, 4
        %v8351 = vadd.f32 %v8349, %v8350
        %v8352 = vrot.slane %v8351, 2
        %v8353 = vadd.f32 %v8351, %v8352
        %v8354 = vrot.slane %v8353, 1
        %v8355 = vadd.f32 %v8353, %v8354
        %v8356 = vadd.f32 %v6454, %v6664
        %v8357 = vsel %vm1965, %v6874, 0.0
        %v8358 = vadd.f32 %v8356, %v8357
        %v8359 = vrot.slane %v8358, 4
        %v8360 = vadd.f32 %v8358, %v8359
        %v8361 = vrot.slane %v8360, 2
        %v8362 = vadd.f32 %v8360, %v8361
        %v8363 = vrot.slane %v8362, 1
        %v8364 = vadd.f32 %v8362, %v8363
        %v8365 = vadd.f32 %v6455, %v6665
        %v8366 = vsel %vm1965, %v6875, 0.0
        %v8367 = vadd.f32 %v8365, %v8366
        %v8368 = vrot.slane %v8367, 4
        %v8369 = vadd.f32 %v8367, %v8368
        %v8370 = vrot.slane %v8369, 2
        %v8371 = vadd.f32 %v8369, %v8370
        %v8372 = vrot.slane %v8371, 1
        %v8373 = vadd.f32 %v8371, %v8372
        %v8374 = vadd.f32 %v6456, %v6666
        %v8375 = vsel %vm1965, %v6876, 0.0
        %v8376 = vadd.f32 %v8374, %v8375
        %v8377 = vrot.slane %v8376, 4
        %v8378 = vadd.f32 %v8376, %v8377
        %v8379 = vrot.slane %v8378, 2
        %v8380 = vadd.f32 %v8378, %v8379
        %v8381 = vrot.slane %v8380, 1
        %v8382 = vadd.f32 %v8380, %v8381
        %v8383 = vadd.f32 %v6457, %v6667
        %v8384 = vsel %vm1965, %v6877, 0.0
        %v8385 = vadd.f32 %v8383, %v8384
        %v8386 = vrot.slane %v8385, 4
        %v8387 = vadd.f32 %v8385, %v8386
        %v8388 = vrot.slane %v8387, 2
        %v8389 = vadd.f32 %v8387, %v8388
        %v8390 = vrot.slane %v8389, 1
        %v8391 = vadd.f32 %v8389, %v8390
        %v8392 = vadd.f32 %v6458, %v6668
        %v8393 = vsel %vm1965, %v6878, 0.0
        %v8394 = vadd.f32 %v8392, %v8393
        %v8395 = vrot.slane %v8394, 4
        %v8396 = vadd.f32 %v8394, %v8395
        %v8397 = vrot.slane %v8396, 2
        %v8398 = vadd.f32 %v8396, %v8397
        %v8399 = vrot.slane %v8398, 1
        %v8400 = vadd.f32 %v8398, %v8399
        %v8401 = vadd.f32 %v6459, %v6669
        %v8402 = vsel %vm1965, %v6879, 0.0
        %v8403 = vadd.f32 %v8401, %v8402
        %v8404 = vrot.slane %v8403, 4
        %v8405 = vadd.f32 %v8403, %v8404
        %v8406 = vrot.slane %v8405, 2
        %v8407 = vadd.f32 %v8405, %v8406
        %v8408 = vrot.slane %v8407, 1
        %v8409 = vadd.f32 %v8407, %v8408
        %v8410 = vadd.f32 %v6460, %v6670
        %v8411 = vsel %vm1965, %v6880, 0.0
        %v8412 = vadd.f32 %v8410, %v8411
        %v8413 = vrot.slane %v8412, 4
        %v8414 = vadd.f32 %v8412, %v8413
        %v8415 = vrot.slane %v8414, 2
        %v8416 = vadd.f32 %v8414, %v8415
        %v8417 = vrot.slane %v8416, 1
        %v8418 = vadd.f32 %v8416, %v8417
        %v8419 = vadd.f32 %v6461, %v6671
        %v8420 = vsel %vm1965, %v6881, 0.0
        %v8421 = vadd.f32 %v8419, %v8420
        %v8422 = vrot.slane %v8421, 4
        %v8423 = vadd.f32 %v8421, %v8422
        %v8424 = vrot.slane %v8423, 2
        %v8425 = vadd.f32 %v8423, %v8424
        %v8426 = vrot.slane %v8425, 1
        %v8427 = vadd.f32 %v8425, %v8426
        %v8428 = vadd.f32 %v6462, %v6672
        %v8429 = vsel %vm1965, %v6882, 0.0
        %v8430 = vadd.f32 %v8428, %v8429
        %v8431 = vrot.slane %v8430, 4
        %v8432 = vadd.f32 %v8430, %v8431
        %v8433 = vrot.slane %v8432, 2
        %v8434 = vadd.f32 %v8432, %v8433
        %v8435 = vrot.slane %v8434, 1
        %v8436 = vadd.f32 %v8434, %v8435
        %v8437 = vadd.f32 %v6463, %v6673
        %v8438 = vsel %vm1965, %v6883, 0.0
        %v8439 = vadd.f32 %v8437, %v8438
        %v8440 = vrot.slane %v8439, 4
        %v8441 = vadd.f32 %v8439, %v8440
        %v8442 = vrot.slane %v8441, 2
        %v8443 = vadd.f32 %v8441, %v8442
        %v8444 = vrot.slane %v8443, 1
        %v8445 = vadd.f32 %v8443, %v8444
        %v8446 = vadd.f32 %v6464, %v6674
        %v8447 = vsel %vm1965, %v6884, 0.0
        %v8448 = vadd.f32 %v8446, %v8447
        %v8449 = vrot.slane %v8448, 4
        %v8450 = vadd.f32 %v8448, %v8449
        %v8451 = vrot.slane %v8450, 2
        %v8452 = vadd.f32 %v8450, %v8451
        %v8453 = vrot.slane %v8452, 1
        %v8454 = vadd.f32 %v8452, %v8453
        %v8455 = vadd.f32 %v6465, %v6675
        %v8456 = vsel %vm1965, %v6885, 0.0
        %v8457 = vadd.f32 %v8455, %v8456
        %v8458 = vrot.slane %v8457, 4
        %v8459 = vadd.f32 %v8457, %v8458
        %v8460 = vrot.slane %v8459, 2
        %v8461 = vadd.f32 %v8459, %v8460
        %v8462 = vrot.slane %v8461, 1
        %v8463 = vadd.f32 %v8461, %v8462
        %v8464 = vadd.f32 %v6466, %v6676
        %v8465 = vsel %vm1965, %v6886, 0.0
        %v8466 = vadd.f32 %v8464, %v8465
        %v8467 = vrot.slane %v8466, 4
        %v8468 = vadd.f32 %v8466, %v8467
        %v8469 = vrot.slane %v8468, 2
        %v8470 = vadd.f32 %v8468, %v8469
        %v8471 = vrot.slane %v8470, 1
        %v8472 = vadd.f32 %v8470, %v8471
        %v8473 = vadd.f32 %v6467, %v6677
        %v8474 = vsel %vm1965, %v6887, 0.0
        %v8475 = vadd.f32 %v8473, %v8474
        %v8476 = vrot.slane %v8475, 4
        %v8477 = vadd.f32 %v8475, %v8476
        %v8478 = vrot.slane %v8477, 2
        %v8479 = vadd.f32 %v8477, %v8478
        %v8480 = vrot.slane %v8479, 1
        %v8481 = vadd.f32 %v8479, %v8480
        %v8482 = vadd.f32 %v6468, %v6678
        %v8483 = vsel %vm1965, %v6888, 0.0
        %v8484 = vadd.f32 %v8482, %v8483
        %v8485 = vrot.slane %v8484, 4
        %v8486 = vadd.f32 %v8484, %v8485
        %v8487 = vrot.slane %v8486, 2
        %v8488 = vadd.f32 %v8486, %v8487
        %v8489 = vrot.slane %v8488, 1
        %v8490 = vadd.f32 %v8488, %v8489
        %v8491 = vadd.f32 %v6469, %v6679
        %v8492 = vsel %vm1965, %v6889, 0.0
        %v8493 = vadd.f32 %v8491, %v8492
        %v8494 = vrot.slane %v8493, 4
        %v8495 = vadd.f32 %v8493, %v8494
        %v8496 = vrot.slane %v8495, 2
        %v8497 = vadd.f32 %v8495, %v8496
        %v8498 = vrot.slane %v8497, 1
        %v8499 = vadd.f32 %v8497, %v8498
        %v8500 = vadd.f32 %v6470, %v6680
        %v8501 = vsel %vm1965, %v6890, 0.0
        %v8502 = vadd.f32 %v8500, %v8501
        %v8503 = vrot.slane %v8502, 4
        %v8504 = vadd.f32 %v8502, %v8503
        %v8505 = vrot.slane %v8504, 2
        %v8506 = vadd.f32 %v8504, %v8505
        %v8507 = vrot.slane %v8506, 1
        %v8508 = vadd.f32 %v8506, %v8507
        %v8509 = vadd.f32 %v6471, %v6681
        %v8510 = vsel %vm1965, %v6891, 0.0
        %v8511 = vadd.f32 %v8509, %v8510
        %v8512 = vrot.slane %v8511, 4
        %v8513 = vadd.f32 %v8511, %v8512
        %v8514 = vrot.slane %v8513, 2
        %v8515 = vadd.f32 %v8513, %v8514
        %v8516 = vrot.slane %v8515, 1
        %v8517 = vadd.f32 %v8515, %v8516
        %v8518 = vadd.f32 %v6472, %v6682
        %v8519 = vsel %vm1965, %v6892, 0.0
        %v8520 = vadd.f32 %v8518, %v8519
        %v8521 = vrot.slane %v8520, 4
        %v8522 = vadd.f32 %v8520, %v8521
        %v8523 = vrot.slane %v8522, 2
        %v8524 = vadd.f32 %v8522, %v8523
        %v8525 = vrot.slane %v8524, 1
        %v8526 = vadd.f32 %v8524, %v8525
        %v8527 = vadd.f32 %v6473, %v6683
        %v8528 = vsel %vm1965, %v6893, 0.0
        %v8529 = vadd.f32 %v8527, %v8528
        %v8530 = vrot.slane %v8529, 4
        %v8531 = vadd.f32 %v8529, %v8530
        %v8532 = vrot.slane %v8531, 2
        %v8533 = vadd.f32 %v8531, %v8532
        %v8534 = vrot.slane %v8533, 1
        %v8535 = vadd.f32 %v8533, %v8534
        %v8536 = vadd.f32 %v6474, %v6684
        %v8537 = vsel %vm1965, %v6894, 0.0
        %v8538 = vadd.f32 %v8536, %v8537
        %v8539 = vrot.slane %v8538, 4
        %v8540 = vadd.f32 %v8538, %v8539
        %v8541 = vrot.slane %v8540, 2
        %v8542 = vadd.f32 %v8540, %v8541
        %v8543 = vrot.slane %v8542, 1
        %v8544 = vadd.f32 %v8542, %v8543
        %v8545 = vadd.f32 %v6475, %v6685
        %v8546 = vsel %vm1965, %v6895, 0.0
        %v8547 = vadd.f32 %v8545, %v8546
        %v8548 = vrot.slane %v8547, 4
        %v8549 = vadd.f32 %v8547, %v8548
        %v8550 = vrot.slane %v8549, 2
        %v8551 = vadd.f32 %v8549, %v8550
        %v8552 = vrot.slane %v8551, 1
        %v8553 = vadd.f32 %v8551, %v8552
        %v8554 = vadd.f32 %v6476, %v6686
        %v8555 = vsel %vm1965, %v6896, 0.0
        %v8556 = vadd.f32 %v8554, %v8555
        %v8557 = vrot.slane %v8556, 4
        %v8558 = vadd.f32 %v8556, %v8557
        %v8559 = vrot.slane %v8558, 2
        %v8560 = vadd.f32 %v8558, %v8559
        %v8561 = vrot.slane %v8560, 1
        %v8562 = vadd.f32 %v8560, %v8561
        %v8563 = vadd.f32 %v6477, %v6687
        %v8564 = vsel %vm1965, %v6897, 0.0
        %v8565 = vadd.f32 %v8563, %v8564
        %v8566 = vrot.slane %v8565, 4
        %v8567 = vadd.f32 %v8565, %v8566
        %v8568 = vrot.slane %v8567, 2
        %v8569 = vadd.f32 %v8567, %v8568
        %v8570 = vrot.slane %v8569, 1
        %v8571 = vadd.f32 %v8569, %v8570
        %v8572 = vadd.f32 %v6478, %v6688
        %v8573 = vsel %vm1965, %v6898, 0.0
        %v8574 = vadd.f32 %v8572, %v8573
        %v8575 = vrot.slane %v8574, 4
        %v8576 = vadd.f32 %v8574, %v8575
        %v8577 = vrot.slane %v8576, 2
        %v8578 = vadd.f32 %v8576, %v8577
        %v8579 = vrot.slane %v8578, 1
        %v8580 = vadd.f32 %v8578, %v8579
        %v8581 = vadd.f32 %v6479, %v6689
        %v8582 = vsel %vm1965, %v6899, 0.0
        %v8583 = vadd.f32 %v8581, %v8582
        %v8584 = vrot.slane %v8583, 4
        %v8585 = vadd.f32 %v8583, %v8584
        %v8586 = vrot.slane %v8585, 2
        %v8587 = vadd.f32 %v8585, %v8586
        %v8588 = vrot.slane %v8587, 1
        %v8589 = vadd.f32 %v8587, %v8588
        %v8590 = vadd.f32 %v6480, %v6690
        %v8591 = vsel %vm1965, %v6900, 0.0
        %v8592 = vadd.f32 %v8590, %v8591
        %v8593 = vrot.slane %v8592, 4
        %v8594 = vadd.f32 %v8592, %v8593
        %v8595 = vrot.slane %v8594, 2
        %v8596 = vadd.f32 %v8594, %v8595
        %v8597 = vrot.slane %v8596, 1
        %v8598 = vadd.f32 %v8596, %v8597
        %v8599 = vadd.f32 %v6481, %v6691
        %v8600 = vsel %vm1965, %v6901, 0.0
        %v8601 = vadd.f32 %v8599, %v8600
        %v8602 = vrot.slane %v8601, 4
        %v8603 = vadd.f32 %v8601, %v8602
        %v8604 = vrot.slane %v8603, 2
        %v8605 = vadd.f32 %v8603, %v8604
        %v8606 = vrot.slane %v8605, 1
        %v8607 = vadd.f32 %v8605, %v8606
        %v8608 = vadd.f32 %v6482, %v6692
        %v8609 = vsel %vm1965, %v6902, 0.0
        %v8610 = vadd.f32 %v8608, %v8609
        %v8611 = vrot.slane %v8610, 4
        %v8612 = vadd.f32 %v8610, %v8611
        %v8613 = vrot.slane %v8612, 2
        %v8614 = vadd.f32 %v8612, %v8613
        %v8615 = vrot.slane %v8614, 1
        %v8616 = vadd.f32 %v8614, %v8615
        %v8617 = vadd.f32 %v6483, %v6693
        %v8618 = vsel %vm1965, %v6903, 0.0
        %v8619 = vadd.f32 %v8617, %v8618
        %v8620 = vrot.slane %v8619, 4
        %v8621 = vadd.f32 %v8619, %v8620
        %v8622 = vrot.slane %v8621, 2
        %v8623 = vadd.f32 %v8621, %v8622
        %v8624 = vrot.slane %v8623, 1
        %v8625 = vadd.f32 %v8623, %v8624
        %v8626 = vadd.f32 %v6484, %v6694
        %v8627 = vsel %vm1965, %v6904, 0.0
        %v8628 = vadd.f32 %v8626, %v8627
        %v8629 = vrot.slane %v8628, 4
        %v8630 = vadd.f32 %v8628, %v8629
        %v8631 = vrot.slane %v8630, 2
        %v8632 = vadd.f32 %v8630, %v8631
        %v8633 = vrot.slane %v8632, 1
        %v8634 = vadd.f32 %v8632, %v8633
        %v8635 = vadd.f32 %v6485, %v6695
        %v8636 = vsel %vm1965, %v6905, 0.0
        %v8637 = vadd.f32 %v8635, %v8636
        %v8638 = vrot.slane %v8637, 4
        %v8639 = vadd.f32 %v8637, %v8638
        %v8640 = vrot.slane %v8639, 2
        %v8641 = vadd.f32 %v8639, %v8640
        %v8642 = vrot.slane %v8641, 1
        %v8643 = vadd.f32 %v8641, %v8642
        %v8644 = vadd.f32 %v6486, %v6696
        %v8645 = vsel %vm1965, %v6906, 0.0
        %v8646 = vadd.f32 %v8644, %v8645
        %v8647 = vrot.slane %v8646, 4
        %v8648 = vadd.f32 %v8646, %v8647
        %v8649 = vrot.slane %v8648, 2
        %v8650 = vadd.f32 %v8648, %v8649
        %v8651 = vrot.slane %v8650, 1
        %v8652 = vadd.f32 %v8650, %v8651
        %v8653 = vadd.f32 %v6487, %v6697
        %v8654 = vsel %vm1965, %v6907, 0.0
        %v8655 = vadd.f32 %v8653, %v8654
        %v8656 = vrot.slane %v8655, 4
        %v8657 = vadd.f32 %v8655, %v8656
        %v8658 = vrot.slane %v8657, 2
        %v8659 = vadd.f32 %v8657, %v8658
        %v8660 = vrot.slane %v8659, 1
        %v8661 = vadd.f32 %v8659, %v8660
        %v8662 = vadd.f32 %v6488, %v6698
        %v8663 = vsel %vm1965, %v6908, 0.0
        %v8664 = vadd.f32 %v8662, %v8663
        %v8665 = vrot.slane %v8664, 4
        %v8666 = vadd.f32 %v8664, %v8665
        %v8667 = vrot.slane %v8666, 2
        %v8668 = vadd.f32 %v8666, %v8667
        %v8669 = vrot.slane %v8668, 1
        %v8670 = vadd.f32 %v8668, %v8669
        %v8671 = vadd.f32 %v6489, %v6699
        %v8672 = vsel %vm1965, %v6909, 0.0
        %v8673 = vadd.f32 %v8671, %v8672
        %v8674 = vrot.slane %v8673, 4
        %v8675 = vadd.f32 %v8673, %v8674
        %v8676 = vrot.slane %v8675, 2
        %v8677 = vadd.f32 %v8675, %v8676
        %v8678 = vrot.slane %v8677, 1
        %v8679 = vadd.f32 %v8677, %v8678
        %v8680 = vadd.f32 %v6490, %v6700
        %v8681 = vsel %vm1965, %v6910, 0.0
        %v8682 = vadd.f32 %v8680, %v8681
        %v8683 = vrot.slane %v8682, 4
        %v8684 = vadd.f32 %v8682, %v8683
        %v8685 = vrot.slane %v8684, 2
        %v8686 = vadd.f32 %v8684, %v8685
        %v8687 = vrot.slane %v8686, 1
        %v8688 = vadd.f32 %v8686, %v8687
        %v8689 = vadd.f32 %v6491, %v6701
        %v8690 = vsel %vm1965, %v6911, 0.0
        %v8691 = vadd.f32 %v8689, %v8690
        %v8692 = vrot.slane %v8691, 4
        %v8693 = vadd.f32 %v8691, %v8692
        %v8694 = vrot.slane %v8693, 2
        %v8695 = vadd.f32 %v8693, %v8694
        %v8696 = vrot.slane %v8695, 1
        %v8697 = vadd.f32 %v8695, %v8696
        %v8698 = vadd.f32 %v6492, %v6702
        %v8699 = vsel %vm1965, %v6912, 0.0
        %v8700 = vadd.f32 %v8698, %v8699
        %v8701 = vrot.slane %v8700, 4
        %v8702 = vadd.f32 %v8700, %v8701
        %v8703 = vrot.slane %v8702, 2
        %v8704 = vadd.f32 %v8702, %v8703
        %v8705 = vrot.slane %v8704, 1
        %v8706 = vadd.f32 %v8704, %v8705
        %v8707 = vadd.f32 %v6493, %v6703
        %v8708 = vsel %vm1965, %v6913, 0.0
        %v8709 = vadd.f32 %v8707, %v8708
        %v8710 = vrot.slane %v8709, 4
        %v8711 = vadd.f32 %v8709, %v8710
        %v8712 = vrot.slane %v8711, 2
        %v8713 = vadd.f32 %v8711, %v8712
        %v8714 = vrot.slane %v8713, 1
        %v8715 = vadd.f32 %v8713, %v8714
        %v8716 = vadd.f32 %v6494, %v6704
        %v8717 = vsel %vm1965, %v6914, 0.0
        %v8718 = vadd.f32 %v8716, %v8717
        %v8719 = vrot.slane %v8718, 4
        %v8720 = vadd.f32 %v8718, %v8719
        %v8721 = vrot.slane %v8720, 2
        %v8722 = vadd.f32 %v8720, %v8721
        %v8723 = vrot.slane %v8722, 1
        %v8724 = vadd.f32 %v8722, %v8723
        %v8725 = vadd.f32 %v6495, %v6705
        %v8726 = vsel %vm1965, %v6915, 0.0
        %v8727 = vadd.f32 %v8725, %v8726
        %v8728 = vrot.slane %v8727, 4
        %v8729 = vadd.f32 %v8727, %v8728
        %v8730 = vrot.slane %v8729, 2
        %v8731 = vadd.f32 %v8729, %v8730
        %v8732 = vrot.slane %v8731, 1
        %v8733 = vadd.f32 %v8731, %v8732
        %v8734 = vadd.f32 %v6496, %v6706
        %v8735 = vsel %vm1965, %v6916, 0.0
        %v8736 = vadd.f32 %v8734, %v8735
        %v8737 = vrot.slane %v8736, 4
        %v8738 = vadd.f32 %v8736, %v8737
        %v8739 = vrot.slane %v8738, 2
        %v8740 = vadd.f32 %v8738, %v8739
        %v8741 = vrot.slane %v8740, 1
        %v8742 = vadd.f32 %v8740, %v8741
        %v8743 = vadd.f32 %v6497, %v6707
        %v8744 = vsel %vm1965, %v6917, 0.0
        %v8745 = vadd.f32 %v8743, %v8744
        %v8746 = vrot.slane %v8745, 4
        %v8747 = vadd.f32 %v8745, %v8746
        %v8748 = vrot.slane %v8747, 2
        %v8749 = vadd.f32 %v8747, %v8748
        %v8750 = vrot.slane %v8749, 1
        %v8751 = vadd.f32 %v8749, %v8750
        %v8752 = vadd.f32 %v6498, %v6708
        %v8753 = vsel %vm1965, %v6918, 0.0
        %v8754 = vadd.f32 %v8752, %v8753
        %v8755 = vrot.slane %v8754, 4
        %v8756 = vadd.f32 %v8754, %v8755
        %v8757 = vrot.slane %v8756, 2
        %v8758 = vadd.f32 %v8756, %v8757
        %v8759 = vrot.slane %v8758, 1
        %v8760 = vadd.f32 %v8758, %v8759
        %v8761 = vadd.f32 %v6499, %v6709
        %v8762 = vsel %vm1965, %v6919, 0.0
        %v8763 = vadd.f32 %v8761, %v8762
        %v8764 = vrot.slane %v8763, 4
        %v8765 = vadd.f32 %v8763, %v8764
        %v8766 = vrot.slane %v8765, 2
        %v8767 = vadd.f32 %v8765, %v8766
        %v8768 = vrot.slane %v8767, 1
        %v8769 = vadd.f32 %v8767, %v8768
        %v8770 = vadd.f32 %v6500, %v6710
        %v8771 = vsel %vm1965, %v6920, 0.0
        %v8772 = vadd.f32 %v8770, %v8771
        %v8773 = vrot.slane %v8772, 4
        %v8774 = vadd.f32 %v8772, %v8773
        %v8775 = vrot.slane %v8774, 2
        %v8776 = vadd.f32 %v8774, %v8775
        %v8777 = vrot.slane %v8776, 1
        %v8778 = vadd.f32 %v8776, %v8777
        %v8779 = vadd.f32 %v6501, %v6711
        %v8780 = vsel %vm1965, %v6921, 0.0
        %v8781 = vadd.f32 %v8779, %v8780
        %v8782 = vrot.slane %v8781, 4
        %v8783 = vadd.f32 %v8781, %v8782
        %v8784 = vrot.slane %v8783, 2
        %v8785 = vadd.f32 %v8783, %v8784
        %v8786 = vrot.slane %v8785, 1
        %v8787 = vadd.f32 %v8785, %v8786
        %v8788 = vadd.f32 %v6502, %v6712
        %v8789 = vsel %vm1965, %v6922, 0.0
        %v8790 = vadd.f32 %v8788, %v8789
        %v8791 = vrot.slane %v8790, 4
        %v8792 = vadd.f32 %v8790, %v8791
        %v8793 = vrot.slane %v8792, 2
        %v8794 = vadd.f32 %v8792, %v8793
        %v8795 = vrot.slane %v8794, 1
        %v8796 = vadd.f32 %v8794, %v8795
        %v8797 = vadd.f32 %v6503, %v6713
        %v8798 = vsel %vm1965, %v6923, 0.0
        %v8799 = vadd.f32 %v8797, %v8798
        %v8800 = vrot.slane %v8799, 4
        %v8801 = vadd.f32 %v8799, %v8800
        %v8802 = vrot.slane %v8801, 2
        %v8803 = vadd.f32 %v8801, %v8802
        %v8804 = vrot.slane %v8803, 1
        %v8805 = vadd.f32 %v8803, %v8804
        %v8806 = vadd.f32 %v6504, %v6714
        %v8807 = vsel %vm1965, %v6924, 0.0
        %v8808 = vadd.f32 %v8806, %v8807
        %v8809 = vrot.slane %v8808, 4
        %v8810 = vadd.f32 %v8808, %v8809
        %v8811 = vrot.slane %v8810, 2
        %v8812 = vadd.f32 %v8810, %v8811
        %v8813 = vrot.slane %v8812, 1
        %v8814 = vadd.f32 %v8812, %v8813
        %v9025 = vcombine.low %v6933, %v6942
        %v9026 = vcombine.low %v6951, %v6960
        %v9027 = vcombine.low %v6969, %v6978
        %v9028 = vcombine.low %v6987, %v6996
        %v9030 = vunpack.c.l.s4 1966171168
        %v9031 = vunpack.c.0.s8 %v9030
        %v9032 = vlaneseq
        %v9033 = vshrl.u32 %v9032, 7
        %v9034 = vsub.s32 %v9031, %v9033
        %v9035 = vrot.slane %v9025, %v9034
        %v9037 = vunpack.c.l.s4 1966171168
        %v9038 = vunpack.c.0.s8 %v9037
        %v9039 = vlaneseq
        %v9040 = vshrl.u32 %v9039, 7
        %v9041 = vsub.s32 %v9038, %v9040
        %v9042 = vrot.slane %v9026, %v9041
        %v9044 = vunpack.c.l.s4 1966171168
        %v9045 = vunpack.c.0.s8 %v9044
        %v9046 = vlaneseq
        %v9047 = vshrl.u32 %v9046, 7
        %v9048 = vsub.s32 %v9045, %v9047
        %v9049 = vrot.slane %v9027, %v9048
        %v9051 = vunpack.c.l.s4 1966171168
        %v9052 = vunpack.c.0.s8 %v9051
        %v9053 = vlaneseq
        %v9054 = vshrl.u32 %v9053, 7
        %v9055 = vsub.s32 %v9052, %v9054
        %v9056 = vrot.slane %v9028, %v9055
        %v9057 = vcombine.low %v9035, %v9042
        %v9058 = vcombine.low %v9049, %v9056
        %v9060 = vunpack.c.l.s4 1966171168
        %v9061 = vunpack.c.0.s8 %v9060
        %v9062 = vlaneseq
        %v9063 = vshrl.u32 %v9062, 7
        %v9064 = vsub.s32 %v9061, %v9063
        %v9065 = vrot.slane %v9057, %v9064
        %v9067 = vunpack.c.l.s4 1966171168
        %v9068 = vunpack.c.0.s8 %v9067
        %v9069 = vlaneseq
        %v9070 = vshrl.u32 %v9069, 7
        %v9071 = vsub.s32 %v9068, %v9070
        %v9072 = vrot.slane %v9058, %v9071
        %v9073 = vcombine.low %v9065, %v9072
        %v9074 = vcombine.low %v7005, %v7014
        %v9075 = vcombine.low %v7023, %v7032
        %v9076 = vcombine.low %v7041, %v7050
        %v9077 = vcombine.low %v7059, %v7068
        %v9079 = vunpack.c.l.s4 1966171168
        %v9080 = vunpack.c.0.s8 %v9079
        %v9081 = vlaneseq
        %v9082 = vshrl.u32 %v9081, 7
        %v9083 = vsub.s32 %v9080, %v9082
        %v9084 = vrot.slane %v9074, %v9083
        %v9086 = vunpack.c.l.s4 1966171168
        %v9087 = vunpack.c.0.s8 %v9086
        %v9088 = vlaneseq
        %v9089 = vshrl.u32 %v9088, 7
        %v9090 = vsub.s32 %v9087, %v9089
        %v9091 = vrot.slane %v9075, %v9090
        %v9093 = vunpack.c.l.s4 1966171168
        %v9094 = vunpack.c.0.s8 %v9093
        %v9095 = vlaneseq
        %v9096 = vshrl.u32 %v9095, 7
        %v9097 = vsub.s32 %v9094, %v9096
        %v9098 = vrot.slane %v9076, %v9097
        %v9100 = vunpack.c.l.s4 1966171168
        %v9101 = vunpack.c.0.s8 %v9100
        %v9102 = vlaneseq
        %v9103 = vshrl.u32 %v9102, 7
        %v9104 = vsub.s32 %v9101, %v9103
        %v9105 = vrot.slane %v9077, %v9104
        %v9106 = vcombine.low %v9084, %v9091
        %v9107 = vcombine.low %v9098, %v9105
        %v9109 = vunpack.c.l.s4 1966171168
        %v9110 = vunpack.c.0.s8 %v9109
        %v9111 = vlaneseq
        %v9112 = vshrl.u32 %v9111, 7
        %v9113 = vsub.s32 %v9110, %v9112
        %v9114 = vrot.slane %v9106, %v9113
        %v9116 = vunpack.c.l.s4 1966171168
        %v9117 = vunpack.c.0.s8 %v9116
        %v9118 = vlaneseq
        %v9119 = vshrl.u32 %v9118, 7
        %v9120 = vsub.s32 %v9117, %v9119
        %v9121 = vrot.slane %v9107, %v9120
        %v9122 = vcombine.low %v9114, %v9121
        %v9123 = vcombine.low %v7077, %v7086
        %v9124 = vcombine.low %v7095, %v7104
        %v9125 = vcombine.low %v7113, %v7122
        %v9126 = vcombine.low %v7131, %v7140
        %v9128 = vunpack.c.l.s4 1966171168
        %v9129 = vunpack.c.0.s8 %v9128
        %v9130 = vlaneseq
        %v9131 = vshrl.u32 %v9130, 7
        %v9132 = vsub.s32 %v9129, %v9131
        %v9133 = vrot.slane %v9123, %v9132
        %v9135 = vunpack.c.l.s4 1966171168
        %v9136 = vunpack.c.0.s8 %v9135
        %v9137 = vlaneseq
        %v9138 = vshrl.u32 %v9137, 7
        %v9139 = vsub.s32 %v9136, %v9138
        %v9140 = vrot.slane %v9124, %v9139
        %v9142 = vunpack.c.l.s4 1966171168
        %v9143 = vunpack.c.0.s8 %v9142
        %v9144 = vlaneseq
        %v9145 = vshrl.u32 %v9144, 7
        %v9146 = vsub.s32 %v9143, %v9145
        %v9147 = vrot.slane %v9125, %v9146
        %v9149 = vunpack.c.l.s4 1966171168
        %v9150 = vunpack.c.0.s8 %v9149
        %v9151 = vlaneseq
        %v9152 = vshrl.u32 %v9151, 7
        %v9153 = vsub.s32 %v9150, %v9152
        %v9154 = vrot.slane %v9126, %v9153
        %v9155 = vcombine.low %v9133, %v9140
        %v9156 = vcombine.low %v9147, %v9154
        %v9158 = vunpack.c.l.s4 1966171168
        %v9159 = vunpack.c.0.s8 %v9158
        %v9160 = vlaneseq
        %v9161 = vshrl.u32 %v9160, 7
        %v9162 = vsub.s32 %v9159, %v9161
        %v9163 = vrot.slane %v9155, %v9162
        %v9165 = vunpack.c.l.s4 1966171168
        %v9166 = vunpack.c.0.s8 %v9165
        %v9167 = vlaneseq
        %v9168 = vshrl.u32 %v9167, 7
        %v9169 = vsub.s32 %v9166, %v9168
        %v9170 = vrot.slane %v9156, %v9169
        %v9171 = vcombine.low %v9163, %v9170
        %v9172 = vcombine.low %v7149, %v7158
        %v9173 = vcombine.low %v7167, %v7176
        %v9174 = vcombine.low %v7185, %v7194
        %v9175 = vcombine.low %v7203, %v7212
        %v9177 = vunpack.c.l.s4 1966171168
        %v9178 = vunpack.c.0.s8 %v9177
        %v9179 = vlaneseq
        %v9180 = vshrl.u32 %v9179, 7
        %v9181 = vsub.s32 %v9178, %v9180
        %v9182 = vrot.slane %v9172, %v9181
        %v9184 = vunpack.c.l.s4 1966171168
        %v9185 = vunpack.c.0.s8 %v9184
        %v9186 = vlaneseq
        %v9187 = vshrl.u32 %v9186, 7
        %v9188 = vsub.s32 %v9185, %v9187
        %v9189 = vrot.slane %v9173, %v9188
        %v9191 = vunpack.c.l.s4 1966171168
        %v9192 = vunpack.c.0.s8 %v9191
        %v9193 = vlaneseq
        %v9194 = vshrl.u32 %v9193, 7
        %v9195 = vsub.s32 %v9192, %v9194
        %v9196 = vrot.slane %v9174, %v9195
        %v9198 = vunpack.c.l.s4 1966171168
        %v9199 = vunpack.c.0.s8 %v9198
        %v9200 = vlaneseq
        %v9201 = vshrl.u32 %v9200, 7
        %v9202 = vsub.s32 %v9199, %v9201
        %v9203 = vrot.slane %v9175, %v9202
        %v9204 = vcombine.low %v9182, %v9189
        %v9205 = vcombine.low %v9196, %v9203
        %v9207 = vunpack.c.l.s4 1966171168
        %v9208 = vunpack.c.0.s8 %v9207
        %v9209 = vlaneseq
        %v9210 = vshrl.u32 %v9209, 7
        %v9211 = vsub.s32 %v9208, %v9210
        %v9212 = vrot.slane %v9204, %v9211
        %v9214 = vunpack.c.l.s4 1966171168
        %v9215 = vunpack.c.0.s8 %v9214
        %v9216 = vlaneseq
        %v9217 = vshrl.u32 %v9216, 7
        %v9218 = vsub.s32 %v9215, %v9217
        %v9219 = vrot.slane %v9205, %v9218
        %v9220 = vcombine.low %v9212, %v9219
        %v9221 = vcombine.low %v7221, %v7230
        %v9222 = vcombine.low %v7239, %v7248
        %v9223 = vcombine.low %v7257, %v7266
        %v9224 = vcombine.low %v7275, %v7284
        %v9226 = vunpack.c.l.s4 1966171168
        %v9227 = vunpack.c.0.s8 %v9226
        %v9228 = vlaneseq
        %v9229 = vshrl.u32 %v9228, 7
        %v9230 = vsub.s32 %v9227, %v9229
        %v9231 = vrot.slane %v9221, %v9230
        %v9233 = vunpack.c.l.s4 1966171168
        %v9234 = vunpack.c.0.s8 %v9233
        %v9235 = vlaneseq
        %v9236 = vshrl.u32 %v9235, 7
        %v9237 = vsub.s32 %v9234, %v9236
        %v9238 = vrot.slane %v9222, %v9237
        %v9240 = vunpack.c.l.s4 1966171168
        %v9241 = vunpack.c.0.s8 %v9240
        %v9242 = vlaneseq
        %v9243 = vshrl.u32 %v9242, 7
        %v9244 = vsub.s32 %v9241, %v9243
        %v9245 = vrot.slane %v9223, %v9244
        %v9247 = vunpack.c.l.s4 1966171168
        %v9248 = vunpack.c.0.s8 %v9247
        %v9249 = vlaneseq
        %v9250 = vshrl.u32 %v9249, 7
        %v9251 = vsub.s32 %v9248, %v9250
        %v9252 = vrot.slane %v9224, %v9251
        %v9253 = vcombine.low %v9231, %v9238
        %v9254 = vcombine.low %v9245, %v9252
        %v9256 = vunpack.c.l.s4 1966171168
        %v9257 = vunpack.c.0.s8 %v9256
        %v9258 = vlaneseq
        %v9259 = vshrl.u32 %v9258, 7
        %v9260 = vsub.s32 %v9257, %v9259
        %v9261 = vrot.slane %v9253, %v9260
        %v9263 = vunpack.c.l.s4 1966171168
        %v9264 = vunpack.c.0.s8 %v9263
        %v9265 = vlaneseq
        %v9266 = vshrl.u32 %v9265, 7
        %v9267 = vsub.s32 %v9264, %v9266
        %v9268 = vrot.slane %v9254, %v9267
        %v9269 = vcombine.low %v9261, %v9268
        %v9270 = vcombine.low %v7293, %v7302
        %v9271 = vcombine.low %v7311, %v7320
        %v9272 = vcombine.low %v7329, %v7338
        %v9273 = vcombine.low %v7347, %v7356
        %v9275 = vunpack.c.l.s4 1966171168
        %v9276 = vunpack.c.0.s8 %v9275
        %v9277 = vlaneseq
        %v9278 = vshrl.u32 %v9277, 7
        %v9279 = vsub.s32 %v9276, %v9278
        %v9280 = vrot.slane %v9270, %v9279
        %v9282 = vunpack.c.l.s4 1966171168
        %v9283 = vunpack.c.0.s8 %v9282
        %v9284 = vlaneseq
        %v9285 = vshrl.u32 %v9284, 7
        %v9286 = vsub.s32 %v9283, %v9285
        %v9287 = vrot.slane %v9271, %v9286
        %v9289 = vunpack.c.l.s4 1966171168
        %v9290 = vunpack.c.0.s8 %v9289
        %v9291 = vlaneseq
        %v9292 = vshrl.u32 %v9291, 7
        %v9293 = vsub.s32 %v9290, %v9292
        %v9294 = vrot.slane %v9272, %v9293
        %v9296 = vunpack.c.l.s4 1966171168
        %v9297 = vunpack.c.0.s8 %v9296
        %v9298 = vlaneseq
        %v9299 = vshrl.u32 %v9298, 7
        %v9300 = vsub.s32 %v9297, %v9299
        %v9301 = vrot.slane %v9273, %v9300
        %v9302 = vcombine.low %v9280, %v9287
        %v9303 = vcombine.low %v9294, %v9301
        %v9305 = vunpack.c.l.s4 1966171168
        %v9306 = vunpack.c.0.s8 %v9305
        %v9307 = vlaneseq
        %v9308 = vshrl.u32 %v9307, 7
        %v9309 = vsub.s32 %v9306, %v9308
        %v9310 = vrot.slane %v9302, %v9309
        %v9312 = vunpack.c.l.s4 1966171168
        %v9313 = vunpack.c.0.s8 %v9312
        %v9314 = vlaneseq
        %v9315 = vshrl.u32 %v9314, 7
        %v9316 = vsub.s32 %v9313, %v9315
        %v9317 = vrot.slane %v9303, %v9316
        %v9318 = vcombine.low %v9310, %v9317
        %v9319 = vcombine.low %v7365, %v7374
        %v9320 = vcombine.low %v7383, %v7392
        %v9321 = vcombine.low %v7401, %v7410
        %v9322 = vcombine.low %v7419, %v7428
        %v9324 = vunpack.c.l.s4 1966171168
        %v9325 = vunpack.c.0.s8 %v9324
        %v9326 = vlaneseq
        %v9327 = vshrl.u32 %v9326, 7
        %v9328 = vsub.s32 %v9325, %v9327
        %v9329 = vrot.slane %v9319, %v9328
        %v9331 = vunpack.c.l.s4 1966171168
        %v9332 = vunpack.c.0.s8 %v9331
        %v9333 = vlaneseq
        %v9334 = vshrl.u32 %v9333, 7
        %v9335 = vsub.s32 %v9332, %v9334
        %v9336 = vrot.slane %v9320, %v9335
        %v9338 = vunpack.c.l.s4 1966171168
        %v9339 = vunpack.c.0.s8 %v9338
        %v9340 = vlaneseq
        %v9341 = vshrl.u32 %v9340, 7
        %v9342 = vsub.s32 %v9339, %v9341
        %v9343 = vrot.slane %v9321, %v9342
        %v9345 = vunpack.c.l.s4 1966171168
        %v9346 = vunpack.c.0.s8 %v9345
        %v9347 = vlaneseq
        %v9348 = vshrl.u32 %v9347, 7
        %v9349 = vsub.s32 %v9346, %v9348
        %v9350 = vrot.slane %v9322, %v9349
        %v9351 = vcombine.low %v9329, %v9336
        %v9352 = vcombine.low %v9343, %v9350
        %v9354 = vunpack.c.l.s4 1966171168
        %v9355 = vunpack.c.0.s8 %v9354
        %v9356 = vlaneseq
        %v9357 = vshrl.u32 %v9356, 7
        %v9358 = vsub.s32 %v9355, %v9357
        %v9359 = vrot.slane %v9351, %v9358
        %v9361 = vunpack.c.l.s4 1966171168
        %v9362 = vunpack.c.0.s8 %v9361
        %v9363 = vlaneseq
        %v9364 = vshrl.u32 %v9363, 7
        %v9365 = vsub.s32 %v9362, %v9364
        %v9366 = vrot.slane %v9352, %v9365
        %v9367 = vcombine.low %v9359, %v9366
        %v9368 = vcombine.low %v7437, %v7446
        %v9369 = vcombine.low %v7455, %v7464
        %v9370 = vcombine.low %v7473, %v7482
        %v9371 = vcombine.low %v7491, %v7500
        %v9373 = vunpack.c.l.s4 1966171168
        %v9374 = vunpack.c.0.s8 %v9373
        %v9375 = vlaneseq
        %v9376 = vshrl.u32 %v9375, 7
        %v9377 = vsub.s32 %v9374, %v9376
        %v9378 = vrot.slane %v9368, %v9377
        %v9380 = vunpack.c.l.s4 1966171168
        %v9381 = vunpack.c.0.s8 %v9380
        %v9382 = vlaneseq
        %v9383 = vshrl.u32 %v9382, 7
        %v9384 = vsub.s32 %v9381, %v9383
        %v9385 = vrot.slane %v9369, %v9384
        %v9387 = vunpack.c.l.s4 1966171168
        %v9388 = vunpack.c.0.s8 %v9387
        %v9389 = vlaneseq
        %v9390 = vshrl.u32 %v9389, 7
        %v9391 = vsub.s32 %v9388, %v9390
        %v9392 = vrot.slane %v9370, %v9391
        %v9394 = vunpack.c.l.s4 1966171168
        %v9395 = vunpack.c.0.s8 %v9394
        %v9396 = vlaneseq
        %v9397 = vshrl.u32 %v9396, 7
        %v9398 = vsub.s32 %v9395, %v9397
        %v9399 = vrot.slane %v9371, %v9398
        %v9400 = vcombine.low %v9378, %v9385
        %v9401 = vcombine.low %v9392, %v9399
        %v9403 = vunpack.c.l.s4 1966171168
        %v9404 = vunpack.c.0.s8 %v9403
        %v9405 = vlaneseq
        %v9406 = vshrl.u32 %v9405, 7
        %v9407 = vsub.s32 %v9404, %v9406
        %v9408 = vrot.slane %v9400, %v9407
        %v9410 = vunpack.c.l.s4 1966171168
        %v9411 = vunpack.c.0.s8 %v9410
        %v9412 = vlaneseq
        %v9413 = vshrl.u32 %v9412, 7
        %v9414 = vsub.s32 %v9411, %v9413
        %v9415 = vrot.slane %v9401, %v9414
        %v9416 = vcombine.low %v9408, %v9415
        %v9417 = vcombine.low %v7509, %v7518
        %v9418 = vcombine.low %v7527, %v7536
        %v9419 = vcombine.low %v7545, %v7554
        %v9420 = vcombine.low %v7563, %v7572
        %v9422 = vunpack.c.l.s4 1966171168
        %v9423 = vunpack.c.0.s8 %v9422
        %v9424 = vlaneseq
        %v9425 = vshrl.u32 %v9424, 7
        %v9426 = vsub.s32 %v9423, %v9425
        %v9427 = vrot.slane %v9417, %v9426
        %v9429 = vunpack.c.l.s4 1966171168
        %v9430 = vunpack.c.0.s8 %v9429
        %v9431 = vlaneseq
        %v9432 = vshrl.u32 %v9431, 7
        %v9433 = vsub.s32 %v9430, %v9432
        %v9434 = vrot.slane %v9418, %v9433
        %v9436 = vunpack.c.l.s4 1966171168
        %v9437 = vunpack.c.0.s8 %v9436
        %v9438 = vlaneseq
        %v9439 = vshrl.u32 %v9438, 7
        %v9440 = vsub.s32 %v9437, %v9439
        %v9441 = vrot.slane %v9419, %v9440
        %v9443 = vunpack.c.l.s4 1966171168
        %v9444 = vunpack.c.0.s8 %v9443
        %v9445 = vlaneseq
        %v9446 = vshrl.u32 %v9445, 7
        %v9447 = vsub.s32 %v9444, %v9446
        %v9448 = vrot.slane %v9420, %v9447
        %v9449 = vcombine.low %v9427, %v9434
        %v9450 = vcombine.low %v9441, %v9448
        %v9452 = vunpack.c.l.s4 1966171168
        %v9453 = vunpack.c.0.s8 %v9452
        %v9454 = vlaneseq
        %v9455 = vshrl.u32 %v9454, 7
        %v9456 = vsub.s32 %v9453, %v9455
        %v9457 = vrot.slane %v9449, %v9456
        %v9459 = vunpack.c.l.s4 1966171168
        %v9460 = vunpack.c.0.s8 %v9459
        %v9461 = vlaneseq
        %v9462 = vshrl.u32 %v9461, 7
        %v9463 = vsub.s32 %v9460, %v9462
        %v9464 = vrot.slane %v9450, %v9463
        %v9465 = vcombine.low %v9457, %v9464
        %v9466 = vcombine.low %v7581, %v7590
        %v9467 = vcombine.low %v7599, %v7608
        %v9468 = vcombine.low %v7617, %v7626
        %v9469 = vcombine.low %v7635, %v7644
        %v9471 = vunpack.c.l.s4 1966171168
        %v9472 = vunpack.c.0.s8 %v9471
        %v9473 = vlaneseq
        %v9474 = vshrl.u32 %v9473, 7
        %v9475 = vsub.s32 %v9472, %v9474
        %v9476 = vrot.slane %v9466, %v9475
        %v9478 = vunpack.c.l.s4 1966171168
        %v9479 = vunpack.c.0.s8 %v9478
        %v9480 = vlaneseq
        %v9481 = vshrl.u32 %v9480, 7
        %v9482 = vsub.s32 %v9479, %v9481
        %v9483 = vrot.slane %v9467, %v9482
        %v9485 = vunpack.c.l.s4 1966171168
        %v9486 = vunpack.c.0.s8 %v9485
        %v9487 = vlaneseq
        %v9488 = vshrl.u32 %v9487, 7
        %v9489 = vsub.s32 %v9486, %v9488
        %v9490 = vrot.slane %v9468, %v9489
        %v9492 = vunpack.c.l.s4 1966171168
        %v9493 = vunpack.c.0.s8 %v9492
        %v9494 = vlaneseq
        %v9495 = vshrl.u32 %v9494, 7
        %v9496 = vsub.s32 %v9493, %v9495
        %v9497 = vrot.slane %v9469, %v9496
        %v9498 = vcombine.low %v9476, %v9483
        %v9499 = vcombine.low %v9490, %v9497
        %v9501 = vunpack.c.l.s4 1966171168
        %v9502 = vunpack.c.0.s8 %v9501
        %v9503 = vlaneseq
        %v9504 = vshrl.u32 %v9503, 7
        %v9505 = vsub.s32 %v9502, %v9504
        %v9506 = vrot.slane %v9498, %v9505
        %v9508 = vunpack.c.l.s4 1966171168
        %v9509 = vunpack.c.0.s8 %v9508
        %v9510 = vlaneseq
        %v9511 = vshrl.u32 %v9510, 7
        %v9512 = vsub.s32 %v9509, %v9511
        %v9513 = vrot.slane %v9499, %v9512
        %v9514 = vcombine.low %v9506, %v9513
        %v9515 = vcombine.low %v7653, %v7662
        %v9516 = vcombine.low %v7671, %v7680
        %v9517 = vcombine.low %v7689, %v7698
        %v9518 = vcombine.low %v7707, %v7716
        %v9520 = vunpack.c.l.s4 1966171168
        %v9521 = vunpack.c.0.s8 %v9520
        %v9522 = vlaneseq
        %v9523 = vshrl.u32 %v9522, 7
        %v9524 = vsub.s32 %v9521, %v9523
        %v9525 = vrot.slane %v9515, %v9524
        %v9527 = vunpack.c.l.s4 1966171168
        %v9528 = vunpack.c.0.s8 %v9527
        %v9529 = vlaneseq
        %v9530 = vshrl.u32 %v9529, 7
        %v9531 = vsub.s32 %v9528, %v9530
        %v9532 = vrot.slane %v9516, %v9531
        %v9534 = vunpack.c.l.s4 1966171168
        %v9535 = vunpack.c.0.s8 %v9534
        %v9536 = vlaneseq
        %v9537 = vshrl.u32 %v9536, 7
        %v9538 = vsub.s32 %v9535, %v9537
        %v9539 = vrot.slane %v9517, %v9538
        %v9541 = vunpack.c.l.s4 1966171168
        %v9542 = vunpack.c.0.s8 %v9541
        %v9543 = vlaneseq
        %v9544 = vshrl.u32 %v9543, 7
        %v9545 = vsub.s32 %v9542, %v9544
        %v9546 = vrot.slane %v9518, %v9545
        %v9547 = vcombine.low %v9525, %v9532
        %v9548 = vcombine.low %v9539, %v9546
        %v9550 = vunpack.c.l.s4 1966171168
        %v9551 = vunpack.c.0.s8 %v9550
        %v9552 = vlaneseq
        %v9553 = vshrl.u32 %v9552, 7
        %v9554 = vsub.s32 %v9551, %v9553
        %v9555 = vrot.slane %v9547, %v9554
        %v9557 = vunpack.c.l.s4 1966171168
        %v9558 = vunpack.c.0.s8 %v9557
        %v9559 = vlaneseq
        %v9560 = vshrl.u32 %v9559, 7
        %v9561 = vsub.s32 %v9558, %v9560
        %v9562 = vrot.slane %v9548, %v9561
        %v9563 = vcombine.low %v9555, %v9562
        %v9564 = vcombine.low %v7725, %v7734
        %v9565 = vcombine.low %v7743, %v7752
        %v9566 = vcombine.low %v7761, %v7770
        %v9567 = vcombine.low %v7779, %v7788
        %v9569 = vunpack.c.l.s4 1966171168
        %v9570 = vunpack.c.0.s8 %v9569
        %v9571 = vlaneseq
        %v9572 = vshrl.u32 %v9571, 7
        %v9573 = vsub.s32 %v9570, %v9572
        %v9574 = vrot.slane %v9564, %v9573
        %v9576 = vunpack.c.l.s4 1966171168
        %v9577 = vunpack.c.0.s8 %v9576
        %v9578 = vlaneseq
        %v9579 = vshrl.u32 %v9578, 7
        %v9580 = vsub.s32 %v9577, %v9579
        %v9581 = vrot.slane %v9565, %v9580
        %v9583 = vunpack.c.l.s4 1966171168
        %v9584 = vunpack.c.0.s8 %v9583
        %v9585 = vlaneseq
        %v9586 = vshrl.u32 %v9585, 7
        %v9587 = vsub.s32 %v9584, %v9586
        %v9588 = vrot.slane %v9566, %v9587
        %v9590 = vunpack.c.l.s4 1966171168
        %v9591 = vunpack.c.0.s8 %v9590
        %v9592 = vlaneseq
        %v9593 = vshrl.u32 %v9592, 7
        %v9594 = vsub.s32 %v9591, %v9593
        %v9595 = vrot.slane %v9567, %v9594
        %v9596 = vcombine.low %v9574, %v9581
        %v9597 = vcombine.low %v9588, %v9595
        %v9599 = vunpack.c.l.s4 1966171168
        %v9600 = vunpack.c.0.s8 %v9599
        %v9601 = vlaneseq
        %v9602 = vshrl.u32 %v9601, 7
        %v9603 = vsub.s32 %v9600, %v9602
        %v9604 = vrot.slane %v9596, %v9603
        %v9606 = vunpack.c.l.s4 1966171168
        %v9607 = vunpack.c.0.s8 %v9606
        %v9608 = vlaneseq
        %v9609 = vshrl.u32 %v9608, 7
        %v9610 = vsub.s32 %v9607, %v9609
        %v9611 = vrot.slane %v9597, %v9610
        %v9612 = vcombine.low %v9604, %v9611
        %v9613 = vcombine.low %v7797, %v7806
        %v9614 = vcombine.low %v7815, %v7824
        %v9615 = vcombine.low %v7833, %v7842
        %v9616 = vcombine.low %v7851, %v7860
        %v9618 = vunpack.c.l.s4 1966171168
        %v9619 = vunpack.c.0.s8 %v9618
        %v9620 = vlaneseq
        %v9621 = vshrl.u32 %v9620, 7
        %v9622 = vsub.s32 %v9619, %v9621
        %v9623 = vrot.slane %v9613, %v9622
        %v9625 = vunpack.c.l.s4 1966171168
        %v9626 = vunpack.c.0.s8 %v9625
        %v9627 = vlaneseq
        %v9628 = vshrl.u32 %v9627, 7
        %v9629 = vsub.s32 %v9626, %v9628
        %v9630 = vrot.slane %v9614, %v9629
        %v9632 = vunpack.c.l.s4 1966171168
        %v9633 = vunpack.c.0.s8 %v9632
        %v9634 = vlaneseq
        %v9635 = vshrl.u32 %v9634, 7
        %v9636 = vsub.s32 %v9633, %v9635
        %v9637 = vrot.slane %v9615, %v9636
        %v9639 = vunpack.c.l.s4 1966171168
        %v9640 = vunpack.c.0.s8 %v9639
        %v9641 = vlaneseq
        %v9642 = vshrl.u32 %v9641, 7
        %v9643 = vsub.s32 %v9640, %v9642
        %v9644 = vrot.slane %v9616, %v9643
        %v9645 = vcombine.low %v9623, %v9630
        %v9646 = vcombine.low %v9637, %v9644
        %v9648 = vunpack.c.l.s4 1966171168
        %v9649 = vunpack.c.0.s8 %v9648
        %v9650 = vlaneseq
        %v9651 = vshrl.u32 %v9650, 7
        %v9652 = vsub.s32 %v9649, %v9651
        %v9653 = vrot.slane %v9645, %v9652
        %v9655 = vunpack.c.l.s4 1966171168
        %v9656 = vunpack.c.0.s8 %v9655
        %v9657 = vlaneseq
        %v9658 = vshrl.u32 %v9657, 7
        %v9659 = vsub.s32 %v9656, %v9658
        %v9660 = vrot.slane %v9646, %v9659
        %v9661 = vcombine.low %v9653, %v9660
        %v9662 = vcombine.low %v7869, %v7878
        %v9663 = vcombine.low %v7887, %v7896
        %v9664 = vcombine.low %v7905, %v7914
        %v9665 = vcombine.low %v7923, %v7932
        %v9667 = vunpack.c.l.s4 1966171168
        %v9668 = vunpack.c.0.s8 %v9667
        %v9669 = vlaneseq
        %v9670 = vshrl.u32 %v9669, 7
        %v9671 = vsub.s32 %v9668, %v9670
        %v9672 = vrot.slane %v9662, %v9671
        %v9674 = vunpack.c.l.s4 1966171168
        %v9675 = vunpack.c.0.s8 %v9674
        %v9676 = vlaneseq
        %v9677 = vshrl.u32 %v9676, 7
        %v9678 = vsub.s32 %v9675, %v9677
        %v9679 = vrot.slane %v9663, %v9678
        %v9681 = vunpack.c.l.s4 1966171168
        %v9682 = vunpack.c.0.s8 %v9681
        %v9683 = vlaneseq
        %v9684 = vshrl.u32 %v9683, 7
        %v9685 = vsub.s32 %v9682, %v9684
        %v9686 = vrot.slane %v9664, %v9685
        %v9688 = vunpack.c.l.s4 1966171168
        %v9689 = vunpack.c.0.s8 %v9688
        %v9690 = vlaneseq
        %v9691 = vshrl.u32 %v9690, 7
        %v9692 = vsub.s32 %v9689, %v9691
        %v9693 = vrot.slane %v9665, %v9692
        %v9694 = vcombine.low %v9672, %v9679
        %v9695 = vcombine.low %v9686, %v9693
        %v9697 = vunpack.c.l.s4 1966171168
        %v9698 = vunpack.c.0.s8 %v9697
        %v9699 = vlaneseq
        %v9700 = vshrl.u32 %v9699, 7
        %v9701 = vsub.s32 %v9698, %v9700
        %v9702 = vrot.slane %v9694, %v9701
        %v9704 = vunpack.c.l.s4 1966171168
        %v9705 = vunpack.c.0.s8 %v9704
        %v9706 = vlaneseq
        %v9707 = vshrl.u32 %v9706, 7
        %v9708 = vsub.s32 %v9705, %v9707
        %v9709 = vrot.slane %v9695, %v9708
        %v9710 = vcombine.low %v9702, %v9709
        %v9711 = vcombine.low %v7941, %v7950
        %v9712 = vcombine.low %v7959, %v7968
        %v9713 = vcombine.low %v7977, %v7986
        %v9714 = vcombine.low %v7995, %v8004
        %v9716 = vunpack.c.l.s4 1966171168
        %v9717 = vunpack.c.0.s8 %v9716
        %v9718 = vlaneseq
        %v9719 = vshrl.u32 %v9718, 7
        %v9720 = vsub.s32 %v9717, %v9719
        %v9721 = vrot.slane %v9711, %v9720
        %v9723 = vunpack.c.l.s4 1966171168
        %v9724 = vunpack.c.0.s8 %v9723
        %v9725 = vlaneseq
        %v9726 = vshrl.u32 %v9725, 7
        %v9727 = vsub.s32 %v9724, %v9726
        %v9728 = vrot.slane %v9712, %v9727
        %v9730 = vunpack.c.l.s4 1966171168
        %v9731 = vunpack.c.0.s8 %v9730
        %v9732 = vlaneseq
        %v9733 = vshrl.u32 %v9732, 7
        %v9734 = vsub.s32 %v9731, %v9733
        %v9735 = vrot.slane %v9713, %v9734
        %v9737 = vunpack.c.l.s4 1966171168
        %v9738 = vunpack.c.0.s8 %v9737
        %v9739 = vlaneseq
        %v9740 = vshrl.u32 %v9739, 7
        %v9741 = vsub.s32 %v9738, %v9740
        %v9742 = vrot.slane %v9714, %v9741
        %v9743 = vcombine.low %v9721, %v9728
        %v9744 = vcombine.low %v9735, %v9742
        %v9746 = vunpack.c.l.s4 1966171168
        %v9747 = vunpack.c.0.s8 %v9746
        %v9748 = vlaneseq
        %v9749 = vshrl.u32 %v9748, 7
        %v9750 = vsub.s32 %v9747, %v9749
        %v9751 = vrot.slane %v9743, %v9750
        %v9753 = vunpack.c.l.s4 1966171168
        %v9754 = vunpack.c.0.s8 %v9753
        %v9755 = vlaneseq
        %v9756 = vshrl.u32 %v9755, 7
        %v9757 = vsub.s32 %v9754, %v9756
        %v9758 = vrot.slane %v9744, %v9757
        %v9759 = vcombine.low %v9751, %v9758
        %v9760 = vcombine.low %v8013, %v8022
        %v9761 = vcombine.low %v8031, %v8040
        %v9762 = vcombine.low %v8049, %v8058
        %v9763 = vcombine.low %v8067, %v8076
        %v9765 = vunpack.c.l.s4 1966171168
        %v9766 = vunpack.c.0.s8 %v9765
        %v9767 = vlaneseq
        %v9768 = vshrl.u32 %v9767, 7
        %v9769 = vsub.s32 %v9766, %v9768
        %v9770 = vrot.slane %v9760, %v9769
        %v9772 = vunpack.c.l.s4 1966171168
        %v9773 = vunpack.c.0.s8 %v9772
        %v9774 = vlaneseq
        %v9775 = vshrl.u32 %v9774, 7
        %v9776 = vsub.s32 %v9773, %v9775
        %v9777 = vrot.slane %v9761, %v9776
        %v9779 = vunpack.c.l.s4 1966171168
        %v9780 = vunpack.c.0.s8 %v9779
        %v9781 = vlaneseq
        %v9782 = vshrl.u32 %v9781, 7
        %v9783 = vsub.s32 %v9780, %v9782
        %v9784 = vrot.slane %v9762, %v9783
        %v9786 = vunpack.c.l.s4 1966171168
        %v9787 = vunpack.c.0.s8 %v9786
        %v9788 = vlaneseq
        %v9789 = vshrl.u32 %v9788, 7
        %v9790 = vsub.s32 %v9787, %v9789
        %v9791 = vrot.slane %v9763, %v9790
        %v9792 = vcombine.low %v9770, %v9777
        %v9793 = vcombine.low %v9784, %v9791
        %v9795 = vunpack.c.l.s4 1966171168
        %v9796 = vunpack.c.0.s8 %v9795
        %v9797 = vlaneseq
        %v9798 = vshrl.u32 %v9797, 7
        %v9799 = vsub.s32 %v9796, %v9798
        %v9800 = vrot.slane %v9792, %v9799
        %v9802 = vunpack.c.l.s4 1966171168
        %v9803 = vunpack.c.0.s8 %v9802
        %v9804 = vlaneseq
        %v9805 = vshrl.u32 %v9804, 7
        %v9806 = vsub.s32 %v9803, %v9805
        %v9807 = vrot.slane %v9793, %v9806
        %v9808 = vcombine.low %v9800, %v9807
        %v9809 = vcombine.low %v8085, %v8094
        %v9810 = vcombine.low %v8103, %v8112
        %v9811 = vcombine.low %v8121, %v8130
        %v9812 = vcombine.low %v8139, %v8148
        %v9814 = vunpack.c.l.s4 1966171168
        %v9815 = vunpack.c.0.s8 %v9814
        %v9816 = vlaneseq
        %v9817 = vshrl.u32 %v9816, 7
        %v9818 = vsub.s32 %v9815, %v9817
        %v9819 = vrot.slane %v9809, %v9818
        %v9821 = vunpack.c.l.s4 1966171168
        %v9822 = vunpack.c.0.s8 %v9821
        %v9823 = vlaneseq
        %v9824 = vshrl.u32 %v9823, 7
        %v9825 = vsub.s32 %v9822, %v9824
        %v9826 = vrot.slane %v9810, %v9825
        %v9828 = vunpack.c.l.s4 1966171168
        %v9829 = vunpack.c.0.s8 %v9828
        %v9830 = vlaneseq
        %v9831 = vshrl.u32 %v9830, 7
        %v9832 = vsub.s32 %v9829, %v9831
        %v9833 = vrot.slane %v9811, %v9832
        %v9835 = vunpack.c.l.s4 1966171168
        %v9836 = vunpack.c.0.s8 %v9835
        %v9837 = vlaneseq
        %v9838 = vshrl.u32 %v9837, 7
        %v9839 = vsub.s32 %v9836, %v9838
        %v9840 = vrot.slane %v9812, %v9839
        %v9841 = vcombine.low %v9819, %v9826
        %v9842 = vcombine.low %v9833, %v9840
        %v9844 = vunpack.c.l.s4 1966171168
        %v9845 = vunpack.c.0.s8 %v9844
        %v9846 = vlaneseq
        %v9847 = vshrl.u32 %v9846, 7
        %v9848 = vsub.s32 %v9845, %v9847
        %v9849 = vrot.slane %v9841, %v9848
        %v9851 = vunpack.c.l.s4 1966171168
        %v9852 = vunpack.c.0.s8 %v9851
        %v9853 = vlaneseq
        %v9854 = vshrl.u32 %v9853, 7
        %v9855 = vsub.s32 %v9852, %v9854
        %v9856 = vrot.slane %v9842, %v9855
        %v9857 = vcombine.low %v9849, %v9856
        %v9858 = vcombine.low %v8157, %v8166
        %v9859 = vcombine.low %v8175, %v8184
        %v9860 = vcombine.low %v8193, %v8202
        %v9861 = vcombine.low %v8211, %v8220
        %v9863 = vunpack.c.l.s4 1966171168
        %v9864 = vunpack.c.0.s8 %v9863
        %v9865 = vlaneseq
        %v9866 = vshrl.u32 %v9865, 7
        %v9867 = vsub.s32 %v9864, %v9866
        %v9868 = vrot.slane %v9858, %v9867
        %v9870 = vunpack.c.l.s4 1966171168
        %v9871 = vunpack.c.0.s8 %v9870
        %v9872 = vlaneseq
        %v9873 = vshrl.u32 %v9872, 7
        %v9874 = vsub.s32 %v9871, %v9873
        %v9875 = vrot.slane %v9859, %v9874
        %v9877 = vunpack.c.l.s4 1966171168
        %v9878 = vunpack.c.0.s8 %v9877
        %v9879 = vlaneseq
        %v9880 = vshrl.u32 %v9879, 7
        %v9881 = vsub.s32 %v9878, %v9880
        %v9882 = vrot.slane %v9860, %v9881
        %v9884 = vunpack.c.l.s4 1966171168
        %v9885 = vunpack.c.0.s8 %v9884
        %v9886 = vlaneseq
        %v9887 = vshrl.u32 %v9886, 7
        %v9888 = vsub.s32 %v9885, %v9887
        %v9889 = vrot.slane %v9861, %v9888
        %v9890 = vcombine.low %v9868, %v9875
        %v9891 = vcombine.low %v9882, %v9889
        %v9893 = vunpack.c.l.s4 1966171168
        %v9894 = vunpack.c.0.s8 %v9893
        %v9895 = vlaneseq
        %v9896 = vshrl.u32 %v9895, 7
        %v9897 = vsub.s32 %v9894, %v9896
        %v9898 = vrot.slane %v9890, %v9897
        %v9900 = vunpack.c.l.s4 1966171168
        %v9901 = vunpack.c.0.s8 %v9900
        %v9902 = vlaneseq
        %v9903 = vshrl.u32 %v9902, 7
        %v9904 = vsub.s32 %v9901, %v9903
        %v9905 = vrot.slane %v9891, %v9904
        %v9906 = vcombine.low %v9898, %v9905
        %v9907 = vcombine.low %v8229, %v8238
        %v9908 = vcombine.low %v8247, %v8256
        %v9909 = vcombine.low %v8265, %v8274
        %v9910 = vcombine.low %v8283, %v8292
        %v9912 = vunpack.c.l.s4 1966171168
        %v9913 = vunpack.c.0.s8 %v9912
        %v9914 = vlaneseq
        %v9915 = vshrl.u32 %v9914, 7
        %v9916 = vsub.s32 %v9913, %v9915
        %v9917 = vrot.slane %v9907, %v9916
        %v9919 = vunpack.c.l.s4 1966171168
        %v9920 = vunpack.c.0.s8 %v9919
        %v9921 = vlaneseq
        %v9922 = vshrl.u32 %v9921, 7
        %v9923 = vsub.s32 %v9920, %v9922
        %v9924 = vrot.slane %v9908, %v9923
        %v9926 = vunpack.c.l.s4 1966171168
        %v9927 = vunpack.c.0.s8 %v9926
        %v9928 = vlaneseq
        %v9929 = vshrl.u32 %v9928, 7
        %v9930 = vsub.s32 %v9927, %v9929
        %v9931 = vrot.slane %v9909, %v9930
        %v9933 = vunpack.c.l.s4 1966171168
        %v9934 = vunpack.c.0.s8 %v9933
        %v9935 = vlaneseq
        %v9936 = vshrl.u32 %v9935, 7
        %v9937 = vsub.s32 %v9934, %v9936
        %v9938 = vrot.slane %v9910, %v9937
        %v9939 = vcombine.low %v9917, %v9924
        %v9940 = vcombine.low %v9931, %v9938
        %v9942 = vunpack.c.l.s4 1966171168
        %v9943 = vunpack.c.0.s8 %v9942
        %v9944 = vlaneseq
        %v9945 = vshrl.u32 %v9944, 7
        %v9946 = vsub.s32 %v9943, %v9945
        %v9947 = vrot.slane %v9939, %v9946
        %v9949 = vunpack.c.l.s4 1966171168
        %v9950 = vunpack.c.0.s8 %v9949
        %v9951 = vlaneseq
        %v9952 = vshrl.u32 %v9951, 7
        %v9953 = vsub.s32 %v9950, %v9952
        %v9954 = vrot.slane %v9940, %v9953
        %v9955 = vcombine.low %v9947, %v9954
        %v9956 = vcombine.low %v8301, %v8310
        %v9957 = vcombine.low %v8319, %v8328
        %v9958 = vcombine.low %v8337, %v8346
        %v9959 = vcombine.low %v8355, %v8364
        %v9961 = vunpack.c.l.s4 1966171168
        %v9962 = vunpack.c.0.s8 %v9961
        %v9963 = vlaneseq
        %v9964 = vshrl.u32 %v9963, 7
        %v9965 = vsub.s32 %v9962, %v9964
        %v9966 = vrot.slane %v9956, %v9965
        %v9968 = vunpack.c.l.s4 1966171168
        %v9969 = vunpack.c.0.s8 %v9968
        %v9970 = vlaneseq
        %v9971 = vshrl.u32 %v9970, 7
        %v9972 = vsub.s32 %v9969, %v9971
        %v9973 = vrot.slane %v9957, %v9972
        %v9975 = vunpack.c.l.s4 1966171168
        %v9976 = vunpack.c.0.s8 %v9975
        %v9977 = vlaneseq
        %v9978 = vshrl.u32 %v9977, 7
        %v9979 = vsub.s32 %v9976, %v9978
        %v9980 = vrot.slane %v9958, %v9979
        %v9982 = vunpack.c.l.s4 1966171168
        %v9983 = vunpack.c.0.s8 %v9982
        %v9984 = vlaneseq
        %v9985 = vshrl.u32 %v9984, 7
        %v9986 = vsub.s32 %v9983, %v9985
        %v9987 = vrot.slane %v9959, %v9986
        %v9988 = vcombine.low %v9966, %v9973
        %v9989 = vcombine.low %v9980, %v9987
        %v9991 = vunpack.c.l.s4 1966171168
        %v9992 = vunpack.c.0.s8 %v9991
        %v9993 = vlaneseq
        %v9994 = vshrl.u32 %v9993, 7
        %v9995 = vsub.s32 %v9992, %v9994
        %v9996 = vrot.slane %v9988, %v9995
        %v9998 = vunpack.c.l.s4 1966171168
        %v9999 = vunpack.c.0.s8 %v9998
        %v10000 = vlaneseq
        %v10001 = vshrl.u32 %v10000, 7
        %v10002 = vsub.s32 %v9999, %v10001
        %v10003 = vrot.slane %v9989, %v10002
        %v10004 = vcombine.low %v9996, %v10003
        %v10005 = vcombine.low %v8373, %v8382
        %v10006 = vcombine.low %v8391, %v8400
        %v10007 = vcombine.low %v8409, %v8418
        %v10008 = vcombine.low %v8427, %v8436
        %v10010 = vunpack.c.l.s4 1966171168
        %v10011 = vunpack.c.0.s8 %v10010
        %v10012 = vlaneseq
        %v10013 = vshrl.u32 %v10012, 7
        %v10014 = vsub.s32 %v10011, %v10013
        %v10015 = vrot.slane %v10005, %v10014
        %v10017 = vunpack.c.l.s4 1966171168
        %v10018 = vunpack.c.0.s8 %v10017
        %v10019 = vlaneseq
        %v10020 = vshrl.u32 %v10019, 7
        %v10021 = vsub.s32 %v10018, %v10020
        %v10022 = vrot.slane %v10006, %v10021
        %v10024 = vunpack.c.l.s4 1966171168
        %v10025 = vunpack.c.0.s8 %v10024
        %v10026 = vlaneseq
        %v10027 = vshrl.u32 %v10026, 7
        %v10028 = vsub.s32 %v10025, %v10027
        %v10029 = vrot.slane %v10007, %v10028
        %v10031 = vunpack.c.l.s4 1966171168
        %v10032 = vunpack.c.0.s8 %v10031
        %v10033 = vlaneseq
        %v10034 = vshrl.u32 %v10033, 7
        %v10035 = vsub.s32 %v10032, %v10034
        %v10036 = vrot.slane %v10008, %v10035
        %v10037 = vcombine.low %v10015, %v10022
        %v10038 = vcombine.low %v10029, %v10036
        %v10040 = vunpack.c.l.s4 1966171168
        %v10041 = vunpack.c.0.s8 %v10040
        %v10042 = vlaneseq
        %v10043 = vshrl.u32 %v10042, 7
        %v10044 = vsub.s32 %v10041, %v10043
        %v10045 = vrot.slane %v10037, %v10044
        %v10047 = vunpack.c.l.s4 1966171168
        %v10048 = vunpack.c.0.s8 %v10047
        %v10049 = vlaneseq
        %v10050 = vshrl.u32 %v10049, 7
        %v10051 = vsub.s32 %v10048, %v10050
        %v10052 = vrot.slane %v10038, %v10051
        %v10053 = vcombine.low %v10045, %v10052
        %v10054 = vcombine.low %v8445, %v8454
        %v10055 = vcombine.low %v8463, %v8472
        %v10056 = vcombine.low %v8481, %v8490
        %v10057 = vcombine.low %v8499, %v8508
        %v10059 = vunpack.c.l.s4 1966171168
        %v10060 = vunpack.c.0.s8 %v10059
        %v10061 = vlaneseq
        %v10062 = vshrl.u32 %v10061, 7
        %v10063 = vsub.s32 %v10060, %v10062
        %v10064 = vrot.slane %v10054, %v10063
        %v10066 = vunpack.c.l.s4 1966171168
        %v10067 = vunpack.c.0.s8 %v10066
        %v10068 = vlaneseq
        %v10069 = vshrl.u32 %v10068, 7
        %v10070 = vsub.s32 %v10067, %v10069
        %v10071 = vrot.slane %v10055, %v10070
        %v10073 = vunpack.c.l.s4 1966171168
        %v10074 = vunpack.c.0.s8 %v10073
        %v10075 = vlaneseq
        %v10076 = vshrl.u32 %v10075, 7
        %v10077 = vsub.s32 %v10074, %v10076
        %v10078 = vrot.slane %v10056, %v10077
        %v10080 = vunpack.c.l.s4 1966171168
        %v10081 = vunpack.c.0.s8 %v10080
        %v10082 = vlaneseq
        %v10083 = vshrl.u32 %v10082, 7
        %v10084 = vsub.s32 %v10081, %v10083
        %v10085 = vrot.slane %v10057, %v10084
        %v10086 = vcombine.low %v10064, %v10071
        %v10087 = vcombine.low %v10078, %v10085
        %v10089 = vunpack.c.l.s4 1966171168
        %v10090 = vunpack.c.0.s8 %v10089
        %v10091 = vlaneseq
        %v10092 = vshrl.u32 %v10091, 7
        %v10093 = vsub.s32 %v10090, %v10092
        %v10094 = vrot.slane %v10086, %v10093
        %v10096 = vunpack.c.l.s4 1966171168
        %v10097 = vunpack.c.0.s8 %v10096
        %v10098 = vlaneseq
        %v10099 = vshrl.u32 %v10098, 7
        %v10100 = vsub.s32 %v10097, %v10099
        %v10101 = vrot.slane %v10087, %v10100
        %v10102 = vcombine.low %v10094, %v10101
        %v10103 = vcombine.low %v8517, %v8526
        %v10104 = vcombine.low %v8535, %v8544
        %v10105 = vcombine.low %v8553, %v8562
        %v10106 = vcombine.low %v8571, %v8580
        %v10108 = vunpack.c.l.s4 1966171168
        %v10109 = vunpack.c.0.s8 %v10108
        %v10110 = vlaneseq
        %v10111 = vshrl.u32 %v10110, 7
        %v10112 = vsub.s32 %v10109, %v10111
        %v10113 = vrot.slane %v10103, %v10112
        %v10115 = vunpack.c.l.s4 1966171168
        %v10116 = vunpack.c.0.s8 %v10115
        %v10117 = vlaneseq
        %v10118 = vshrl.u32 %v10117, 7
        %v10119 = vsub.s32 %v10116, %v10118
        %v10120 = vrot.slane %v10104, %v10119
        %v10122 = vunpack.c.l.s4 1966171168
        %v10123 = vunpack.c.0.s8 %v10122
        %v10124 = vlaneseq
        %v10125 = vshrl.u32 %v10124, 7
        %v10126 = vsub.s32 %v10123, %v10125
        %v10127 = vrot.slane %v10105, %v10126
        %v10129 = vunpack.c.l.s4 1966171168
        %v10130 = vunpack.c.0.s8 %v10129
        %v10131 = vlaneseq
        %v10132 = vshrl.u32 %v10131, 7
        %v10133 = vsub.s32 %v10130, %v10132
        %v10134 = vrot.slane %v10106, %v10133
        %v10135 = vcombine.low %v10113, %v10120
        %v10136 = vcombine.low %v10127, %v10134
        %v10138 = vunpack.c.l.s4 1966171168
        %v10139 = vunpack.c.0.s8 %v10138
        %v10140 = vlaneseq
        %v10141 = vshrl.u32 %v10140, 7
        %v10142 = vsub.s32 %v10139, %v10141
        %v10143 = vrot.slane %v10135, %v10142
        %v10145 = vunpack.c.l.s4 1966171168
        %v10146 = vunpack.c.0.s8 %v10145
        %v10147 = vlaneseq
        %v10148 = vshrl.u32 %v10147, 7
        %v10149 = vsub.s32 %v10146, %v10148
        %v10150 = vrot.slane %v10136, %v10149
        %v10151 = vcombine.low %v10143, %v10150
        %v10152 = vcombine.low %v8589, %v8598
        %v10153 = vcombine.low %v8607, %v8616
        %v10154 = vcombine.low %v8625, %v8634
        %v10155 = vcombine.low %v8643, %v8652
        %v10157 = vunpack.c.l.s4 1966171168
        %v10158 = vunpack.c.0.s8 %v10157
        %v10159 = vlaneseq
        %v10160 = vshrl.u32 %v10159, 7
        %v10161 = vsub.s32 %v10158, %v10160
        %v10162 = vrot.slane %v10152, %v10161
        %v10164 = vunpack.c.l.s4 1966171168
        %v10165 = vunpack.c.0.s8 %v10164
        %v10166 = vlaneseq
        %v10167 = vshrl.u32 %v10166, 7
        %v10168 = vsub.s32 %v10165, %v10167
        %v10169 = vrot.slane %v10153, %v10168
        %v10171 = vunpack.c.l.s4 1966171168
        %v10172 = vunpack.c.0.s8 %v10171
        %v10173 = vlaneseq
        %v10174 = vshrl.u32 %v10173, 7
        %v10175 = vsub.s32 %v10172, %v10174
        %v10176 = vrot.slane %v10154, %v10175
        %v10178 = vunpack.c.l.s4 1966171168
        %v10179 = vunpack.c.0.s8 %v10178
        %v10180 = vlaneseq
        %v10181 = vshrl.u32 %v10180, 7
        %v10182 = vsub.s32 %v10179, %v10181
        %v10183 = vrot.slane %v10155, %v10182
        %v10184 = vcombine.low %v10162, %v10169
        %v10185 = vcombine.low %v10176, %v10183
        %v10187 = vunpack.c.l.s4 1966171168
        %v10188 = vunpack.c.0.s8 %v10187
        %v10189 = vlaneseq
        %v10190 = vshrl.u32 %v10189, 7
        %v10191 = vsub.s32 %v10188, %v10190
        %v10192 = vrot.slane %v10184, %v10191
        %v10194 = vunpack.c.l.s4 1966171168
        %v10195 = vunpack.c.0.s8 %v10194
        %v10196 = vlaneseq
        %v10197 = vshrl.u32 %v10196, 7
        %v10198 = vsub.s32 %v10195, %v10197
        %v10199 = vrot.slane %v10185, %v10198
        %v10200 = vcombine.low %v10192, %v10199
        %v10201 = vcombine.low %v8661, %v8670
        %v10202 = vcombine.low %v8679, %v8688
        %v10203 = vcombine.low %v8697, %v8706
        %v10204 = vcombine.low %v8715, %v8724
        %v10206 = vunpack.c.l.s4 1966171168
        %v10207 = vunpack.c.0.s8 %v10206
        %v10208 = vlaneseq
        %v10209 = vshrl.u32 %v10208, 7
        %v10210 = vsub.s32 %v10207, %v10209
        %v10211 = vrot.slane %v10201, %v10210
        %v10213 = vunpack.c.l.s4 1966171168
        %v10214 = vunpack.c.0.s8 %v10213
        %v10215 = vlaneseq
        %v10216 = vshrl.u32 %v10215, 7
        %v10217 = vsub.s32 %v10214, %v10216
        %v10218 = vrot.slane %v10202, %v10217
        %v10220 = vunpack.c.l.s4 1966171168
        %v10221 = vunpack.c.0.s8 %v10220
        %v10222 = vlaneseq
        %v10223 = vshrl.u32 %v10222, 7
        %v10224 = vsub.s32 %v10221, %v10223
        %v10225 = vrot.slane %v10203, %v10224
        %v10227 = vunpack.c.l.s4 1966171168
        %v10228 = vunpack.c.0.s8 %v10227
        %v10229 = vlaneseq
        %v10230 = vshrl.u32 %v10229, 7
        %v10231 = vsub.s32 %v10228, %v10230
        %v10232 = vrot.slane %v10204, %v10231
        %v10233 = vcombine.low %v10211, %v10218
        %v10234 = vcombine.low %v10225, %v10232
        %v10236 = vunpack.c.l.s4 1966171168
        %v10237 = vunpack.c.0.s8 %v10236
        %v10238 = vlaneseq
        %v10239 = vshrl.u32 %v10238, 7
        %v10240 = vsub.s32 %v10237, %v10239
        %v10241 = vrot.slane %v10233, %v10240
        %v10243 = vunpack.c.l.s4 1966171168
        %v10244 = vunpack.c.0.s8 %v10243
        %v10245 = vlaneseq
        %v10246 = vshrl.u32 %v10245, 7
        %v10247 = vsub.s32 %v10244, %v10246
        %v10248 = vrot.slane %v10234, %v10247
        %v10249 = vcombine.low %v10241, %v10248
        %v10250 = vcombine.low %v8733, %v8742
        %v10251 = vcombine.low %v8751, %v8760
        %v10252 = vcombine.low %v8769, %v8778
        %v10253 = vcombine.low %v8787, %v8796
        %v10255 = vunpack.c.l.s4 1966171168
        %v10256 = vunpack.c.0.s8 %v10255
        %v10257 = vlaneseq
        %v10258 = vshrl.u32 %v10257, 7
        %v10259 = vsub.s32 %v10256, %v10258
        %v10260 = vrot.slane %v10250, %v10259
        %v10262 = vunpack.c.l.s4 1966171168
        %v10263 = vunpack.c.0.s8 %v10262
        %v10264 = vlaneseq
        %v10265 = vshrl.u32 %v10264, 7
        %v10266 = vsub.s32 %v10263, %v10265
        %v10267 = vrot.slane %v10251, %v10266
        %v10269 = vunpack.c.l.s4 1966171168
        %v10270 = vunpack.c.0.s8 %v10269
        %v10271 = vlaneseq
        %v10272 = vshrl.u32 %v10271, 7
        %v10273 = vsub.s32 %v10270, %v10272
        %v10274 = vrot.slane %v10252, %v10273
        %v10276 = vunpack.c.l.s4 1966171168
        %v10277 = vunpack.c.0.s8 %v10276
        %v10278 = vlaneseq
        %v10279 = vshrl.u32 %v10278, 7
        %v10280 = vsub.s32 %v10277, %v10279
        %v10281 = vrot.slane %v10253, %v10280
        %v10282 = vcombine.low %v10260, %v10267
        %v10283 = vcombine.low %v10274, %v10281
        %v10285 = vunpack.c.l.s4 1966171168
        %v10286 = vunpack.c.0.s8 %v10285
        %v10287 = vlaneseq
        %v10288 = vshrl.u32 %v10287, 7
        %v10289 = vsub.s32 %v10286, %v10288
        %v10290 = vrot.slane %v10282, %v10289
        %v10292 = vunpack.c.l.s4 1966171168
        %v10293 = vunpack.c.0.s8 %v10292
        %v10294 = vlaneseq
        %v10295 = vshrl.u32 %v10294, 7
        %v10296 = vsub.s32 %v10293, %v10295
        %v10297 = vrot.slane %v10283, %v10296
        %v10298 = vcombine.low %v10290, %v10297
        %v10299 = vcombine.low %v8805, %v8814
        %v10301 = vunpack.c.l.s4 1966171168
        %v10302 = vunpack.c.0.s8 %v10301
        %v10303 = vlaneseq
        %v10304 = vshrl.u32 %v10303, 7
        %v10305 = vsub.s32 %v10302, %v10304
        %v10306 = vrot.slane %v10299, %v10305
        %v10308 = vunpack.c.l.s4 1966171168
        %v10309 = vunpack.c.0.s8 %v10308
        %v10310 = vlaneseq
        %v10311 = vshrl.u32 %v10310, 7
        %v10312 = vsub.s32 %v10309, %v10311
        %v10313 = vrot.slane %v10306, %v10312
        %s10341 = scalar_lea.vmem %s255, 1 [#allocation7]
        %10342 = vst [vmem:[%s10341] ss:$2 sm:$0xff] %v9073
        %s10343 = scalar_lea.vmem %s255, 17 [#allocation7]
        %10344 = vst [vmem:[%s10343] ss:$2 sm:$0xff] %v9122
        %s10345 = scalar_lea.vmem %s255, 33 [#allocation7]
        %10346 = vst [vmem:[%s10345] ss:$2 sm:$0xff] %v9171
        %s10347 = scalar_lea.vmem %s255, 49 [#allocation7]
        %10348 = vst [vmem:[%s10347] ss:$2 sm:$0xff] %v9220
        %s10349 = scalar_lea.vmem %s255, 65 [#allocation7]
        %10350 = vst [vmem:[%s10349] ss:$2 sm:$0xff] %v9269
        %s10351 = scalar_lea.vmem %s255, 81 [#allocation7]
        %10352 = vst [vmem:[%s10351] ss:$2 sm:$0xff] %v9318
        %s10353 = scalar_lea.vmem %s255, 97 [#allocation7]
        %10354 = vst [vmem:[%s10353] ss:$2 sm:$0xff] %v9367
        %s10355 = scalar_lea.vmem %s255, 113 [#allocation7]
        %10356 = vst [vmem:[%s10355] ss:$2 sm:$0xff] %v9416
        %s10357 = scalar_lea.vmem %s255, 129 [#allocation7]
        %10358 = vst [vmem:[%s10357] ss:$2 sm:$0xff] %v9465
        %s10359 = scalar_lea.vmem %s255, 145 [#allocation7]
        %10360 = vst [vmem:[%s10359] ss:$2 sm:$0xff] %v9514
        %s10361 = scalar_lea.vmem %s255, 161 [#allocation7]
        %10362 = vst [vmem:[%s10361] ss:$2 sm:$0xff] %v9563
        %s10363 = scalar_lea.vmem %s255, 177 [#allocation7]
        %10364 = vst [vmem:[%s10363] ss:$2 sm:$0xff] %v9612
        %s10365 = scalar_lea.vmem %s255, 193 [#allocation7]
        %10366 = vst [vmem:[%s10365] ss:$2 sm:$0xff] %v9661
        %s10367 = scalar_lea.vmem %s255, 209 [#allocation7]
        %10368 = vst [vmem:[%s10367] ss:$2 sm:$0xff] %v9710
        %s10369 = scalar_lea.vmem %s255, 225 [#allocation7]
        %10370 = vst [vmem:[%s10369] ss:$2 sm:$0xff] %v9759
        %s10371 = scalar_lea.vmem %s255, 241 [#allocation7]
        %10372 = vst [vmem:[%s10371] ss:$2 sm:$0xff] %v9808
        %s10373 = scalar_lea.vmem %s255, 257 [#allocation7]
        %10374 = vst [vmem:[%s10373] ss:$2 sm:$0xff] %v9857
        %s10375 = scalar_lea.vmem %s255, 273 [#allocation7]
        %10376 = vst [vmem:[%s10375] ss:$2 sm:$0xff] %v9906
        %s10377 = scalar_lea.vmem %s255, 289 [#allocation7]
        %10378 = vst [vmem:[%s10377] ss:$2 sm:$0xff] %v9955
        %s10379 = scalar_lea.vmem %s255, 305 [#allocation7]
        %10380 = vst [vmem:[%s10379] ss:$2 sm:$0xff] %v10004
        %s10381 = scalar_lea.vmem %s255, 321 [#allocation7]
        %10382 = vst [vmem:[%s10381] ss:$2 sm:$0xff] %v10053
        %s10383 = scalar_lea.vmem %s255, 337 [#allocation7]
        %10384 = vst [vmem:[%s10383] ss:$2 sm:$0xff] %v10102
        %s10385 = scalar_lea.vmem %s255, 353 [#allocation7]
        %10386 = vst [vmem:[%s10385] ss:$2 sm:$0xff] %v10151
        %s10387 = scalar_lea.vmem %s255, 369 [#allocation7]
        %10388 = vst [vmem:[%s10387] ss:$2 sm:$0xff] %v10200
        %s10389 = scalar_lea.vmem %s255, 385 [#allocation7]
        %10390 = vst [vmem:[%s10389] ss:$2 sm:$0xff] %v10249
        %s10391 = scalar_lea.vmem %s255, 401 [#allocation7]
        %10392 = vst [vmem:[%s10391] ss:$2 sm:$0xff] %v10298
        %s10393 = scalar_lea.vmem %s255, 417 [#allocation7]
        %10394 = vst.msk [vmem:[%s10393] ss:$2 sm:$0x3] %vm5644, %v10313
        %s10395 = sand.u32 %s126, 1
        %s10396 = scalar_lea.sflag [#allocation4], %s10395
        %s10397 = sand.u32 %s126, 1
        %s10398 = smul.addr %s10397, 420
        %s10399 = scalar_lea.vmem [#allocation7], %s10398
        // Predicated region
        $region45: #{tpu_custom_call.1} parent=35 // pred_check
          %p10400 = pneg %p136
        $region46: #{tpu_custom_call.1} parent=35 // pred_check_branch
          %10402 = sbr.rel (%p10400) target = $region48
        $region47: #{tpu_custom_call.1} parent=35 // pred_region
          %s10403 = smul.u32 210, %s24
          %s10405 = ssub.s32 6720, 6720
          %10406 = vsyncadd %s10396, %s10405
          %s10407 = smul.addr %s10403, 32
          %s10408 = scalar_lea.hbm %s4, %s10407
          %s10410 = sshll.u32 %s10399, 4
          %s10411 = int_to_ptr.vmem [resolvable:$true] %s10410
          %10413 = dma.vmem_to_hbm [thread:$0]  %s10411, 6720, %s10408, %s10396
        $region48: #{tpu_custom_call.1} parent=35 // pred_fallthru
          _
      $region36: #{tpu_custom_call.1} parent=5 // pred_fallthru
        _
      %p10414 = scmp.le.s32.totalorder 2, %s19
      // Predicated region
      $region49: #{tpu_custom_call.1} parent=5 // pred_check
        %p10415 = pneg %p10414
      $region50: #{tpu_custom_call.1} parent=5 // pred_check_branch
        %10417 = sbr.rel (%p10415) target = $region52
      $region51: #{tpu_custom_call.1} parent=5 // pred_region
        %s10418 = ssub.s32 %s19, 2
        // Predicated region
        $region53: #{tpu_custom_call.1} parent=51 // pred_check
          %p10419 = pneg %p142
        $region54: #{tpu_custom_call.1} parent=51 // pred_check_branch
          %10421 = sbr.rel (%p10419) target = $region56
        $region55: #{tpu_custom_call.1} parent=51 // pred_region
          %s10422 = sand.u32 %s127, 1
          %s10423 = scalar_lea.sflag [#allocation4], %s10422
          %s10424 = sand.u32 %s127, 1
          %s10425 = smul.addr %s10424, 420
          %s10426 = scalar_lea.vmem [#allocation7], %s10425
          %10427 = dma.done %s10423, 6720
        $region56: #{tpu_custom_call.1} parent=51 // pred_fallthru
          _
      $region52: #{tpu_custom_call.1} parent=5 // pred_fallthru
        _
    $region6: #{tpu_custom_call.1} parent=1 // loop_footer
      %s23 = sadd.s32 1, %s19
    $region7: #{tpu_custom_call.1} parent=1 // loop_footer_branch
      %18 = sbr.rel target = $region3
    $region8: #{tpu_custom_call.1} parent=1 // loop_exit
      _
    %10428 = vsyncpa [#allocation3], 1
    %s10429 = scalar_lea.sflag [#allocation3], 1
    %10430 = vsyncpa %s10429, 1
    %10431 = vsyncpa [#allocation6], 1
    %s10432 = scalar_lea.sflag [#allocation6], 1
    %10433 = vsyncpa %s10432, 1
    %10434 = vsyncpa [#allocation4], 1
    %s10435 = scalar_lea.sflag [#allocation4], 1
    %10436 = vsyncpa %s10435, 1

</llo_original>
